<compile_context>
chip_gen: v6e
topology: v6e:2x2x1
jax: 0.10.0
libtpu: 0.0.40
codegen_flags: <defaults>
</compile_context>

<pallas_src>
import functools

import jax
import jax.numpy as jnp
from jax.experimental import pallas as pl
from jax.experimental.pallas import tpu as pltpu


# --------------------------------------------------------------------------
# Kernel 1: conv1 (im2col GEMM) + conv2 + conv3, each with folded BN + ReLU.
# Grid is (B,), one batch element per step; weights stay resident in VMEM.
# --------------------------------------------------------------------------
def conv_stack_kernel(xcol_ref, w1_ref, b1_ref, w2_ref, b2_ref, w3_ref, b3_ref,
                      o_ref, pad_ref, *, H1, W1, C):
    P1 = H1 * W1

    # ---- conv1 (7x7, stride 2, pad 3) as a single bf16 GEMM, fp32 accum ----
    a = jnp.dot(xcol_ref[0], w1_ref[...], preferred_element_type=jnp.float32)
    a = jnp.maximum(a + b1_ref[...], 0.0)                      # (P1, C) fp32

    # Zero the padded scratch once per grid step (borders stay zero; the
    # interior is overwritten before every use).  Unconditional so it is
    # correct under megacore "parallel" splitting of the batch axis.
    pad_ref[...] = jnp.zeros_like(pad_ref)

    def conv3x3(act, w_ref, b_ref):
        # write activation into the interior of the zero-padded scratch
        pad_ref[1:H1 + 1, 1:W1 + 1, :] = act.reshape(H1, W1, C)
        acc = jnp.zeros((P1, C), jnp.float32)
        for t in range(9):                                     # static unroll
            dy, dx = t // 3, t % 3
            win = pad_ref[dy:dy + H1, dx:dx + W1, :]           # (H1, W1, C)
            acc = acc + jnp.dot(
                win.reshape(P1, C).astype(jnp.bfloat16), w_ref[t],
                preferred_element_type=jnp.float32)
        return jnp.maximum(acc + b_ref[...], 0.0)

    a = conv3x3(a, w2_ref, b2_ref)                             # conv2+bn2+relu
    a = conv3x3(a, w3_ref, b3_ref)                             # conv3+bn3+relu

    # bf16 output halves HBM traffic into the proj GEMM.
    o_ref[0] = a.reshape(H1, W1, C).astype(o_ref.dtype)


# --------------------------------------------------------------------------
# Kernel 2: proj conv (kernel == stride) as a patchify GEMM + bias.
# --------------------------------------------------------------------------
def proj_kernel(p_ref, w_ref, b_ref, o_ref):
    acc = jnp.dot(p_ref[0], w_ref[...], preferred_element_type=jnp.float32)
    o_ref[0] = acc + b_ref[...]


# --------------------------------------------------------------------------
# Host wrapper
# --------------------------------------------------------------------------
@functools.partial(jax.jit, static_argnames=("patch_size",))
def patch_embed4_2_forward(x_nchw, params, *, patch_size=16):
    B, Cin, H, W = x_nchw.shape
    C = 64                                  # internal conv width (module spec)
    H1, W1 = H // 2, W // 2                 # after conv1 (stride 2)
    ps = patch_size // 2                    # proj kernel / stride
    Ho, Wo = H1 // ps, W1 // ps
    P1, P2 = H1 * W1, Ho * Wo
    E = params["wp"].shape[0]
    eps = 1e-5

    # ---- fold BN (inference) into conv weight + bias ----
    def fold(w, g, b, m, v):
        s = g / jnp.sqrt(v + eps)
        return w * s[:, None, None, None], b - m * s

    w1f, b1f = fold(params["w1"], params["g1"], params["b1"], params["m1"], params["v1"])
    w2f, b2f = fold(params["w2"], params["g2"], params["b2"], params["m2"], params["v2"])
    w3f, b3f = fold(params["w3"], params["g3"], params["b3"], params["m3"], params["v3"])

    # ---- reshape to GEMM form; matmul operands in bf16, biases as (1, C) ----
    w1m = jnp.transpose(w1f, (2, 3, 1, 0)).reshape(7 * 7 * Cin, C).astype(jnp.bfloat16)
    w2m = jnp.transpose(w2f, (2, 3, 1, 0)).reshape(9, C, C).astype(jnp.bfloat16)
    w3m = jnp.transpose(w3f, (2, 3, 1, 0)).reshape(9, C, C).astype(jnp.bfloat16)
    wpm = jnp.transpose(params["wp"], (2, 3, 1, 0)).reshape(ps * ps * C, E).astype(jnp.bfloat16)
    b1r, b2r, b3r = b1f.reshape(1, C), b2f.reshape(1, C), b3f.reshape(1, C)
    bpr = params["bp"].reshape(1, E).astype(jnp.float32)

    # ---- host-side im2col for the strided 7x7 conv (layout only, no FLOPs) ----
    x_nhwc = jnp.transpose(x_nchw, (0, 2, 3, 1))
    xp = jnp.pad(x_nhwc, ((0, 0), (3, 3), (3, 3), (0, 0)))
    cols = [xp[:, ky:ky + 2 * H1:2, kx:kx + 2 * W1:2, :]
            for ky in range(7) for kx in range(7)]
    xcol = jnp.concatenate(cols, axis=-1).reshape(B, P1, 7 * 7 * Cin)
    xcol = xcol.astype(jnp.bfloat16)

    cparams = pltpu.CompilerParams(dimension_semantics=("parallel",),
                                   vmem_limit_bytes=64 * 1024 * 1024)

    feat = pl.pallas_call(
        functools.partial(conv_stack_kernel, H1=H1, W1=W1, C=C),
        out_shape=jax.ShapeDtypeStruct((B, H1, W1, C), jnp.bfloat16),
        grid=(B,),
        in_specs=[
            pl.BlockSpec((1, P1, 7 * 7 * Cin), lambda b: (b, 0, 0)),
            pl.BlockSpec((7 * 7 * Cin, C), lambda b: (0, 0)),
            pl.BlockSpec((1, C), lambda b: (0, 0)),
            pl.BlockSpec((9, C, C), lambda b: (0, 0, 0)),
            pl.BlockSpec((1, C), lambda b: (0, 0)),
            pl.BlockSpec((9, C, C), lambda b: (0, 0, 0)),
            pl.BlockSpec((1, C), lambda b: (0, 0)),
        ],
        out_specs=pl.BlockSpec((1, H1, W1, C), lambda b: (b, 0, 0, 0)),
        scratch_shapes=[pltpu.VMEM((H1 + 2, W1 + 2, C), jnp.float32)],
        compiler_params=cparams,
    )(xcol, w1m, b1r, w2m, b2r, w3m, b3r)

    # ---- host-side non-overlapping patchify (pure layout) for the proj conv ----
    pat = feat.reshape(B, Ho, ps, Wo, ps, C).transpose(0, 1, 3, 2, 4, 5)
    pat = pat.reshape(B, P2, ps * ps * C)

    out = pl.pallas_call(
        proj_kernel,
        out_shape=jax.ShapeDtypeStruct((B, P2, E), jnp.float32),
        grid=(B,),
        in_specs=[
            pl.BlockSpec((1, P2, ps * ps * C), lambda b: (b, 0, 0)),
            pl.BlockSpec((ps * ps * C, E), lambda b: (0, 0)),
            pl.BlockSpec((1, E), lambda b: (0, 0)),
        ],
        out_specs=pl.BlockSpec((1, P2, E), lambda b: (b, 0, 0)),
        compiler_params=cparams,
    )(pat, wpm, bpr)

    # back to PyTorch NCHW layout: (B, E, Ho, Wo)
    return out.reshape(B, Ho, Wo, E).transpose(0, 3, 1, 2)


# --------------------------------------------------------------------------
# Pure-JAX fp32 reference mirroring the PyTorch forward (eval-mode BN).
# --------------------------------------------------------------------------
def reference_forward(x_nchw, params, *, patch_size=16, eps=1e-5):
    ps = patch_size // 2

    def conv(h, w, stride, pad):
        return jax.lax.conv_general_dilated(
            h, jnp.transpose(w, (2, 3, 1, 0)),
            window_strides=(stride, stride),
            padding=((pad, pad), (pad, pad)),
            dimension_numbers=("NHWC", "HWIO", "NHWC"))

    def bn(h, g, b, m, v):
        return (h - m) / jnp.sqrt(v + eps) * g + b

    h = jnp.transpose(x_nchw, (0, 2, 3, 1)).astype(jnp.float32)
    h = jax.nn.relu(bn(conv(h, params["w1"], 2, 3),
                       params["g1"], params["b1"], params["m1"], params["v1"]))
    h = jax.nn.relu(bn(conv(h, params["w2"], 1, 1),
                       params["g2"], params["b2"], params["m2"], params["v2"]))
    h = jax.nn.relu(bn(conv(h, params["w3"], 1, 1),
                       params["g3"], params["b3"], params["m3"], params["v3"]))
    h = conv(h, params["wp"], ps, 0) + params["bp"]
    return jnp.transpose(h, (0, 3, 1, 2))


def init_params(key, in_chans=3, embed_dim=128, patch_size=16):
    ps = patch_size // 2
    ks = jax.random.split(key, 8)

    def bn_params(k):
        k1, k2, k3, k4 = jax.random.split(k, 4)
        return (1.0 + 0.1 * jax.random.normal(k1, (64,), jnp.float32),   # gamma
                0.1 * jax.random.normal(k2, (64,), jnp.float32),         # beta
                0.1 * jax.random.normal(k3, (64,), jnp.float32),         # running mean
                0.5 + jax.random.uniform(k4, (64,), jnp.float32))        # running var > 0

    g1, b1, m1, v1 = bn_params(ks[1])
    g2, b2, m2, v2 = bn_params(ks[3])
    g3, b3, m3, v3 = bn_params(ks[5])
    return {
        "w1": 0.05 * jax.random.normal(ks[0], (64, in_chans, 7, 7), jnp.float32),
        "g1": g1, "b1": b1, "m1": m1, "v1": v1,
        "w2": 0.04 * jax.random.normal(ks[2], (64, 64, 3, 3), jnp.float32),
        "g2": g2, "b2": b2, "m2": m2, "v2": v2,
        "w3": 0.04 * jax.random.normal(ks[4], (64, 64, 3, 3), jnp.float32),
        "g3": g3, "b3": b3, "m3": m3, "v3": v3,
        "wp": 0.02 * jax.random.normal(ks[6], (embed_dim, 64, ps, ps), jnp.float32),
        "bp": 0.01 * jax.random.normal(ks[7], (embed_dim,), jnp.float32),
    }


if __name__ == "__main__":
    B, Cin, H, W = 2, 3, 32, 32          # small test config (img_size=32)
    patch_size, embed_dim = 16, 128      # embed_dim kept lane-dense (multiple of 128)

    key = jax.random.PRNGKey(0)
    kx, kp = jax.random.split(key)
    x = jax.random.normal(kx, (B, Cin, H, W), jnp.float32)
    params = init_params(kp, in_chans=Cin, embed_dim=embed_dim, patch_size=patch_size)

    out = patch_embed4_2_forward(x, params, patch_size=patch_size)
    out = jax.block_until_ready(out)

    ref = reference_forward(x, params, patch_size=patch_size)
    assert out.shape == (B, embed_dim, H // patch_size, W // patch_size), out.shape
    err = float(jnp.max(jnp.abs(out - ref)))
    # tolerance accounts for bf16 matmul operands / bf16 intermediate storage
    assert err < 7.5e-2, f"max abs err vs fp32 reference: {err}"

    print("KERNEL_OK")
</pallas_src>

<mosaic_0001>
module attributes {stable_mosaic.version = 11 : i64} {
  func.func @conv_stack_kernel(%arg0: i32, %arg1: memref<1x256x147xbf16, #tpu.memory_space<vmem>>, %arg2: memref<147x64xbf16, #tpu.memory_space<vmem>>, %arg3: memref<1x64xf32, #tpu.memory_space<vmem>>, %arg4: memref<9x64x64xbf16, #tpu.memory_space<vmem>>, %arg5: memref<1x64xf32, #tpu.memory_space<vmem>>, %arg6: memref<9x64x64xbf16, #tpu.memory_space<vmem>>, %arg7: memref<1x64xf32, #tpu.memory_space<vmem>>, %arg8: memref<1x16x16x64xbf16, #tpu.memory_space<vmem>>, %arg9: memref<18x18x64xf32, #tpu.memory_space<vmem>>) attributes {dimension_semantics = [#tpu.dimension_semantics<parallel>], iteration_bounds = array<i64: 2>, scalar_prefetch = 0 : i64, scratch_operands = 1 : i64, tpu.core_type = #tpu.core_type<tc>, window_params = [{transform_indices = @transform_0, window_bounds = array<i64: 1, 256, 147>}, {pipeline_mode = #tpu.pipeline_mode<synchronous>, transform_indices = @transform_1, window_bounds = array<i64: 147, 64>}, {pipeline_mode = #tpu.pipeline_mode<synchronous>, transform_indices = @transform_2, window_bounds = array<i64: 1, 64>}, {pipeline_mode = #tpu.pipeline_mode<synchronous>, transform_indices = @transform_3, window_bounds = array<i64: 9, 64, 64>}, {pipeline_mode = #tpu.pipeline_mode<synchronous>, transform_indices = @transform_4, window_bounds = array<i64: 1, 64>}, {pipeline_mode = #tpu.pipeline_mode<synchronous>, transform_indices = @transform_5, window_bounds = array<i64: 9, 64, 64>}, {pipeline_mode = #tpu.pipeline_mode<synchronous>, transform_indices = @transform_6, window_bounds = array<i64: 1, 64>}, {transform_indices = @transform_7, window_bounds = array<i64: 1, 16, 16, 64>}]} {
    %c0 = arith.constant 0 : index
    %c0_0 = arith.constant 0 : index
    %c0_1 = arith.constant 0 : index
    %0 = vector.load %arg1[%c0, %c0_0, %c0_1] : memref<1x256x147xbf16, #tpu.memory_space<vmem>>, vector<1x256x147xbf16>
    %1 = vector.shape_cast %0 : vector<1x256x147xbf16> to vector<256x147xbf16>
    %c0_2 = arith.constant 0 : index
    %c0_3 = arith.constant 0 : index
    %2 = vector.load %arg2[%c0_2, %c0_3] : memref<147x64xbf16, #tpu.memory_space<vmem>>, vector<147x64xbf16>
    %cst = arith.constant dense<0.000000e+00> : vector<256x64xf32>
    %3 = tpu.matmul %1, %2, %cst {dimension_numbers = #tpu.dot_dimension_numbers<[1], [0], [0], [1], [0, 0, 1, 1], [], []>} : vector<256x147xbf16>, vector<147x64xbf16>, vector<256x64xf32> -> vector<256x64xf32>
    %c0_4 = arith.constant 0 : index
    %c0_5 = arith.constant 0 : index
    %4 = vector.load %arg3[%c0_4, %c0_5] : memref<1x64xf32, #tpu.memory_space<vmem>>, vector<1x64xf32>
    %5 = vector.broadcast %4 : vector<1x64xf32> to vector<256x64xf32>
    %6 = arith.addf %3, %5 : vector<256x64xf32>
    %cst_6 = arith.constant 0.000000e+00 : f32
    %7 = vector.broadcast %cst_6 : f32 to vector<256x64xf32>
    %8 = arith.maximumf %6, %7 : vector<256x64xf32>
    %cst_7 = arith.constant 0.000000e+00 : f32
    %9 = vector.broadcast %cst_7 : f32 to vector<18x18x64xf32>
    %c0_8 = arith.constant 0 : index
    %c0_9 = arith.constant 0 : index
    %c0_10 = arith.constant 0 : index
    %10 = vector.load %arg9[%c0_8, %c0_9, %c0_10] : memref<18x18x64xf32, #tpu.memory_space<vmem>>, vector<18x18x64xf32>
    tpu.vector_store %arg9[%c0_8, %c0_9, %c0_10], %9 {strides = array<i32>} : memref<18x18x64xf32, #tpu.memory_space<vmem>>, vector<18x18x64xf32>,
    %11 = vector.shape_cast %8 : vector<256x64xf32> to vector<16x16x64xf32>
    %c1 = arith.constant 1 : index
    %c1_11 = arith.constant 1 : index
    %c0_12 = arith.constant 0 : index
    %12 = vector.load %arg9[%c1, %c1_11, %c0_12] : memref<18x18x64xf32, #tpu.memory_space<vmem>>, vector<16x16x64xf32>
    tpu.vector_store %arg9[%c1, %c1_11, %c0_12], %11 {strides = array<i32>} : memref<18x18x64xf32, #tpu.memory_space<vmem>>, vector<16x16x64xf32>,
    %cst_13 = arith.constant 0.000000e+00 : f32
    %13 = vector.broadcast %cst_13 : f32 to vector<256x64xf32>
    %c0_14 = arith.constant 0 : index
    %c0_15 = arith.constant 0 : index
    %c0_16 = arith.constant 0 : index
    %14 = vector.load %arg9[%c0_14, %c0_15, %c0_16] : memref<18x18x64xf32, #tpu.memory_space<vmem>>, vector<16x16x64xf32>
    %15 = vector.shape_cast %14 : vector<16x16x64xf32> to vector<256x64xf32>
    %16 = arith.truncf %15 : vector<256x64xf32> to vector<256x64xbf16>
    %c0_17 = arith.constant 0 : index
    %c0_18 = arith.constant 0 : index
    %c0_19 = arith.constant 0 : index
    %17 = vector.load %arg4[%c0_17, %c0_18, %c0_19] : memref<9x64x64xbf16, #tpu.memory_space<vmem>>, vector<1x64x64xbf16>
    %18 = vector.shape_cast %17 : vector<1x64x64xbf16> to vector<64x64xbf16>
    %cst_20 = arith.constant dense<0.000000e+00> : vector<256x64xf32>
    %19 = tpu.matmul %16, %18, %cst_20 {dimension_numbers = #tpu.dot_dimension_numbers<[1], [0], [0], [1], [0, 0, 1, 1], [], []>} : vector<256x64xbf16>, vector<64x64xbf16>, vector<256x64xf32> -> vector<256x64xf32>
    %20 = arith.addf %13, %19 : vector<256x64xf32>
    %c0_21 = arith.constant 0 : index
    %c1_22 = arith.constant 1 : index
    %c0_23 = arith.constant 0 : index
    %21 = vector.load %arg9[%c0_21, %c1_22, %c0_23] : memref<18x18x64xf32, #tpu.memory_space<vmem>>, vector<16x16x64xf32>
    %22 = vector.shape_cast %21 : vector<16x16x64xf32> to vector<256x64xf32>
    %23 = arith.truncf %22 : vector<256x64xf32> to vector<256x64xbf16>
    %c1_24 = arith.constant 1 : index
    %c0_25 = arith.constant 0 : index
    %c0_26 = arith.constant 0 : index
    %24 = vector.load %arg4[%c1_24, %c0_25, %c0_26] : memref<9x64x64xbf16, #tpu.memory_space<vmem>>, vector<1x64x64xbf16>
    %25 = vector.shape_cast %24 : vector<1x64x64xbf16> to vector<64x64xbf16>
    %cst_27 = arith.constant dense<0.000000e+00> : vector<256x64xf32>
    %26 = tpu.matmul %23, %25, %cst_27 {dimension_numbers = #tpu.dot_dimension_numbers<[1], [0], [0], [1], [0, 0, 1, 1], [], []>} : vector<256x64xbf16>, vector<64x64xbf16>, vector<256x64xf32> -> vector<256x64xf32>
    %27 = arith.addf %20, %26 : vector<256x64xf32>
    %c0_28 = arith.constant 0 : index
    %c2 = arith.constant 2 : index
    %c0_29 = arith.constant 0 : index
    %28 = vector.load %arg9[%c0_28, %c2, %c0_29] : memref<18x18x64xf32, #tpu.memory_space<vmem>>, vector<16x16x64xf32>
    %29 = vector.shape_cast %28 : vector<16x16x64xf32> to vector<256x64xf32>
    %30 = arith.truncf %29 : vector<256x64xf32> to vector<256x64xbf16>
    %c2_30 = arith.constant 2 : index
    %c0_31 = arith.constant 0 : index
    %c0_32 = arith.constant 0 : index
    %31 = vector.load %arg4[%c2_30, %c0_31, %c0_32] : memref<9x64x64xbf16, #tpu.memory_space<vmem>>, vector<1x64x64xbf16>
    %32 = vector.shape_cast %31 : vector<1x64x64xbf16> to vector<64x64xbf16>
    %cst_33 = arith.constant dense<0.000000e+00> : vector<256x64xf32>
    %33 = tpu.matmul %30, %32, %cst_33 {dimension_numbers = #tpu.dot_dimension_numbers<[1], [0], [0], [1], [0, 0, 1, 1], [], []>} : vector<256x64xbf16>, vector<64x64xbf16>, vector<256x64xf32> -> vector<256x64xf32>
    %34 = arith.addf %27, %33 : vector<256x64xf32>
    %c1_34 = arith.constant 1 : index
    %c0_35 = arith.constant 0 : index
    %c0_36 = arith.constant 0 : index
    %35 = vector.load %arg9[%c1_34, %c0_35, %c0_36] : memref<18x18x64xf32, #tpu.memory_space<vmem>>, vector<16x16x64xf32>
    %36 = vector.shape_cast %35 : vector<16x16x64xf32> to vector<256x64xf32>
    %37 = arith.truncf %36 : vector<256x64xf32> to vector<256x64xbf16>
    %c3 = arith.constant 3 : index
    %c0_37 = arith.constant 0 : index
    %c0_38 = arith.constant 0 : index
    %38 = vector.load %arg4[%c3, %c0_37, %c0_38] : memref<9x64x64xbf16, #tpu.memory_space<vmem>>, vector<1x64x64xbf16>
    %39 = vector.shape_cast %38 : vector<1x64x64xbf16> to vector<64x64xbf16>
    %cst_39 = arith.constant dense<0.000000e+00> : vector<256x64xf32>
    %40 = tpu.matmul %37, %39, %cst_39 {dimension_numbers = #tpu.dot_dimension_numbers<[1], [0], [0], [1], [0, 0, 1, 1], [], []>} : vector<256x64xbf16>, vector<64x64xbf16>, vector<256x64xf32> -> vector<256x64xf32>
    %41 = arith.addf %34, %40 : vector<256x64xf32>
    %c1_40 = arith.constant 1 : index
    %c1_41 = arith.constant 1 : index
    %c0_42 = arith.constant 0 : index
    %42 = vector.load %arg9[%c1_40, %c1_41, %c0_42] : memref<18x18x64xf32, #tpu.memory_space<vmem>>, vector<16x16x64xf32>
    %43 = vector.shape_cast %42 : vector<16x16x64xf32> to vector<256x64xf32>
    %44 = arith.truncf %43 : vector<256x64xf32> to vector<256x64xbf16>
    %c4 = arith.constant 4 : index
    %c0_43 = arith.constant 0 : index
    %c0_44 = arith.constant 0 : index
    %45 = vector.load %arg4[%c4, %c0_43, %c0_44] : memref<9x64x64xbf16, #tpu.memory_space<vmem>>, vector<1x64x64xbf16>
    %46 = vector.shape_cast %45 : vector<1x64x64xbf16> to vector<64x64xbf16>
    %cst_45 = arith.constant dense<0.000000e+00> : vector<256x64xf32>
    %47 = tpu.matmul %44, %46, %cst_45 {dimension_numbers = #tpu.dot_dimension_numbers<[1], [0], [0], [1], [0, 0, 1, 1], [], []>} : vector<256x64xbf16>, vector<64x64xbf16>, vector<256x64xf32> -> vector<256x64xf32>
    %48 = arith.addf %41, %47 : vector<256x64xf32>
    %c1_46 = arith.constant 1 : index
    %c2_47 = arith.constant 2 : index
    %c0_48 = arith.constant 0 : index
    %49 = vector.load %arg9[%c1_46, %c2_47, %c0_48] : memref<18x18x64xf32, #tpu.memory_space<vmem>>, vector<16x16x64xf32>
    %50 = vector.shape_cast %49 : vector<16x16x64xf32> to vector<256x64xf32>
    %51 = arith.truncf %50 : vector<256x64xf32> to vector<256x64xbf16>
    %c5 = arith.constant 5 : index
    %c0_49 = arith.constant 0 : index
    %c0_50 = arith.constant 0 : index
    %52 = vector.load %arg4[%c5, %c0_49, %c0_50] : memref<9x64x64xbf16, #tpu.memory_space<vmem>>, vector<1x64x64xbf16>
    %53 = vector.shape_cast %52 : vector<1x64x64xbf16> to vector<64x64xbf16>
    %cst_51 = arith.constant dense<0.000000e+00> : vector<256x64xf32>
    %54 = tpu.matmul %51, %53, %cst_51 {dimension_numbers = #tpu.dot_dimension_numbers<[1], [0], [0], [1], [0, 0, 1, 1], [], []>} : vector<256x64xbf16>, vector<64x64xbf16>, vector<256x64xf32> -> vector<256x64xf32>
    %55 = arith.addf %48, %54 : vector<256x64xf32>
    %c2_52 = arith.constant 2 : index
    %c0_53 = arith.constant 0 : index
    %c0_54 = arith.constant 0 : index
    %56 = vector.load %arg9[%c2_52, %c0_53, %c0_54] : memref<18x18x64xf32, #tpu.memory_space<vmem>>, vector<16x16x64xf32>
    %57 = vector.shape_cast %56 : vector<16x16x64xf32> to vector<256x64xf32>
    %58 = arith.truncf %57 : vector<256x64xf32> to vector<256x64xbf16>
    %c6 = arith.constant 6 : index
    %c0_55 = arith.constant 0 : index
    %c0_56 = arith.constant 0 : index
    %59 = vector.load %arg4[%c6, %c0_55, %c0_56] : memref<9x64x64xbf16, #tpu.memory_space<vmem>>, vector<1x64x64xbf16>
    %60 = vector.shape_cast %59 : vector<1x64x64xbf16> to vector<64x64xbf16>
    %cst_57 = arith.constant dense<0.000000e+00> : vector<256x64xf32>
    %61 = tpu.matmul %58, %60, %cst_57 {dimension_numbers = #tpu.dot_dimension_numbers<[1], [0], [0], [1], [0, 0, 1, 1], [], []>} : vector<256x64xbf16>, vector<64x64xbf16>, vector<256x64xf32> -> vector<256x64xf32>
    %62 = arith.addf %55, %61 : vector<256x64xf32>
    %c2_58 = arith.constant 2 : index
    %c1_59 = arith.constant 1 : index
    %c0_60 = arith.constant 0 : index
    %63 = vector.load %arg9[%c2_58, %c1_59, %c0_60] : memref<18x18x64xf32, #tpu.memory_space<vmem>>, vector<16x16x64xf32>
    %64 = vector.shape_cast %63 : vector<16x16x64xf32> to vector<256x64xf32>
    %65 = arith.truncf %64 : vector<256x64xf32> to vector<256x64xbf16>
    %c7 = arith.constant 7 : index
    %c0_61 = arith.constant 0 : index
    %c0_62 = arith.constant 0 : index
    %66 = vector.load %arg4[%c7, %c0_61, %c0_62] : memref<9x64x64xbf16, #tpu.memory_space<vmem>>, vector<1x64x64xbf16>
    %67 = vector.shape_cast %66 : vector<1x64x64xbf16> to vector<64x64xbf16>
    %cst_63 = arith.constant dense<0.000000e+00> : vector<256x64xf32>
    %68 = tpu.matmul %65, %67, %cst_63 {dimension_numbers = #tpu.dot_dimension_numbers<[1], [0], [0], [1], [0, 0, 1, 1], [], []>} : vector<256x64xbf16>, vector<64x64xbf16>, vector<256x64xf32> -> vector<256x64xf32>
    %69 = arith.addf %62, %68 : vector<256x64xf32>
    %c2_64 = arith.constant 2 : index
    %c2_65 = arith.constant 2 : index
    %c0_66 = arith.constant 0 : index
    %70 = vector.load %arg9[%c2_64, %c2_65, %c0_66] : memref<18x18x64xf32, #tpu.memory_space<vmem>>, vector<16x16x64xf32>
    %71 = vector.shape_cast %70 : vector<16x16x64xf32> to vector<256x64xf32>
    %72 = arith.truncf %71 : vector<256x64xf32> to vector<256x64xbf16>
    %c8 = arith.constant 8 : index
    %c0_67 = arith.constant 0 : index
    %c0_68 = arith.constant 0 : index
    %73 = vector.load %arg4[%c8, %c0_67, %c0_68] : memref<9x64x64xbf16, #tpu.memory_space<vmem>>, vector<1x64x64xbf16>
    %74 = vector.shape_cast %73 : vector<1x64x64xbf16> to vector<64x64xbf16>
    %cst_69 = arith.constant dense<0.000000e+00> : vector<256x64xf32>
    %75 = tpu.matmul %72, %74, %cst_69 {dimension_numbers = #tpu.dot_dimension_numbers<[1], [0], [0], [1], [0, 0, 1, 1], [], []>} : vector<256x64xbf16>, vector<64x64xbf16>, vector<256x64xf32> -> vector<256x64xf32>
    %76 = arith.addf %69, %75 : vector<256x64xf32>
    %c0_70 = arith.constant 0 : index
    %c0_71 = arith.constant 0 : index
    %77 = vector.load %arg5[%c0_70, %c0_71] : memref<1x64xf32, #tpu.memory_space<vmem>>, vector<1x64xf32>
    %78 = vector.broadcast %77 : vector<1x64xf32> to vector<256x64xf32>
    %79 = arith.addf %76, %78 : vector<256x64xf32>
    %cst_72 = arith.constant 0.000000e+00 : f32
    %80 = vector.broadcast %cst_72 : f32 to vector<256x64xf32>
    %81 = arith.maximumf %79, %80 : vector<256x64xf32>
    %82 = vector.shape_cast %81 : vector<256x64xf32> to vector<16x16x64xf32>
    %c1_73 = arith.constant 1 : index
    %c1_74 = arith.constant 1 : index
    %c0_75 = arith.constant 0 : index
    %83 = vector.load %arg9[%c1_73, %c1_74, %c0_75] : memref<18x18x64xf32, #tpu.memory_space<vmem>>, vector<16x16x64xf32>
    tpu.vector_store %arg9[%c1_73, %c1_74, %c0_75], %82 {strides = array<i32>} : memref<18x18x64xf32, #tpu.memory_space<vmem>>, vector<16x16x64xf32>,
    %cst_76 = arith.constant 0.000000e+00 : f32
    %84 = vector.broadcast %cst_76 : f32 to vector<256x64xf32>
    %c0_77 = arith.constant 0 : index
    %c0_78 = arith.constant 0 : index
    %c0_79 = arith.constant 0 : index
    %85 = vector.load %arg9[%c0_77, %c0_78, %c0_79] : memref<18x18x64xf32, #tpu.memory_space<vmem>>, vector<16x16x64xf32>
    %86 = vector.shape_cast %85 : vector<16x16x64xf32> to vector<256x64xf32>
    %87 = arith.truncf %86 : vector<256x64xf32> to vector<256x64xbf16>
    %c0_80 = arith.constant 0 : index
    %c0_81 = arith.constant 0 : index
    %c0_82 = arith.constant 0 : index
    %88 = vector.load %arg6[%c0_80, %c0_81, %c0_82] : memref<9x64x64xbf16, #tpu.memory_space<vmem>>, vector<1x64x64xbf16>
    %89 = vector.shape_cast %88 : vector<1x64x64xbf16> to vector<64x64xbf16>
    %cst_83 = arith.constant dense<0.000000e+00> : vector<256x64xf32>
    %90 = tpu.matmul %87, %89, %cst_83 {dimension_numbers = #tpu.dot_dimension_numbers<[1], [0], [0], [1], [0, 0, 1, 1], [], []>} : vector<256x64xbf16>, vector<64x64xbf16>, vector<256x64xf32> -> vector<256x64xf32>
    %91 = arith.addf %84, %90 : vector<256x64xf32>
    %c0_84 = arith.constant 0 : index
    %c1_85 = arith.constant 1 : index
    %c0_86 = arith.constant 0 : index
    %92 = vector.load %arg9[%c0_84, %c1_85, %c0_86] : memref<18x18x64xf32, #tpu.memory_space<vmem>>, vector<16x16x64xf32>
    %93 = vector.shape_cast %92 : vector<16x16x64xf32> to vector<256x64xf32>
    %94 = arith.truncf %93 : vector<256x64xf32> to vector<256x64xbf16>
    %c1_87 = arith.constant 1 : index
    %c0_88 = arith.constant 0 : index
    %c0_89 = arith.constant 0 : index
    %95 = vector.load %arg6[%c1_87, %c0_88, %c0_89] : memref<9x64x64xbf16, #tpu.memory_space<vmem>>, vector<1x64x64xbf16>
    %96 = vector.shape_cast %95 : vector<1x64x64xbf16> to vector<64x64xbf16>
    %cst_90 = arith.constant dense<0.000000e+00> : vector<256x64xf32>
    %97 = tpu.matmul %94, %96, %cst_90 {dimension_numbers = #tpu.dot_dimension_numbers<[1], [0], [0], [1], [0, 0, 1, 1], [], []>} : vector<256x64xbf16>, vector<64x64xbf16>, vector<256x64xf32> -> vector<256x64xf32>
    %98 = arith.addf %91, %97 : vector<256x64xf32>
    %c0_91 = arith.constant 0 : index
    %c2_92 = arith.constant 2 : index
    %c0_93 = arith.constant 0 : index
    %99 = vector.load %arg9[%c0_91, %c2_92, %c0_93] : memref<18x18x64xf32, #tpu.memory_space<vmem>>, vector<16x16x64xf32>
    %100 = vector.shape_cast %99 : vector<16x16x64xf32> to vector<256x64xf32>
    %101 = arith.truncf %100 : vector<256x64xf32> to vector<256x64xbf16>
    %c2_94 = arith.constant 2 : index
    %c0_95 = arith.constant 0 : index
    %c0_96 = arith.constant 0 : index
    %102 = vector.load %arg6[%c2_94, %c0_95, %c0_96] : memref<9x64x64xbf16, #tpu.memory_space<vmem>>, vector<1x64x64xbf16>
    %103 = vector.shape_cast %102 : vector<1x64x64xbf16> to vector<64x64xbf16>
    %cst_97 = arith.constant dense<0.000000e+00> : vector<256x64xf32>
    %104 = tpu.matmul %101, %103, %cst_97 {dimension_numbers = #tpu.dot_dimension_numbers<[1], [0], [0], [1], [0, 0, 1, 1], [], []>} : vector<256x64xbf16>, vector<64x64xbf16>, vector<256x64xf32> -> vector<256x64xf32>
    %105 = arith.addf %98, %104 : vector<256x64xf32>
    %c1_98 = arith.constant 1 : index
    %c0_99 = arith.constant 0 : index
    %c0_100 = arith.constant 0 : index
    %106 = vector.load %arg9[%c1_98, %c0_99, %c0_100] : memref<18x18x64xf32, #tpu.memory_space<vmem>>, vector<16x16x64xf32>
    %107 = vector.shape_cast %106 : vector<16x16x64xf32> to vector<256x64xf32>
    %108 = arith.truncf %107 : vector<256x64xf32> to vector<256x64xbf16>
    %c3_101 = arith.constant 3 : index
    %c0_102 = arith.constant 0 : index
    %c0_103 = arith.constant 0 : index
    %109 = vector.load %arg6[%c3_101, %c0_102, %c0_103] : memref<9x64x64xbf16, #tpu.memory_space<vmem>>, vector<1x64x64xbf16>
    %110 = vector.shape_cast %109 : vector<1x64x64xbf16> to vector<64x64xbf16>
    %cst_104 = arith.constant dense<0.000000e+00> : vector<256x64xf32>
    %111 = tpu.matmul %108, %110, %cst_104 {dimension_numbers = #tpu.dot_dimension_numbers<[1], [0], [0], [1], [0, 0, 1, 1], [], []>} : vector<256x64xbf16>, vector<64x64xbf16>, vector<256x64xf32> -> vector<256x64xf32>
    %112 = arith.addf %105, %111 : vector<256x64xf32>
    %c1_105 = arith.constant 1 : index
    %c1_106 = arith.constant 1 : index
    %c0_107 = arith.constant 0 : index
    %113 = vector.load %arg9[%c1_105, %c1_106, %c0_107] : memref<18x18x64xf32, #tpu.memory_space<vmem>>, vector<16x16x64xf32>
    %114 = vector.shape_cast %113 : vector<16x16x64xf32> to vector<256x64xf32>
    %115 = arith.truncf %114 : vector<256x64xf32> to vector<256x64xbf16>
    %c4_108 = arith.constant 4 : index
    %c0_109 = arith.constant 0 : index
    %c0_110 = arith.constant 0 : index
    %116 = vector.load %arg6[%c4_108, %c0_109, %c0_110] : memref<9x64x64xbf16, #tpu.memory_space<vmem>>, vector<1x64x64xbf16>
    %117 = vector.shape_cast %116 : vector<1x64x64xbf16> to vector<64x64xbf16>
    %cst_111 = arith.constant dense<0.000000e+00> : vector<256x64xf32>
    %118 = tpu.matmul %115, %117, %cst_111 {dimension_numbers = #tpu.dot_dimension_numbers<[1], [0], [0], [1], [0, 0, 1, 1], [], []>} : vector<256x64xbf16>, vector<64x64xbf16>, vector<256x64xf32> -> vector<256x64xf32>
    %119 = arith.addf %112, %118 : vector<256x64xf32>
    %c1_112 = arith.constant 1 : index
    %c2_113 = arith.constant 2 : index
    %c0_114 = arith.constant 0 : index
    %120 = vector.load %arg9[%c1_112, %c2_113, %c0_114] : memref<18x18x64xf32, #tpu.memory_space<vmem>>, vector<16x16x64xf32>
    %121 = vector.shape_cast %120 : vector<16x16x64xf32> to vector<256x64xf32>
    %122 = arith.truncf %121 : vector<256x64xf32> to vector<256x64xbf16>
    %c5_115 = arith.constant 5 : index
    %c0_116 = arith.constant 0 : index
    %c0_117 = arith.constant 0 : index
    %123 = vector.load %arg6[%c5_115, %c0_116, %c0_117] : memref<9x64x64xbf16, #tpu.memory_space<vmem>>, vector<1x64x64xbf16>
    %124 = vector.shape_cast %123 : vector<1x64x64xbf16> to vector<64x64xbf16>
    %cst_118 = arith.constant dense<0.000000e+00> : vector<256x64xf32>
    %125 = tpu.matmul %122, %124, %cst_118 {dimension_numbers = #tpu.dot_dimension_numbers<[1], [0], [0], [1], [0, 0, 1, 1], [], []>} : vector<256x64xbf16>, vector<64x64xbf16>, vector<256x64xf32> -> vector<256x64xf32>
    %126 = arith.addf %119, %125 : vector<256x64xf32>
    %c2_119 = arith.constant 2 : index
    %c0_120 = arith.constant 0 : index
    %c0_121 = arith.constant 0 : index
    %127 = vector.load %arg9[%c2_119, %c0_120, %c0_121] : memref<18x18x64xf32, #tpu.memory_space<vmem>>, vector<16x16x64xf32>
    %128 = vector.shape_cast %127 : vector<16x16x64xf32> to vector<256x64xf32>
    %129 = arith.truncf %128 : vector<256x64xf32> to vector<256x64xbf16>
    %c6_122 = arith.constant 6 : index
    %c0_123 = arith.constant 0 : index
    %c0_124 = arith.constant 0 : index
    %130 = vector.load %arg6[%c6_122, %c0_123, %c0_124] : memref<9x64x64xbf16, #tpu.memory_space<vmem>>, vector<1x64x64xbf16>
    %131 = vector.shape_cast %130 : vector<1x64x64xbf16> to vector<64x64xbf16>
    %cst_125 = arith.constant dense<0.000000e+00> : vector<256x64xf32>
    %132 = tpu.matmul %129, %131, %cst_125 {dimension_numbers = #tpu.dot_dimension_numbers<[1], [0], [0], [1], [0, 0, 1, 1], [], []>} : vector<256x64xbf16>, vector<64x64xbf16>, vector<256x64xf32> -> vector<256x64xf32>
    %133 = arith.addf %126, %132 : vector<256x64xf32>
    %c2_126 = arith.constant 2 : index
    %c1_127 = arith.constant 1 : index
    %c0_128 = arith.constant 0 : index
    %134 = vector.load %arg9[%c2_126, %c1_127, %c0_128] : memref<18x18x64xf32, #tpu.memory_space<vmem>>, vector<16x16x64xf32>
    %135 = vector.shape_cast %134 : vector<16x16x64xf32> to vector<256x64xf32>
    %136 = arith.truncf %135 : vector<256x64xf32> to vector<256x64xbf16>
    %c7_129 = arith.constant 7 : index
    %c0_130 = arith.constant 0 : index
    %c0_131 = arith.constant 0 : index
    %137 = vector.load %arg6[%c7_129, %c0_130, %c0_131] : memref<9x64x64xbf16, #tpu.memory_space<vmem>>, vector<1x64x64xbf16>
    %138 = vector.shape_cast %137 : vector<1x64x64xbf16> to vector<64x64xbf16>
    %cst_132 = arith.constant dense<0.000000e+00> : vector<256x64xf32>
    %139 = tpu.matmul %136, %138, %cst_132 {dimension_numbers = #tpu.dot_dimension_numbers<[1], [0], [0], [1], [0, 0, 1, 1], [], []>} : vector<256x64xbf16>, vector<64x64xbf16>, vector<256x64xf32> -> vector<256x64xf32>
    %140 = arith.addf %133, %139 : vector<256x64xf32>
    %c2_133 = arith.constant 2 : index
    %c2_134 = arith.constant 2 : index
    %c0_135 = arith.constant 0 : index
    %141 = vector.load %arg9[%c2_133, %c2_134, %c0_135] : memref<18x18x64xf32, #tpu.memory_space<vmem>>, vector<16x16x64xf32>
    %142 = vector.shape_cast %141 : vector<16x16x64xf32> to vector<256x64xf32>
    %143 = arith.truncf %142 : vector<256x64xf32> to vector<256x64xbf16>
    %c8_136 = arith.constant 8 : index
    %c0_137 = arith.constant 0 : index
    %c0_138 = arith.constant 0 : index
    %144 = vector.load %arg6[%c8_136, %c0_137, %c0_138] : memref<9x64x64xbf16, #tpu.memory_space<vmem>>, vector<1x64x64xbf16>
    %145 = vector.shape_cast %144 : vector<1x64x64xbf16> to vector<64x64xbf16>
    %cst_139 = arith.constant dense<0.000000e+00> : vector<256x64xf32>
    %146 = tpu.matmul %143, %145, %cst_139 {dimension_numbers = #tpu.dot_dimension_numbers<[1], [0], [0], [1], [0, 0, 1, 1], [], []>} : vector<256x64xbf16>, vector<64x64xbf16>, vector<256x64xf32> -> vector<256x64xf32>
    %147 = arith.addf %140, %146 : vector<256x64xf32>
    %c0_140 = arith.constant 0 : index
    %c0_141 = arith.constant 0 : index
    %148 = vector.load %arg7[%c0_140, %c0_141] : memref<1x64xf32, #tpu.memory_space<vmem>>, vector<1x64xf32>
    %149 = vector.broadcast %148 : vector<1x64xf32> to vector<256x64xf32>
    %150 = arith.addf %147, %149 : vector<256x64xf32>
    %cst_142 = arith.constant 0.000000e+00 : f32
    %151 = vector.broadcast %cst_142 : f32 to vector<256x64xf32>
    %152 = arith.maximumf %150, %151 : vector<256x64xf32>
    %153 = vector.shape_cast %152 : vector<256x64xf32> to vector<16x16x64xf32>
    %154 = arith.truncf %153 : vector<16x16x64xf32> to vector<16x16x64xbf16>
    %c0_143 = arith.constant 0 : index
    %c0_144 = arith.constant 0 : index
    %c0_145 = arith.constant 0 : index
    %c0_146 = arith.constant 0 : index
    %155 = vector.load %arg8[%c0_143, %c0_144, %c0_145, %c0_146] : memref<1x16x16x64xbf16, #tpu.memory_space<vmem>>, vector<1x16x16x64xbf16>
    %156 = vector.shape_cast %155 : vector<1x16x16x64xbf16> to vector<16x16x64xbf16>
    %157 = vector.shape_cast %154 : vector<16x16x64xbf16> to vector<1x16x16x64xbf16>
    tpu.vector_store %arg8[%c0_143, %c0_144, %c0_145, %c0_146], %157 {strides = array<i32>} : memref<1x16x16x64xbf16, #tpu.memory_space<vmem>>, vector<1x16x16x64xbf16>,
    return
  }
  func.func @transform_0(%arg0: i32) -> (i32, i32, i32) {
    %c0_i32 = arith.constant 0 : i32
    %c0_i32_0 = arith.constant 0 : i32
    %c0_i32_1 = arith.constant 0 : i32
    return %arg0, %c0_i32, %c0_i32_0 : i32, i32, i32
  }
  func.func @transform_1(%arg0: i32) -> (i32, i32) {
    %c0_i32 = arith.constant 0 : i32
    %c0_i32_0 = arith.constant 0 : i32
    %c0_i32_1 = arith.constant 0 : i32
    return %c0_i32, %c0_i32_0 : i32, i32
  }
  func.func @transform_2(%arg0: i32) -> (i32, i32) {
    %c0_i32 = arith.constant 0 : i32
    %c0_i32_0 = arith.constant 0 : i32
    %c0_i32_1 = arith.constant 0 : i32
    return %c0_i32, %c0_i32_0 : i32, i32
  }
  func.func @transform_3(%arg0: i32) -> (i32, i32, i32) {
    %c0_i32 = arith.constant 0 : i32
    %c0_i32_0 = arith.constant 0 : i32
    %c0_i32_1 = arith.constant 0 : i32
    %c0_i32_2 = arith.constant 0 : i32
    return %c0_i32, %c0_i32_0, %c0_i32_1 : i32, i32, i32
  }
  func.func @transform_4(%arg0: i32) -> (i32, i32) {
    %c0_i32 = arith.constant 0 : i32
    %c0_i32_0 = arith.constant 0 : i32
    %c0_i32_1 = arith.constant 0 : i32
    return %c0_i32, %c0_i32_0 : i32, i32
  }
  func.func @transform_5(%arg0: i32) -> (i32, i32, i32) {
    %c0_i32 = arith.constant 0 : i32
    %c0_i32_0 = arith.constant 0 : i32
    %c0_i32_1 = arith.constant 0 : i32
    %c0_i32_2 = arith.constant 0 : i32
    return %c0_i32, %c0_i32_0, %c0_i32_1 : i32, i32, i32
  }
  func.func @transform_6(%arg0: i32) -> (i32, i32) {
    %c0_i32 = arith.constant 0 : i32
    %c0_i32_0 = arith.constant 0 : i32
    %c0_i32_1 = arith.constant 0 : i32
    return %c0_i32, %c0_i32_0 : i32, i32
  }
  func.func @transform_7(%arg0: i32) -> (i32, i32, i32, i32) {
    %c0_i32 = arith.constant 0 : i32
    %c0_i32_0 = arith.constant 0 : i32
    %c0_i32_1 = arith.constant 0 : i32
    %c0_i32_2 = arith.constant 0 : i32
    return %arg0, %c0_i32, %c0_i32_0, %c0_i32_1 : i32, i32, i32, i32
  }
}

module attributes {stable_mosaic.version = 11 : i64} {
  func.func @proj_kernel(%arg0: i32, %arg1: memref<1x4x4096xbf16, #tpu.memory_space<vmem>>, %arg2: memref<4096x128xbf16, #tpu.memory_space<vmem>>, %arg3: memref<1x128xf32, #tpu.memory_space<vmem>>, %arg4: memref<1x4x128xf32, #tpu.memory_space<vmem>>) attributes {dimension_semantics = [#tpu.dimension_semantics<parallel>], iteration_bounds = array<i64: 2>, scalar_prefetch = 0 : i64, scratch_operands = 0 : i64, tpu.core_type = #tpu.core_type<tc>, window_params = [{transform_indices = @transform_0, window_bounds = array<i64: 1, 4, 4096>}, {pipeline_mode = #tpu.pipeline_mode<synchronous>, transform_indices = @transform_1, window_bounds = array<i64: 4096, 128>}, {pipeline_mode = #tpu.pipeline_mode<synchronous>, transform_indices = @transform_2, window_bounds = array<i64: 1, 128>}, {transform_indices = @transform_3, window_bounds = array<i64: 1, 4, 128>}]} {
    %c0 = arith.constant 0 : index
    %c0_0 = arith.constant 0 : index
    %c0_1 = arith.constant 0 : index
    %0 = vector.load %arg1[%c0, %c0_0, %c0_1] : memref<1x4x4096xbf16, #tpu.memory_space<vmem>>, vector<1x4x4096xbf16>
    %1 = vector.shape_cast %0 : vector<1x4x4096xbf16> to vector<4x4096xbf16>
    %c0_2 = arith.constant 0 : index
    %c0_3 = arith.constant 0 : index
    %2 = vector.load %arg2[%c0_2, %c0_3] : memref<4096x128xbf16, #tpu.memory_space<vmem>>, vector<4096x128xbf16>
    %cst = arith.constant dense<0.000000e+00> : vector<4x128xf32>
    %3 = tpu.matmul %1, %2, %cst {dimension_numbers = #tpu.dot_dimension_numbers<[1], [0], [0], [1], [0, 0, 1, 1], [], []>} : vector<4x4096xbf16>, vector<4096x128xbf16>, vector<4x128xf32> -> vector<4x128xf32>
    %c0_4 = arith.constant 0 : index
    %c0_5 = arith.constant 0 : index
    %4 = vector.load %arg3[%c0_4, %c0_5] : memref<1x128xf32, #tpu.memory_space<vmem>>, vector<1x128xf32>
    %5 = vector.broadcast %4 : vector<1x128xf32> to vector<4x128xf32>
    %6 = arith.addf %3, %5 : vector<4x128xf32>
    %c0_6 = arith.constant 0 : index
    %c0_7 = arith.constant 0 : index
    %c0_8 = arith.constant 0 : index
    %7 = vector.load %arg4[%c0_6, %c0_7, %c0_8] : memref<1x4x128xf32, #tpu.memory_space<vmem>>, vector<1x4x128xf32>
    %8 = vector.shape_cast %7 : vector<1x4x128xf32> to vector<4x128xf32>
    %9 = vector.shape_cast %6 : vector<4x128xf32> to vector<1x4x128xf32>
    tpu.vector_store %arg4[%c0_6, %c0_7, %c0_8], %9 {strides = array<i32>} : memref<1x4x128xf32, #tpu.memory_space<vmem>>, vector<1x4x128xf32>,
    return
  }
  func.func @transform_0(%arg0: i32) -> (i32, i32, i32) {
    %c0_i32 = arith.constant 0 : i32
    %c0_i32_0 = arith.constant 0 : i32
    %c0_i32_1 = arith.constant 0 : i32
    return %arg0, %c0_i32, %c0_i32_0 : i32, i32, i32
  }
  func.func @transform_1(%arg0: i32) -> (i32, i32) {
    %c0_i32 = arith.constant 0 : i32
    %c0_i32_0 = arith.constant 0 : i32
    %c0_i32_1 = arith.constant 0 : i32
    return %c0_i32, %c0_i32_0 : i32, i32
  }
  func.func @transform_2(%arg0: i32) -> (i32, i32) {
    %c0_i32 = arith.constant 0 : i32
    %c0_i32_0 = arith.constant 0 : i32
    %c0_i32_1 = arith.constant 0 : i32
    return %c0_i32, %c0_i32_0 : i32, i32
  }
  func.func @transform_3(%arg0: i32) -> (i32, i32, i32) {
    %c0_i32 = arith.constant 0 : i32
    %c0_i32_0 = arith.constant 0 : i32
    %c0_i32_1 = arith.constant 0 : i32
    return %arg0, %c0_i32, %c0_i32_0 : i32, i32, i32
  }
}

</mosaic_0001>

<llo_original>
// kernel: patch_embed4_2_forward.3
$region0: #{patch_embed4_2_forward.3}
  #allocation0 [shape = 'u32[]', space=smem, size = 0x4, offset = 0x4, fixed_abs, tag = 'smem constant byte address 0x4 - core index']
  #allocation1 [shape = 'u32[144,128]{1,0:T(1,128)}', space=vmem, size = 0x12000, scoped, tag = 'internal scratch']
  %s0 = inlined_call_operand.vmem [shape: bf16[2,4,4096], index: 0, kind: input, shape index: {}]
  %s1 = inlined_call_operand.vmem [shape: bf16[4096,128], index: 1, kind: input, shape index: {}]
  %s2 = inlined_call_operand.vmem [shape: f32[1,128], index: 2, kind: input, shape index: {}]
  %s3 = inlined_call_operand.hbm [shape: f32[2,4,128], index: 3, kind: output, shape index: {}]
  %s4 = sld [smem:[#allocation0]]
  $region45: #{patch_embed4_2_forward.3} parent=0
    _
  %s6 = ssub.s32 1, %s4
  %s7 = scalar_select 0, %s6, %s4
  $region1: #{patch_embed4_2_forward.3} parent=0
    #allocation2 [shape = 'u8[4096]{0}', space=vmem, size = 0x1000, scoped, tag = 'output window, operand 0']
    #allocation3 [shape = 's32[2]{0}', space=sflag, size = 0x8, scoped, tag = 'scoped memory for patch_embed4_2_forward.3']
    %8 = vsyncpa [#allocation3], 0
    %s9 = scalar_lea.sflag [#allocation3], 1
    %10 = vsyncpa %s9, 0
    loop: start=0, step=1, limit=4
    $region2: #{patch_embed4_2_forward.3} parent=1 // loop_pre_header
      _
    $region3: #{patch_embed4_2_forward.3} parent=1 // loop_header
      %s12 = sphi 0, %s16
      %p13 = scmp.ge.s32.totalorder %s12, 4
      %s22 = sphi 0, %s24
      %s25 = sphi 0, %s22
      %s26 = sphi 0, %s25
      %s42 = sphi 0, %s26
      %s46 = sphi 0, %s46
      %s48 = sphi 0, %s46
      %s49 = sphi 0, %s48
      %s63 = sphi 0, %s49
      %s67 = sphi 0, %s67
      %s69 = sphi 0, %s67
      %s70 = sphi 0, %s69
      %s84 = sphi 0, %s70
      %s90 = sphi 0, %s92
      %s93 = sphi 0, %s90
      %s94 = sphi 0, %s93
      %s110 = sphi 0, %s94
    $region4: #{patch_embed4_2_forward.3} parent=1 // loop_header_branch
      %15 = sbr.rel (%p13) target = $region8
    $region5: #{patch_embed4_2_forward.3} parent=1 // loop_body
      %s17 = ssub.s32 %s12, 1
      %s18 = ssub.s32 %s12, 2
      %s19 = sadd.s32 %s12, 1
      %s20 = ssub.s32 %s12, %s19
      %p21 = scmp.eq.s32.totalorder %s20, 0
      %s23 = sadd.s32 %s22, 1
      %s24 = scalar_select %p21, %s22, %s23
      %p27 = pneg %p21
      %p28 = scmp.eq.s32.totalorder %s12, 1
      %p29 = por %p27, %p28
      %p30 = scmp.ne.s32.totalorder %s22, %s25
      %p31 = scmp.eq.s32.totalorder %s12, 0
      %p32 = por %p30, %p31
      %p33 = scmp.ne.s32.totalorder %s22, %s25
      %p34 = scmp.eq.s32.totalorder %s17, 1
      %p35 = por %p33, %p34
      %p36 = scmp.ne.s32.totalorder %s25, %s26
      %p37 = scmp.eq.s32.totalorder %s17, 0
      %p38 = por %p36, %p37
      %p39 = scmp.ne.s32.totalorder %s25, %s26
      %p40 = scmp.eq.s32.totalorder %s18, 1
      %p41 = por %p39, %p40
      %p43 = scmp.ne.s32.totalorder %s26, %s42
      %p44 = scmp.eq.s32.totalorder %s18, 0
      %p45 = por %p43, %p44
      %s47 = sadd.s32 %s46, 1
      %p50 = scmp.eq.s32.totalorder %s12, 1
      %p51 = scmp.ne.s32.totalorder %s46, %s48
      %p52 = scmp.eq.s32.totalorder %s12, 0
      %p53 = por %p51, %p52
      %p54 = scmp.ne.s32.totalorder %s46, %s48
      %p55 = scmp.eq.s32.totalorder %s17, 1
      %p56 = por %p54, %p55
      %p57 = scmp.ne.s32.totalorder %s48, %s49
      %p58 = scmp.eq.s32.totalorder %s17, 0
      %p59 = por %p57, %p58
      %p60 = scmp.ne.s32.totalorder %s48, %s49
      %p61 = scmp.eq.s32.totalorder %s18, 1
      %p62 = por %p60, %p61
      %p64 = scmp.ne.s32.totalorder %s49, %s63
      %p65 = scmp.eq.s32.totalorder %s18, 0
      %p66 = por %p64, %p65
      %s68 = sadd.s32 %s67, 1
      %p71 = scmp.eq.s32.totalorder %s12, 1
      %p72 = scmp.ne.s32.totalorder %s67, %s69
      %p73 = scmp.eq.s32.totalorder %s12, 0
      %p74 = por %p72, %p73
      %p75 = scmp.ne.s32.totalorder %s67, %s69
      %p76 = scmp.eq.s32.totalorder %s17, 1
      %p77 = por %p75, %p76
      %p78 = scmp.ne.s32.totalorder %s69, %s70
      %p79 = scmp.eq.s32.totalorder %s17, 0
      %p80 = por %p78, %p79
      %p81 = scmp.ne.s32.totalorder %s69, %s70
      %p82 = scmp.eq.s32.totalorder %s18, 1
      %p83 = por %p81, %p82
      %p85 = scmp.ne.s32.totalorder %s70, %s84
      %p86 = scmp.eq.s32.totalorder %s18, 0
      %p87 = por %p85, %p86
      %s88 = ssub.s32 %s12, %s19
      %p89 = scmp.eq.s32.totalorder %s88, 0
      %s91 = sadd.s32 %s90, 1
      %s92 = scalar_select %p89, %s90, %s91
      %p95 = pneg %p89
      %p96 = scmp.eq.s32.totalorder %s12, 1
      %p97 = por %p95, %p96
      %p98 = scmp.ne.s32.totalorder %s90, %s93
      %p99 = scmp.eq.s32.totalorder %s12, 0
      %p100 = por %p98, %p99
      %p101 = scmp.ne.s32.totalorder %s90, %s93
      %p102 = scmp.eq.s32.totalorder %s17, 1
      %p103 = por %p101, %p102
      %p104 = scmp.ne.s32.totalorder %s93, %s94
      %p105 = scmp.eq.s32.totalorder %s17, 0
      %p106 = por %p104, %p105
      %p107 = scmp.ne.s32.totalorder %s93, %s94
      %p108 = scmp.eq.s32.totalorder %s18, 1
      %p109 = por %p107, %p108
      %p111 = scmp.ne.s32.totalorder %s94, %s110
      %p112 = scmp.eq.s32.totalorder %s18, 0
      %p113 = por %p111, %p112
      %p114 = scmp.le.s32.totalorder 1, %s12
      %p115 = scmp.lt.s32.totalorder %s12, 3
      %p116 = pnand %p114, %p115
      %p117 = pneg %p116
      // Predicated region
      $region9: #{patch_embed4_2_forward.3} parent=5 // pred_check
        _
      $region10: #{patch_embed4_2_forward.3} parent=5 // pred_check_branch
        %119 = sbr.rel (%p116) target = $region12
      $region11: #{patch_embed4_2_forward.3} parent=5 // pred_region
        %s120 = ssub.s32 %s12, 1
        // Predicated region
        $region13: #{patch_embed4_2_forward.3} parent=11 // pred_check
          %p121 = pneg %p59
        $region14: #{patch_embed4_2_forward.3} parent=11 // pred_check_branch
          %123 = sbr.rel (%p121) target = $region16
        $region15: #{patch_embed4_2_forward.3} parent=11 // pred_region
          _
        $region16: #{patch_embed4_2_forward.3} parent=11 // pred_fallthru
          _
        // Predicated region
        $region17: #{patch_embed4_2_forward.3} parent=11 // pred_check
          %p124 = pneg %p80
        $region18: #{patch_embed4_2_forward.3} parent=11 // pred_check_branch
          %126 = sbr.rel (%p124) target = $region20
        $region19: #{patch_embed4_2_forward.3} parent=11 // pred_region
          _
        $region20: #{patch_embed4_2_forward.3} parent=11 // pred_fallthru
          _
      $region12: #{patch_embed4_2_forward.3} parent=5 // pred_fallthru
        _
      %p127 = scmp.lt.s32.totalorder %s12, 2
      // Predicated region
      $region21: #{patch_embed4_2_forward.3} parent=5 // pred_check
        %p128 = pneg %p127
      $region22: #{patch_embed4_2_forward.3} parent=5 // pred_check_branch
        %130 = sbr.rel (%p128) target = $region24
      $region23: #{patch_embed4_2_forward.3} parent=5 // pred_region
        // Predicated region
        $region25: #{patch_embed4_2_forward.3} parent=23 // pred_check
          %p131 = pneg %p32
        $region26: #{patch_embed4_2_forward.3} parent=23 // pred_check_branch
          %133 = sbr.rel (%p131) target = $region28
        $region27: #{patch_embed4_2_forward.3} parent=23 // pred_region
          %p134 = scmp.lt.s32.totalorder %s12, 1
          %s135 = scalar_select %p134, %s12, 1
          %s136 = smul.addr %s135, 32
          %s137 = smul.addr %s136, 2
          %s138 = scalar_lea.vmem %s0, %s137
        $region28: #{patch_embed4_2_forward.3} parent=23 // pred_fallthru
          _
      $region24: #{patch_embed4_2_forward.3} parent=5 // pred_fallthru
        _
      %p139 = scmp.le.s32.totalorder 1, %s12
      %p140 = scmp.lt.s32.totalorder %s12, 3
      %p141 = pnand %p139, %p140
      %p142 = pneg %p141
      // Predicated region
      $region29: #{patch_embed4_2_forward.3} parent=5 // pred_check
        _
      $region30: #{patch_embed4_2_forward.3} parent=5 // pred_check_branch
        %144 = sbr.rel (%p141) target = $region32
      $region31: #{patch_embed4_2_forward.3} parent=5 // pred_region
        %s145 = ssub.s32 %s12, 1
        %p146 = scmp.lt.s32.totalorder %s17, 1
        %s147 = scalar_select %p146, %s17, 1
        %s148 = smul.addr %s147, 32
        %s149 = smul.addr %s148, 2
        %s150 = scalar_lea.vmem %s0, %s149
        %p151 = pneg %p38
        %p152 = pneg %p35
        %p153 = pneg %p59
        %p154 = pneg %p56
        %p155 = pneg %p80
        %p156 = pneg %p77
        %p157 = pneg %p106
        %p158 = pneg %p103
        %s159 = sand.u32 %s93, 1
        %s160 = scalar_lea.sflag [#allocation3], %s159
        %s161 = sand.u32 %s93, 1
        %s162 = smul.addr %s161, 4
        %s163 = scalar_lea.vmem [#allocation2], %s162
        %p164 = scmp.lt.s32.totalorder %s17, 1
        %s165 = scalar_select %p164, %s17, 1
        %s166 = smul.addr %s165, 32
        %s167 = smul.addr %s166, 2
        %s168 = scalar_lea.vmem %s0, %s167
        %v170 = vld [vmem:[%s168] sm:$0xff]
        %v171 = vld [vmem:[%s168 + $0x8] sm:$0xff]
        %v172 = vld [vmem:[%s168 + $0x10] sm:$0xff]
        %v173 = vld [vmem:[%s168 + $0x18] sm:$0xff]
        %v174 = vld [vmem:[%s168 + $0x20] sm:$0xff]
        %v175 = vld [vmem:[%s168 + $0x28] sm:$0xff]
        %v176 = vld [vmem:[%s168 + $0x30] sm:$0xff]
        %v177 = vld [vmem:[%s168 + $0x38] sm:$0xff]
        %v178 = vld [vmem:[%s1] sm:$0xf]
        %v179 = vld [vmem:[%s1 + $0x4] sm:$0xf]
        %v180 = vld [vmem:[%s1 + $0x8] sm:$0xf]
        %v181 = vld [vmem:[%s1 + $0xc] sm:$0xf]
        %v182 = vld [vmem:[%s1 + $0x10] sm:$0xf]
        %v183 = vld [vmem:[%s1 + $0x14] sm:$0xf]
        %v184 = vld [vmem:[%s1 + $0x18] sm:$0xf]
        %v185 = vld [vmem:[%s1 + $0x1c] sm:$0xf]
        %v186 = vld [vmem:[%s1 + $0x20] sm:$0xf]
        %v187 = vld [vmem:[%s1 + $0x24] sm:$0xf]
        %v188 = vld [vmem:[%s1 + $0x28] sm:$0xf]
        %v189 = vld [vmem:[%s1 + $0x2c] sm:$0xf]
        %v190 = vld [vmem:[%s1 + $0x30] sm:$0xf]
        %v191 = vld [vmem:[%s1 + $0x34] sm:$0xf]
        %v192 = vld [vmem:[%s1 + $0x38] sm:$0xf]
        %v193 = vld [vmem:[%s1 + $0x3c] sm:$0xf]
        %v194 = vld [vmem:[%s1 + $0x40] sm:$0xf]
        %v195 = vld [vmem:[%s1 + $0x44] sm:$0xf]
        %v196 = vld [vmem:[%s1 + $0x48] sm:$0xf]
        %v197 = vld [vmem:[%s1 + $0x4c] sm:$0xf]
        %v198 = vld [vmem:[%s1 + $0x50] sm:$0xf]
        %v199 = vld [vmem:[%s1 + $0x54] sm:$0xf]
        %v200 = vld [vmem:[%s1 + $0x58] sm:$0xf]
        %v201 = vld [vmem:[%s1 + $0x5c] sm:$0xf]
        %v202 = vld [vmem:[%s1 + $0x60] sm:$0xf]
        %v203 = vld [vmem:[%s1 + $0x64] sm:$0xf]
        %v204 = vld [vmem:[%s1 + $0x68] sm:$0xf]
        %v205 = vld [vmem:[%s1 + $0x6c] sm:$0xf]
        %v206 = vld [vmem:[%s1 + $0x70] sm:$0xf]
        %v207 = vld [vmem:[%s1 + $0x74] sm:$0xf]
        %v208 = vld [vmem:[%s1 + $0x78] sm:$0xf]
        %v209 = vld [vmem:[%s1 + $0x7c] sm:$0xf]
        %v210 = vld [vmem:[%s1 + $0x80] sm:$0xf]
        %v211 = vld [vmem:[%s1 + $0x84] sm:$0xf]
        %v212 = vld [vmem:[%s1 + $0x88] sm:$0xf]
        %v213 = vld [vmem:[%s1 + $0x8c] sm:$0xf]
        %v214 = vld [vmem:[%s1 + $0x90] sm:$0xf]
        %v215 = vld [vmem:[%s1 + $0x94] sm:$0xf]
        %v216 = vld [vmem:[%s1 + $0x98] sm:$0xf]
        %v217 = vld [vmem:[%s1 + $0x9c] sm:$0xf]
        %v218 = vld [vmem:[%s1 + $0xa0] sm:$0xf]
        %v219 = vld [vmem:[%s1 + $0xa4] sm:$0xf]
        %v220 = vld [vmem:[%s1 + $0xa8] sm:$0xf]
        %v221 = vld [vmem:[%s1 + $0xac] sm:$0xf]
        %v222 = vld [vmem:[%s1 + $0xb0] sm:$0xf]
        %v223 = vld [vmem:[%s1 + $0xb4] sm:$0xf]
        %v224 = vld [vmem:[%s1 + $0xb8] sm:$0xf]
        %v225 = vld [vmem:[%s1 + $0xbc] sm:$0xf]
        %v226 = vld [vmem:[%s1 + $0xc0] sm:$0xf]
        %v227 = vld [vmem:[%s1 + $0xc4] sm:$0xf]
        %v228 = vld [vmem:[%s1 + $0xc8] sm:$0xf]
        %v229 = vld [vmem:[%s1 + $0xcc] sm:$0xf]
        %v230 = vld [vmem:[%s1 + $0xd0] sm:$0xf]
        %v231 = vld [vmem:[%s1 + $0xd4] sm:$0xf]
        %v232 = vld [vmem:[%s1 + $0xd8] sm:$0xf]
        %v233 = vld [vmem:[%s1 + $0xdc] sm:$0xf]
        %v234 = vld [vmem:[%s1 + $0xe0] sm:$0xf]
        %v235 = vld [vmem:[%s1 + $0xe4] sm:$0xf]
        %v236 = vld [vmem:[%s1 + $0xe8] sm:$0xf]
        %v237 = vld [vmem:[%s1 + $0xec] sm:$0xf]
        %v238 = vld [vmem:[%s1 + $0xf0] sm:$0xf]
        %v239 = vld [vmem:[%s1 + $0xf4] sm:$0xf]
        %v240 = vld [vmem:[%s1 + $0xf8] sm:$0xf]
        %v241 = vld [vmem:[%s1 + $0xfc] sm:$0xf]
        %v242 = vld [vmem:[%s1 + $0x100] sm:$0xf]
        %v243 = vld [vmem:[%s1 + $0x104] sm:$0xf]
        %v244 = vld [vmem:[%s1 + $0x108] sm:$0xf]
        %v245 = vld [vmem:[%s1 + $0x10c] sm:$0xf]
        %v246 = vld [vmem:[%s1 + $0x110] sm:$0xf]
        %v247 = vld [vmem:[%s1 + $0x114] sm:$0xf]
        %v248 = vld [vmem:[%s1 + $0x118] sm:$0xf]
        %v249 = vld [vmem:[%s1 + $0x11c] sm:$0xf]
        %v250 = vld [vmem:[%s1 + $0x120] sm:$0xf]
        %v251 = vld [vmem:[%s1 + $0x124] sm:$0xf]
        %v252 = vld [vmem:[%s1 + $0x128] sm:$0xf]
        %v253 = vld [vmem:[%s1 + $0x12c] sm:$0xf]
        %v254 = vld [vmem:[%s1 + $0x130] sm:$0xf]
        %v255 = vld [vmem:[%s1 + $0x134] sm:$0xf]
        %v256 = vld [vmem:[%s1 + $0x138] sm:$0xf]
        %v257 = vld [vmem:[%s1 + $0x13c] sm:$0xf]
        %v258 = vld [vmem:[%s1 + $0x140] sm:$0xf]
        %v259 = vld [vmem:[%s1 + $0x144] sm:$0xf]
        %v260 = vld [vmem:[%s1 + $0x148] sm:$0xf]
        %v261 = vld [vmem:[%s1 + $0x14c] sm:$0xf]
        %v262 = vld [vmem:[%s1 + $0x150] sm:$0xf]
        %v263 = vld [vmem:[%s1 + $0x154] sm:$0xf]
        %v264 = vld [vmem:[%s1 + $0x158] sm:$0xf]
        %v265 = vld [vmem:[%s1 + $0x15c] sm:$0xf]
        %v266 = vld [vmem:[%s1 + $0x160] sm:$0xf]
        %v267 = vld [vmem:[%s1 + $0x164] sm:$0xf]
        %v268 = vld [vmem:[%s1 + $0x168] sm:$0xf]
        %v269 = vld [vmem:[%s1 + $0x16c] sm:$0xf]
        %v270 = vld [vmem:[%s1 + $0x170] sm:$0xf]
        %v271 = vld [vmem:[%s1 + $0x174] sm:$0xf]
        %v272 = vld [vmem:[%s1 + $0x178] sm:$0xf]
        %v273 = vld [vmem:[%s1 + $0x17c] sm:$0xf]
        %v274 = vld [vmem:[%s1 + $0x180] sm:$0xf]
        %v275 = vld [vmem:[%s1 + $0x184] sm:$0xf]
        %v276 = vld [vmem:[%s1 + $0x188] sm:$0xf]
        %v277 = vld [vmem:[%s1 + $0x18c] sm:$0xf]
        %v278 = vld [vmem:[%s1 + $0x190] sm:$0xf]
        %v279 = vld [vmem:[%s1 + $0x194] sm:$0xf]
        %v280 = vld [vmem:[%s1 + $0x198] sm:$0xf]
        %v281 = vld [vmem:[%s1 + $0x19c] sm:$0xf]
        %v282 = vld [vmem:[%s1 + $0x1a0] sm:$0xf]
        %v283 = vld [vmem:[%s1 + $0x1a4] sm:$0xf]
        %v284 = vld [vmem:[%s1 + $0x1a8] sm:$0xf]
        %v285 = vld [vmem:[%s1 + $0x1ac] sm:$0xf]
        %v286 = vld [vmem:[%s1 + $0x1b0] sm:$0xf]
        %v287 = vld [vmem:[%s1 + $0x1b4] sm:$0xf]
        %v288 = vld [vmem:[%s1 + $0x1b8] sm:$0xf]
        %v289 = vld [vmem:[%s1 + $0x1bc] sm:$0xf]
        %v290 = vld [vmem:[%s1 + $0x1c0] sm:$0xf]
        %v291 = vld [vmem:[%s1 + $0x1c4] sm:$0xf]
        %v292 = vld [vmem:[%s1 + $0x1c8] sm:$0xf]
        %v293 = vld [vmem:[%s1 + $0x1cc] sm:$0xf]
        %v294 = vld [vmem:[%s1 + $0x1d0] sm:$0xf]
        %v295 = vld [vmem:[%s1 + $0x1d4] sm:$0xf]
        %v296 = vld [vmem:[%s1 + $0x1d8] sm:$0xf]
        %v297 = vld [vmem:[%s1 + $0x1dc] sm:$0xf]
        %v298 = vld [vmem:[%s1 + $0x1e0] sm:$0xf]
        %v299 = vld [vmem:[%s1 + $0x1e4] sm:$0xf]
        %v300 = vld [vmem:[%s1 + $0x1e8] sm:$0xf]
        %v301 = vld [vmem:[%s1 + $0x1ec] sm:$0xf]
        %v302 = vld [vmem:[%s1 + $0x1f0] sm:$0xf]
        %v303 = vld [vmem:[%s1 + $0x1f4] sm:$0xf]
        %v304 = vld [vmem:[%s1 + $0x1f8] sm:$0xf]
        %v305 = vld [vmem:[%s1 + $0x1fc] sm:$0xf]
        %v306 = vld [vmem:[%s1 + $0x200] sm:$0xf]
        %v307 = vld [vmem:[%s1 + $0x204] sm:$0xf]
        %v308 = vld [vmem:[%s1 + $0x208] sm:$0xf]
        %v309 = vld [vmem:[%s1 + $0x20c] sm:$0xf]
        %v310 = vld [vmem:[%s1 + $0x210] sm:$0xf]
        %v311 = vld [vmem:[%s1 + $0x214] sm:$0xf]
        %v312 = vld [vmem:[%s1 + $0x218] sm:$0xf]
        %v313 = vld [vmem:[%s1 + $0x21c] sm:$0xf]
        %v314 = vld [vmem:[%s1 + $0x220] sm:$0xf]
        %v315 = vld [vmem:[%s1 + $0x224] sm:$0xf]
        %v316 = vld [vmem:[%s1 + $0x228] sm:$0xf]
        %v317 = vld [vmem:[%s1 + $0x22c] sm:$0xf]
        %v318 = vld [vmem:[%s1 + $0x230] sm:$0xf]
        %v319 = vld [vmem:[%s1 + $0x234] sm:$0xf]
        %v320 = vld [vmem:[%s1 + $0x238] sm:$0xf]
        %v321 = vld [vmem:[%s1 + $0x23c] sm:$0xf]
        %v322 = vld [vmem:[%s1 + $0x240] sm:$0xf]
        %v323 = vld [vmem:[%s1 + $0x244] sm:$0xf]
        %v324 = vld [vmem:[%s1 + $0x248] sm:$0xf]
        %v325 = vld [vmem:[%s1 + $0x24c] sm:$0xf]
        %v326 = vld [vmem:[%s1 + $0x250] sm:$0xf]
        %v327 = vld [vmem:[%s1 + $0x254] sm:$0xf]
        %v328 = vld [vmem:[%s1 + $0x258] sm:$0xf]
        %v329 = vld [vmem:[%s1 + $0x25c] sm:$0xf]
        %v330 = vld [vmem:[%s1 + $0x260] sm:$0xf]
        %v331 = vld [vmem:[%s1 + $0x264] sm:$0xf]
        %v332 = vld [vmem:[%s1 + $0x268] sm:$0xf]
        %v333 = vld [vmem:[%s1 + $0x26c] sm:$0xf]
        %v334 = vld [vmem:[%s1 + $0x270] sm:$0xf]
        %v335 = vld [vmem:[%s1 + $0x274] sm:$0xf]
        %v336 = vld [vmem:[%s1 + $0x278] sm:$0xf]
        %v337 = vld [vmem:[%s1 + $0x27c] sm:$0xf]
        %v338 = vld [vmem:[%s1 + $0x280] sm:$0xf]
        %v339 = vld [vmem:[%s1 + $0x284] sm:$0xf]
        %v340 = vld [vmem:[%s1 + $0x288] sm:$0xf]
        %v341 = vld [vmem:[%s1 + $0x28c] sm:$0xf]
        %v342 = vld [vmem:[%s1 + $0x290] sm:$0xf]
        %v343 = vld [vmem:[%s1 + $0x294] sm:$0xf]
        %v344 = vld [vmem:[%s1 + $0x298] sm:$0xf]
        %v345 = vld [vmem:[%s1 + $0x29c] sm:$0xf]
        %v346 = vld [vmem:[%s1 + $0x2a0] sm:$0xf]
        %v347 = vld [vmem:[%s1 + $0x2a4] sm:$0xf]
        %v348 = vld [vmem:[%s1 + $0x2a8] sm:$0xf]
        %v349 = vld [vmem:[%s1 + $0x2ac] sm:$0xf]
        %v350 = vld [vmem:[%s1 + $0x2b0] sm:$0xf]
        %v351 = vld [vmem:[%s1 + $0x2b4] sm:$0xf]
        %v352 = vld [vmem:[%s1 + $0x2b8] sm:$0xf]
        %v353 = vld [vmem:[%s1 + $0x2bc] sm:$0xf]
        %v354 = vld [vmem:[%s1 + $0x2c0] sm:$0xf]
        %v355 = vld [vmem:[%s1 + $0x2c4] sm:$0xf]
        %v356 = vld [vmem:[%s1 + $0x2c8] sm:$0xf]
        %v357 = vld [vmem:[%s1 + $0x2cc] sm:$0xf]
        %v358 = vld [vmem:[%s1 + $0x2d0] sm:$0xf]
        %v359 = vld [vmem:[%s1 + $0x2d4] sm:$0xf]
        %v360 = vld [vmem:[%s1 + $0x2d8] sm:$0xf]
        %v361 = vld [vmem:[%s1 + $0x2dc] sm:$0xf]
        %v362 = vld [vmem:[%s1 + $0x2e0] sm:$0xf]
        %v363 = vld [vmem:[%s1 + $0x2e4] sm:$0xf]
        %v364 = vld [vmem:[%s1 + $0x2e8] sm:$0xf]
        %v365 = vld [vmem:[%s1 + $0x2ec] sm:$0xf]
        %v366 = vld [vmem:[%s1 + $0x2f0] sm:$0xf]
        %v367 = vld [vmem:[%s1 + $0x2f4] sm:$0xf]
        %v368 = vld [vmem:[%s1 + $0x2f8] sm:$0xf]
        %v369 = vld [vmem:[%s1 + $0x2fc] sm:$0xf]
        %v370 = vld [vmem:[%s1 + $0x300] sm:$0xf]
        %v371 = vld [vmem:[%s1 + $0x304] sm:$0xf]
        %v372 = vld [vmem:[%s1 + $0x308] sm:$0xf]
        %v373 = vld [vmem:[%s1 + $0x30c] sm:$0xf]
        %v374 = vld [vmem:[%s1 + $0x310] sm:$0xf]
        %v375 = vld [vmem:[%s1 + $0x314] sm:$0xf]
        %v376 = vld [vmem:[%s1 + $0x318] sm:$0xf]
        %v377 = vld [vmem:[%s1 + $0x31c] sm:$0xf]
        %v378 = vld [vmem:[%s1 + $0x320] sm:$0xf]
        %v379 = vld [vmem:[%s1 + $0x324] sm:$0xf]
        %v380 = vld [vmem:[%s1 + $0x328] sm:$0xf]
        %v381 = vld [vmem:[%s1 + $0x32c] sm:$0xf]
        %v382 = vld [vmem:[%s1 + $0x330] sm:$0xf]
        %v383 = vld [vmem:[%s1 + $0x334] sm:$0xf]
        %v384 = vld [vmem:[%s1 + $0x338] sm:$0xf]
        %v385 = vld [vmem:[%s1 + $0x33c] sm:$0xf]
        %v386 = vld [vmem:[%s1 + $0x340] sm:$0xf]
        %v387 = vld [vmem:[%s1 + $0x344] sm:$0xf]
        %v388 = vld [vmem:[%s1 + $0x348] sm:$0xf]
        %v389 = vld [vmem:[%s1 + $0x34c] sm:$0xf]
        %v390 = vld [vmem:[%s1 + $0x350] sm:$0xf]
        %v391 = vld [vmem:[%s1 + $0x354] sm:$0xf]
        %v392 = vld [vmem:[%s1 + $0x358] sm:$0xf]
        %v393 = vld [vmem:[%s1 + $0x35c] sm:$0xf]
        %v394 = vld [vmem:[%s1 + $0x360] sm:$0xf]
        %v395 = vld [vmem:[%s1 + $0x364] sm:$0xf]
        %v396 = vld [vmem:[%s1 + $0x368] sm:$0xf]
        %v397 = vld [vmem:[%s1 + $0x36c] sm:$0xf]
        %v398 = vld [vmem:[%s1 + $0x370] sm:$0xf]
        %v399 = vld [vmem:[%s1 + $0x374] sm:$0xf]
        %v400 = vld [vmem:[%s1 + $0x378] sm:$0xf]
        %v401 = vld [vmem:[%s1 + $0x37c] sm:$0xf]
        %v402 = vld [vmem:[%s1 + $0x380] sm:$0xf]
        %v403 = vld [vmem:[%s1 + $0x384] sm:$0xf]
        %v404 = vld [vmem:[%s1 + $0x388] sm:$0xf]
        %v405 = vld [vmem:[%s1 + $0x38c] sm:$0xf]
        %v406 = vld [vmem:[%s1 + $0x390] sm:$0xf]
        %v407 = vld [vmem:[%s1 + $0x394] sm:$0xf]
        %v408 = vld [vmem:[%s1 + $0x398] sm:$0xf]
        %v409 = vld [vmem:[%s1 + $0x39c] sm:$0xf]
        %v410 = vld [vmem:[%s1 + $0x3a0] sm:$0xf]
        %v411 = vld [vmem:[%s1 + $0x3a4] sm:$0xf]
        %v412 = vld [vmem:[%s1 + $0x3a8] sm:$0xf]
        %v413 = vld [vmem:[%s1 + $0x3ac] sm:$0xf]
        %v414 = vld [vmem:[%s1 + $0x3b0] sm:$0xf]
        %v415 = vld [vmem:[%s1 + $0x3b4] sm:$0xf]
        %v416 = vld [vmem:[%s1 + $0x3b8] sm:$0xf]
        %v417 = vld [vmem:[%s1 + $0x3bc] sm:$0xf]
        %v418 = vld [vmem:[%s1 + $0x3c0] sm:$0xf]
        %v419 = vld [vmem:[%s1 + $0x3c4] sm:$0xf]
        %v420 = vld [vmem:[%s1 + $0x3c8] sm:$0xf]
        %v421 = vld [vmem:[%s1 + $0x3cc] sm:$0xf]
        %v422 = vld [vmem:[%s1 + $0x3d0] sm:$0xf]
        %v423 = vld [vmem:[%s1 + $0x3d4] sm:$0xf]
        %v424 = vld [vmem:[%s1 + $0x3d8] sm:$0xf]
        %v425 = vld [vmem:[%s1 + $0x3dc] sm:$0xf]
        %v426 = vld [vmem:[%s1 + $0x3e0] sm:$0xf]
        %v427 = vld [vmem:[%s1 + $0x3e4] sm:$0xf]
        %v428 = vld [vmem:[%s1 + $0x3e8] sm:$0xf]
        %v429 = vld [vmem:[%s1 + $0x3ec] sm:$0xf]
        %v430 = vld [vmem:[%s1 + $0x3f0] sm:$0xf]
        %v431 = vld [vmem:[%s1 + $0x3f4] sm:$0xf]
        %v432 = vld [vmem:[%s1 + $0x3f8] sm:$0xf]
        %v433 = vld [vmem:[%s1 + $0x3fc] sm:$0xf]
        %v434 = vld [vmem:[%s1 + $0x400] sm:$0xf]
        %v435 = vld [vmem:[%s1 + $0x404] sm:$0xf]
        %v436 = vld [vmem:[%s1 + $0x408] sm:$0xf]
        %v437 = vld [vmem:[%s1 + $0x40c] sm:$0xf]
        %v438 = vld [vmem:[%s1 + $0x410] sm:$0xf]
        %v439 = vld [vmem:[%s1 + $0x414] sm:$0xf]
        %v440 = vld [vmem:[%s1 + $0x418] sm:$0xf]
        %v441 = vld [vmem:[%s1 + $0x41c] sm:$0xf]
        %v442 = vld [vmem:[%s1 + $0x420] sm:$0xf]
        %v443 = vld [vmem:[%s1 + $0x424] sm:$0xf]
        %v444 = vld [vmem:[%s1 + $0x428] sm:$0xf]
        %v445 = vld [vmem:[%s1 + $0x42c] sm:$0xf]
        %v446 = vld [vmem:[%s1 + $0x430] sm:$0xf]
        %v447 = vld [vmem:[%s1 + $0x434] sm:$0xf]
        %v448 = vld [vmem:[%s1 + $0x438] sm:$0xf]
        %v449 = vld [vmem:[%s1 + $0x43c] sm:$0xf]
        %v450 = vld [vmem:[%s1 + $0x440] sm:$0xf]
        %v451 = vld [vmem:[%s1 + $0x444] sm:$0xf]
        %v452 = vld [vmem:[%s1 + $0x448] sm:$0xf]
        %v453 = vld [vmem:[%s1 + $0x44c] sm:$0xf]
        %v454 = vld [vmem:[%s1 + $0x450] sm:$0xf]
        %v455 = vld [vmem:[%s1 + $0x454] sm:$0xf]
        %v456 = vld [vmem:[%s1 + $0x458] sm:$0xf]
        %v457 = vld [vmem:[%s1 + $0x45c] sm:$0xf]
        %v458 = vld [vmem:[%s1 + $0x460] sm:$0xf]
        %v459 = vld [vmem:[%s1 + $0x464] sm:$0xf]
        %v460 = vld [vmem:[%s1 + $0x468] sm:$0xf]
        %v461 = vld [vmem:[%s1 + $0x46c] sm:$0xf]
        %v462 = vld [vmem:[%s1 + $0x470] sm:$0xf]
        %v463 = vld [vmem:[%s1 + $0x474] sm:$0xf]
        %v464 = vld [vmem:[%s1 + $0x478] sm:$0xf]
        %v465 = vld [vmem:[%s1 + $0x47c] sm:$0xf]
        %v466 = vld [vmem:[%s1 + $0x480] sm:$0xf]
        %v467 = vld [vmem:[%s1 + $0x484] sm:$0xf]
        %v468 = vld [vmem:[%s1 + $0x488] sm:$0xf]
        %v469 = vld [vmem:[%s1 + $0x48c] sm:$0xf]
        %v470 = vld [vmem:[%s1 + $0x490] sm:$0xf]
        %v471 = vld [vmem:[%s1 + $0x494] sm:$0xf]
        %v472 = vld [vmem:[%s1 + $0x498] sm:$0xf]
        %v473 = vld [vmem:[%s1 + $0x49c] sm:$0xf]
        %v474 = vld [vmem:[%s1 + $0x4a0] sm:$0xf]
        %v475 = vld [vmem:[%s1 + $0x4a4] sm:$0xf]
        %v476 = vld [vmem:[%s1 + $0x4a8] sm:$0xf]
        %v477 = vld [vmem:[%s1 + $0x4ac] sm:$0xf]
        %v478 = vld [vmem:[%s1 + $0x4b0] sm:$0xf]
        %v479 = vld [vmem:[%s1 + $0x4b4] sm:$0xf]
        %v480 = vld [vmem:[%s1 + $0x4b8] sm:$0xf]
        %v481 = vld [vmem:[%s1 + $0x4bc] sm:$0xf]
        %v482 = vld [vmem:[%s1 + $0x4c0] sm:$0xf]
        %v483 = vld [vmem:[%s1 + $0x4c4] sm:$0xf]
        %v484 = vld [vmem:[%s1 + $0x4c8] sm:$0xf]
        %v485 = vld [vmem:[%s1 + $0x4cc] sm:$0xf]
        %v486 = vld [vmem:[%s1 + $0x4d0] sm:$0xf]
        %v487 = vld [vmem:[%s1 + $0x4d4] sm:$0xf]
        %v488 = vld [vmem:[%s1 + $0x4d8] sm:$0xf]
        %v489 = vld [vmem:[%s1 + $0x4dc] sm:$0xf]
        %v490 = vld [vmem:[%s1 + $0x4e0] sm:$0xf]
        %v491 = vld [vmem:[%s1 + $0x4e4] sm:$0xf]
        %v492 = vld [vmem:[%s1 + $0x4e8] sm:$0xf]
        %v493 = vld [vmem:[%s1 + $0x4ec] sm:$0xf]
        %v494 = vld [vmem:[%s1 + $0x4f0] sm:$0xf]
        %v495 = vld [vmem:[%s1 + $0x4f4] sm:$0xf]
        %v496 = vld [vmem:[%s1 + $0x4f8] sm:$0xf]
        %v497 = vld [vmem:[%s1 + $0x4fc] sm:$0xf]
        %v498 = vld [vmem:[%s1 + $0x500] sm:$0xf]
        %v499 = vld [vmem:[%s1 + $0x504] sm:$0xf]
        %v500 = vld [vmem:[%s1 + $0x508] sm:$0xf]
        %v501 = vld [vmem:[%s1 + $0x50c] sm:$0xf]
        %v502 = vld [vmem:[%s1 + $0x510] sm:$0xf]
        %v503 = vld [vmem:[%s1 + $0x514] sm:$0xf]
        %v504 = vld [vmem:[%s1 + $0x518] sm:$0xf]
        %v505 = vld [vmem:[%s1 + $0x51c] sm:$0xf]
        %v506 = vld [vmem:[%s1 + $0x520] sm:$0xf]
        %v507 = vld [vmem:[%s1 + $0x524] sm:$0xf]
        %v508 = vld [vmem:[%s1 + $0x528] sm:$0xf]
        %v509 = vld [vmem:[%s1 + $0x52c] sm:$0xf]
        %v510 = vld [vmem:[%s1 + $0x530] sm:$0xf]
        %v511 = vld [vmem:[%s1 + $0x534] sm:$0xf]
        %v512 = vld [vmem:[%s1 + $0x538] sm:$0xf]
        %v513 = vld [vmem:[%s1 + $0x53c] sm:$0xf]
        %v514 = vld [vmem:[%s1 + $0x540] sm:$0xf]
        %v515 = vld [vmem:[%s1 + $0x544] sm:$0xf]
        %v516 = vld [vmem:[%s1 + $0x548] sm:$0xf]
        %v517 = vld [vmem:[%s1 + $0x54c] sm:$0xf]
        %v518 = vld [vmem:[%s1 + $0x550] sm:$0xf]
        %v519 = vld [vmem:[%s1 + $0x554] sm:$0xf]
        %v520 = vld [vmem:[%s1 + $0x558] sm:$0xf]
        %v521 = vld [vmem:[%s1 + $0x55c] sm:$0xf]
        %v522 = vld [vmem:[%s1 + $0x560] sm:$0xf]
        %v523 = vld [vmem:[%s1 + $0x564] sm:$0xf]
        %v524 = vld [vmem:[%s1 + $0x568] sm:$0xf]
        %v525 = vld [vmem:[%s1 + $0x56c] sm:$0xf]
        %v526 = vld [vmem:[%s1 + $0x570] sm:$0xf]
        %v527 = vld [vmem:[%s1 + $0x574] sm:$0xf]
        %v528 = vld [vmem:[%s1 + $0x578] sm:$0xf]
        %v529 = vld [vmem:[%s1 + $0x57c] sm:$0xf]
        %v530 = vld [vmem:[%s1 + $0x580] sm:$0xf]
        %v531 = vld [vmem:[%s1 + $0x584] sm:$0xf]
        %v532 = vld [vmem:[%s1 + $0x588] sm:$0xf]
        %v533 = vld [vmem:[%s1 + $0x58c] sm:$0xf]
        %v534 = vld [vmem:[%s1 + $0x590] sm:$0xf]
        %v535 = vld [vmem:[%s1 + $0x594] sm:$0xf]
        %v536 = vld [vmem:[%s1 + $0x598] sm:$0xf]
        %v537 = vld [vmem:[%s1 + $0x59c] sm:$0xf]
        %v538 = vld [vmem:[%s1 + $0x5a0] sm:$0xf]
        %v539 = vld [vmem:[%s1 + $0x5a4] sm:$0xf]
        %v540 = vld [vmem:[%s1 + $0x5a8] sm:$0xf]
        %v541 = vld [vmem:[%s1 + $0x5ac] sm:$0xf]
        %v542 = vld [vmem:[%s1 + $0x5b0] sm:$0xf]
        %v543 = vld [vmem:[%s1 + $0x5b4] sm:$0xf]
        %v544 = vld [vmem:[%s1 + $0x5b8] sm:$0xf]
        %v545 = vld [vmem:[%s1 + $0x5bc] sm:$0xf]
        %v546 = vld [vmem:[%s1 + $0x5c0] sm:$0xf]
        %v547 = vld [vmem:[%s1 + $0x5c4] sm:$0xf]
        %v548 = vld [vmem:[%s1 + $0x5c8] sm:$0xf]
        %v549 = vld [vmem:[%s1 + $0x5cc] sm:$0xf]
        %v550 = vld [vmem:[%s1 + $0x5d0] sm:$0xf]
        %v551 = vld [vmem:[%s1 + $0x5d4] sm:$0xf]
        %v552 = vld [vmem:[%s1 + $0x5d8] sm:$0xf]
        %v553 = vld [vmem:[%s1 + $0x5dc] sm:$0xf]
        %v554 = vld [vmem:[%s1 + $0x5e0] sm:$0xf]
        %v555 = vld [vmem:[%s1 + $0x5e4] sm:$0xf]
        %v556 = vld [vmem:[%s1 + $0x5e8] sm:$0xf]
        %v557 = vld [vmem:[%s1 + $0x5ec] sm:$0xf]
        %v558 = vld [vmem:[%s1 + $0x5f0] sm:$0xf]
        %v559 = vld [vmem:[%s1 + $0x5f4] sm:$0xf]
        %v560 = vld [vmem:[%s1 + $0x5f8] sm:$0xf]
        %v561 = vld [vmem:[%s1 + $0x5fc] sm:$0xf]
        %v562 = vld [vmem:[%s1 + $0x600] sm:$0xf]
        %v563 = vld [vmem:[%s1 + $0x604] sm:$0xf]
        %v564 = vld [vmem:[%s1 + $0x608] sm:$0xf]
        %v565 = vld [vmem:[%s1 + $0x60c] sm:$0xf]
        %v566 = vld [vmem:[%s1 + $0x610] sm:$0xf]
        %v567 = vld [vmem:[%s1 + $0x614] sm:$0xf]
        %v568 = vld [vmem:[%s1 + $0x618] sm:$0xf]
        %v569 = vld [vmem:[%s1 + $0x61c] sm:$0xf]
        %v570 = vld [vmem:[%s1 + $0x620] sm:$0xf]
        %v571 = vld [vmem:[%s1 + $0x624] sm:$0xf]
        %v572 = vld [vmem:[%s1 + $0x628] sm:$0xf]
        %v573 = vld [vmem:[%s1 + $0x62c] sm:$0xf]
        %v574 = vld [vmem:[%s1 + $0x630] sm:$0xf]
        %v575 = vld [vmem:[%s1 + $0x634] sm:$0xf]
        %v576 = vld [vmem:[%s1 + $0x638] sm:$0xf]
        %v577 = vld [vmem:[%s1 + $0x63c] sm:$0xf]
        %v578 = vld [vmem:[%s1 + $0x640] sm:$0xf]
        %v579 = vld [vmem:[%s1 + $0x644] sm:$0xf]
        %v580 = vld [vmem:[%s1 + $0x648] sm:$0xf]
        %v581 = vld [vmem:[%s1 + $0x64c] sm:$0xf]
        %v582 = vld [vmem:[%s1 + $0x650] sm:$0xf]
        %v583 = vld [vmem:[%s1 + $0x654] sm:$0xf]
        %v584 = vld [vmem:[%s1 + $0x658] sm:$0xf]
        %v585 = vld [vmem:[%s1 + $0x65c] sm:$0xf]
        %v586 = vld [vmem:[%s1 + $0x660] sm:$0xf]
        %v587 = vld [vmem:[%s1 + $0x664] sm:$0xf]
        %v588 = vld [vmem:[%s1 + $0x668] sm:$0xf]
        %v589 = vld [vmem:[%s1 + $0x66c] sm:$0xf]
        %v590 = vld [vmem:[%s1 + $0x670] sm:$0xf]
        %v591 = vld [vmem:[%s1 + $0x674] sm:$0xf]
        %v592 = vld [vmem:[%s1 + $0x678] sm:$0xf]
        %v593 = vld [vmem:[%s1 + $0x67c] sm:$0xf]
        %v594 = vld [vmem:[%s1 + $0x680] sm:$0xf]
        %v595 = vld [vmem:[%s1 + $0x684] sm:$0xf]
        %v596 = vld [vmem:[%s1 + $0x688] sm:$0xf]
        %v597 = vld [vmem:[%s1 + $0x68c] sm:$0xf]
        %v598 = vld [vmem:[%s1 + $0x690] sm:$0xf]
        %v599 = vld [vmem:[%s1 + $0x694] sm:$0xf]
        %v600 = vld [vmem:[%s1 + $0x698] sm:$0xf]
        %v601 = vld [vmem:[%s1 + $0x69c] sm:$0xf]
        %v602 = vld [vmem:[%s1 + $0x6a0] sm:$0xf]
        %v603 = vld [vmem:[%s1 + $0x6a4] sm:$0xf]
        %v604 = vld [vmem:[%s1 + $0x6a8] sm:$0xf]
        %v605 = vld [vmem:[%s1 + $0x6ac] sm:$0xf]
        %v606 = vld [vmem:[%s1 + $0x6b0] sm:$0xf]
        %v607 = vld [vmem:[%s1 + $0x6b4] sm:$0xf]
        %v608 = vld [vmem:[%s1 + $0x6b8] sm:$0xf]
        %v609 = vld [vmem:[%s1 + $0x6bc] sm:$0xf]
        %v610 = vld [vmem:[%s1 + $0x6c0] sm:$0xf]
        %v611 = vld [vmem:[%s1 + $0x6c4] sm:$0xf]
        %v612 = vld [vmem:[%s1 + $0x6c8] sm:$0xf]
        %v613 = vld [vmem:[%s1 + $0x6cc] sm:$0xf]
        %v614 = vld [vmem:[%s1 + $0x6d0] sm:$0xf]
        %v615 = vld [vmem:[%s1 + $0x6d4] sm:$0xf]
        %v616 = vld [vmem:[%s1 + $0x6d8] sm:$0xf]
        %v617 = vld [vmem:[%s1 + $0x6dc] sm:$0xf]
        %v618 = vld [vmem:[%s1 + $0x6e0] sm:$0xf]
        %v619 = vld [vmem:[%s1 + $0x6e4] sm:$0xf]
        %v620 = vld [vmem:[%s1 + $0x6e8] sm:$0xf]
        %v621 = vld [vmem:[%s1 + $0x6ec] sm:$0xf]
        %v622 = vld [vmem:[%s1 + $0x6f0] sm:$0xf]
        %v623 = vld [vmem:[%s1 + $0x6f4] sm:$0xf]
        %v624 = vld [vmem:[%s1 + $0x6f8] sm:$0xf]
        %v625 = vld [vmem:[%s1 + $0x6fc] sm:$0xf]
        %v626 = vld [vmem:[%s1 + $0x700] sm:$0xf]
        %v627 = vld [vmem:[%s1 + $0x704] sm:$0xf]
        %v628 = vld [vmem:[%s1 + $0x708] sm:$0xf]
        %v629 = vld [vmem:[%s1 + $0x70c] sm:$0xf]
        %v630 = vld [vmem:[%s1 + $0x710] sm:$0xf]
        %v631 = vld [vmem:[%s1 + $0x714] sm:$0xf]
        %v632 = vld [vmem:[%s1 + $0x718] sm:$0xf]
        %v633 = vld [vmem:[%s1 + $0x71c] sm:$0xf]
        %v634 = vld [vmem:[%s1 + $0x720] sm:$0xf]
        %v635 = vld [vmem:[%s1 + $0x724] sm:$0xf]
        %v636 = vld [vmem:[%s1 + $0x728] sm:$0xf]
        %v637 = vld [vmem:[%s1 + $0x72c] sm:$0xf]
        %v638 = vld [vmem:[%s1 + $0x730] sm:$0xf]
        %v639 = vld [vmem:[%s1 + $0x734] sm:$0xf]
        %v640 = vld [vmem:[%s1 + $0x738] sm:$0xf]
        %v641 = vld [vmem:[%s1 + $0x73c] sm:$0xf]
        %v642 = vld [vmem:[%s1 + $0x740] sm:$0xf]
        %v643 = vld [vmem:[%s1 + $0x744] sm:$0xf]
        %v644 = vld [vmem:[%s1 + $0x748] sm:$0xf]
        %v645 = vld [vmem:[%s1 + $0x74c] sm:$0xf]
        %v646 = vld [vmem:[%s1 + $0x750] sm:$0xf]
        %v647 = vld [vmem:[%s1 + $0x754] sm:$0xf]
        %v648 = vld [vmem:[%s1 + $0x758] sm:$0xf]
        %v649 = vld [vmem:[%s1 + $0x75c] sm:$0xf]
        %v650 = vld [vmem:[%s1 + $0x760] sm:$0xf]
        %v651 = vld [vmem:[%s1 + $0x764] sm:$0xf]
        %v652 = vld [vmem:[%s1 + $0x768] sm:$0xf]
        %v653 = vld [vmem:[%s1 + $0x76c] sm:$0xf]
        %v654 = vld [vmem:[%s1 + $0x770] sm:$0xf]
        %v655 = vld [vmem:[%s1 + $0x774] sm:$0xf]
        %v656 = vld [vmem:[%s1 + $0x778] sm:$0xf]
        %v657 = vld [vmem:[%s1 + $0x77c] sm:$0xf]
        %v658 = vld [vmem:[%s1 + $0x780] sm:$0xf]
        %v659 = vld [vmem:[%s1 + $0x784] sm:$0xf]
        %v660 = vld [vmem:[%s1 + $0x788] sm:$0xf]
        %v661 = vld [vmem:[%s1 + $0x78c] sm:$0xf]
        %v662 = vld [vmem:[%s1 + $0x790] sm:$0xf]
        %v663 = vld [vmem:[%s1 + $0x794] sm:$0xf]
        %v664 = vld [vmem:[%s1 + $0x798] sm:$0xf]
        %v665 = vld [vmem:[%s1 + $0x79c] sm:$0xf]
        %v666 = vld [vmem:[%s1 + $0x7a0] sm:$0xf]
        %v667 = vld [vmem:[%s1 + $0x7a4] sm:$0xf]
        %v668 = vld [vmem:[%s1 + $0x7a8] sm:$0xf]
        %v669 = vld [vmem:[%s1 + $0x7ac] sm:$0xf]
        %v670 = vld [vmem:[%s1 + $0x7b0] sm:$0xf]
        %v671 = vld [vmem:[%s1 + $0x7b4] sm:$0xf]
        %v672 = vld [vmem:[%s1 + $0x7b8] sm:$0xf]
        %v673 = vld [vmem:[%s1 + $0x7bc] sm:$0xf]
        %v674 = vld [vmem:[%s1 + $0x7c0] sm:$0xf]
        %v675 = vld [vmem:[%s1 + $0x7c4] sm:$0xf]
        %v676 = vld [vmem:[%s1 + $0x7c8] sm:$0xf]
        %v677 = vld [vmem:[%s1 + $0x7cc] sm:$0xf]
        %v678 = vld [vmem:[%s1 + $0x7d0] sm:$0xf]
        %v679 = vld [vmem:[%s1 + $0x7d4] sm:$0xf]
        %v680 = vld [vmem:[%s1 + $0x7d8] sm:$0xf]
        %v681 = vld [vmem:[%s1 + $0x7dc] sm:$0xf]
        %v682 = vld [vmem:[%s1 + $0x7e0] sm:$0xf]
        %v683 = vld [vmem:[%s1 + $0x7e4] sm:$0xf]
        %v684 = vld [vmem:[%s1 + $0x7e8] sm:$0xf]
        %v685 = vld [vmem:[%s1 + $0x7ec] sm:$0xf]
        %v686 = vld [vmem:[%s1 + $0x7f0] sm:$0xf]
        %v687 = vld [vmem:[%s1 + $0x7f4] sm:$0xf]
        %v688 = vld [vmem:[%s1 + $0x7f8] sm:$0xf]
        %v689 = vld [vmem:[%s1 + $0x7fc] sm:$0xf]
        %v690 = vld [vmem:[%s2] sm:$0x1]
        %v692 = vlaneseq
        %v693 = vshrl.u32 %v692, 7
        %v694 = vsub.s32 0, %v693
        %v695 = vrot.slane %v690, %v694
        %v705 = vcombine.high %v170, %v170
        %v707 = vunpack.c.l.s4 1983009808
        %v708 = vunpack.c.0.s8 %v707
        %v709 = vlaneseq
        %v710 = vshrl.u32 %v709, 7
        %v711 = vsub.s32 %v708, %v710
        %v712 = vrot.slane %v170, %v711
        %v714 = vunpack.c.l.s4 1983009808
        %v715 = vunpack.c.0.s8 %v714
        %v716 = vlaneseq
        %v717 = vshrl.u32 %v716, 7
        %v718 = vsub.s32 %v715, %v717
        %v719 = vrot.slane %v705, %v718
        %v720 = vcombine.high %v712, %v712
        %v721 = vcombine.high %v719, %v719
        %v722 = vcombine.high %v171, %v171
        %v724 = vunpack.c.l.s4 1983009808
        %v725 = vunpack.c.0.s8 %v724
        %v726 = vlaneseq
        %v727 = vshrl.u32 %v726, 7
        %v728 = vsub.s32 %v725, %v727
        %v729 = vrot.slane %v171, %v728
        %v731 = vunpack.c.l.s4 1983009808
        %v732 = vunpack.c.0.s8 %v731
        %v733 = vlaneseq
        %v734 = vshrl.u32 %v733, 7
        %v735 = vsub.s32 %v732, %v734
        %v736 = vrot.slane %v722, %v735
        %v737 = vcombine.high %v729, %v729
        %v738 = vcombine.high %v736, %v736
        %v739 = vcombine.high %v172, %v172
        %v741 = vunpack.c.l.s4 1983009808
        %v742 = vunpack.c.0.s8 %v741
        %v743 = vlaneseq
        %v744 = vshrl.u32 %v743, 7
        %v745 = vsub.s32 %v742, %v744
        %v746 = vrot.slane %v172, %v745
        %v748 = vunpack.c.l.s4 1983009808
        %v749 = vunpack.c.0.s8 %v748
        %v750 = vlaneseq
        %v751 = vshrl.u32 %v750, 7
        %v752 = vsub.s32 %v749, %v751
        %v753 = vrot.slane %v739, %v752
        %v754 = vcombine.high %v746, %v746
        %v755 = vcombine.high %v753, %v753
        %v756 = vcombine.high %v173, %v173
        %v758 = vunpack.c.l.s4 1983009808
        %v759 = vunpack.c.0.s8 %v758
        %v760 = vlaneseq
        %v761 = vshrl.u32 %v760, 7
        %v762 = vsub.s32 %v759, %v761
        %v763 = vrot.slane %v173, %v762
        %v765 = vunpack.c.l.s4 1983009808
        %v766 = vunpack.c.0.s8 %v765
        %v767 = vlaneseq
        %v768 = vshrl.u32 %v767, 7
        %v769 = vsub.s32 %v766, %v768
        %v770 = vrot.slane %v756, %v769
        %v771 = vcombine.high %v763, %v763
        %v772 = vcombine.high %v770, %v770
        %v773 = vcombine.high %v174, %v174
        %v775 = vunpack.c.l.s4 1983009808
        %v776 = vunpack.c.0.s8 %v775
        %v777 = vlaneseq
        %v778 = vshrl.u32 %v777, 7
        %v779 = vsub.s32 %v776, %v778
        %v780 = vrot.slane %v174, %v779
        %v782 = vunpack.c.l.s4 1983009808
        %v783 = vunpack.c.0.s8 %v782
        %v784 = vlaneseq
        %v785 = vshrl.u32 %v784, 7
        %v786 = vsub.s32 %v783, %v785
        %v787 = vrot.slane %v773, %v786
        %v788 = vcombine.high %v780, %v780
        %v789 = vcombine.high %v787, %v787
        %v790 = vcombine.high %v175, %v175
        %v792 = vunpack.c.l.s4 1983009808
        %v793 = vunpack.c.0.s8 %v792
        %v794 = vlaneseq
        %v795 = vshrl.u32 %v794, 7
        %v796 = vsub.s32 %v793, %v795
        %v797 = vrot.slane %v175, %v796
        %v799 = vunpack.c.l.s4 1983009808
        %v800 = vunpack.c.0.s8 %v799
        %v801 = vlaneseq
        %v802 = vshrl.u32 %v801, 7
        %v803 = vsub.s32 %v800, %v802
        %v804 = vrot.slane %v790, %v803
        %v805 = vcombine.high %v797, %v797
        %v806 = vcombine.high %v804, %v804
        %v807 = vcombine.high %v176, %v176
        %v809 = vunpack.c.l.s4 1983009808
        %v810 = vunpack.c.0.s8 %v809
        %v811 = vlaneseq
        %v812 = vshrl.u32 %v811, 7
        %v813 = vsub.s32 %v810, %v812
        %v814 = vrot.slane %v176, %v813
        %v816 = vunpack.c.l.s4 1983009808
        %v817 = vunpack.c.0.s8 %v816
        %v818 = vlaneseq
        %v819 = vshrl.u32 %v818, 7
        %v820 = vsub.s32 %v817, %v819
        %v821 = vrot.slane %v807, %v820
        %v822 = vcombine.high %v814, %v814
        %v823 = vcombine.high %v821, %v821
        %v824 = vcombine.high %v177, %v177
        %v826 = vunpack.c.l.s4 1983009808
        %v827 = vunpack.c.0.s8 %v826
        %v828 = vlaneseq
        %v829 = vshrl.u32 %v828, 7
        %v830 = vsub.s32 %v827, %v829
        %v831 = vrot.slane %v177, %v830
        %v833 = vunpack.c.l.s4 1983009808
        %v834 = vunpack.c.0.s8 %v833
        %v835 = vlaneseq
        %v836 = vshrl.u32 %v835, 7
        %v837 = vsub.s32 %v834, %v836
        %v838 = vrot.slane %v824, %v837
        %v839 = vcombine.high %v831, %v831
        %v840 = vcombine.high %v838, %v838
        %v1385 = vunpack.c.l.b16 %v178
        %v1386 = vunpack.c.l.b16 %v179
        %v1387 = vunpack.c.l.b16 %v180
        %v1388 = vunpack.c.l.b16 %v181
        %v1389 = vunpack.c.l.b16 %v182
        %v1390 = vunpack.c.l.b16 %v183
        %v1391 = vunpack.c.l.b16 %v184
        %v1392 = vunpack.c.l.b16 %v185
        %v1393 = vunpack.c.l.b16 %v186
        %v1394 = vunpack.c.l.b16 %v187
        %v1395 = vunpack.c.l.b16 %v188
        %v1396 = vunpack.c.l.b16 %v189
        %v1397 = vunpack.c.l.b16 %v190
        %v1398 = vunpack.c.l.b16 %v191
        %v1399 = vunpack.c.l.b16 %v192
        %v1400 = vunpack.c.l.b16 %v193
        %v1401 = vunpack.c.l.b16 %v194
        %v1402 = vunpack.c.l.b16 %v195
        %v1403 = vunpack.c.l.b16 %v196
        %v1404 = vunpack.c.l.b16 %v197
        %v1405 = vunpack.c.l.b16 %v198
        %v1406 = vunpack.c.l.b16 %v199
        %v1407 = vunpack.c.l.b16 %v200
        %v1408 = vunpack.c.l.b16 %v201
        %v1409 = vunpack.c.l.b16 %v202
        %v1410 = vunpack.c.l.b16 %v203
        %v1411 = vunpack.c.l.b16 %v204
        %v1412 = vunpack.c.l.b16 %v205
        %v1413 = vunpack.c.l.b16 %v206
        %v1414 = vunpack.c.l.b16 %v207
        %v1415 = vunpack.c.l.b16 %v208
        %v1416 = vunpack.c.l.b16 %v209
        %v1417 = vunpack.c.l.b16 %v210
        %v1418 = vunpack.c.l.b16 %v211
        %v1419 = vunpack.c.l.b16 %v212
        %v1420 = vunpack.c.l.b16 %v213
        %v1421 = vunpack.c.l.b16 %v214
        %v1422 = vunpack.c.l.b16 %v215
        %v1423 = vunpack.c.l.b16 %v216
        %v1424 = vunpack.c.l.b16 %v217
        %v1425 = vunpack.c.l.b16 %v218
        %v1426 = vunpack.c.l.b16 %v219
        %v1427 = vunpack.c.l.b16 %v220
        %v1428 = vunpack.c.l.b16 %v221
        %v1429 = vunpack.c.l.b16 %v222
        %v1430 = vunpack.c.l.b16 %v223
        %v1431 = vunpack.c.l.b16 %v224
        %v1432 = vunpack.c.l.b16 %v225
        %v1433 = vunpack.c.l.b16 %v226
        %v1434 = vunpack.c.l.b16 %v227
        %v1435 = vunpack.c.l.b16 %v228
        %v1436 = vunpack.c.l.b16 %v229
        %v1437 = vunpack.c.l.b16 %v230
        %v1438 = vunpack.c.l.b16 %v231
        %v1439 = vunpack.c.l.b16 %v232
        %v1440 = vunpack.c.l.b16 %v233
        %v1441 = vunpack.c.l.b16 %v234
        %v1442 = vunpack.c.l.b16 %v235
        %v1443 = vunpack.c.l.b16 %v236
        %v1444 = vunpack.c.l.b16 %v237
        %v1445 = vunpack.c.l.b16 %v238
        %v1446 = vunpack.c.l.b16 %v239
        %v1447 = vunpack.c.l.b16 %v240
        %v1448 = vunpack.c.l.b16 %v241
        %v1449 = vunpack.c.l.b16 %v242
        %v1450 = vunpack.c.l.b16 %v243
        %v1451 = vunpack.c.l.b16 %v244
        %v1452 = vunpack.c.l.b16 %v245
        %v1453 = vunpack.c.l.b16 %v246
        %v1454 = vunpack.c.l.b16 %v247
        %v1455 = vunpack.c.l.b16 %v248
        %v1456 = vunpack.c.l.b16 %v249
        %v1457 = vunpack.c.l.b16 %v250
        %v1458 = vunpack.c.l.b16 %v251
        %v1459 = vunpack.c.l.b16 %v252
        %v1460 = vunpack.c.l.b16 %v253
        %v1461 = vunpack.c.l.b16 %v254
        %v1462 = vunpack.c.l.b16 %v255
        %v1463 = vunpack.c.l.b16 %v256
        %v1464 = vunpack.c.l.b16 %v257
        %v1465 = vunpack.c.l.b16 %v258
        %v1466 = vunpack.c.l.b16 %v259
        %v1467 = vunpack.c.l.b16 %v260
        %v1468 = vunpack.c.l.b16 %v261
        %v1469 = vunpack.c.l.b16 %v262
        %v1470 = vunpack.c.l.b16 %v263
        %v1471 = vunpack.c.l.b16 %v264
        %v1472 = vunpack.c.l.b16 %v265
        %v1473 = vunpack.c.l.b16 %v266
        %v1474 = vunpack.c.l.b16 %v267
        %v1475 = vunpack.c.l.b16 %v268
        %v1476 = vunpack.c.l.b16 %v269
        %v1477 = vunpack.c.l.b16 %v270
        %v1478 = vunpack.c.l.b16 %v271
        %v1479 = vunpack.c.l.b16 %v272
        %v1480 = vunpack.c.l.b16 %v273
        %v1481 = vunpack.c.l.b16 %v274
        %v1482 = vunpack.c.l.b16 %v275
        %v1483 = vunpack.c.l.b16 %v276
        %v1484 = vunpack.c.l.b16 %v277
        %v1485 = vunpack.c.l.b16 %v278
        %v1486 = vunpack.c.l.b16 %v279
        %v1487 = vunpack.c.l.b16 %v280
        %v1488 = vunpack.c.l.b16 %v281
        %v1489 = vunpack.c.l.b16 %v282
        %v1490 = vunpack.c.l.b16 %v283
        %v1491 = vunpack.c.l.b16 %v284
        %v1492 = vunpack.c.l.b16 %v285
        %v1493 = vunpack.c.l.b16 %v286
        %v1494 = vunpack.c.l.b16 %v287
        %v1495 = vunpack.c.l.b16 %v288
        %v1496 = vunpack.c.l.b16 %v289
        %v1497 = vunpack.c.l.b16 %v290
        %v1498 = vunpack.c.l.b16 %v291
        %v1499 = vunpack.c.l.b16 %v292
        %v1500 = vunpack.c.l.b16 %v293
        %v1501 = vunpack.c.l.b16 %v294
        %v1502 = vunpack.c.l.b16 %v295
        %v1503 = vunpack.c.l.b16 %v296
        %v1504 = vunpack.c.l.b16 %v297
        %v1505 = vunpack.c.l.b16 %v298
        %v1506 = vunpack.c.l.b16 %v299
        %v1507 = vunpack.c.l.b16 %v300
        %v1508 = vunpack.c.l.b16 %v301
        %v1509 = vunpack.c.l.b16 %v302
        %v1510 = vunpack.c.l.b16 %v303
        %v1511 = vunpack.c.l.b16 %v304
        %v1512 = vunpack.c.l.b16 %v305
        %v1513 = vunpack.c.l.b16 %v306
        %v1514 = vunpack.c.l.b16 %v307
        %v1515 = vunpack.c.l.b16 %v308
        %v1516 = vunpack.c.l.b16 %v309
        %v1517 = vunpack.c.l.b16 %v310
        %v1518 = vunpack.c.l.b16 %v311
        %v1519 = vunpack.c.l.b16 %v312
        %v1520 = vunpack.c.l.b16 %v313
        %v1521 = vunpack.c.l.b16 %v314
        %v1522 = vunpack.c.l.b16 %v315
        %v1523 = vunpack.c.l.b16 %v316
        %v1524 = vunpack.c.l.b16 %v317
        %v1525 = vunpack.c.l.b16 %v318
        %v1526 = vunpack.c.l.b16 %v319
        %v1527 = vunpack.c.l.b16 %v320
        %v1528 = vunpack.c.l.b16 %v321
        %v1529 = vunpack.c.l.b16 %v322
        %v1530 = vunpack.c.l.b16 %v323
        %v1531 = vunpack.c.l.b16 %v324
        %v1532 = vunpack.c.l.b16 %v325
        %v1533 = vunpack.c.l.b16 %v326
        %v1534 = vunpack.c.l.b16 %v327
        %v1535 = vunpack.c.l.b16 %v328
        %v1536 = vunpack.c.l.b16 %v329
        %v1537 = vunpack.c.l.b16 %v330
        %v1538 = vunpack.c.l.b16 %v331
        %v1539 = vunpack.c.l.b16 %v332
        %v1540 = vunpack.c.l.b16 %v333
        %v1541 = vunpack.c.l.b16 %v334
        %v1542 = vunpack.c.l.b16 %v335
        %v1543 = vunpack.c.l.b16 %v336
        %v1544 = vunpack.c.l.b16 %v337
        %v1545 = vunpack.c.l.b16 %v338
        %v1546 = vunpack.c.l.b16 %v339
        %v1547 = vunpack.c.l.b16 %v340
        %v1548 = vunpack.c.l.b16 %v341
        %v1549 = vunpack.c.l.b16 %v342
        %v1550 = vunpack.c.l.b16 %v343
        %v1551 = vunpack.c.l.b16 %v344
        %v1552 = vunpack.c.l.b16 %v345
        %v1553 = vunpack.c.l.b16 %v346
        %v1554 = vunpack.c.l.b16 %v347
        %v1555 = vunpack.c.l.b16 %v348
        %v1556 = vunpack.c.l.b16 %v349
        %v1557 = vunpack.c.l.b16 %v350
        %v1558 = vunpack.c.l.b16 %v351
        %v1559 = vunpack.c.l.b16 %v352
        %v1560 = vunpack.c.l.b16 %v353
        %v1561 = vunpack.c.l.b16 %v354
        %v1562 = vunpack.c.l.b16 %v355
        %v1563 = vunpack.c.l.b16 %v356
        %v1564 = vunpack.c.l.b16 %v357
        %v1565 = vunpack.c.l.b16 %v358
        %v1566 = vunpack.c.l.b16 %v359
        %v1567 = vunpack.c.l.b16 %v360
        %v1568 = vunpack.c.l.b16 %v361
        %v1569 = vunpack.c.l.b16 %v362
        %v1570 = vunpack.c.l.b16 %v363
        %v1571 = vunpack.c.l.b16 %v364
        %v1572 = vunpack.c.l.b16 %v365
        %v1573 = vunpack.c.l.b16 %v366
        %v1574 = vunpack.c.l.b16 %v367
        %v1575 = vunpack.c.l.b16 %v368
        %v1576 = vunpack.c.l.b16 %v369
        %v1577 = vunpack.c.l.b16 %v370
        %v1578 = vunpack.c.l.b16 %v371
        %v1579 = vunpack.c.l.b16 %v372
        %v1580 = vunpack.c.l.b16 %v373
        %v1581 = vunpack.c.l.b16 %v374
        %v1582 = vunpack.c.l.b16 %v375
        %v1583 = vunpack.c.l.b16 %v376
        %v1584 = vunpack.c.l.b16 %v377
        %v1585 = vunpack.c.l.b16 %v378
        %v1586 = vunpack.c.l.b16 %v379
        %v1587 = vunpack.c.l.b16 %v380
        %v1588 = vunpack.c.l.b16 %v381
        %v1589 = vunpack.c.l.b16 %v382
        %v1590 = vunpack.c.l.b16 %v383
        %v1591 = vunpack.c.l.b16 %v384
        %v1592 = vunpack.c.l.b16 %v385
        %v1593 = vunpack.c.l.b16 %v386
        %v1594 = vunpack.c.l.b16 %v387
        %v1595 = vunpack.c.l.b16 %v388
        %v1596 = vunpack.c.l.b16 %v389
        %v1597 = vunpack.c.l.b16 %v390
        %v1598 = vunpack.c.l.b16 %v391
        %v1599 = vunpack.c.l.b16 %v392
        %v1600 = vunpack.c.l.b16 %v393
        %v1601 = vunpack.c.l.b16 %v394
        %v1602 = vunpack.c.l.b16 %v395
        %v1603 = vunpack.c.l.b16 %v396
        %v1604 = vunpack.c.l.b16 %v397
        %v1605 = vunpack.c.l.b16 %v398
        %v1606 = vunpack.c.l.b16 %v399
        %v1607 = vunpack.c.l.b16 %v400
        %v1608 = vunpack.c.l.b16 %v401
        %v1609 = vunpack.c.l.b16 %v402
        %v1610 = vunpack.c.l.b16 %v403
        %v1611 = vunpack.c.l.b16 %v404
        %v1612 = vunpack.c.l.b16 %v405
        %v1613 = vunpack.c.l.b16 %v406
        %v1614 = vunpack.c.l.b16 %v407
        %v1615 = vunpack.c.l.b16 %v408
        %v1616 = vunpack.c.l.b16 %v409
        %v1617 = vunpack.c.l.b16 %v410
        %v1618 = vunpack.c.l.b16 %v411
        %v1619 = vunpack.c.l.b16 %v412
        %v1620 = vunpack.c.l.b16 %v413
        %v1621 = vunpack.c.l.b16 %v414
        %v1622 = vunpack.c.l.b16 %v415
        %v1623 = vunpack.c.l.b16 %v416
        %v1624 = vunpack.c.l.b16 %v417
        %v1625 = vunpack.c.l.b16 %v418
        %v1626 = vunpack.c.l.b16 %v419
        %v1627 = vunpack.c.l.b16 %v420
        %v1628 = vunpack.c.l.b16 %v421
        %v1629 = vunpack.c.l.b16 %v422
        %v1630 = vunpack.c.l.b16 %v423
        %v1631 = vunpack.c.l.b16 %v424
        %v1632 = vunpack.c.l.b16 %v425
        %v1633 = vunpack.c.l.b16 %v426
        %v1634 = vunpack.c.l.b16 %v427
        %v1635 = vunpack.c.l.b16 %v428
        %v1636 = vunpack.c.l.b16 %v429
        %v1637 = vunpack.c.l.b16 %v430
        %v1638 = vunpack.c.l.b16 %v431
        %v1639 = vunpack.c.l.b16 %v432
        %v1640 = vunpack.c.l.b16 %v433
        %v1641 = vunpack.c.l.b16 %v434
        %v1642 = vunpack.c.l.b16 %v435
        %v1643 = vunpack.c.l.b16 %v436
        %v1644 = vunpack.c.l.b16 %v437
        %v1645 = vunpack.c.l.b16 %v438
        %v1646 = vunpack.c.l.b16 %v439
        %v1647 = vunpack.c.l.b16 %v440
        %v1648 = vunpack.c.l.b16 %v441
        %v1649 = vunpack.c.l.b16 %v442
        %v1650 = vunpack.c.l.b16 %v443
        %v1651 = vunpack.c.l.b16 %v444
        %v1652 = vunpack.c.l.b16 %v445
        %v1653 = vunpack.c.l.b16 %v446
        %v1654 = vunpack.c.l.b16 %v447
        %v1655 = vunpack.c.l.b16 %v448
        %v1656 = vunpack.c.l.b16 %v449
        %v1657 = vunpack.c.l.b16 %v450
        %v1658 = vunpack.c.l.b16 %v451
        %v1659 = vunpack.c.l.b16 %v452
        %v1660 = vunpack.c.l.b16 %v453
        %v1661 = vunpack.c.l.b16 %v454
        %v1662 = vunpack.c.l.b16 %v455
        %v1663 = vunpack.c.l.b16 %v456
        %v1664 = vunpack.c.l.b16 %v457
        %v1665 = vunpack.c.l.b16 %v458
        %v1666 = vunpack.c.l.b16 %v459
        %v1667 = vunpack.c.l.b16 %v460
        %v1668 = vunpack.c.l.b16 %v461
        %v1669 = vunpack.c.l.b16 %v462
        %v1670 = vunpack.c.l.b16 %v463
        %v1671 = vunpack.c.l.b16 %v464
        %v1672 = vunpack.c.l.b16 %v465
        %v1673 = vunpack.c.l.b16 %v466
        %v1674 = vunpack.c.l.b16 %v467
        %v1675 = vunpack.c.l.b16 %v468
        %v1676 = vunpack.c.l.b16 %v469
        %v1677 = vunpack.c.l.b16 %v470
        %v1678 = vunpack.c.l.b16 %v471
        %v1679 = vunpack.c.l.b16 %v472
        %v1680 = vunpack.c.l.b16 %v473
        %v1681 = vunpack.c.l.b16 %v474
        %v1682 = vunpack.c.l.b16 %v475
        %v1683 = vunpack.c.l.b16 %v476
        %v1684 = vunpack.c.l.b16 %v477
        %v1685 = vunpack.c.l.b16 %v478
        %v1686 = vunpack.c.l.b16 %v479
        %v1687 = vunpack.c.l.b16 %v480
        %v1688 = vunpack.c.l.b16 %v481
        %v1689 = vunpack.c.l.b16 %v482
        %v1690 = vunpack.c.l.b16 %v483
        %v1691 = vunpack.c.l.b16 %v484
        %v1692 = vunpack.c.l.b16 %v485
        %v1693 = vunpack.c.l.b16 %v486
        %v1694 = vunpack.c.l.b16 %v487
        %v1695 = vunpack.c.l.b16 %v488
        %v1696 = vunpack.c.l.b16 %v489
        %v1697 = vunpack.c.l.b16 %v490
        %v1698 = vunpack.c.l.b16 %v491
        %v1699 = vunpack.c.l.b16 %v492
        %v1700 = vunpack.c.l.b16 %v493
        %v1701 = vunpack.c.l.b16 %v494
        %v1702 = vunpack.c.l.b16 %v495
        %v1703 = vunpack.c.l.b16 %v496
        %v1704 = vunpack.c.l.b16 %v497
        %v1705 = vunpack.c.l.b16 %v498
        %v1706 = vunpack.c.l.b16 %v499
        %v1707 = vunpack.c.l.b16 %v500
        %v1708 = vunpack.c.l.b16 %v501
        %v1709 = vunpack.c.l.b16 %v502
        %v1710 = vunpack.c.l.b16 %v503
        %v1711 = vunpack.c.l.b16 %v504
        %v1712 = vunpack.c.l.b16 %v505
        %v1713 = vunpack.c.l.b16 %v506
        %v1714 = vunpack.c.l.b16 %v507
        %v1715 = vunpack.c.l.b16 %v508
        %v1716 = vunpack.c.l.b16 %v509
        %v1717 = vunpack.c.l.b16 %v510
        %v1718 = vunpack.c.l.b16 %v511
        %v1719 = vunpack.c.l.b16 %v512
        %v1720 = vunpack.c.l.b16 %v513
        %v1721 = vunpack.c.l.b16 %v514
        %v1722 = vunpack.c.l.b16 %v515
        %v1723 = vunpack.c.l.b16 %v516
        %v1724 = vunpack.c.l.b16 %v517
        %v1725 = vunpack.c.l.b16 %v518
        %v1726 = vunpack.c.l.b16 %v519
        %v1727 = vunpack.c.l.b16 %v520
        %v1728 = vunpack.c.l.b16 %v521
        %v1729 = vunpack.c.l.b16 %v522
        %v1730 = vunpack.c.l.b16 %v523
        %v1731 = vunpack.c.l.b16 %v524
        %v1732 = vunpack.c.l.b16 %v525
        %v1733 = vunpack.c.l.b16 %v526
        %v1734 = vunpack.c.l.b16 %v527
        %v1735 = vunpack.c.l.b16 %v528
        %v1736 = vunpack.c.l.b16 %v529
        %v1737 = vunpack.c.l.b16 %v530
        %v1738 = vunpack.c.l.b16 %v531
        %v1739 = vunpack.c.l.b16 %v532
        %v1740 = vunpack.c.l.b16 %v533
        %v1741 = vunpack.c.l.b16 %v534
        %v1742 = vunpack.c.l.b16 %v535
        %v1743 = vunpack.c.l.b16 %v536
        %v1744 = vunpack.c.l.b16 %v537
        %v1745 = vunpack.c.l.b16 %v538
        %v1746 = vunpack.c.l.b16 %v539
        %v1747 = vunpack.c.l.b16 %v540
        %v1748 = vunpack.c.l.b16 %v541
        %v1749 = vunpack.c.l.b16 %v542
        %v1750 = vunpack.c.l.b16 %v543
        %v1751 = vunpack.c.l.b16 %v544
        %v1752 = vunpack.c.l.b16 %v545
        %v1753 = vunpack.c.l.b16 %v546
        %v1754 = vunpack.c.l.b16 %v547
        %v1755 = vunpack.c.l.b16 %v548
        %v1756 = vunpack.c.l.b16 %v549
        %v1757 = vunpack.c.l.b16 %v550
        %v1758 = vunpack.c.l.b16 %v551
        %v1759 = vunpack.c.l.b16 %v552
        %v1760 = vunpack.c.l.b16 %v553
        %v1761 = vunpack.c.l.b16 %v554
        %v1762 = vunpack.c.l.b16 %v555
        %v1763 = vunpack.c.l.b16 %v556
        %v1764 = vunpack.c.l.b16 %v557
        %v1765 = vunpack.c.l.b16 %v558
        %v1766 = vunpack.c.l.b16 %v559
        %v1767 = vunpack.c.l.b16 %v560
        %v1768 = vunpack.c.l.b16 %v561
        %v1769 = vunpack.c.l.b16 %v562
        %v1770 = vunpack.c.l.b16 %v563
        %v1771 = vunpack.c.l.b16 %v564
        %v1772 = vunpack.c.l.b16 %v565
        %v1773 = vunpack.c.l.b16 %v566
        %v1774 = vunpack.c.l.b16 %v567
        %v1775 = vunpack.c.l.b16 %v568
        %v1776 = vunpack.c.l.b16 %v569
        %v1777 = vunpack.c.l.b16 %v570
        %v1778 = vunpack.c.l.b16 %v571
        %v1779 = vunpack.c.l.b16 %v572
        %v1780 = vunpack.c.l.b16 %v573
        %v1781 = vunpack.c.l.b16 %v574
        %v1782 = vunpack.c.l.b16 %v575
        %v1783 = vunpack.c.l.b16 %v576
        %v1784 = vunpack.c.l.b16 %v577
        %v1785 = vunpack.c.l.b16 %v578
        %v1786 = vunpack.c.l.b16 %v579
        %v1787 = vunpack.c.l.b16 %v580
        %v1788 = vunpack.c.l.b16 %v581
        %v1789 = vunpack.c.l.b16 %v582
        %v1790 = vunpack.c.l.b16 %v583
        %v1791 = vunpack.c.l.b16 %v584
        %v1792 = vunpack.c.l.b16 %v585
        %v1793 = vunpack.c.l.b16 %v586
        %v1794 = vunpack.c.l.b16 %v587
        %v1795 = vunpack.c.l.b16 %v588
        %v1796 = vunpack.c.l.b16 %v589
        %v1797 = vunpack.c.l.b16 %v590
        %v1798 = vunpack.c.l.b16 %v591
        %v1799 = vunpack.c.l.b16 %v592
        %v1800 = vunpack.c.l.b16 %v593
        %v1801 = vunpack.c.l.b16 %v594
        %v1802 = vunpack.c.l.b16 %v595
        %v1803 = vunpack.c.l.b16 %v596
        %v1804 = vunpack.c.l.b16 %v597
        %v1805 = vunpack.c.l.b16 %v598
        %v1806 = vunpack.c.l.b16 %v599
        %v1807 = vunpack.c.l.b16 %v600
        %v1808 = vunpack.c.l.b16 %v601
        %v1809 = vunpack.c.l.b16 %v602
        %v1810 = vunpack.c.l.b16 %v603
        %v1811 = vunpack.c.l.b16 %v604
        %v1812 = vunpack.c.l.b16 %v605
        %v1813 = vunpack.c.l.b16 %v606
        %v1814 = vunpack.c.l.b16 %v607
        %v1815 = vunpack.c.l.b16 %v608
        %v1816 = vunpack.c.l.b16 %v609
        %v1817 = vunpack.c.l.b16 %v610
        %v1818 = vunpack.c.l.b16 %v611
        %v1819 = vunpack.c.l.b16 %v612
        %v1820 = vunpack.c.l.b16 %v613
        %v1821 = vunpack.c.l.b16 %v614
        %v1822 = vunpack.c.l.b16 %v615
        %v1823 = vunpack.c.l.b16 %v616
        %v1824 = vunpack.c.l.b16 %v617
        %v1825 = vunpack.c.l.b16 %v618
        %v1826 = vunpack.c.l.b16 %v619
        %v1827 = vunpack.c.l.b16 %v620
        %v1828 = vunpack.c.l.b16 %v621
        %v1829 = vunpack.c.l.b16 %v622
        %v1830 = vunpack.c.l.b16 %v623
        %v1831 = vunpack.c.l.b16 %v624
        %v1832 = vunpack.c.l.b16 %v625
        %v1833 = vunpack.c.l.b16 %v626
        %v1834 = vunpack.c.l.b16 %v627
        %v1835 = vunpack.c.l.b16 %v628
        %v1836 = vunpack.c.l.b16 %v629
        %v1837 = vunpack.c.l.b16 %v630
        %v1838 = vunpack.c.l.b16 %v631
        %v1839 = vunpack.c.l.b16 %v632
        %v1840 = vunpack.c.l.b16 %v633
        %v1841 = vunpack.c.l.b16 %v634
        %v1842 = vunpack.c.l.b16 %v635
        %v1843 = vunpack.c.l.b16 %v636
        %v1844 = vunpack.c.l.b16 %v637
        %v1845 = vunpack.c.l.b16 %v638
        %v1846 = vunpack.c.l.b16 %v639
        %v1847 = vunpack.c.l.b16 %v640
        %v1848 = vunpack.c.l.b16 %v641
        %v1849 = vunpack.c.l.b16 %v642
        %v1850 = vunpack.c.l.b16 %v643
        %v1851 = vunpack.c.l.b16 %v644
        %v1852 = vunpack.c.l.b16 %v645
        %v1853 = vunpack.c.l.b16 %v646
        %v1854 = vunpack.c.l.b16 %v647
        %v1855 = vunpack.c.l.b16 %v648
        %v1856 = vunpack.c.l.b16 %v649
        %v1857 = vunpack.c.l.b16 %v650
        %v1858 = vunpack.c.l.b16 %v651
        %v1859 = vunpack.c.l.b16 %v652
        %v1860 = vunpack.c.l.b16 %v653
        %v1861 = vunpack.c.l.b16 %v654
        %v1862 = vunpack.c.l.b16 %v655
        %v1863 = vunpack.c.l.b16 %v656
        %v1864 = vunpack.c.l.b16 %v657
        %v1865 = vunpack.c.l.b16 %v658
        %v1866 = vunpack.c.l.b16 %v659
        %v1867 = vunpack.c.l.b16 %v660
        %v1868 = vunpack.c.l.b16 %v661
        %v1869 = vunpack.c.l.b16 %v662
        %v1870 = vunpack.c.l.b16 %v663
        %v1871 = vunpack.c.l.b16 %v664
        %v1872 = vunpack.c.l.b16 %v665
        %v1873 = vunpack.c.l.b16 %v666
        %v1874 = vunpack.c.l.b16 %v667
        %v1875 = vunpack.c.l.b16 %v668
        %v1876 = vunpack.c.l.b16 %v669
        %v1877 = vunpack.c.l.b16 %v670
        %v1878 = vunpack.c.l.b16 %v671
        %v1879 = vunpack.c.l.b16 %v672
        %v1880 = vunpack.c.l.b16 %v673
        %v1881 = vunpack.c.l.b16 %v674
        %v1882 = vunpack.c.l.b16 %v675
        %v1883 = vunpack.c.l.b16 %v676
        %v1884 = vunpack.c.l.b16 %v677
        %v1885 = vunpack.c.l.b16 %v678
        %v1886 = vunpack.c.l.b16 %v679
        %v1887 = vunpack.c.l.b16 %v680
        %v1888 = vunpack.c.l.b16 %v681
        %v1889 = vunpack.c.l.b16 %v682
        %v1890 = vunpack.c.l.b16 %v683
        %v1891 = vunpack.c.l.b16 %v684
        %v1892 = vunpack.c.l.b16 %v685
        %v1893 = vunpack.c.l.b16 %v686
        %v1894 = vunpack.c.l.b16 %v687
        %v1895 = vunpack.c.l.b16 %v688
        %v1896 = vunpack.c.l.b16 %v689
        %v1897 = vpack.c.b16 %v1386, %v1385
        %v1898 = vpack.c.b16 %v1388, %v1387
        %v1899 = vpack.c.b16 %v1390, %v1389
        %v1900 = vpack.c.b16 %v1392, %v1391
        %v1901 = vpack.c.b16 %v1394, %v1393
        %v1902 = vpack.c.b16 %v1396, %v1395
        %v1903 = vpack.c.b16 %v1398, %v1397
        %v1904 = vpack.c.b16 %v1400, %v1399
        %v1905 = vpack.c.b16 %v1402, %v1401
        %v1906 = vpack.c.b16 %v1404, %v1403
        %v1907 = vpack.c.b16 %v1406, %v1405
        %v1908 = vpack.c.b16 %v1408, %v1407
        %v1909 = vpack.c.b16 %v1410, %v1409
        %v1910 = vpack.c.b16 %v1412, %v1411
        %v1911 = vpack.c.b16 %v1414, %v1413
        %v1912 = vpack.c.b16 %v1416, %v1415
        %v1913 = vpack.c.b16 %v1418, %v1417
        %v1914 = vpack.c.b16 %v1420, %v1419
        %v1915 = vpack.c.b16 %v1422, %v1421
        %v1916 = vpack.c.b16 %v1424, %v1423
        %v1917 = vpack.c.b16 %v1426, %v1425
        %v1918 = vpack.c.b16 %v1428, %v1427
        %v1919 = vpack.c.b16 %v1430, %v1429
        %v1920 = vpack.c.b16 %v1432, %v1431
        %v1921 = vpack.c.b16 %v1434, %v1433
        %v1922 = vpack.c.b16 %v1436, %v1435
        %v1923 = vpack.c.b16 %v1438, %v1437
        %v1924 = vpack.c.b16 %v1440, %v1439
        %v1925 = vpack.c.b16 %v1442, %v1441
        %v1926 = vpack.c.b16 %v1444, %v1443
        %v1927 = vpack.c.b16 %v1446, %v1445
        %v1928 = vpack.c.b16 %v1448, %v1447
        %v1929 = vpack.c.b16 %v1450, %v1449
        %v1930 = vpack.c.b16 %v1452, %v1451
        %v1931 = vpack.c.b16 %v1454, %v1453
        %v1932 = vpack.c.b16 %v1456, %v1455
        %v1933 = vpack.c.b16 %v1458, %v1457
        %v1934 = vpack.c.b16 %v1460, %v1459
        %v1935 = vpack.c.b16 %v1462, %v1461
        %v1936 = vpack.c.b16 %v1464, %v1463
        %v1937 = vpack.c.b16 %v1466, %v1465
        %v1938 = vpack.c.b16 %v1468, %v1467
        %v1939 = vpack.c.b16 %v1470, %v1469
        %v1940 = vpack.c.b16 %v1472, %v1471
        %v1941 = vpack.c.b16 %v1474, %v1473
        %v1942 = vpack.c.b16 %v1476, %v1475
        %v1943 = vpack.c.b16 %v1478, %v1477
        %v1944 = vpack.c.b16 %v1480, %v1479
        %v1945 = vpack.c.b16 %v1482, %v1481
        %v1946 = vpack.c.b16 %v1484, %v1483
        %v1947 = vpack.c.b16 %v1486, %v1485
        %v1948 = vpack.c.b16 %v1488, %v1487
        %v1949 = vpack.c.b16 %v1490, %v1489
        %v1950 = vpack.c.b16 %v1492, %v1491
        %v1951 = vpack.c.b16 %v1494, %v1493
        %v1952 = vpack.c.b16 %v1496, %v1495
        %v1953 = vpack.c.b16 %v1498, %v1497
        %v1954 = vpack.c.b16 %v1500, %v1499
        %v1955 = vpack.c.b16 %v1502, %v1501
        %v1956 = vpack.c.b16 %v1504, %v1503
        %v1957 = vpack.c.b16 %v1506, %v1505
        %v1958 = vpack.c.b16 %v1508, %v1507
        %v1959 = vpack.c.b16 %v1510, %v1509
        %v1960 = vpack.c.b16 %v1512, %v1511
        %v1961 = vpack.c.b16 %v1514, %v1513
        %v1962 = vpack.c.b16 %v1516, %v1515
        %v1963 = vpack.c.b16 %v1518, %v1517
        %v1964 = vpack.c.b16 %v1520, %v1519
        %v1965 = vpack.c.b16 %v1522, %v1521
        %v1966 = vpack.c.b16 %v1524, %v1523
        %v1967 = vpack.c.b16 %v1526, %v1525
        %v1968 = vpack.c.b16 %v1528, %v1527
        %v1969 = vpack.c.b16 %v1530, %v1529
        %v1970 = vpack.c.b16 %v1532, %v1531
        %v1971 = vpack.c.b16 %v1534, %v1533
        %v1972 = vpack.c.b16 %v1536, %v1535
        %v1973 = vpack.c.b16 %v1538, %v1537
        %v1974 = vpack.c.b16 %v1540, %v1539
        %v1975 = vpack.c.b16 %v1542, %v1541
        %v1976 = vpack.c.b16 %v1544, %v1543
        %v1977 = vpack.c.b16 %v1546, %v1545
        %v1978 = vpack.c.b16 %v1548, %v1547
        %v1979 = vpack.c.b16 %v1550, %v1549
        %v1980 = vpack.c.b16 %v1552, %v1551
        %v1981 = vpack.c.b16 %v1554, %v1553
        %v1982 = vpack.c.b16 %v1556, %v1555
        %v1983 = vpack.c.b16 %v1558, %v1557
        %v1984 = vpack.c.b16 %v1560, %v1559
        %v1985 = vpack.c.b16 %v1562, %v1561
        %v1986 = vpack.c.b16 %v1564, %v1563
        %v1987 = vpack.c.b16 %v1566, %v1565
        %v1988 = vpack.c.b16 %v1568, %v1567
        %v1989 = vpack.c.b16 %v1570, %v1569
        %v1990 = vpack.c.b16 %v1572, %v1571
        %v1991 = vpack.c.b16 %v1574, %v1573
        %v1992 = vpack.c.b16 %v1576, %v1575
        %v1993 = vpack.c.b16 %v1578, %v1577
        %v1994 = vpack.c.b16 %v1580, %v1579
        %v1995 = vpack.c.b16 %v1582, %v1581
        %v1996 = vpack.c.b16 %v1584, %v1583
        %v1997 = vpack.c.b16 %v1586, %v1585
        %v1998 = vpack.c.b16 %v1588, %v1587
        %v1999 = vpack.c.b16 %v1590, %v1589
        %v2000 = vpack.c.b16 %v1592, %v1591
        %v2001 = vpack.c.b16 %v1594, %v1593
        %v2002 = vpack.c.b16 %v1596, %v1595
        %v2003 = vpack.c.b16 %v1598, %v1597
        %v2004 = vpack.c.b16 %v1600, %v1599
        %v2005 = vpack.c.b16 %v1602, %v1601
        %v2006 = vpack.c.b16 %v1604, %v1603
        %v2007 = vpack.c.b16 %v1606, %v1605
        %v2008 = vpack.c.b16 %v1608, %v1607
        %v2009 = vpack.c.b16 %v1610, %v1609
        %v2010 = vpack.c.b16 %v1612, %v1611
        %v2011 = vpack.c.b16 %v1614, %v1613
        %v2012 = vpack.c.b16 %v1616, %v1615
        %v2013 = vpack.c.b16 %v1618, %v1617
        %v2014 = vpack.c.b16 %v1620, %v1619
        %v2015 = vpack.c.b16 %v1622, %v1621
        %v2016 = vpack.c.b16 %v1624, %v1623
        %v2017 = vpack.c.b16 %v1626, %v1625
        %v2018 = vpack.c.b16 %v1628, %v1627
        %v2019 = vpack.c.b16 %v1630, %v1629
        %v2020 = vpack.c.b16 %v1632, %v1631
        %v2021 = vpack.c.b16 %v1634, %v1633
        %v2022 = vpack.c.b16 %v1636, %v1635
        %v2023 = vpack.c.b16 %v1638, %v1637
        %v2024 = vpack.c.b16 %v1640, %v1639
        %v2025 = vpack.c.b16 %v1642, %v1641
        %v2026 = vpack.c.b16 %v1644, %v1643
        %v2027 = vpack.c.b16 %v1646, %v1645
        %v2028 = vpack.c.b16 %v1648, %v1647
        %v2029 = vpack.c.b16 %v1650, %v1649
        %v2030 = vpack.c.b16 %v1652, %v1651
        %v2031 = vpack.c.b16 %v1654, %v1653
        %v2032 = vpack.c.b16 %v1656, %v1655
        %v2033 = vpack.c.b16 %v1658, %v1657
        %v2034 = vpack.c.b16 %v1660, %v1659
        %v2035 = vpack.c.b16 %v1662, %v1661
        %v2036 = vpack.c.b16 %v1664, %v1663
        %v2037 = vpack.c.b16 %v1666, %v1665
        %v2038 = vpack.c.b16 %v1668, %v1667
        %v2039 = vpack.c.b16 %v1670, %v1669
        %v2040 = vpack.c.b16 %v1672, %v1671
        %v2041 = vpack.c.b16 %v1674, %v1673
        %v2042 = vpack.c.b16 %v1676, %v1675
        %v2043 = vpack.c.b16 %v1678, %v1677
        %v2044 = vpack.c.b16 %v1680, %v1679
        %v2045 = vpack.c.b16 %v1682, %v1681
        %v2046 = vpack.c.b16 %v1684, %v1683
        %v2047 = vpack.c.b16 %v1686, %v1685
        %v2048 = vpack.c.b16 %v1688, %v1687
        %v2049 = vpack.c.b16 %v1690, %v1689
        %v2050 = vpack.c.b16 %v1692, %v1691
        %v2051 = vpack.c.b16 %v1694, %v1693
        %v2052 = vpack.c.b16 %v1696, %v1695
        %v2053 = vpack.c.b16 %v1698, %v1697
        %v2054 = vpack.c.b16 %v1700, %v1699
        %v2055 = vpack.c.b16 %v1702, %v1701
        %v2056 = vpack.c.b16 %v1704, %v1703
        %v2057 = vpack.c.b16 %v1706, %v1705
        %v2058 = vpack.c.b16 %v1708, %v1707
        %v2059 = vpack.c.b16 %v1710, %v1709
        %v2060 = vpack.c.b16 %v1712, %v1711
        %v2061 = vpack.c.b16 %v1714, %v1713
        %v2062 = vpack.c.b16 %v1716, %v1715
        %v2063 = vpack.c.b16 %v1718, %v1717
        %v2064 = vpack.c.b16 %v1720, %v1719
        %v2065 = vpack.c.b16 %v1722, %v1721
        %v2066 = vpack.c.b16 %v1724, %v1723
        %v2067 = vpack.c.b16 %v1726, %v1725
        %v2068 = vpack.c.b16 %v1728, %v1727
        %v2069 = vpack.c.b16 %v1730, %v1729
        %v2070 = vpack.c.b16 %v1732, %v1731
        %v2071 = vpack.c.b16 %v1734, %v1733
        %v2072 = vpack.c.b16 %v1736, %v1735
        %v2073 = vpack.c.b16 %v1738, %v1737
        %v2074 = vpack.c.b16 %v1740, %v1739
        %v2075 = vpack.c.b16 %v1742, %v1741
        %v2076 = vpack.c.b16 %v1744, %v1743
        %v2077 = vpack.c.b16 %v1746, %v1745
        %v2078 = vpack.c.b16 %v1748, %v1747
        %v2079 = vpack.c.b16 %v1750, %v1749
        %v2080 = vpack.c.b16 %v1752, %v1751
        %v2081 = vpack.c.b16 %v1754, %v1753
        %v2082 = vpack.c.b16 %v1756, %v1755
        %v2083 = vpack.c.b16 %v1758, %v1757
        %v2084 = vpack.c.b16 %v1760, %v1759
        %v2085 = vpack.c.b16 %v1762, %v1761
        %v2086 = vpack.c.b16 %v1764, %v1763
        %v2087 = vpack.c.b16 %v1766, %v1765
        %v2088 = vpack.c.b16 %v1768, %v1767
        %v2089 = vpack.c.b16 %v1770, %v1769
        %v2090 = vpack.c.b16 %v1772, %v1771
        %v2091 = vpack.c.b16 %v1774, %v1773
        %v2092 = vpack.c.b16 %v1776, %v1775
        %v2093 = vpack.c.b16 %v1778, %v1777
        %v2094 = vpack.c.b16 %v1780, %v1779
        %v2095 = vpack.c.b16 %v1782, %v1781
        %v2096 = vpack.c.b16 %v1784, %v1783
        %v2097 = vpack.c.b16 %v1786, %v1785
        %v2098 = vpack.c.b16 %v1788, %v1787
        %v2099 = vpack.c.b16 %v1790, %v1789
        %v2100 = vpack.c.b16 %v1792, %v1791
        %v2101 = vpack.c.b16 %v1794, %v1793
        %v2102 = vpack.c.b16 %v1796, %v1795
        %v2103 = vpack.c.b16 %v1798, %v1797
        %v2104 = vpack.c.b16 %v1800, %v1799
        %v2105 = vpack.c.b16 %v1802, %v1801
        %v2106 = vpack.c.b16 %v1804, %v1803
        %v2107 = vpack.c.b16 %v1806, %v1805
        %v2108 = vpack.c.b16 %v1808, %v1807
        %v2109 = vpack.c.b16 %v1810, %v1809
        %v2110 = vpack.c.b16 %v1812, %v1811
        %v2111 = vpack.c.b16 %v1814, %v1813
        %v2112 = vpack.c.b16 %v1816, %v1815
        %v2113 = vpack.c.b16 %v1818, %v1817
        %v2114 = vpack.c.b16 %v1820, %v1819
        %v2115 = vpack.c.b16 %v1822, %v1821
        %v2116 = vpack.c.b16 %v1824, %v1823
        %v2117 = vpack.c.b16 %v1826, %v1825
        %v2118 = vpack.c.b16 %v1828, %v1827
        %v2119 = vpack.c.b16 %v1830, %v1829
        %v2120 = vpack.c.b16 %v1832, %v1831
        %v2121 = vpack.c.b16 %v1834, %v1833
        %v2122 = vpack.c.b16 %v1836, %v1835
        %v2123 = vpack.c.b16 %v1838, %v1837
        %v2124 = vpack.c.b16 %v1840, %v1839
        %v2125 = vpack.c.b16 %v1842, %v1841
        %v2126 = vpack.c.b16 %v1844, %v1843
        %v2127 = vpack.c.b16 %v1846, %v1845
        %v2128 = vpack.c.b16 %v1848, %v1847
        %v2129 = vpack.c.b16 %v1850, %v1849
        %v2130 = vpack.c.b16 %v1852, %v1851
        %v2131 = vpack.c.b16 %v1854, %v1853
        %v2132 = vpack.c.b16 %v1856, %v1855
        %v2133 = vpack.c.b16 %v1858, %v1857
        %v2134 = vpack.c.b16 %v1860, %v1859
        %v2135 = vpack.c.b16 %v1862, %v1861
        %v2136 = vpack.c.b16 %v1864, %v1863
        %v2137 = vpack.c.b16 %v1866, %v1865
        %v2138 = vpack.c.b16 %v1868, %v1867
        %v2139 = vpack.c.b16 %v1870, %v1869
        %v2140 = vpack.c.b16 %v1872, %v1871
        %v2141 = vpack.c.b16 %v1874, %v1873
        %v2142 = vpack.c.b16 %v1876, %v1875
        %v2143 = vpack.c.b16 %v1878, %v1877
        %v2144 = vpack.c.b16 %v1880, %v1879
        %v2145 = vpack.c.b16 %v1882, %v1881
        %v2146 = vpack.c.b16 %v1884, %v1883
        %v2147 = vpack.c.b16 %v1886, %v1885
        %v2148 = vpack.c.b16 %v1888, %v1887
        %v2149 = vpack.c.b16 %v1890, %v1889
        %v2150 = vpack.c.b16 %v1892, %v1891
        %v2151 = vpack.c.b16 %v1894, %v1893
        %v2152 = vpack.c.b16 %v1896, %v1895
        %2409 = vmatprep.subr.bf16.mxu0 0
        %2410 = vmatpush1.bf16.msra.mxu0 %v1904
        %2411 = vmatprep.subr.bf16.mxu0 0
        %2412 = vmatpush1.bf16.msra.mxu0 %v1903
        %2413 = vmatprep.subr.bf16.mxu0 0
        %2414 = vmatpush1.bf16.msra.mxu0 %v1902
        %2415 = vmatprep.subr.bf16.mxu0 0
        %2416 = vmatpush1.bf16.msra.mxu0 %v1901
        %2417 = vmatprep.subr.bf16.mxu0 0
        %2418 = vmatpush1.bf16.msra.mxu0 %v1900
        %2419 = vmatprep.subr.bf16.mxu0 0
        %2420 = vmatpush1.bf16.msra.mxu0 %v1899
        %2421 = vmatprep.subr.bf16.mxu0 0
        %2422 = vmatpush1.bf16.msra.mxu0 %v1898
        %2423 = vmatprep.subr.bf16.mxu0 0
        %2424 = vmatpush1.bf16.msra.mxu0 %v1897
        %2425 = vmatprep.subr.bf16.mxu0 0
        %2426 = vmatpush2.bf16.msra.mxu0 %v1912
        %2427 = vmatprep.subr.bf16.mxu0 0
        %2428 = vmatpush2.bf16.msra.mxu0 %v1911
        %2429 = vmatprep.subr.bf16.mxu0 0
        %2430 = vmatpush2.bf16.msra.mxu0 %v1910
        %2431 = vmatprep.subr.bf16.mxu0 0
        %2432 = vmatpush2.bf16.msra.mxu0 %v1909
        %2433 = vmatprep.subr.bf16.mxu0 0
        %2434 = vmatpush2.bf16.msra.mxu0 %v1908
        %2435 = vmatprep.subr.bf16.mxu0 0
        %2436 = vmatpush2.bf16.msra.mxu0 %v1907
        %2437 = vmatprep.subr.bf16.mxu0 0
        %2438 = vmatpush2.bf16.msra.mxu0 %v1906
        %2439 = vmatprep.subr.bf16.mxu0 0
        %2440 = vmatpush2.bf16.msra.mxu0 %v1905
        %2441 = vmatprep.mubr.bf16.mxu0 %v720
        %2442 = vmatmul.mubr.bf16.gmra.mxu0 %v712
        %v2443 = vpop.f32.mrf.mxu0
        %v2444 = vadd.f32 %v695, %v2443
        %v2445 = vpop.f32.mrf.mxu0
        %v2446 = vpop.f32.mrf.mxu0
        %v2447 = vpop.f32.mrf.mxu0
        %2448 = vdwg.mxu0
        %2449 = vmatprep.subr.bf16.mxu0 0
        %2450 = vmatpush1.bf16.msra.mxu0 %v1920
        %2451 = vmatprep.subr.bf16.mxu0 0
        %2452 = vmatpush1.bf16.msra.mxu0 %v1919
        %2453 = vmatprep.subr.bf16.mxu0 0
        %2454 = vmatpush1.bf16.msra.mxu0 %v1918
        %2455 = vmatprep.subr.bf16.mxu0 0
        %2456 = vmatpush1.bf16.msra.mxu0 %v1917
        %2457 = vmatprep.subr.bf16.mxu0 0
        %2458 = vmatpush1.bf16.msra.mxu0 %v1916
        %2459 = vmatprep.subr.bf16.mxu0 0
        %2460 = vmatpush1.bf16.msra.mxu0 %v1915
        %2461 = vmatprep.subr.bf16.mxu0 0
        %2462 = vmatpush1.bf16.msra.mxu0 %v1914
        %2463 = vmatprep.subr.bf16.mxu0 0
        %2464 = vmatpush1.bf16.msra.mxu0 %v1913
        %2465 = vmatprep.subr.bf16.mxu0 0
        %2466 = vmatpush2.bf16.msra.mxu0 %v1928
        %2467 = vmatprep.subr.bf16.mxu0 0
        %2468 = vmatpush2.bf16.msra.mxu0 %v1927
        %2469 = vmatprep.subr.bf16.mxu0 0
        %2470 = vmatpush2.bf16.msra.mxu0 %v1926
        %2471 = vmatprep.subr.bf16.mxu0 0
        %2472 = vmatpush2.bf16.msra.mxu0 %v1925
        %2473 = vmatprep.subr.bf16.mxu0 0
        %2474 = vmatpush2.bf16.msra.mxu0 %v1924
        %2475 = vmatprep.subr.bf16.mxu0 0
        %2476 = vmatpush2.bf16.msra.mxu0 %v1923
        %2477 = vmatprep.subr.bf16.mxu0 0
        %2478 = vmatpush2.bf16.msra.mxu0 %v1922
        %2479 = vmatprep.subr.bf16.mxu0 0
        %2480 = vmatpush2.bf16.msra.mxu0 %v1921
        %2481 = vmatprep.mubr.bf16.mxu0 %v721
        %2482 = vmatmul.mubr.bf16.gmra.mxu0 %v719
        %v2483 = vpop.f32.mrf.mxu0
        %v2484 = vadd.f32 %v2444, %v2483
        %v2485 = vpop.f32.mrf.mxu0
        %v2486 = vpop.f32.mrf.mxu0
        %v2487 = vpop.f32.mrf.mxu0
        %2488 = vdwg.mxu0
        %2489 = vmatprep.subr.bf16.mxu0 0
        %2490 = vmatpush1.bf16.msra.mxu0 %v1936
        %2491 = vmatprep.subr.bf16.mxu0 0
        %2492 = vmatpush1.bf16.msra.mxu0 %v1935
        %2493 = vmatprep.subr.bf16.mxu0 0
        %2494 = vmatpush1.bf16.msra.mxu0 %v1934
        %2495 = vmatprep.subr.bf16.mxu0 0
        %2496 = vmatpush1.bf16.msra.mxu0 %v1933
        %2497 = vmatprep.subr.bf16.mxu0 0
        %2498 = vmatpush1.bf16.msra.mxu0 %v1932
        %2499 = vmatprep.subr.bf16.mxu0 0
        %2500 = vmatpush1.bf16.msra.mxu0 %v1931
        %2501 = vmatprep.subr.bf16.mxu0 0
        %2502 = vmatpush1.bf16.msra.mxu0 %v1930
        %2503 = vmatprep.subr.bf16.mxu0 0
        %2504 = vmatpush1.bf16.msra.mxu0 %v1929
        %2505 = vmatprep.subr.bf16.mxu0 0
        %2506 = vmatpush2.bf16.msra.mxu0 %v1944
        %2507 = vmatprep.subr.bf16.mxu0 0
        %2508 = vmatpush2.bf16.msra.mxu0 %v1943
        %2509 = vmatprep.subr.bf16.mxu0 0
        %2510 = vmatpush2.bf16.msra.mxu0 %v1942
        %2511 = vmatprep.subr.bf16.mxu0 0
        %2512 = vmatpush2.bf16.msra.mxu0 %v1941
        %2513 = vmatprep.subr.bf16.mxu0 0
        %2514 = vmatpush2.bf16.msra.mxu0 %v1940
        %2515 = vmatprep.subr.bf16.mxu0 0
        %2516 = vmatpush2.bf16.msra.mxu0 %v1939
        %2517 = vmatprep.subr.bf16.mxu0 0
        %2518 = vmatpush2.bf16.msra.mxu0 %v1938
        %2519 = vmatprep.subr.bf16.mxu0 0
        %2520 = vmatpush2.bf16.msra.mxu0 %v1937
        %2521 = vmatprep.mubr.bf16.mxu0 %v737
        %2522 = vmatmul.mubr.bf16.gmra.mxu0 %v729
        %v2523 = vpop.f32.mrf.mxu0
        %v2524 = vadd.f32 %v2484, %v2523
        %v2525 = vpop.f32.mrf.mxu0
        %v2526 = vpop.f32.mrf.mxu0
        %v2527 = vpop.f32.mrf.mxu0
        %2528 = vdwg.mxu0
        %2529 = vmatprep.subr.bf16.mxu0 0
        %2530 = vmatpush1.bf16.msra.mxu0 %v1952
        %2531 = vmatprep.subr.bf16.mxu0 0
        %2532 = vmatpush1.bf16.msra.mxu0 %v1951
        %2533 = vmatprep.subr.bf16.mxu0 0
        %2534 = vmatpush1.bf16.msra.mxu0 %v1950
        %2535 = vmatprep.subr.bf16.mxu0 0
        %2536 = vmatpush1.bf16.msra.mxu0 %v1949
        %2537 = vmatprep.subr.bf16.mxu0 0
        %2538 = vmatpush1.bf16.msra.mxu0 %v1948
        %2539 = vmatprep.subr.bf16.mxu0 0
        %2540 = vmatpush1.bf16.msra.mxu0 %v1947
        %2541 = vmatprep.subr.bf16.mxu0 0
        %2542 = vmatpush1.bf16.msra.mxu0 %v1946
        %2543 = vmatprep.subr.bf16.mxu0 0
        %2544 = vmatpush1.bf16.msra.mxu0 %v1945
        %2545 = vmatprep.subr.bf16.mxu0 0
        %2546 = vmatpush2.bf16.msra.mxu0 %v1960
        %2547 = vmatprep.subr.bf16.mxu0 0
        %2548 = vmatpush2.bf16.msra.mxu0 %v1959
        %2549 = vmatprep.subr.bf16.mxu0 0
        %2550 = vmatpush2.bf16.msra.mxu0 %v1958
        %2551 = vmatprep.subr.bf16.mxu0 0
        %2552 = vmatpush2.bf16.msra.mxu0 %v1957
        %2553 = vmatprep.subr.bf16.mxu0 0
        %2554 = vmatpush2.bf16.msra.mxu0 %v1956
        %2555 = vmatprep.subr.bf16.mxu0 0
        %2556 = vmatpush2.bf16.msra.mxu0 %v1955
        %2557 = vmatprep.subr.bf16.mxu0 0
        %2558 = vmatpush2.bf16.msra.mxu0 %v1954
        %2559 = vmatprep.subr.bf16.mxu0 0
        %2560 = vmatpush2.bf16.msra.mxu0 %v1953
        %2561 = vmatprep.mubr.bf16.mxu0 %v738
        %2562 = vmatmul.mubr.bf16.gmra.mxu0 %v736
        %v2563 = vpop.f32.mrf.mxu0
        %v2564 = vadd.f32 %v2524, %v2563
        %v2565 = vpop.f32.mrf.mxu0
        %v2566 = vpop.f32.mrf.mxu0
        %v2567 = vpop.f32.mrf.mxu0
        %2568 = vdwg.mxu0
        %2569 = vmatprep.subr.bf16.mxu0 0
        %2570 = vmatpush1.bf16.msra.mxu0 %v1968
        %2571 = vmatprep.subr.bf16.mxu0 0
        %2572 = vmatpush1.bf16.msra.mxu0 %v1967
        %2573 = vmatprep.subr.bf16.mxu0 0
        %2574 = vmatpush1.bf16.msra.mxu0 %v1966
        %2575 = vmatprep.subr.bf16.mxu0 0
        %2576 = vmatpush1.bf16.msra.mxu0 %v1965
        %2577 = vmatprep.subr.bf16.mxu0 0
        %2578 = vmatpush1.bf16.msra.mxu0 %v1964
        %2579 = vmatprep.subr.bf16.mxu0 0
        %2580 = vmatpush1.bf16.msra.mxu0 %v1963
        %2581 = vmatprep.subr.bf16.mxu0 0
        %2582 = vmatpush1.bf16.msra.mxu0 %v1962
        %2583 = vmatprep.subr.bf16.mxu0 0
        %2584 = vmatpush1.bf16.msra.mxu0 %v1961
        %2585 = vmatprep.subr.bf16.mxu0 0
        %2586 = vmatpush2.bf16.msra.mxu0 %v1976
        %2587 = vmatprep.subr.bf16.mxu0 0
        %2588 = vmatpush2.bf16.msra.mxu0 %v1975
        %2589 = vmatprep.subr.bf16.mxu0 0
        %2590 = vmatpush2.bf16.msra.mxu0 %v1974
        %2591 = vmatprep.subr.bf16.mxu0 0
        %2592 = vmatpush2.bf16.msra.mxu0 %v1973
        %2593 = vmatprep.subr.bf16.mxu0 0
        %2594 = vmatpush2.bf16.msra.mxu0 %v1972
        %2595 = vmatprep.subr.bf16.mxu0 0
        %2596 = vmatpush2.bf16.msra.mxu0 %v1971
        %2597 = vmatprep.subr.bf16.mxu0 0
        %2598 = vmatpush2.bf16.msra.mxu0 %v1970
        %2599 = vmatprep.subr.bf16.mxu0 0
        %2600 = vmatpush2.bf16.msra.mxu0 %v1969
        %2601 = vmatprep.mubr.bf16.mxu0 %v754
        %2602 = vmatmul.mubr.bf16.gmra.mxu0 %v746
        %v2603 = vpop.f32.mrf.mxu0
        %v2604 = vadd.f32 %v2564, %v2603
        %v2605 = vpop.f32.mrf.mxu0
        %v2606 = vpop.f32.mrf.mxu0
        %v2607 = vpop.f32.mrf.mxu0
        %2608 = vdwg.mxu0
        %2609 = vmatprep.subr.bf16.mxu0 0
        %2610 = vmatpush1.bf16.msra.mxu0 %v1984
        %2611 = vmatprep.subr.bf16.mxu0 0
        %2612 = vmatpush1.bf16.msra.mxu0 %v1983
        %2613 = vmatprep.subr.bf16.mxu0 0
        %2614 = vmatpush1.bf16.msra.mxu0 %v1982
        %2615 = vmatprep.subr.bf16.mxu0 0
        %2616 = vmatpush1.bf16.msra.mxu0 %v1981
        %2617 = vmatprep.subr.bf16.mxu0 0
        %2618 = vmatpush1.bf16.msra.mxu0 %v1980
        %2619 = vmatprep.subr.bf16.mxu0 0
        %2620 = vmatpush1.bf16.msra.mxu0 %v1979
        %2621 = vmatprep.subr.bf16.mxu0 0
        %2622 = vmatpush1.bf16.msra.mxu0 %v1978
        %2623 = vmatprep.subr.bf16.mxu0 0
        %2624 = vmatpush1.bf16.msra.mxu0 %v1977
        %2625 = vmatprep.subr.bf16.mxu0 0
        %2626 = vmatpush2.bf16.msra.mxu0 %v1992
        %2627 = vmatprep.subr.bf16.mxu0 0
        %2628 = vmatpush2.bf16.msra.mxu0 %v1991
        %2629 = vmatprep.subr.bf16.mxu0 0
        %2630 = vmatpush2.bf16.msra.mxu0 %v1990
        %2631 = vmatprep.subr.bf16.mxu0 0
        %2632 = vmatpush2.bf16.msra.mxu0 %v1989
        %2633 = vmatprep.subr.bf16.mxu0 0
        %2634 = vmatpush2.bf16.msra.mxu0 %v1988
        %2635 = vmatprep.subr.bf16.mxu0 0
        %2636 = vmatpush2.bf16.msra.mxu0 %v1987
        %2637 = vmatprep.subr.bf16.mxu0 0
        %2638 = vmatpush2.bf16.msra.mxu0 %v1986
        %2639 = vmatprep.subr.bf16.mxu0 0
        %2640 = vmatpush2.bf16.msra.mxu0 %v1985
        %2641 = vmatprep.mubr.bf16.mxu0 %v755
        %2642 = vmatmul.mubr.bf16.gmra.mxu0 %v753
        %v2643 = vpop.f32.mrf.mxu0
        %v2644 = vadd.f32 %v2604, %v2643
        %v2645 = vpop.f32.mrf.mxu0
        %v2646 = vpop.f32.mrf.mxu0
        %v2647 = vpop.f32.mrf.mxu0
        %2648 = vdwg.mxu0
        %2649 = vmatprep.subr.bf16.mxu0 0
        %2650 = vmatpush1.bf16.msra.mxu0 %v2000
        %2651 = vmatprep.subr.bf16.mxu0 0
        %2652 = vmatpush1.bf16.msra.mxu0 %v1999
        %2653 = vmatprep.subr.bf16.mxu0 0
        %2654 = vmatpush1.bf16.msra.mxu0 %v1998
        %2655 = vmatprep.subr.bf16.mxu0 0
        %2656 = vmatpush1.bf16.msra.mxu0 %v1997
        %2657 = vmatprep.subr.bf16.mxu0 0
        %2658 = vmatpush1.bf16.msra.mxu0 %v1996
        %2659 = vmatprep.subr.bf16.mxu0 0
        %2660 = vmatpush1.bf16.msra.mxu0 %v1995
        %2661 = vmatprep.subr.bf16.mxu0 0
        %2662 = vmatpush1.bf16.msra.mxu0 %v1994
        %2663 = vmatprep.subr.bf16.mxu0 0
        %2664 = vmatpush1.bf16.msra.mxu0 %v1993
        %2665 = vmatprep.subr.bf16.mxu0 0
        %2666 = vmatpush2.bf16.msra.mxu0 %v2008
        %2667 = vmatprep.subr.bf16.mxu0 0
        %2668 = vmatpush2.bf16.msra.mxu0 %v2007
        %2669 = vmatprep.subr.bf16.mxu0 0
        %2670 = vmatpush2.bf16.msra.mxu0 %v2006
        %2671 = vmatprep.subr.bf16.mxu0 0
        %2672 = vmatpush2.bf16.msra.mxu0 %v2005
        %2673 = vmatprep.subr.bf16.mxu0 0
        %2674 = vmatpush2.bf16.msra.mxu0 %v2004
        %2675 = vmatprep.subr.bf16.mxu0 0
        %2676 = vmatpush2.bf16.msra.mxu0 %v2003
        %2677 = vmatprep.subr.bf16.mxu0 0
        %2678 = vmatpush2.bf16.msra.mxu0 %v2002
        %2679 = vmatprep.subr.bf16.mxu0 0
        %2680 = vmatpush2.bf16.msra.mxu0 %v2001
        %2681 = vmatprep.mubr.bf16.mxu0 %v771
        %2682 = vmatmul.mubr.bf16.gmra.mxu0 %v763
        %v2683 = vpop.f32.mrf.mxu0
        %v2684 = vadd.f32 %v2644, %v2683
        %v2685 = vpop.f32.mrf.mxu0
        %v2686 = vpop.f32.mrf.mxu0
        %v2687 = vpop.f32.mrf.mxu0
        %2688 = vdwg.mxu0
        %2689 = vmatprep.subr.bf16.mxu0 0
        %2690 = vmatpush1.bf16.msra.mxu0 %v2016
        %2691 = vmatprep.subr.bf16.mxu0 0
        %2692 = vmatpush1.bf16.msra.mxu0 %v2015
        %2693 = vmatprep.subr.bf16.mxu0 0
        %2694 = vmatpush1.bf16.msra.mxu0 %v2014
        %2695 = vmatprep.subr.bf16.mxu0 0
        %2696 = vmatpush1.bf16.msra.mxu0 %v2013
        %2697 = vmatprep.subr.bf16.mxu0 0
        %2698 = vmatpush1.bf16.msra.mxu0 %v2012
        %2699 = vmatprep.subr.bf16.mxu0 0
        %2700 = vmatpush1.bf16.msra.mxu0 %v2011
        %2701 = vmatprep.subr.bf16.mxu0 0
        %2702 = vmatpush1.bf16.msra.mxu0 %v2010
        %2703 = vmatprep.subr.bf16.mxu0 0
        %2704 = vmatpush1.bf16.msra.mxu0 %v2009
        %2705 = vmatprep.subr.bf16.mxu0 0
        %2706 = vmatpush2.bf16.msra.mxu0 %v2024
        %2707 = vmatprep.subr.bf16.mxu0 0
        %2708 = vmatpush2.bf16.msra.mxu0 %v2023
        %2709 = vmatprep.subr.bf16.mxu0 0
        %2710 = vmatpush2.bf16.msra.mxu0 %v2022
        %2711 = vmatprep.subr.bf16.mxu0 0
        %2712 = vmatpush2.bf16.msra.mxu0 %v2021
        %2713 = vmatprep.subr.bf16.mxu0 0
        %2714 = vmatpush2.bf16.msra.mxu0 %v2020
        %2715 = vmatprep.subr.bf16.mxu0 0
        %2716 = vmatpush2.bf16.msra.mxu0 %v2019
        %2717 = vmatprep.subr.bf16.mxu0 0
        %2718 = vmatpush2.bf16.msra.mxu0 %v2018
        %2719 = vmatprep.subr.bf16.mxu0 0
        %2720 = vmatpush2.bf16.msra.mxu0 %v2017
        %2721 = vmatprep.mubr.bf16.mxu0 %v772
        %2722 = vmatmul.mubr.bf16.gmra.mxu0 %v770
        %v2723 = vpop.f32.mrf.mxu0
        %v2724 = vadd.f32 %v2684, %v2723
        %v2725 = vpop.f32.mrf.mxu0
        %v2726 = vpop.f32.mrf.mxu0
        %v2727 = vpop.f32.mrf.mxu0
        %2728 = vdwg.mxu0
        %2729 = vmatprep.subr.bf16.mxu0 0
        %2730 = vmatpush1.bf16.msra.mxu0 %v2032
        %2731 = vmatprep.subr.bf16.mxu0 0
        %2732 = vmatpush1.bf16.msra.mxu0 %v2031
        %2733 = vmatprep.subr.bf16.mxu0 0
        %2734 = vmatpush1.bf16.msra.mxu0 %v2030
        %2735 = vmatprep.subr.bf16.mxu0 0
        %2736 = vmatpush1.bf16.msra.mxu0 %v2029
        %2737 = vmatprep.subr.bf16.mxu0 0
        %2738 = vmatpush1.bf16.msra.mxu0 %v2028
        %2739 = vmatprep.subr.bf16.mxu0 0
        %2740 = vmatpush1.bf16.msra.mxu0 %v2027
        %2741 = vmatprep.subr.bf16.mxu0 0
        %2742 = vmatpush1.bf16.msra.mxu0 %v2026
        %2743 = vmatprep.subr.bf16.mxu0 0
        %2744 = vmatpush1.bf16.msra.mxu0 %v2025
        %2745 = vmatprep.subr.bf16.mxu0 0
        %2746 = vmatpush2.bf16.msra.mxu0 %v2040
        %2747 = vmatprep.subr.bf16.mxu0 0
        %2748 = vmatpush2.bf16.msra.mxu0 %v2039
        %2749 = vmatprep.subr.bf16.mxu0 0
        %2750 = vmatpush2.bf16.msra.mxu0 %v2038
        %2751 = vmatprep.subr.bf16.mxu0 0
        %2752 = vmatpush2.bf16.msra.mxu0 %v2037
        %2753 = vmatprep.subr.bf16.mxu0 0
        %2754 = vmatpush2.bf16.msra.mxu0 %v2036
        %2755 = vmatprep.subr.bf16.mxu0 0
        %2756 = vmatpush2.bf16.msra.mxu0 %v2035
        %2757 = vmatprep.subr.bf16.mxu0 0
        %2758 = vmatpush2.bf16.msra.mxu0 %v2034
        %2759 = vmatprep.subr.bf16.mxu0 0
        %2760 = vmatpush2.bf16.msra.mxu0 %v2033
        %2761 = vmatprep.mubr.bf16.mxu0 %v788
        %2762 = vmatmul.mubr.bf16.gmra.mxu0 %v780
        %v2763 = vpop.f32.mrf.mxu0
        %v2764 = vadd.f32 %v2724, %v2763
        %v2765 = vpop.f32.mrf.mxu0
        %v2766 = vpop.f32.mrf.mxu0
        %v2767 = vpop.f32.mrf.mxu0
        %2768 = vdwg.mxu0
        %2769 = vmatprep.subr.bf16.mxu0 0
        %2770 = vmatpush1.bf16.msra.mxu0 %v2048
        %2771 = vmatprep.subr.bf16.mxu0 0
        %2772 = vmatpush1.bf16.msra.mxu0 %v2047
        %2773 = vmatprep.subr.bf16.mxu0 0
        %2774 = vmatpush1.bf16.msra.mxu0 %v2046
        %2775 = vmatprep.subr.bf16.mxu0 0
        %2776 = vmatpush1.bf16.msra.mxu0 %v2045
        %2777 = vmatprep.subr.bf16.mxu0 0
        %2778 = vmatpush1.bf16.msra.mxu0 %v2044
        %2779 = vmatprep.subr.bf16.mxu0 0
        %2780 = vmatpush1.bf16.msra.mxu0 %v2043
        %2781 = vmatprep.subr.bf16.mxu0 0
        %2782 = vmatpush1.bf16.msra.mxu0 %v2042
        %2783 = vmatprep.subr.bf16.mxu0 0
        %2784 = vmatpush1.bf16.msra.mxu0 %v2041
        %2785 = vmatprep.subr.bf16.mxu0 0
        %2786 = vmatpush2.bf16.msra.mxu0 %v2056
        %2787 = vmatprep.subr.bf16.mxu0 0
        %2788 = vmatpush2.bf16.msra.mxu0 %v2055
        %2789 = vmatprep.subr.bf16.mxu0 0
        %2790 = vmatpush2.bf16.msra.mxu0 %v2054
        %2791 = vmatprep.subr.bf16.mxu0 0
        %2792 = vmatpush2.bf16.msra.mxu0 %v2053
        %2793 = vmatprep.subr.bf16.mxu0 0
        %2794 = vmatpush2.bf16.msra.mxu0 %v2052
        %2795 = vmatprep.subr.bf16.mxu0 0
        %2796 = vmatpush2.bf16.msra.mxu0 %v2051
        %2797 = vmatprep.subr.bf16.mxu0 0
        %2798 = vmatpush2.bf16.msra.mxu0 %v2050
        %2799 = vmatprep.subr.bf16.mxu0 0
        %2800 = vmatpush2.bf16.msra.mxu0 %v2049
        %2801 = vmatprep.mubr.bf16.mxu0 %v789
        %2802 = vmatmul.mubr.bf16.gmra.mxu0 %v787
        %v2803 = vpop.f32.mrf.mxu0
        %v2804 = vadd.f32 %v2764, %v2803
        %v2805 = vpop.f32.mrf.mxu0
        %v2806 = vpop.f32.mrf.mxu0
        %v2807 = vpop.f32.mrf.mxu0
        %2808 = vdwg.mxu0
        %2809 = vmatprep.subr.bf16.mxu0 0
        %2810 = vmatpush1.bf16.msra.mxu0 %v2064
        %2811 = vmatprep.subr.bf16.mxu0 0
        %2812 = vmatpush1.bf16.msra.mxu0 %v2063
        %2813 = vmatprep.subr.bf16.mxu0 0
        %2814 = vmatpush1.bf16.msra.mxu0 %v2062
        %2815 = vmatprep.subr.bf16.mxu0 0
        %2816 = vmatpush1.bf16.msra.mxu0 %v2061
        %2817 = vmatprep.subr.bf16.mxu0 0
        %2818 = vmatpush1.bf16.msra.mxu0 %v2060
        %2819 = vmatprep.subr.bf16.mxu0 0
        %2820 = vmatpush1.bf16.msra.mxu0 %v2059
        %2821 = vmatprep.subr.bf16.mxu0 0
        %2822 = vmatpush1.bf16.msra.mxu0 %v2058
        %2823 = vmatprep.subr.bf16.mxu0 0
        %2824 = vmatpush1.bf16.msra.mxu0 %v2057
        %2825 = vmatprep.subr.bf16.mxu0 0
        %2826 = vmatpush2.bf16.msra.mxu0 %v2072
        %2827 = vmatprep.subr.bf16.mxu0 0
        %2828 = vmatpush2.bf16.msra.mxu0 %v2071
        %2829 = vmatprep.subr.bf16.mxu0 0
        %2830 = vmatpush2.bf16.msra.mxu0 %v2070
        %2831 = vmatprep.subr.bf16.mxu0 0
        %2832 = vmatpush2.bf16.msra.mxu0 %v2069
        %2833 = vmatprep.subr.bf16.mxu0 0
        %2834 = vmatpush2.bf16.msra.mxu0 %v2068
        %2835 = vmatprep.subr.bf16.mxu0 0
        %2836 = vmatpush2.bf16.msra.mxu0 %v2067
        %2837 = vmatprep.subr.bf16.mxu0 0
        %2838 = vmatpush2.bf16.msra.mxu0 %v2066
        %2839 = vmatprep.subr.bf16.mxu0 0
        %2840 = vmatpush2.bf16.msra.mxu0 %v2065
        %2841 = vmatprep.mubr.bf16.mxu0 %v805
        %2842 = vmatmul.mubr.bf16.gmra.mxu0 %v797
        %v2843 = vpop.f32.mrf.mxu0
        %v2844 = vadd.f32 %v2804, %v2843
        %v2845 = vpop.f32.mrf.mxu0
        %v2846 = vpop.f32.mrf.mxu0
        %v2847 = vpop.f32.mrf.mxu0
        %2848 = vdwg.mxu0
        %2849 = vmatprep.subr.bf16.mxu0 0
        %2850 = vmatpush1.bf16.msra.mxu0 %v2080
        %2851 = vmatprep.subr.bf16.mxu0 0
        %2852 = vmatpush1.bf16.msra.mxu0 %v2079
        %2853 = vmatprep.subr.bf16.mxu0 0
        %2854 = vmatpush1.bf16.msra.mxu0 %v2078
        %2855 = vmatprep.subr.bf16.mxu0 0
        %2856 = vmatpush1.bf16.msra.mxu0 %v2077
        %2857 = vmatprep.subr.bf16.mxu0 0
        %2858 = vmatpush1.bf16.msra.mxu0 %v2076
        %2859 = vmatprep.subr.bf16.mxu0 0
        %2860 = vmatpush1.bf16.msra.mxu0 %v2075
        %2861 = vmatprep.subr.bf16.mxu0 0
        %2862 = vmatpush1.bf16.msra.mxu0 %v2074
        %2863 = vmatprep.subr.bf16.mxu0 0
        %2864 = vmatpush1.bf16.msra.mxu0 %v2073
        %2865 = vmatprep.subr.bf16.mxu0 0
        %2866 = vmatpush2.bf16.msra.mxu0 %v2088
        %2867 = vmatprep.subr.bf16.mxu0 0
        %2868 = vmatpush2.bf16.msra.mxu0 %v2087
        %2869 = vmatprep.subr.bf16.mxu0 0
        %2870 = vmatpush2.bf16.msra.mxu0 %v2086
        %2871 = vmatprep.subr.bf16.mxu0 0
        %2872 = vmatpush2.bf16.msra.mxu0 %v2085
        %2873 = vmatprep.subr.bf16.mxu0 0
        %2874 = vmatpush2.bf16.msra.mxu0 %v2084
        %2875 = vmatprep.subr.bf16.mxu0 0
        %2876 = vmatpush2.bf16.msra.mxu0 %v2083
        %2877 = vmatprep.subr.bf16.mxu0 0
        %2878 = vmatpush2.bf16.msra.mxu0 %v2082
        %2879 = vmatprep.subr.bf16.mxu0 0
        %2880 = vmatpush2.bf16.msra.mxu0 %v2081
        %2881 = vmatprep.mubr.bf16.mxu0 %v806
        %2882 = vmatmul.mubr.bf16.gmra.mxu0 %v804
        %v2883 = vpop.f32.mrf.mxu0
        %v2884 = vadd.f32 %v2844, %v2883
        %v2885 = vpop.f32.mrf.mxu0
        %v2886 = vpop.f32.mrf.mxu0
        %v2887 = vpop.f32.mrf.mxu0
        %2888 = vdwg.mxu0
        %2889 = vmatprep.subr.bf16.mxu0 0
        %2890 = vmatpush1.bf16.msra.mxu0 %v2096
        %2891 = vmatprep.subr.bf16.mxu0 0
        %2892 = vmatpush1.bf16.msra.mxu0 %v2095
        %2893 = vmatprep.subr.bf16.mxu0 0
        %2894 = vmatpush1.bf16.msra.mxu0 %v2094
        %2895 = vmatprep.subr.bf16.mxu0 0
        %2896 = vmatpush1.bf16.msra.mxu0 %v2093
        %2897 = vmatprep.subr.bf16.mxu0 0
        %2898 = vmatpush1.bf16.msra.mxu0 %v2092
        %2899 = vmatprep.subr.bf16.mxu0 0
        %2900 = vmatpush1.bf16.msra.mxu0 %v2091
        %2901 = vmatprep.subr.bf16.mxu0 0
        %2902 = vmatpush1.bf16.msra.mxu0 %v2090
        %2903 = vmatprep.subr.bf16.mxu0 0
        %2904 = vmatpush1.bf16.msra.mxu0 %v2089
        %2905 = vmatprep.subr.bf16.mxu0 0
        %2906 = vmatpush2.bf16.msra.mxu0 %v2104
        %2907 = vmatprep.subr.bf16.mxu0 0
        %2908 = vmatpush2.bf16.msra.mxu0 %v2103
        %2909 = vmatprep.subr.bf16.mxu0 0
        %2910 = vmatpush2.bf16.msra.mxu0 %v2102
        %2911 = vmatprep.subr.bf16.mxu0 0
        %2912 = vmatpush2.bf16.msra.mxu0 %v2101
        %2913 = vmatprep.subr.bf16.mxu0 0
        %2914 = vmatpush2.bf16.msra.mxu0 %v2100
        %2915 = vmatprep.subr.bf16.mxu0 0
        %2916 = vmatpush2.bf16.msra.mxu0 %v2099
        %2917 = vmatprep.subr.bf16.mxu0 0
        %2918 = vmatpush2.bf16.msra.mxu0 %v2098
        %2919 = vmatprep.subr.bf16.mxu0 0
        %2920 = vmatpush2.bf16.msra.mxu0 %v2097
        %2921 = vmatprep.mubr.bf16.mxu0 %v822
        %2922 = vmatmul.mubr.bf16.gmra.mxu0 %v814
        %v2923 = vpop.f32.mrf.mxu0
        %v2924 = vadd.f32 %v2884, %v2923
        %v2925 = vpop.f32.mrf.mxu0
        %v2926 = vpop.f32.mrf.mxu0
        %v2927 = vpop.f32.mrf.mxu0
        %2928 = vdwg.mxu0
        %2929 = vmatprep.subr.bf16.mxu0 0
        %2930 = vmatpush1.bf16.msra.mxu0 %v2112
        %2931 = vmatprep.subr.bf16.mxu0 0
        %2932 = vmatpush1.bf16.msra.mxu0 %v2111
        %2933 = vmatprep.subr.bf16.mxu0 0
        %2934 = vmatpush1.bf16.msra.mxu0 %v2110
        %2935 = vmatprep.subr.bf16.mxu0 0
        %2936 = vmatpush1.bf16.msra.mxu0 %v2109
        %2937 = vmatprep.subr.bf16.mxu0 0
        %2938 = vmatpush1.bf16.msra.mxu0 %v2108
        %2939 = vmatprep.subr.bf16.mxu0 0
        %2940 = vmatpush1.bf16.msra.mxu0 %v2107
        %2941 = vmatprep.subr.bf16.mxu0 0
        %2942 = vmatpush1.bf16.msra.mxu0 %v2106
        %2943 = vmatprep.subr.bf16.mxu0 0
        %2944 = vmatpush1.bf16.msra.mxu0 %v2105
        %2945 = vmatprep.subr.bf16.mxu0 0
        %2946 = vmatpush2.bf16.msra.mxu0 %v2120
        %2947 = vmatprep.subr.bf16.mxu0 0
        %2948 = vmatpush2.bf16.msra.mxu0 %v2119
        %2949 = vmatprep.subr.bf16.mxu0 0
        %2950 = vmatpush2.bf16.msra.mxu0 %v2118
        %2951 = vmatprep.subr.bf16.mxu0 0
        %2952 = vmatpush2.bf16.msra.mxu0 %v2117
        %2953 = vmatprep.subr.bf16.mxu0 0
        %2954 = vmatpush2.bf16.msra.mxu0 %v2116
        %2955 = vmatprep.subr.bf16.mxu0 0
        %2956 = vmatpush2.bf16.msra.mxu0 %v2115
        %2957 = vmatprep.subr.bf16.mxu0 0
        %2958 = vmatpush2.bf16.msra.mxu0 %v2114
        %2959 = vmatprep.subr.bf16.mxu0 0
        %2960 = vmatpush2.bf16.msra.mxu0 %v2113
        %2961 = vmatprep.mubr.bf16.mxu0 %v823
        %2962 = vmatmul.mubr.bf16.gmra.mxu0 %v821
        %v2963 = vpop.f32.mrf.mxu0
        %v2964 = vadd.f32 %v2924, %v2963
        %v2965 = vpop.f32.mrf.mxu0
        %v2966 = vpop.f32.mrf.mxu0
        %v2967 = vpop.f32.mrf.mxu0
        %2968 = vdwg.mxu0
        %2969 = vmatprep.subr.bf16.mxu0 0
        %2970 = vmatpush1.bf16.msra.mxu0 %v2128
        %2971 = vmatprep.subr.bf16.mxu0 0
        %2972 = vmatpush1.bf16.msra.mxu0 %v2127
        %2973 = vmatprep.subr.bf16.mxu0 0
        %2974 = vmatpush1.bf16.msra.mxu0 %v2126
        %2975 = vmatprep.subr.bf16.mxu0 0
        %2976 = vmatpush1.bf16.msra.mxu0 %v2125
        %2977 = vmatprep.subr.bf16.mxu0 0
        %2978 = vmatpush1.bf16.msra.mxu0 %v2124
        %2979 = vmatprep.subr.bf16.mxu0 0
        %2980 = vmatpush1.bf16.msra.mxu0 %v2123
        %2981 = vmatprep.subr.bf16.mxu0 0
        %2982 = vmatpush1.bf16.msra.mxu0 %v2122
        %2983 = vmatprep.subr.bf16.mxu0 0
        %2984 = vmatpush1.bf16.msra.mxu0 %v2121
        %2985 = vmatprep.subr.bf16.mxu0 0
        %2986 = vmatpush2.bf16.msra.mxu0 %v2136
        %2987 = vmatprep.subr.bf16.mxu0 0
        %2988 = vmatpush2.bf16.msra.mxu0 %v2135
        %2989 = vmatprep.subr.bf16.mxu0 0
        %2990 = vmatpush2.bf16.msra.mxu0 %v2134
        %2991 = vmatprep.subr.bf16.mxu0 0
        %2992 = vmatpush2.bf16.msra.mxu0 %v2133
        %2993 = vmatprep.subr.bf16.mxu0 0
        %2994 = vmatpush2.bf16.msra.mxu0 %v2132
        %2995 = vmatprep.subr.bf16.mxu0 0
        %2996 = vmatpush2.bf16.msra.mxu0 %v2131
        %2997 = vmatprep.subr.bf16.mxu0 0
        %2998 = vmatpush2.bf16.msra.mxu0 %v2130
        %2999 = vmatprep.subr.bf16.mxu0 0
        %3000 = vmatpush2.bf16.msra.mxu0 %v2129
        %3001 = vmatprep.mubr.bf16.mxu0 %v839
        %3002 = vmatmul.mubr.bf16.gmra.mxu0 %v831
        %v3003 = vpop.f32.mrf.mxu0
        %v3004 = vadd.f32 %v2964, %v3003
        %v3005 = vpop.f32.mrf.mxu0
        %v3006 = vpop.f32.mrf.mxu0
        %v3007 = vpop.f32.mrf.mxu0
        %3008 = vdwg.mxu0
        %3009 = vmatprep.subr.bf16.mxu0 0
        %3010 = vmatpush1.bf16.msra.mxu0 %v2144
        %3011 = vmatprep.subr.bf16.mxu0 0
        %3012 = vmatpush1.bf16.msra.mxu0 %v2143
        %3013 = vmatprep.subr.bf16.mxu0 0
        %3014 = vmatpush1.bf16.msra.mxu0 %v2142
        %3015 = vmatprep.subr.bf16.mxu0 0
        %3016 = vmatpush1.bf16.msra.mxu0 %v2141
        %3017 = vmatprep.subr.bf16.mxu0 0
        %3018 = vmatpush1.bf16.msra.mxu0 %v2140
        %3019 = vmatprep.subr.bf16.mxu0 0
        %3020 = vmatpush1.bf16.msra.mxu0 %v2139
        %3021 = vmatprep.subr.bf16.mxu0 0
        %3022 = vmatpush1.bf16.msra.mxu0 %v2138
        %3023 = vmatprep.subr.bf16.mxu0 0
        %3024 = vmatpush1.bf16.msra.mxu0 %v2137
        %3025 = vmatprep.subr.bf16.mxu0 0
        %3026 = vmatpush2.bf16.msra.mxu0 %v2152
        %3027 = vmatprep.subr.bf16.mxu0 0
        %3028 = vmatpush2.bf16.msra.mxu0 %v2151
        %3029 = vmatprep.subr.bf16.mxu0 0
        %3030 = vmatpush2.bf16.msra.mxu0 %v2150
        %3031 = vmatprep.subr.bf16.mxu0 0
        %3032 = vmatpush2.bf16.msra.mxu0 %v2149
        %3033 = vmatprep.subr.bf16.mxu0 0
        %3034 = vmatpush2.bf16.msra.mxu0 %v2148
        %3035 = vmatprep.subr.bf16.mxu0 0
        %3036 = vmatpush2.bf16.msra.mxu0 %v2147
        %3037 = vmatprep.subr.bf16.mxu0 0
        %3038 = vmatpush2.bf16.msra.mxu0 %v2146
        %3039 = vmatprep.subr.bf16.mxu0 0
        %3040 = vmatpush2.bf16.msra.mxu0 %v2145
        %3041 = vmatprep.mubr.bf16.mxu0 %v840
        %3042 = vmatmul.mubr.bf16.gmra.mxu0 %v838
        %v3043 = vpop.f32.mrf.mxu0
        %v3044 = vadd.f32 %v3004, %v3043
        %v3045 = vpop.f32.mrf.mxu0
        %v3046 = vpop.f32.mrf.mxu0
        %v3047 = vpop.f32.mrf.mxu0
        %3048 = vdwg.mxu0
        %3049 = vst [vmem:[%s163] sm:$0xf] %v3044
        %s3050 = sand.u32 %s93, 1
        %s3051 = scalar_lea.sflag [#allocation3], %s3050
        %s3052 = sand.u32 %s93, 1
        %s3053 = smul.addr %s3052, 4
        %s3054 = scalar_lea.vmem [#allocation2], %s3053
        // Predicated region
        $region33: #{patch_embed4_2_forward.3} parent=31 // pred_check
          %p3055 = pneg %p103
        $region34: #{patch_embed4_2_forward.3} parent=31 // pred_check_branch
          %3057 = sbr.rel (%p3055) target = $region36
        $region35: #{patch_embed4_2_forward.3} parent=31 // pred_region
          %s3059 = ssub.s32 64, 64
          %3060 = vsyncadd %s3051, %s3059
          %s3061 = smul.addr %s17, 64
          %s3062 = scalar_lea.hbm %s3, %s3061
          %s3064 = sshll.u32 %s3054, 4
          %s3065 = int_to_ptr.vmem [resolvable:$true] %s3064
          %3067 = dma.vmem_to_hbm [thread:$0]  %s3065, 64, %s3062, %s3051
        $region36: #{patch_embed4_2_forward.3} parent=31 // pred_fallthru
          _
      $region32: #{patch_embed4_2_forward.3} parent=5 // pred_fallthru
        _
      %p3068 = scmp.le.s32.totalorder 2, %s12
      // Predicated region
      $region37: #{patch_embed4_2_forward.3} parent=5 // pred_check
        %p3069 = pneg %p3068
      $region38: #{patch_embed4_2_forward.3} parent=5 // pred_check_branch
        %3071 = sbr.rel (%p3069) target = $region40
      $region39: #{patch_embed4_2_forward.3} parent=5 // pred_region
        %s3072 = ssub.s32 %s12, 2
        // Predicated region
        $region41: #{patch_embed4_2_forward.3} parent=39 // pred_check
          %p3073 = pneg %p109
        $region42: #{patch_embed4_2_forward.3} parent=39 // pred_check_branch
          %3075 = sbr.rel (%p3073) target = $region44
        $region43: #{patch_embed4_2_forward.3} parent=39 // pred_region
          %s3076 = sand.u32 %s94, 1
          %s3077 = scalar_lea.sflag [#allocation3], %s3076
          %s3078 = sand.u32 %s94, 1
          %s3079 = smul.addr %s3078, 4
          %s3080 = scalar_lea.vmem [#allocation2], %s3079
          %3081 = dma.done %s3077, 64
        $region44: #{patch_embed4_2_forward.3} parent=39 // pred_fallthru
          _
      $region40: #{patch_embed4_2_forward.3} parent=5 // pred_fallthru
        _
    $region6: #{patch_embed4_2_forward.3} parent=1 // loop_footer
      %s16 = sadd.s32 1, %s12
    $region7: #{patch_embed4_2_forward.3} parent=1 // loop_footer_branch
      %11 = sbr.rel target = $region3
    $region8: #{patch_embed4_2_forward.3} parent=1 // loop_exit
      _
    %3082 = vsyncpa [#allocation3], 1
    %s3083 = scalar_lea.sflag [#allocation3], 1
    %3084 = vsyncpa %s3083, 1

// kernel: patch_embed4_2_forward.2
$region0: #{patch_embed4_2_forward.2}
  #allocation0 [shape = 'u32[]', space=smem, size = 0x4, offset = 0x4, fixed_abs, tag = 'smem constant byte address 0x4 - core index']
  #allocation1 [shape = 'u32[144,128]{1,0:T(1,128)}', space=vmem, size = 0x12000, scoped, tag = 'internal scratch']
  #allocation2 [shape = 'f32[18,18,64]{2,1,0:T(8,128)}', space=vmem, size = 0x36000, scoped, tag = 'scratch operand']
  %s0 = inlined_call_operand.vmem [shape: bf16[2,256,147], index: 0, kind: input, shape index: {}]
  %s1 = inlined_call_operand.vmem [shape: bf16[147,64], index: 1, kind: input, shape index: {}]
  %s2 = inlined_call_operand.vmem [shape: f32[1,64], index: 2, kind: input, shape index: {}]
  %s3 = inlined_call_operand.vmem [shape: bf16[9,64,64], index: 3, kind: input, shape index: {}]
  %s4 = inlined_call_operand.vmem [shape: f32[1,64], index: 4, kind: input, shape index: {}]
  %s5 = inlined_call_operand.vmem [shape: bf16[9,64,64], index: 5, kind: input, shape index: {}]
  %s6 = inlined_call_operand.vmem [shape: f32[1,64], index: 6, kind: input, shape index: {}]
  %s7 = inlined_call_operand.vmem [shape: bf16[2,16,16,64], index: 7, kind: output, shape index: {}]
  %s8 = sld [smem:[#allocation0]]
  $region61: #{patch_embed4_2_forward.2} parent=0
    _
  %s10 = ssub.s32 1, %s8
  %s11 = scalar_select 0, %s10, %s8
  loop: start=0, step=1, limit=4
  $region2: #{patch_embed4_2_forward.2} parent=0 // loop_pre_header
    _
  $region3: #{patch_embed4_2_forward.2} parent=0 // loop_header
    %s13 = sphi 0, %s17
    %p14 = scmp.ge.s32.totalorder %s13, 4
    %s23 = sphi 0, %s25
    %s26 = sphi 0, %s23
    %s27 = sphi 0, %s26
    %s43 = sphi 0, %s27
    %s47 = sphi 0, %s47
    %s49 = sphi 0, %s47
    %s50 = sphi 0, %s49
    %s64 = sphi 0, %s50
    %s68 = sphi 0, %s68
    %s70 = sphi 0, %s68
    %s71 = sphi 0, %s70
    %s85 = sphi 0, %s71
    %s89 = sphi 0, %s89
    %s91 = sphi 0, %s89
    %s92 = sphi 0, %s91
    %s106 = sphi 0, %s92
    %s110 = sphi 0, %s110
    %s112 = sphi 0, %s110
    %s113 = sphi 0, %s112
    %s127 = sphi 0, %s113
    %s131 = sphi 0, %s131
    %s133 = sphi 0, %s131
    %s134 = sphi 0, %s133
    %s148 = sphi 0, %s134
    %s152 = sphi 0, %s152
    %s154 = sphi 0, %s152
    %s155 = sphi 0, %s154
    %s169 = sphi 0, %s155
    %s175 = sphi 0, %s177
    %s178 = sphi 0, %s175
    %s179 = sphi 0, %s178
    %s195 = sphi 0, %s179
  $region4: #{patch_embed4_2_forward.2} parent=0 // loop_header_branch
    %16 = sbr.rel (%p14) target = $region8
  $region5: #{patch_embed4_2_forward.2} parent=0 // loop_body
    %s18 = ssub.s32 %s13, 1
    %s19 = ssub.s32 %s13, 2
    %s20 = sadd.s32 %s13, 1
    %s21 = ssub.s32 %s13, %s20
    %p22 = scmp.eq.s32.totalorder %s21, 0
    %s24 = sadd.s32 %s23, 1
    %s25 = scalar_select %p22, %s23, %s24
    %p28 = pneg %p22
    %p29 = scmp.eq.s32.totalorder %s13, 1
    %p30 = por %p28, %p29
    %p31 = scmp.ne.s32.totalorder %s23, %s26
    %p32 = scmp.eq.s32.totalorder %s13, 0
    %p33 = por %p31, %p32
    %p34 = scmp.ne.s32.totalorder %s23, %s26
    %p35 = scmp.eq.s32.totalorder %s18, 1
    %p36 = por %p34, %p35
    %p37 = scmp.ne.s32.totalorder %s26, %s27
    %p38 = scmp.eq.s32.totalorder %s18, 0
    %p39 = por %p37, %p38
    %p40 = scmp.ne.s32.totalorder %s26, %s27
    %p41 = scmp.eq.s32.totalorder %s19, 1
    %p42 = por %p40, %p41
    %p44 = scmp.ne.s32.totalorder %s27, %s43
    %p45 = scmp.eq.s32.totalorder %s19, 0
    %p46 = por %p44, %p45
    %s48 = sadd.s32 %s47, 1
    %p51 = scmp.eq.s32.totalorder %s13, 1
    %p52 = scmp.ne.s32.totalorder %s47, %s49
    %p53 = scmp.eq.s32.totalorder %s13, 0
    %p54 = por %p52, %p53
    %p55 = scmp.ne.s32.totalorder %s47, %s49
    %p56 = scmp.eq.s32.totalorder %s18, 1
    %p57 = por %p55, %p56
    %p58 = scmp.ne.s32.totalorder %s49, %s50
    %p59 = scmp.eq.s32.totalorder %s18, 0
    %p60 = por %p58, %p59
    %p61 = scmp.ne.s32.totalorder %s49, %s50
    %p62 = scmp.eq.s32.totalorder %s19, 1
    %p63 = por %p61, %p62
    %p65 = scmp.ne.s32.totalorder %s50, %s64
    %p66 = scmp.eq.s32.totalorder %s19, 0
    %p67 = por %p65, %p66
    %s69 = sadd.s32 %s68, 1
    %p72 = scmp.eq.s32.totalorder %s13, 1
    %p73 = scmp.ne.s32.totalorder %s68, %s70
    %p74 = scmp.eq.s32.totalorder %s13, 0
    %p75 = por %p73, %p74
    %p76 = scmp.ne.s32.totalorder %s68, %s70
    %p77 = scmp.eq.s32.totalorder %s18, 1
    %p78 = por %p76, %p77
    %p79 = scmp.ne.s32.totalorder %s70, %s71
    %p80 = scmp.eq.s32.totalorder %s18, 0
    %p81 = por %p79, %p80
    %p82 = scmp.ne.s32.totalorder %s70, %s71
    %p83 = scmp.eq.s32.totalorder %s19, 1
    %p84 = por %p82, %p83
    %p86 = scmp.ne.s32.totalorder %s71, %s85
    %p87 = scmp.eq.s32.totalorder %s19, 0
    %p88 = por %p86, %p87
    %s90 = sadd.s32 %s89, 1
    %p93 = scmp.eq.s32.totalorder %s13, 1
    %p94 = scmp.ne.s32.totalorder %s89, %s91
    %p95 = scmp.eq.s32.totalorder %s13, 0
    %p96 = por %p94, %p95
    %p97 = scmp.ne.s32.totalorder %s89, %s91
    %p98 = scmp.eq.s32.totalorder %s18, 1
    %p99 = por %p97, %p98
    %p100 = scmp.ne.s32.totalorder %s91, %s92
    %p101 = scmp.eq.s32.totalorder %s18, 0
    %p102 = por %p100, %p101
    %p103 = scmp.ne.s32.totalorder %s91, %s92
    %p104 = scmp.eq.s32.totalorder %s19, 1
    %p105 = por %p103, %p104
    %p107 = scmp.ne.s32.totalorder %s92, %s106
    %p108 = scmp.eq.s32.totalorder %s19, 0
    %p109 = por %p107, %p108
    %s111 = sadd.s32 %s110, 1
    %p114 = scmp.eq.s32.totalorder %s13, 1
    %p115 = scmp.ne.s32.totalorder %s110, %s112
    %p116 = scmp.eq.s32.totalorder %s13, 0
    %p117 = por %p115, %p116
    %p118 = scmp.ne.s32.totalorder %s110, %s112
    %p119 = scmp.eq.s32.totalorder %s18, 1
    %p120 = por %p118, %p119
    %p121 = scmp.ne.s32.totalorder %s112, %s113
    %p122 = scmp.eq.s32.totalorder %s18, 0
    %p123 = por %p121, %p122
    %p124 = scmp.ne.s32.totalorder %s112, %s113
    %p125 = scmp.eq.s32.totalorder %s19, 1
    %p126 = por %p124, %p125
    %p128 = scmp.ne.s32.totalorder %s113, %s127
    %p129 = scmp.eq.s32.totalorder %s19, 0
    %p130 = por %p128, %p129
    %s132 = sadd.s32 %s131, 1
    %p135 = scmp.eq.s32.totalorder %s13, 1
    %p136 = scmp.ne.s32.totalorder %s131, %s133
    %p137 = scmp.eq.s32.totalorder %s13, 0
    %p138 = por %p136, %p137
    %p139 = scmp.ne.s32.totalorder %s131, %s133
    %p140 = scmp.eq.s32.totalorder %s18, 1
    %p141 = por %p139, %p140
    %p142 = scmp.ne.s32.totalorder %s133, %s134
    %p143 = scmp.eq.s32.totalorder %s18, 0
    %p144 = por %p142, %p143
    %p145 = scmp.ne.s32.totalorder %s133, %s134
    %p146 = scmp.eq.s32.totalorder %s19, 1
    %p147 = por %p145, %p146
    %p149 = scmp.ne.s32.totalorder %s134, %s148
    %p150 = scmp.eq.s32.totalorder %s19, 0
    %p151 = por %p149, %p150
    %s153 = sadd.s32 %s152, 1
    %p156 = scmp.eq.s32.totalorder %s13, 1
    %p157 = scmp.ne.s32.totalorder %s152, %s154
    %p158 = scmp.eq.s32.totalorder %s13, 0
    %p159 = por %p157, %p158
    %p160 = scmp.ne.s32.totalorder %s152, %s154
    %p161 = scmp.eq.s32.totalorder %s18, 1
    %p162 = por %p160, %p161
    %p163 = scmp.ne.s32.totalorder %s154, %s155
    %p164 = scmp.eq.s32.totalorder %s18, 0
    %p165 = por %p163, %p164
    %p166 = scmp.ne.s32.totalorder %s154, %s155
    %p167 = scmp.eq.s32.totalorder %s19, 1
    %p168 = por %p166, %p167
    %p170 = scmp.ne.s32.totalorder %s155, %s169
    %p171 = scmp.eq.s32.totalorder %s19, 0
    %p172 = por %p170, %p171
    %s173 = ssub.s32 %s13, %s20
    %p174 = scmp.eq.s32.totalorder %s173, 0
    %s176 = sadd.s32 %s175, 1
    %s177 = scalar_select %p174, %s175, %s176
    %p180 = pneg %p174
    %p181 = scmp.eq.s32.totalorder %s13, 1
    %p182 = por %p180, %p181
    %p183 = scmp.ne.s32.totalorder %s175, %s178
    %p184 = scmp.eq.s32.totalorder %s13, 0
    %p185 = por %p183, %p184
    %p186 = scmp.ne.s32.totalorder %s175, %s178
    %p187 = scmp.eq.s32.totalorder %s18, 1
    %p188 = por %p186, %p187
    %p189 = scmp.ne.s32.totalorder %s178, %s179
    %p190 = scmp.eq.s32.totalorder %s18, 0
    %p191 = por %p189, %p190
    %p192 = scmp.ne.s32.totalorder %s178, %s179
    %p193 = scmp.eq.s32.totalorder %s19, 1
    %p194 = por %p192, %p193
    %p196 = scmp.ne.s32.totalorder %s179, %s195
    %p197 = scmp.eq.s32.totalorder %s19, 0
    %p198 = por %p196, %p197
    %p199 = scmp.le.s32.totalorder 1, %s13
    %p200 = scmp.lt.s32.totalorder %s13, 3
    %p201 = pnand %p199, %p200
    %p202 = pneg %p201
    // Predicated region
    $region9: #{patch_embed4_2_forward.2} parent=5 // pred_check
      _
    $region10: #{patch_embed4_2_forward.2} parent=5 // pred_check_branch
      %204 = sbr.rel (%p201) target = $region12
    $region11: #{patch_embed4_2_forward.2} parent=5 // pred_region
      %s205 = ssub.s32 %s13, 1
      // Predicated region
      $region13: #{patch_embed4_2_forward.2} parent=11 // pred_check
        %p206 = pneg %p60
      $region14: #{patch_embed4_2_forward.2} parent=11 // pred_check_branch
        %208 = sbr.rel (%p206) target = $region16
      $region15: #{patch_embed4_2_forward.2} parent=11 // pred_region
        _
      $region16: #{patch_embed4_2_forward.2} parent=11 // pred_fallthru
        _
      // Predicated region
      $region17: #{patch_embed4_2_forward.2} parent=11 // pred_check
        %p209 = pneg %p81
      $region18: #{patch_embed4_2_forward.2} parent=11 // pred_check_branch
        %211 = sbr.rel (%p209) target = $region20
      $region19: #{patch_embed4_2_forward.2} parent=11 // pred_region
        _
      $region20: #{patch_embed4_2_forward.2} parent=11 // pred_fallthru
        _
      // Predicated region
      $region21: #{patch_embed4_2_forward.2} parent=11 // pred_check
        %p212 = pneg %p102
      $region22: #{patch_embed4_2_forward.2} parent=11 // pred_check_branch
        %214 = sbr.rel (%p212) target = $region24
      $region23: #{patch_embed4_2_forward.2} parent=11 // pred_region
        _
      $region24: #{patch_embed4_2_forward.2} parent=11 // pred_fallthru
        _
      // Predicated region
      $region25: #{patch_embed4_2_forward.2} parent=11 // pred_check
        %p215 = pneg %p123
      $region26: #{patch_embed4_2_forward.2} parent=11 // pred_check_branch
        %217 = sbr.rel (%p215) target = $region28
      $region27: #{patch_embed4_2_forward.2} parent=11 // pred_region
        _
      $region28: #{patch_embed4_2_forward.2} parent=11 // pred_fallthru
        _
      // Predicated region
      $region29: #{patch_embed4_2_forward.2} parent=11 // pred_check
        %p218 = pneg %p144
      $region30: #{patch_embed4_2_forward.2} parent=11 // pred_check_branch
        %220 = sbr.rel (%p218) target = $region32
      $region31: #{patch_embed4_2_forward.2} parent=11 // pred_region
        _
      $region32: #{patch_embed4_2_forward.2} parent=11 // pred_fallthru
        _
      // Predicated region
      $region33: #{patch_embed4_2_forward.2} parent=11 // pred_check
        %p221 = pneg %p165
      $region34: #{patch_embed4_2_forward.2} parent=11 // pred_check_branch
        %223 = sbr.rel (%p221) target = $region36
      $region35: #{patch_embed4_2_forward.2} parent=11 // pred_region
        _
      $region36: #{patch_embed4_2_forward.2} parent=11 // pred_fallthru
        _
    $region12: #{patch_embed4_2_forward.2} parent=5 // pred_fallthru
      _
    %p224 = scmp.lt.s32.totalorder %s13, 2
    // Predicated region
    $region37: #{patch_embed4_2_forward.2} parent=5 // pred_check
      %p225 = pneg %p224
    $region38: #{patch_embed4_2_forward.2} parent=5 // pred_check_branch
      %227 = sbr.rel (%p225) target = $region40
    $region39: #{patch_embed4_2_forward.2} parent=5 // pred_region
      // Predicated region
      $region41: #{patch_embed4_2_forward.2} parent=39 // pred_check
        %p228 = pneg %p33
      $region42: #{patch_embed4_2_forward.2} parent=39 // pred_check_branch
        %230 = sbr.rel (%p228) target = $region44
      $region43: #{patch_embed4_2_forward.2} parent=39 // pred_region
        %p231 = scmp.lt.s32.totalorder %s13, 1
        %s232 = scalar_select %p231, %s13, 1
        %s233 = smul.addr %s232, 64
        %s234 = smul.addr %s233, 4
        %s235 = scalar_lea.vmem %s0, %s234
      $region44: #{patch_embed4_2_forward.2} parent=39 // pred_fallthru
        _
    $region40: #{patch_embed4_2_forward.2} parent=5 // pred_fallthru
      _
    %p236 = scmp.le.s32.totalorder 1, %s13
    %p237 = scmp.lt.s32.totalorder %s13, 3
    %p238 = pnand %p236, %p237
    %p239 = pneg %p238
    // Predicated region
    $region45: #{patch_embed4_2_forward.2} parent=5 // pred_check
      _
    $region46: #{patch_embed4_2_forward.2} parent=5 // pred_check_branch
      %241 = sbr.rel (%p238) target = $region48
    $region47: #{patch_embed4_2_forward.2} parent=5 // pred_region
      %s242 = ssub.s32 %s13, 1
      %p243 = scmp.lt.s32.totalorder %s18, 1
      %s244 = scalar_select %p243, %s18, 1
      %s245 = smul.addr %s244, 64
      %s246 = smul.addr %s245, 4
      %s247 = scalar_lea.vmem %s0, %s246
      %p248 = pneg %p39
      %p249 = pneg %p36
      %p250 = pneg %p60
      %p251 = pneg %p57
      %p252 = pneg %p81
      %p253 = pneg %p78
      %p254 = pneg %p102
      %p255 = pneg %p99
      %p256 = pneg %p123
      %p257 = pneg %p120
      %p258 = pneg %p144
      %p259 = pneg %p141
      %p260 = pneg %p165
      %p261 = pneg %p162
      %p262 = pneg %p191
      %p263 = pneg %p188
      %p264 = scmp.lt.s32.totalorder %s18, 1
      %s265 = scalar_select %p264, %s18, 1
      %s266 = smul.addr %s265, 32
      %s267 = smul.addr %s266, 4
      %s268 = scalar_lea.vmem %s7, %s267
      %p269 = scmp.lt.s32.totalorder %s18, 1
      %s270 = scalar_select %p269, %s18, 1
      %s271 = smul.addr %s270, 64
      %s272 = smul.addr %s271, 4
      %s273 = scalar_lea.vmem %s0, %s272
      %p274 = scmp.lt.s32.totalorder %s18, 1
      %s275 = scalar_select %p274, %s18, 1
      %s276 = smul.addr %s275, 32
      %s277 = smul.addr %s276, 4
      %s278 = scalar_lea.vmem %s7, %s277
      %v280 = vld [vmem:[%s273] sm:$0xff]
      %v281 = vld [vmem:[%s273 + $0x8] sm:$0xff]
      %v282 = vld [vmem:[%s273 + $0x10] sm:$0xff]
      %v283 = vld [vmem:[%s273 + $0x18] sm:$0xff]
      %v284 = vld [vmem:[%s273 + $0x20] sm:$0xff]
      %v285 = vld [vmem:[%s273 + $0x28] sm:$0xff]
      %v286 = vld [vmem:[%s273 + $0x30] sm:$0xff]
      %v287 = vld [vmem:[%s273 + $0x38] sm:$0xff]
      %v288 = vld [vmem:[%s273 + $0x40] sm:$0xff]
      %v289 = vld [vmem:[%s273 + $0x48] sm:$0xff]
      %v290 = vld [vmem:[%s273 + $0x50] sm:$0xff]
      %v291 = vld [vmem:[%s273 + $0x58] sm:$0xff]
      %v292 = vld [vmem:[%s273 + $0x60] sm:$0xff]
      %v293 = vld [vmem:[%s273 + $0x68] sm:$0xff]
      %v294 = vld [vmem:[%s273 + $0x70] sm:$0xff]
      %v295 = vld [vmem:[%s273 + $0x78] sm:$0xff]
      %v296 = vld [vmem:[%s273 + $0x80] sm:$0xff]
      %v297 = vld [vmem:[%s273 + $0x88] sm:$0xff]
      %v298 = vld [vmem:[%s273 + $0x90] sm:$0xff]
      %v299 = vld [vmem:[%s273 + $0x98] sm:$0xff]
      %v300 = vld [vmem:[%s273 + $0xa0] sm:$0xff]
      %v301 = vld [vmem:[%s273 + $0xa8] sm:$0xff]
      %v302 = vld [vmem:[%s273 + $0xb0] sm:$0xff]
      %v303 = vld [vmem:[%s273 + $0xb8] sm:$0xff]
      %v304 = vld [vmem:[%s273 + $0xc0] sm:$0xff]
      %v305 = vld [vmem:[%s273 + $0xc8] sm:$0xff]
      %v306 = vld [vmem:[%s273 + $0xd0] sm:$0xff]
      %v307 = vld [vmem:[%s273 + $0xd8] sm:$0xff]
      %v308 = vld [vmem:[%s273 + $0xe0] sm:$0xff]
      %v309 = vld [vmem:[%s273 + $0xe8] sm:$0xff]
      %v310 = vld [vmem:[%s273 + $0xf0] sm:$0xff]
      %v311 = vld [vmem:[%s273 + $0xf8] sm:$0xff]
      %v312 = vld [vmem:[%s1] sm:$0xf]
      %v313 = vld [vmem:[%s1 + $0x4] sm:$0xf]
      %v314 = vld [vmem:[%s1 + $0x8] sm:$0xf]
      %v315 = vld [vmem:[%s1 + $0xc] sm:$0xf]
      %v316 = vld [vmem:[%s1 + $0x10] sm:$0xf]
      %v317 = vld [vmem:[%s1 + $0x14] sm:$0xf]
      %v318 = vld [vmem:[%s1 + $0x18] sm:$0xf]
      %v319 = vld [vmem:[%s1 + $0x1c] sm:$0xf]
      %v320 = vld [vmem:[%s1 + $0x20] sm:$0xf]
      %v321 = vld [vmem:[%s1 + $0x24] sm:$0xf]
      %v322 = vld [vmem:[%s1 + $0x28] sm:$0xf]
      %v323 = vld [vmem:[%s1 + $0x2c] sm:$0xf]
      %v324 = vld [vmem:[%s1 + $0x30] sm:$0xf]
      %v325 = vld [vmem:[%s1 + $0x34] sm:$0xf]
      %v326 = vld [vmem:[%s1 + $0x38] sm:$0xf]
      %v327 = vld [vmem:[%s1 + $0x3c] sm:$0xf]
      %v328 = vld [vmem:[%s1 + $0x40] sm:$0xf]
      %v329 = vld [vmem:[%s1 + $0x44] sm:$0xf]
      %v330 = vld [vmem:[%s1 + $0x48] sm:$0x3]
      %v331 = vld [vmem:[%s2] sm:$0x1]
      %v333 = vlaneseq
      %v334 = vshrl.u32 %v333, 7
      %v335 = vsub.s32 0, %v334
      %v336 = vrot.slane %v331, %v335
      %v370 = vunpack.c.l.b16 %v280
      %v371 = vunpack.c.h.b16 %v280
      %v372 = vunpack.c.l.b16 %v281
      %v373 = vunpack.c.h.b16 %v281
      %v374 = vunpack.c.l.b16 %v282
      %v375 = vunpack.c.h.b16 %v282
      %v376 = vunpack.c.l.b16 %v283
      %v377 = vunpack.c.h.b16 %v283
      %v378 = vunpack.c.l.b16 %v284
      %v379 = vunpack.c.h.b16 %v284
      %v380 = vunpack.c.l.b16 %v285
      %v381 = vunpack.c.h.b16 %v285
      %v382 = vunpack.c.l.b16 %v286
      %v383 = vunpack.c.h.b16 %v286
      %v384 = vunpack.c.l.b16 %v287
      %v385 = vunpack.c.h.b16 %v287
      %v386 = vunpack.c.l.b16 %v288
      %v387 = vunpack.c.h.b16 %v288
      %v388 = vunpack.c.l.b16 %v289
      %v389 = vunpack.c.h.b16 %v289
      %v390 = vunpack.c.l.b16 %v290
      %v391 = vunpack.c.h.b16 %v290
      %v392 = vunpack.c.l.b16 %v291
      %v393 = vunpack.c.h.b16 %v291
      %v394 = vunpack.c.l.b16 %v292
      %v395 = vunpack.c.h.b16 %v292
      %v396 = vunpack.c.l.b16 %v293
      %v397 = vunpack.c.h.b16 %v293
      %v398 = vunpack.c.l.b16 %v294
      %v399 = vunpack.c.h.b16 %v294
      %v400 = vunpack.c.l.b16 %v295
      %v401 = vunpack.c.h.b16 %v295
      %v402 = vunpack.c.l.b16 %v296
      %v403 = vunpack.c.h.b16 %v296
      %v404 = vunpack.c.l.b16 %v297
      %v405 = vunpack.c.h.b16 %v297
      %v406 = vunpack.c.l.b16 %v298
      %v407 = vunpack.c.h.b16 %v298
      %v408 = vunpack.c.l.b16 %v299
      %v409 = vunpack.c.h.b16 %v299
      %v410 = vunpack.c.l.b16 %v300
      %v411 = vunpack.c.h.b16 %v300
      %v412 = vunpack.c.l.b16 %v301
      %v413 = vunpack.c.h.b16 %v301
      %v414 = vunpack.c.l.b16 %v302
      %v415 = vunpack.c.h.b16 %v302
      %v416 = vunpack.c.l.b16 %v303
      %v417 = vunpack.c.h.b16 %v303
      %v418 = vunpack.c.l.b16 %v304
      %v419 = vunpack.c.h.b16 %v304
      %v420 = vunpack.c.l.b16 %v305
      %v421 = vunpack.c.h.b16 %v305
      %v422 = vunpack.c.l.b16 %v306
      %v423 = vunpack.c.h.b16 %v306
      %v424 = vunpack.c.l.b16 %v307
      %v425 = vunpack.c.h.b16 %v307
      %v426 = vunpack.c.l.b16 %v308
      %v427 = vunpack.c.h.b16 %v308
      %v428 = vunpack.c.l.b16 %v309
      %v429 = vunpack.c.h.b16 %v309
      %v430 = vunpack.c.l.b16 %v310
      %v431 = vunpack.c.h.b16 %v310
      %v432 = vunpack.c.l.b16 %v311
      %v433 = vunpack.c.h.b16 %v311
      %v434 = vpack.c.b16 %v372, %v370
      %v435 = vpack.c.b16 %v373, %v371
      %v436 = vpack.c.b16 %v376, %v374
      %v437 = vpack.c.b16 %v377, %v375
      %v438 = vpack.c.b16 %v380, %v378
      %v439 = vpack.c.b16 %v381, %v379
      %v440 = vpack.c.b16 %v384, %v382
      %v441 = vpack.c.b16 %v385, %v383
      %v442 = vpack.c.b16 %v388, %v386
      %v443 = vpack.c.b16 %v389, %v387
      %v444 = vpack.c.b16 %v392, %v390
      %v445 = vpack.c.b16 %v393, %v391
      %v446 = vpack.c.b16 %v396, %v394
      %v447 = vpack.c.b16 %v397, %v395
      %v448 = vpack.c.b16 %v400, %v398
      %v449 = vpack.c.b16 %v401, %v399
      %v450 = vpack.c.b16 %v404, %v402
      %v451 = vpack.c.b16 %v405, %v403
      %v452 = vpack.c.b16 %v408, %v406
      %v453 = vpack.c.b16 %v409, %v407
      %v454 = vpack.c.b16 %v412, %v410
      %v455 = vpack.c.b16 %v413, %v411
      %v456 = vpack.c.b16 %v416, %v414
      %v457 = vpack.c.b16 %v417, %v415
      %v458 = vpack.c.b16 %v420, %v418
      %v459 = vpack.c.b16 %v421, %v419
      %v460 = vpack.c.b16 %v424, %v422
      %v461 = vpack.c.b16 %v425, %v423
      %v462 = vpack.c.b16 %v428, %v426
      %v463 = vpack.c.b16 %v429, %v427
      %v464 = vpack.c.b16 %v432, %v430
      %v465 = vpack.c.b16 %v433, %v431
      %v501 = vunpack.c.l.b16 %v312
      %v502 = vunpack.c.l.b16 %v313
      %v503 = vunpack.c.l.b16 %v314
      %v504 = vunpack.c.l.b16 %v315
      %v505 = vunpack.c.l.b16 %v316
      %v506 = vunpack.c.l.b16 %v317
      %v507 = vunpack.c.l.b16 %v318
      %v508 = vunpack.c.l.b16 %v319
      %v509 = vunpack.c.l.b16 %v320
      %v510 = vunpack.c.l.b16 %v321
      %v511 = vunpack.c.l.b16 %v322
      %v512 = vunpack.c.l.b16 %v323
      %v513 = vunpack.c.l.b16 %v324
      %v514 = vunpack.c.l.b16 %v325
      %v515 = vunpack.c.l.b16 %v326
      %v516 = vunpack.c.l.b16 %v327
      %v517 = vunpack.c.l.b16 %v328
      %v518 = vunpack.c.l.b16 %v329
      %v519 = vunpack.c.l.b16 %v330
      %v520 = vpack.c.b16 %v502, %v501
      %v521 = vpack.c.b16 %v504, %v503
      %v522 = vpack.c.b16 %v506, %v505
      %v523 = vpack.c.b16 %v508, %v507
      %v524 = vpack.c.b16 %v510, %v509
      %v525 = vpack.c.b16 %v512, %v511
      %v526 = vpack.c.b16 %v514, %v513
      %v527 = vpack.c.b16 %v516, %v515
      %v528 = vpack.c.b16 %v518, %v517
      %v529 = vpack.c.b16 %v519, %v519
      %vm539 = vcmask 154624
      %v541 = vsel %vm539, %v435, 0
      %v544 = vsel %vm539, %v437, 0
      %v547 = vsel %vm539, %v439, 0
      %v550 = vsel %vm539, %v441, 0
      %v553 = vsel %vm539, %v443, 0
      %v556 = vsel %vm539, %v445, 0
      %v559 = vsel %vm539, %v447, 0
      %v562 = vsel %vm539, %v449, 0
      %v565 = vsel %vm539, %v451, 0
      %v568 = vsel %vm539, %v453, 0
      %v571 = vsel %vm539, %v455, 0
      %v574 = vsel %vm539, %v457, 0
      %v577 = vsel %vm539, %v459, 0
      %v580 = vsel %vm539, %v461, 0
      %v583 = vsel %vm539, %v463, 0
      %v586 = vsel %vm539, %v465, 0
      %vm588 = vcmask 1040384
      %vm589 = vcmask 1041408
      %v590 = vsel %vm588, 4294967295, 65535
      %v591 = vsel %vm589, %v590, 0
      %v593 = vand.u32 %v529, %v591
      %595 = vmatprep.subr.bf16.mxu0 0
      %596 = vmatpush1.bf16.msra.mxu0 %v527
      %597 = vmatprep.subr.bf16.mxu0 0
      %598 = vmatpush1.bf16.msra.mxu0 %v526
      %599 = vmatprep.subr.bf16.mxu0 0
      %600 = vmatpush1.bf16.msra.mxu0 %v525
      %601 = vmatprep.subr.bf16.mxu0 0
      %602 = vmatpush1.bf16.msra.mxu0 %v524
      %603 = vmatprep.subr.bf16.mxu0 0
      %604 = vmatpush1.bf16.msra.mxu0 %v523
      %605 = vmatprep.subr.bf16.mxu0 0
      %606 = vmatpush1.bf16.msra.mxu0 %v522
      %607 = vmatprep.subr.bf16.mxu0 0
      %608 = vmatpush1.bf16.msra.mxu0 %v521
      %609 = vmatprep.subr.bf16.mxu0 0
      %610 = vmatpush1.bf16.msra.mxu0 %v520
      %611 = vmatprep.subr.bf16.mxu0 0
      %612 = vmatpush2.bf16.msra.mxu0 0
      %613 = vmatprep.subr.bf16.mxu0 0
      %614 = vmatpush2.bf16.msra.mxu0 0
      %615 = vmatprep.subr.bf16.mxu0 0
      %616 = vmatpush2.bf16.msra.mxu0 0
      %617 = vmatprep.subr.bf16.mxu0 0
      %618 = vmatpush2.bf16.msra.mxu0 0
      %619 = vmatprep.subr.bf16.mxu0 0
      %620 = vmatpush2.bf16.msra.mxu0 0
      %621 = vmatprep.subr.bf16.mxu0 0
      %622 = vmatpush2.bf16.msra.mxu0 0
      %623 = vmatprep.subr.bf16.mxu0 0
      %624 = vmatpush2.bf16.msra.mxu0 %v593
      %625 = vmatprep.subr.bf16.mxu0 0
      %626 = vmatpush2.bf16.msra.mxu0 %v528
      %627 = vmatprep.mubr.bf16.mxu0 %v541
      %628 = vmatmul.mubr.bf16.gmra.mxu0 %v434
      %v629 = vpop.f32.mrf.mxu0
      %v630 = vadd.f32 %v336, %v629
      %v631 = vpop.f32.mrf.mxu0
      %v632 = vpop.f32.mrf.mxu0
      %v633 = vadd.f32 %v336, %v632
      %v634 = vpop.f32.mrf.mxu0
      %635 = vmatprep.mubr.bf16.mxu0 %v544
      %636 = vmatmul.mubr.bf16.gmra.mxu0 %v436
      %v637 = vpop.f32.mrf.mxu0
      %v638 = vadd.f32 %v336, %v637
      %v639 = vpop.f32.mrf.mxu0
      %v640 = vpop.f32.mrf.mxu0
      %v641 = vadd.f32 %v336, %v640
      %v642 = vpop.f32.mrf.mxu0
      %643 = vmatprep.mubr.bf16.mxu0 %v547
      %644 = vmatmul.mubr.bf16.gmra.mxu0 %v438
      %v645 = vpop.f32.mrf.mxu0
      %v646 = vadd.f32 %v336, %v645
      %v647 = vpop.f32.mrf.mxu0
      %v648 = vpop.f32.mrf.mxu0
      %v649 = vadd.f32 %v336, %v648
      %v650 = vpop.f32.mrf.mxu0
      %651 = vmatprep.mubr.bf16.mxu0 %v550
      %652 = vmatmul.mubr.bf16.gmra.mxu0 %v440
      %v653 = vpop.f32.mrf.mxu0
      %v654 = vadd.f32 %v336, %v653
      %v655 = vpop.f32.mrf.mxu0
      %v656 = vpop.f32.mrf.mxu0
      %v657 = vadd.f32 %v336, %v656
      %v658 = vpop.f32.mrf.mxu0
      %659 = vmatprep.mubr.bf16.mxu0 %v553
      %660 = vmatmul.mubr.bf16.gmra.mxu0 %v442
      %v661 = vpop.f32.mrf.mxu0
      %v662 = vadd.f32 %v336, %v661
      %v663 = vpop.f32.mrf.mxu0
      %v664 = vpop.f32.mrf.mxu0
      %v665 = vadd.f32 %v336, %v664
      %v666 = vpop.f32.mrf.mxu0
      %667 = vmatprep.mubr.bf16.mxu0 %v556
      %668 = vmatmul.mubr.bf16.gmra.mxu0 %v444
      %v669 = vpop.f32.mrf.mxu0
      %v670 = vadd.f32 %v336, %v669
      %v671 = vpop.f32.mrf.mxu0
      %v672 = vpop.f32.mrf.mxu0
      %v673 = vadd.f32 %v336, %v672
      %v674 = vpop.f32.mrf.mxu0
      %675 = vmatprep.mubr.bf16.mxu0 %v559
      %676 = vmatmul.mubr.bf16.gmra.mxu0 %v446
      %v677 = vpop.f32.mrf.mxu0
      %v678 = vadd.f32 %v336, %v677
      %v679 = vpop.f32.mrf.mxu0
      %v680 = vpop.f32.mrf.mxu0
      %v681 = vadd.f32 %v336, %v680
      %v682 = vpop.f32.mrf.mxu0
      %683 = vmatprep.mubr.bf16.mxu0 %v562
      %684 = vmatmul.mubr.bf16.gmra.mxu0 %v448
      %v685 = vpop.f32.mrf.mxu0
      %v686 = vadd.f32 %v336, %v685
      %v687 = vpop.f32.mrf.mxu0
      %v688 = vpop.f32.mrf.mxu0
      %v689 = vadd.f32 %v336, %v688
      %v690 = vpop.f32.mrf.mxu0
      %691 = vmatprep.mubr.bf16.mxu0 %v565
      %692 = vmatmul.mubr.bf16.gmra.mxu0 %v450
      %v693 = vpop.f32.mrf.mxu0
      %v694 = vadd.f32 %v336, %v693
      %v695 = vpop.f32.mrf.mxu0
      %v696 = vpop.f32.mrf.mxu0
      %v697 = vadd.f32 %v336, %v696
      %v698 = vpop.f32.mrf.mxu0
      %699 = vmatprep.mubr.bf16.mxu0 %v568
      %700 = vmatmul.mubr.bf16.gmra.mxu0 %v452
      %v701 = vpop.f32.mrf.mxu0
      %v702 = vadd.f32 %v336, %v701
      %v703 = vpop.f32.mrf.mxu0
      %v704 = vpop.f32.mrf.mxu0
      %v705 = vadd.f32 %v336, %v704
      %v706 = vpop.f32.mrf.mxu0
      %707 = vmatprep.mubr.bf16.mxu0 %v571
      %708 = vmatmul.mubr.bf16.gmra.mxu0 %v454
      %v709 = vpop.f32.mrf.mxu0
      %v710 = vadd.f32 %v336, %v709
      %v711 = vpop.f32.mrf.mxu0
      %v712 = vpop.f32.mrf.mxu0
      %v713 = vadd.f32 %v336, %v712
      %v714 = vpop.f32.mrf.mxu0
      %715 = vmatprep.mubr.bf16.mxu0 %v574
      %716 = vmatmul.mubr.bf16.gmra.mxu0 %v456
      %v717 = vpop.f32.mrf.mxu0
      %v718 = vadd.f32 %v336, %v717
      %v719 = vpop.f32.mrf.mxu0
      %v720 = vpop.f32.mrf.mxu0
      %v721 = vadd.f32 %v336, %v720
      %v722 = vpop.f32.mrf.mxu0
      %723 = vmatprep.mubr.bf16.mxu0 %v577
      %724 = vmatmul.mubr.bf16.gmra.mxu0 %v458
      %v725 = vpop.f32.mrf.mxu0
      %v726 = vadd.f32 %v336, %v725
      %v727 = vpop.f32.mrf.mxu0
      %v728 = vpop.f32.mrf.mxu0
      %v729 = vadd.f32 %v336, %v728
      %v730 = vpop.f32.mrf.mxu0
      %731 = vmatprep.mubr.bf16.mxu0 %v580
      %732 = vmatmul.mubr.bf16.gmra.mxu0 %v460
      %v733 = vpop.f32.mrf.mxu0
      %v734 = vadd.f32 %v336, %v733
      %v735 = vpop.f32.mrf.mxu0
      %v736 = vpop.f32.mrf.mxu0
      %v737 = vadd.f32 %v336, %v736
      %v738 = vpop.f32.mrf.mxu0
      %739 = vmatprep.mubr.bf16.mxu0 %v583
      %740 = vmatmul.mubr.bf16.gmra.mxu0 %v462
      %v741 = vpop.f32.mrf.mxu0
      %v742 = vadd.f32 %v336, %v741
      %v743 = vpop.f32.mrf.mxu0
      %v744 = vpop.f32.mrf.mxu0
      %v745 = vadd.f32 %v336, %v744
      %v746 = vpop.f32.mrf.mxu0
      %747 = vmatprep.mubr.bf16.mxu0 %v586
      %748 = vmatmul.mubr.bf16.gmra.mxu0 %v464
      %v749 = vpop.f32.mrf.mxu0
      %v750 = vadd.f32 %v336, %v749
      %v751 = vpop.f32.mrf.mxu0
      %v752 = vpop.f32.mrf.mxu0
      %v753 = vadd.f32 %v336, %v752
      %v754 = vpop.f32.mrf.mxu0
      %755 = vdwg.mxu0
      %v756 = vmax.f32 %v630, 0.0
      %v757 = vmax.f32 %v633, 0.0
      %v758 = vmax.f32 %v638, 0.0
      %v759 = vmax.f32 %v641, 0.0
      %v760 = vmax.f32 %v646, 0.0
      %v761 = vmax.f32 %v649, 0.0
      %v762 = vmax.f32 %v654, 0.0
      %v763 = vmax.f32 %v657, 0.0
      %v764 = vmax.f32 %v662, 0.0
      %v765 = vmax.f32 %v665, 0.0
      %v766 = vmax.f32 %v670, 0.0
      %v767 = vmax.f32 %v673, 0.0
      %v768 = vmax.f32 %v678, 0.0
      %v769 = vmax.f32 %v681, 0.0
      %v770 = vmax.f32 %v686, 0.0
      %v771 = vmax.f32 %v689, 0.0
      %v772 = vmax.f32 %v694, 0.0
      %v773 = vmax.f32 %v697, 0.0
      %v774 = vmax.f32 %v702, 0.0
      %v775 = vmax.f32 %v705, 0.0
      %v776 = vmax.f32 %v710, 0.0
      %v777 = vmax.f32 %v713, 0.0
      %v778 = vmax.f32 %v718, 0.0
      %v779 = vmax.f32 %v721, 0.0
      %v780 = vmax.f32 %v726, 0.0
      %v781 = vmax.f32 %v729, 0.0
      %v782 = vmax.f32 %v734, 0.0
      %v783 = vmax.f32 %v737, 0.0
      %v784 = vmax.f32 %v742, 0.0
      %v785 = vmax.f32 %v745, 0.0
      %v786 = vmax.f32 %v750, 0.0
      %v787 = vmax.f32 %v753, 0.0
      %vm788 = vcmask 523264
      %789 = vst.msk [vmem:[#allocation2] sm:$0xff] %vm788, 0.0
      %790 = vst.msk [vmem:[#allocation2 + $0x8] sm:$0xff] %vm788, 0.0
      %vm791 = vcmask 517120
      %792 = vst.msk [vmem:[#allocation2 + $0x10] sm:$0x3] %vm791, 0.0
      %793 = vst.msk [vmem:[#allocation2 + $0x18] sm:$0xff] %vm788, 0.0
      %794 = vst.msk [vmem:[#allocation2 + $0x20] sm:$0xff] %vm788, 0.0
      %795 = vst.msk [vmem:[#allocation2 + $0x28] sm:$0x3] %vm791, 0.0
      %796 = vst.msk [vmem:[#allocation2 + $0x30] sm:$0xff] %vm788, 0.0
      %797 = vst.msk [vmem:[#allocation2 + $0x38] sm:$0xff] %vm788, 0.0
      %798 = vst.msk [vmem:[#allocation2 + $0x40] sm:$0x3] %vm791, 0.0
      %799 = vst.msk [vmem:[#allocation2 + $0x48] sm:$0xff] %vm788, 0.0
      %800 = vst.msk [vmem:[#allocation2 + $0x50] sm:$0xff] %vm788, 0.0
      %801 = vst.msk [vmem:[#allocation2 + $0x58] sm:$0x3] %vm791, 0.0
      %802 = vst.msk [vmem:[#allocation2 + $0x60] sm:$0xff] %vm788, 0.0
      %803 = vst.msk [vmem:[#allocation2 + $0x68] sm:$0xff] %vm788, 0.0
      %804 = vst.msk [vmem:[#allocation2 + $0x70] sm:$0x3] %vm791, 0.0
      %805 = vst.msk [vmem:[#allocation2 + $0x78] sm:$0xff] %vm788, 0.0
      %806 = vst.msk [vmem:[#allocation2 + $0x80] sm:$0xff] %vm788, 0.0
      %807 = vst.msk [vmem:[#allocation2 + $0x88] sm:$0x3] %vm791, 0.0
      %808 = vst.msk [vmem:[#allocation2 + $0x90] sm:$0xff] %vm788, 0.0
      %809 = vst.msk [vmem:[#allocation2 + $0x98] sm:$0xff] %vm788, 0.0
      %810 = vst.msk [vmem:[#allocation2 + $0xa0] sm:$0x3] %vm791, 0.0
      %811 = vst.msk [vmem:[#allocation2 + $0xa8] sm:$0xff] %vm788, 0.0
      %812 = vst.msk [vmem:[#allocation2 + $0xb0] sm:$0xff] %vm788, 0.0
      %813 = vst.msk [vmem:[#allocation2 + $0xb8] sm:$0x3] %vm791, 0.0
      %814 = vst.msk [vmem:[#allocation2 + $0xc0] sm:$0xff] %vm788, 0.0
      %815 = vst.msk [vmem:[#allocation2 + $0xc8] sm:$0xff] %vm788, 0.0
      %816 = vst.msk [vmem:[#allocation2 + $0xd0] sm:$0x3] %vm791, 0.0
      %817 = vst.msk [vmem:[#allocation2 + $0xd8] sm:$0xff] %vm788, 0.0
      %818 = vst.msk [vmem:[#allocation2 + $0xe0] sm:$0xff] %vm788, 0.0
      %819 = vst.msk [vmem:[#allocation2 + $0xe8] sm:$0x3] %vm791, 0.0
      %820 = vst.msk [vmem:[#allocation2 + $0xf0] sm:$0xff] %vm788, 0.0
      %821 = vst.msk [vmem:[#allocation2 + $0xf8] sm:$0xff] %vm788, 0.0
      %822 = vst.msk [vmem:[#allocation2 + $0x100] sm:$0x3] %vm791, 0.0
      %823 = vst.msk [vmem:[#allocation2 + $0x108] sm:$0xff] %vm788, 0.0
      %824 = vst.msk [vmem:[#allocation2 + $0x110] sm:$0xff] %vm788, 0.0
      %825 = vst.msk [vmem:[#allocation2 + $0x118] sm:$0x3] %vm791, 0.0
      %826 = vst.msk [vmem:[#allocation2 + $0x120] sm:$0xff] %vm788, 0.0
      %827 = vst.msk [vmem:[#allocation2 + $0x128] sm:$0xff] %vm788, 0.0
      %828 = vst.msk [vmem:[#allocation2 + $0x130] sm:$0x3] %vm791, 0.0
      %829 = vst.msk [vmem:[#allocation2 + $0x138] sm:$0xff] %vm788, 0.0
      %830 = vst.msk [vmem:[#allocation2 + $0x140] sm:$0xff] %vm788, 0.0
      %831 = vst.msk [vmem:[#allocation2 + $0x148] sm:$0x3] %vm791, 0.0
      %832 = vst.msk [vmem:[#allocation2 + $0x150] sm:$0xff] %vm788, 0.0
      %833 = vst.msk [vmem:[#allocation2 + $0x158] sm:$0xff] %vm788, 0.0
      %834 = vst.msk [vmem:[#allocation2 + $0x160] sm:$0x3] %vm791, 0.0
      %835 = vst.msk [vmem:[#allocation2 + $0x168] sm:$0xff] %vm788, 0.0
      %836 = vst.msk [vmem:[#allocation2 + $0x170] sm:$0xff] %vm788, 0.0
      %837 = vst.msk [vmem:[#allocation2 + $0x178] sm:$0x3] %vm791, 0.0
      %838 = vst.msk [vmem:[#allocation2 + $0x180] sm:$0xff] %vm788, 0.0
      %839 = vst.msk [vmem:[#allocation2 + $0x188] sm:$0xff] %vm788, 0.0
      %840 = vst.msk [vmem:[#allocation2 + $0x190] sm:$0x3] %vm791, 0.0
      %841 = vst.msk [vmem:[#allocation2 + $0x198] sm:$0xff] %vm788, 0.0
      %842 = vst.msk [vmem:[#allocation2 + $0x1a0] sm:$0xff] %vm788, 0.0
      %843 = vst.msk [vmem:[#allocation2 + $0x1a8] sm:$0x3] %vm791, 0.0
      %s844 = scalar_lea.vmem [#allocation2], 24
      %845 = vst.msk [vmem:[%s844 + $0x1] sm:$0xff] %vm788, %v756
      %846 = vst.msk [vmem:[%s844 + $0x9] sm:$0xff] %vm788, %v757
      %847 = vst.msk [vmem:[%s844 + $0x19] sm:$0xff] %vm788, %v758
      %848 = vst.msk [vmem:[%s844 + $0x21] sm:$0xff] %vm788, %v759
      %849 = vst.msk [vmem:[%s844 + $0x31] sm:$0xff] %vm788, %v760
      %850 = vst.msk [vmem:[%s844 + $0x39] sm:$0xff] %vm788, %v761
      %851 = vst.msk [vmem:[%s844 + $0x49] sm:$0xff] %vm788, %v762
      %852 = vst.msk [vmem:[%s844 + $0x51] sm:$0xff] %vm788, %v763
      %853 = vst.msk [vmem:[%s844 + $0x61] sm:$0xff] %vm788, %v764
      %854 = vst.msk [vmem:[%s844 + $0x69] sm:$0xff] %vm788, %v765
      %855 = vst.msk [vmem:[%s844 + $0x79] sm:$0xff] %vm788, %v766
      %856 = vst.msk [vmem:[%s844 + $0x81] sm:$0xff] %vm788, %v767
      %857 = vst.msk [vmem:[%s844 + $0x91] sm:$0xff] %vm788, %v768
      %858 = vst.msk [vmem:[%s844 + $0x99] sm:$0xff] %vm788, %v769
      %859 = vst.msk [vmem:[%s844 + $0xa9] sm:$0xff] %vm788, %v770
      %860 = vst.msk [vmem:[%s844 + $0xb1] sm:$0xff] %vm788, %v771
      %861 = vst.msk [vmem:[%s844 + $0xc1] sm:$0xff] %vm788, %v772
      %862 = vst.msk [vmem:[%s844 + $0xc9] sm:$0xff] %vm788, %v773
      %863 = vst.msk [vmem:[%s844 + $0xd9] sm:$0xff] %vm788, %v774
      %864 = vst.msk [vmem:[%s844 + $0xe1] sm:$0xff] %vm788, %v775
      %865 = vst.msk [vmem:[%s844 + $0xf1] sm:$0xff] %vm788, %v776
      %866 = vst.msk [vmem:[%s844 + $0xf9] sm:$0xff] %vm788, %v777
      %867 = vst.msk [vmem:[%s844 + $0x109] sm:$0xff] %vm788, %v778
      %868 = vst.msk [vmem:[%s844 + $0x111] sm:$0xff] %vm788, %v779
      %869 = vst.msk [vmem:[%s844 + $0x121] sm:$0xff] %vm788, %v780
      %870 = vst.msk [vmem:[%s844 + $0x129] sm:$0xff] %vm788, %v781
      %871 = vst.msk [vmem:[%s844 + $0x139] sm:$0xff] %vm788, %v782
      %872 = vst.msk [vmem:[%s844 + $0x141] sm:$0xff] %vm788, %v783
      %873 = vst.msk [vmem:[%s844 + $0x151] sm:$0xff] %vm788, %v784
      %874 = vst.msk [vmem:[%s844 + $0x159] sm:$0xff] %vm788, %v785
      %875 = vst.msk [vmem:[%s844 + $0x169] sm:$0xff] %vm788, %v786
      %876 = vst.msk [vmem:[%s844 + $0x171] sm:$0xff] %vm788, %v787
      %v877 = vld [vmem:[#allocation2] sm:$0xff]
      %v878 = vld [vmem:[#allocation2 + $0x8] sm:$0xff]
      %v879 = vld [vmem:[#allocation2 + $0x18] sm:$0xff]
      %v880 = vld [vmem:[#allocation2 + $0x20] sm:$0xff]
      %v881 = vld [vmem:[#allocation2 + $0x30] sm:$0xff]
      %v882 = vld [vmem:[#allocation2 + $0x38] sm:$0xff]
      %v883 = vld [vmem:[#allocation2 + $0x48] sm:$0xff]
      %v884 = vld [vmem:[#allocation2 + $0x50] sm:$0xff]
      %v885 = vld [vmem:[#allocation2 + $0x60] sm:$0xff]
      %v886 = vld [vmem:[#allocation2 + $0x68] sm:$0xff]
      %v887 = vld [vmem:[#allocation2 + $0x78] sm:$0xff]
      %v888 = vld [vmem:[#allocation2 + $0x80] sm:$0xff]
      %v889 = vld [vmem:[#allocation2 + $0x90] sm:$0xff]
      %v890 = vld [vmem:[#allocation2 + $0x98] sm:$0xff]
      %v891 = vld [vmem:[#allocation2 + $0xa8] sm:$0xff]
      %v892 = vld [vmem:[#allocation2 + $0xb0] sm:$0xff]
      %v893 = vld [vmem:[#allocation2 + $0xc0] sm:$0xff]
      %v894 = vld [vmem:[#allocation2 + $0xc8] sm:$0xff]
      %v895 = vld [vmem:[#allocation2 + $0xd8] sm:$0xff]
      %v896 = vld [vmem:[#allocation2 + $0xe0] sm:$0xff]
      %v897 = vld [vmem:[#allocation2 + $0xf0] sm:$0xff]
      %v898 = vld [vmem:[#allocation2 + $0xf8] sm:$0xff]
      %v899 = vld [vmem:[#allocation2 + $0x108] sm:$0xff]
      %v900 = vld [vmem:[#allocation2 + $0x110] sm:$0xff]
      %v901 = vld [vmem:[#allocation2 + $0x120] sm:$0xff]
      %v902 = vld [vmem:[#allocation2 + $0x128] sm:$0xff]
      %v903 = vld [vmem:[#allocation2 + $0x138] sm:$0xff]
      %v904 = vld [vmem:[#allocation2 + $0x140] sm:$0xff]
      %v905 = vld [vmem:[#allocation2 + $0x150] sm:$0xff]
      %v906 = vld [vmem:[#allocation2 + $0x158] sm:$0xff]
      %v907 = vld [vmem:[#allocation2 + $0x168] sm:$0xff]
      %v908 = vld [vmem:[#allocation2 + $0x170] sm:$0xff]
      %v909 = vpack.c.bf16 %v878, %v877
      %v910 = vpack.c.bf16 %v880, %v879
      %v911 = vpack.c.bf16 %v882, %v881
      %v912 = vpack.c.bf16 %v884, %v883
      %v913 = vpack.c.bf16 %v886, %v885
      %v914 = vpack.c.bf16 %v888, %v887
      %v915 = vpack.c.bf16 %v890, %v889
      %v916 = vpack.c.bf16 %v892, %v891
      %v917 = vpack.c.bf16 %v894, %v893
      %v918 = vpack.c.bf16 %v896, %v895
      %v919 = vpack.c.bf16 %v898, %v897
      %v920 = vpack.c.bf16 %v900, %v899
      %v921 = vpack.c.bf16 %v902, %v901
      %v922 = vpack.c.bf16 %v904, %v903
      %v923 = vpack.c.bf16 %v906, %v905
      %v924 = vpack.c.bf16 %v908, %v907
      %v925 = vld [vmem:[%s3] sm:$0xf]
      %v926 = vld [vmem:[%s3 + $0x4] sm:$0xf]
      %v927 = vld [vmem:[%s3 + $0x8] sm:$0xf]
      %v928 = vld [vmem:[%s3 + $0xc] sm:$0xf]
      %v929 = vld [vmem:[%s3 + $0x10] sm:$0xf]
      %v930 = vld [vmem:[%s3 + $0x14] sm:$0xf]
      %v931 = vld [vmem:[%s3 + $0x18] sm:$0xf]
      %v932 = vld [vmem:[%s3 + $0x1c] sm:$0xf]
      %v933 = vld [vmem:[#allocation2 + $0x1] sm:$0xff]
      %v934 = vld [vmem:[#allocation2 + $0x9] sm:$0xff]
      %v935 = vld [vmem:[#allocation2 + $0x19] sm:$0xff]
      %v936 = vld [vmem:[#allocation2 + $0x21] sm:$0xff]
      %v937 = vld [vmem:[#allocation2 + $0x31] sm:$0xff]
      %v938 = vld [vmem:[#allocation2 + $0x39] sm:$0xff]
      %v939 = vld [vmem:[#allocation2 + $0x49] sm:$0xff]
      %v940 = vld [vmem:[#allocation2 + $0x51] sm:$0xff]
      %v941 = vld [vmem:[#allocation2 + $0x61] sm:$0xff]
      %v942 = vld [vmem:[#allocation2 + $0x69] sm:$0xff]
      %v943 = vld [vmem:[#allocation2 + $0x79] sm:$0xff]
      %v944 = vld [vmem:[#allocation2 + $0x81] sm:$0xff]
      %v945 = vld [vmem:[#allocation2 + $0x91] sm:$0xff]
      %v946 = vld [vmem:[#allocation2 + $0x99] sm:$0xff]
      %v947 = vld [vmem:[#allocation2 + $0xa9] sm:$0xff]
      %v948 = vld [vmem:[#allocation2 + $0xb1] sm:$0xff]
      %v949 = vld [vmem:[#allocation2 + $0xc1] sm:$0xff]
      %v950 = vld [vmem:[#allocation2 + $0xc9] sm:$0xff]
      %v951 = vld [vmem:[#allocation2 + $0xd9] sm:$0xff]
      %v952 = vld [vmem:[#allocation2 + $0xe1] sm:$0xff]
      %v953 = vld [vmem:[#allocation2 + $0xf1] sm:$0xff]
      %v954 = vld [vmem:[#allocation2 + $0xf9] sm:$0xff]
      %v955 = vld [vmem:[#allocation2 + $0x109] sm:$0xff]
      %v956 = vld [vmem:[#allocation2 + $0x111] sm:$0xff]
      %v957 = vld [vmem:[#allocation2 + $0x121] sm:$0xff]
      %v958 = vld [vmem:[#allocation2 + $0x129] sm:$0xff]
      %v959 = vld [vmem:[#allocation2 + $0x139] sm:$0xff]
      %v960 = vld [vmem:[#allocation2 + $0x141] sm:$0xff]
      %v961 = vld [vmem:[#allocation2 + $0x151] sm:$0xff]
      %v962 = vld [vmem:[#allocation2 + $0x159] sm:$0xff]
      %v963 = vld [vmem:[#allocation2 + $0x169] sm:$0xff]
      %v964 = vld [vmem:[#allocation2 + $0x171] sm:$0xff]
      %v965 = vpack.c.bf16 %v934, %v933
      %v966 = vpack.c.bf16 %v936, %v935
      %v967 = vpack.c.bf16 %v938, %v937
      %v968 = vpack.c.bf16 %v940, %v939
      %v969 = vpack.c.bf16 %v942, %v941
      %v970 = vpack.c.bf16 %v944, %v943
      %v971 = vpack.c.bf16 %v946, %v945
      %v972 = vpack.c.bf16 %v948, %v947
      %v973 = vpack.c.bf16 %v950, %v949
      %v974 = vpack.c.bf16 %v952, %v951
      %v975 = vpack.c.bf16 %v954, %v953
      %v976 = vpack.c.bf16 %v956, %v955
      %v977 = vpack.c.bf16 %v958, %v957
      %v978 = vpack.c.bf16 %v960, %v959
      %v979 = vpack.c.bf16 %v962, %v961
      %v980 = vpack.c.bf16 %v964, %v963
      %s981 = scalar_lea.vmem %s3, 32
      %v982 = vld [vmem:[%s981] sm:$0xf]
      %v983 = vld [vmem:[%s981 + $0x4] sm:$0xf]
      %v984 = vld [vmem:[%s981 + $0x8] sm:$0xf]
      %v985 = vld [vmem:[%s981 + $0xc] sm:$0xf]
      %v986 = vld [vmem:[%s981 + $0x10] sm:$0xf]
      %v987 = vld [vmem:[%s981 + $0x14] sm:$0xf]
      %v988 = vld [vmem:[%s981 + $0x18] sm:$0xf]
      %v989 = vld [vmem:[%s981 + $0x1c] sm:$0xf]
      %v998 = vunpack.c.l.b16 %v982
      %v999 = vunpack.c.l.b16 %v983
      %v1000 = vunpack.c.l.b16 %v984
      %v1001 = vunpack.c.l.b16 %v985
      %v1002 = vunpack.c.l.b16 %v986
      %v1003 = vunpack.c.l.b16 %v987
      %v1004 = vunpack.c.l.b16 %v988
      %v1005 = vunpack.c.l.b16 %v989
      %v1006 = vpack.c.b16 %v999, %v998
      %v1007 = vpack.c.b16 %v1001, %v1000
      %v1008 = vpack.c.b16 %v1003, %v1002
      %v1009 = vpack.c.b16 %v1005, %v1004
      %v1015 = vsel %vm788, %v965, 0
      %v1018 = vsel %vm788, %v966, 0
      %v1021 = vsel %vm788, %v967, 0
      %v1024 = vsel %vm788, %v968, 0
      %v1027 = vsel %vm788, %v969, 0
      %v1030 = vsel %vm788, %v970, 0
      %v1033 = vsel %vm788, %v971, 0
      %v1036 = vsel %vm788, %v972, 0
      %v1039 = vsel %vm788, %v973, 0
      %v1042 = vsel %vm788, %v974, 0
      %v1045 = vsel %vm788, %v975, 0
      %v1048 = vsel %vm788, %v976, 0
      %v1051 = vsel %vm788, %v977, 0
      %v1054 = vsel %vm788, %v978, 0
      %v1057 = vsel %vm788, %v979, 0
      %v1060 = vsel %vm788, %v980, 0
      %1062 = vmatprep.subr.bf16.mxu0 0
      %1063 = vmatpush1.bf16.msra.mxu0 0
      %1064 = vmatprep.subr.bf16.mxu0 0
      %1065 = vmatpush1.bf16.msra.mxu0 0
      %1066 = vmatprep.subr.bf16.mxu0 0
      %1067 = vmatpush1.bf16.msra.mxu0 0
      %1068 = vmatprep.subr.bf16.mxu0 0
      %1069 = vmatpush1.bf16.msra.mxu0 0
      %1070 = vmatprep.subr.bf16.mxu0 0
      %1071 = vmatpush1.bf16.msra.mxu0 %v1009
      %1072 = vmatprep.subr.bf16.mxu0 0
      %1073 = vmatpush1.bf16.msra.mxu0 %v1008
      %1074 = vmatprep.subr.bf16.mxu0 0
      %1075 = vmatpush1.bf16.msra.mxu0 %v1007
      %1076 = vmatprep.subr.bf16.mxu0 0
      %1077 = vmatpush1.bf16.msra.mxu0 %v1006
      %1078 = vmatprep.subr.bf16.mxu0 0
      %1079 = vmatpush2.bf16.msra.mxu0 0
      %1080 = vmatprep.subr.bf16.mxu0 0
      %1081 = vmatpush2.bf16.msra.mxu0 0
      %1082 = vmatprep.subr.bf16.mxu0 0
      %1083 = vmatpush2.bf16.msra.mxu0 0
      %1084 = vmatprep.subr.bf16.mxu0 0
      %1085 = vmatpush2.bf16.msra.mxu0 0
      %1086 = vmatprep.subr.bf16.mxu0 0
      %1087 = vmatpush2.bf16.msra.mxu0 0
      %1088 = vmatprep.subr.bf16.mxu0 0
      %1089 = vmatpush2.bf16.msra.mxu0 0
      %1090 = vmatprep.subr.bf16.mxu0 0
      %1091 = vmatpush2.bf16.msra.mxu0 0
      %1092 = vmatprep.subr.bf16.mxu0 0
      %1093 = vmatpush2.bf16.msra.mxu0 0
      %1094 = vmatprep.mubr.bf16.mxu0 0
      %1095 = vmatmul.mubr.bf16.gmra.mxu0 %v1015
      %v1096 = vpop.f32.mrf.mxu0
      %v1097 = vadd.f32 0.0, %v1096
      %v1098 = vpop.f32.mrf.mxu0
      %v1099 = vpop.f32.mrf.mxu0
      %v1100 = vadd.f32 0.0, %v1099
      %v1101 = vpop.f32.mrf.mxu0
      %1102 = vmatprep.mubr.bf16.mxu0 0
      %1103 = vmatmul.mubr.bf16.gmra.mxu0 %v1018
      %v1104 = vpop.f32.mrf.mxu0
      %v1105 = vadd.f32 0.0, %v1104
      %v1106 = vpop.f32.mrf.mxu0
      %v1107 = vpop.f32.mrf.mxu0
      %v1108 = vadd.f32 0.0, %v1107
      %v1109 = vpop.f32.mrf.mxu0
      %1110 = vmatprep.mubr.bf16.mxu0 0
      %1111 = vmatmul.mubr.bf16.gmra.mxu0 %v1021
      %v1112 = vpop.f32.mrf.mxu0
      %v1113 = vadd.f32 0.0, %v1112
      %v1114 = vpop.f32.mrf.mxu0
      %v1115 = vpop.f32.mrf.mxu0
      %v1116 = vadd.f32 0.0, %v1115
      %v1117 = vpop.f32.mrf.mxu0
      %1118 = vmatprep.mubr.bf16.mxu0 0
      %1119 = vmatmul.mubr.bf16.gmra.mxu0 %v1024
      %v1120 = vpop.f32.mrf.mxu0
      %v1121 = vadd.f32 0.0, %v1120
      %v1122 = vpop.f32.mrf.mxu0
      %v1123 = vpop.f32.mrf.mxu0
      %v1124 = vadd.f32 0.0, %v1123
      %v1125 = vpop.f32.mrf.mxu0
      %1126 = vmatprep.mubr.bf16.mxu0 0
      %1127 = vmatmul.mubr.bf16.gmra.mxu0 %v1027
      %v1128 = vpop.f32.mrf.mxu0
      %v1129 = vadd.f32 0.0, %v1128
      %v1130 = vpop.f32.mrf.mxu0
      %v1131 = vpop.f32.mrf.mxu0
      %v1132 = vadd.f32 0.0, %v1131
      %v1133 = vpop.f32.mrf.mxu0
      %1134 = vmatprep.mubr.bf16.mxu0 0
      %1135 = vmatmul.mubr.bf16.gmra.mxu0 %v1030
      %v1136 = vpop.f32.mrf.mxu0
      %v1137 = vadd.f32 0.0, %v1136
      %v1138 = vpop.f32.mrf.mxu0
      %v1139 = vpop.f32.mrf.mxu0
      %v1140 = vadd.f32 0.0, %v1139
      %v1141 = vpop.f32.mrf.mxu0
      %1142 = vmatprep.mubr.bf16.mxu0 0
      %1143 = vmatmul.mubr.bf16.gmra.mxu0 %v1033
      %v1144 = vpop.f32.mrf.mxu0
      %v1145 = vadd.f32 0.0, %v1144
      %v1146 = vpop.f32.mrf.mxu0
      %v1147 = vpop.f32.mrf.mxu0
      %v1148 = vadd.f32 0.0, %v1147
      %v1149 = vpop.f32.mrf.mxu0
      %1150 = vmatprep.mubr.bf16.mxu0 0
      %1151 = vmatmul.mubr.bf16.gmra.mxu0 %v1036
      %v1152 = vpop.f32.mrf.mxu0
      %v1153 = vadd.f32 0.0, %v1152
      %v1154 = vpop.f32.mrf.mxu0
      %v1155 = vpop.f32.mrf.mxu0
      %v1156 = vadd.f32 0.0, %v1155
      %v1157 = vpop.f32.mrf.mxu0
      %1158 = vmatprep.mubr.bf16.mxu0 0
      %1159 = vmatmul.mubr.bf16.gmra.mxu0 %v1039
      %v1160 = vpop.f32.mrf.mxu0
      %v1161 = vadd.f32 0.0, %v1160
      %v1162 = vpop.f32.mrf.mxu0
      %v1163 = vpop.f32.mrf.mxu0
      %v1164 = vadd.f32 0.0, %v1163
      %v1165 = vpop.f32.mrf.mxu0
      %1166 = vmatprep.mubr.bf16.mxu0 0
      %1167 = vmatmul.mubr.bf16.gmra.mxu0 %v1042
      %v1168 = vpop.f32.mrf.mxu0
      %v1169 = vadd.f32 0.0, %v1168
      %v1170 = vpop.f32.mrf.mxu0
      %v1171 = vpop.f32.mrf.mxu0
      %v1172 = vadd.f32 0.0, %v1171
      %v1173 = vpop.f32.mrf.mxu0
      %1174 = vmatprep.mubr.bf16.mxu0 0
      %1175 = vmatmul.mubr.bf16.gmra.mxu0 %v1045
      %v1176 = vpop.f32.mrf.mxu0
      %v1177 = vadd.f32 0.0, %v1176
      %v1178 = vpop.f32.mrf.mxu0
      %v1179 = vpop.f32.mrf.mxu0
      %v1180 = vadd.f32 0.0, %v1179
      %v1181 = vpop.f32.mrf.mxu0
      %1182 = vmatprep.mubr.bf16.mxu0 0
      %1183 = vmatmul.mubr.bf16.gmra.mxu0 %v1048
      %v1184 = vpop.f32.mrf.mxu0
      %v1185 = vadd.f32 0.0, %v1184
      %v1186 = vpop.f32.mrf.mxu0
      %v1187 = vpop.f32.mrf.mxu0
      %v1188 = vadd.f32 0.0, %v1187
      %v1189 = vpop.f32.mrf.mxu0
      %1190 = vmatprep.mubr.bf16.mxu0 0
      %1191 = vmatmul.mubr.bf16.gmra.mxu0 %v1051
      %v1192 = vpop.f32.mrf.mxu0
      %v1193 = vadd.f32 0.0, %v1192
      %v1194 = vpop.f32.mrf.mxu0
      %v1195 = vpop.f32.mrf.mxu0
      %v1196 = vadd.f32 0.0, %v1195
      %v1197 = vpop.f32.mrf.mxu0
      %1198 = vmatprep.mubr.bf16.mxu0 0
      %1199 = vmatmul.mubr.bf16.gmra.mxu0 %v1054
      %v1200 = vpop.f32.mrf.mxu0
      %v1201 = vadd.f32 0.0, %v1200
      %v1202 = vpop.f32.mrf.mxu0
      %v1203 = vpop.f32.mrf.mxu0
      %v1204 = vadd.f32 0.0, %v1203
      %v1205 = vpop.f32.mrf.mxu0
      %1206 = vmatprep.mubr.bf16.mxu0 0
      %1207 = vmatmul.mubr.bf16.gmra.mxu0 %v1057
      %v1208 = vpop.f32.mrf.mxu0
      %v1209 = vadd.f32 0.0, %v1208
      %v1210 = vpop.f32.mrf.mxu0
      %v1211 = vpop.f32.mrf.mxu0
      %v1212 = vadd.f32 0.0, %v1211
      %v1213 = vpop.f32.mrf.mxu0
      %1214 = vmatprep.mubr.bf16.mxu0 0
      %1215 = vmatmul.mubr.bf16.gmra.mxu0 %v1060
      %v1216 = vpop.f32.mrf.mxu0
      %v1217 = vadd.f32 0.0, %v1216
      %v1218 = vpop.f32.mrf.mxu0
      %v1219 = vpop.f32.mrf.mxu0
      %v1220 = vadd.f32 0.0, %v1219
      %v1221 = vpop.f32.mrf.mxu0
      %1222 = vdwg.mxu0
      %v1231 = vunpack.c.l.b16 %v925
      %v1232 = vunpack.c.l.b16 %v926
      %v1233 = vunpack.c.l.b16 %v927
      %v1234 = vunpack.c.l.b16 %v928
      %v1235 = vunpack.c.l.b16 %v929
      %v1236 = vunpack.c.l.b16 %v930
      %v1237 = vunpack.c.l.b16 %v931
      %v1238 = vunpack.c.l.b16 %v932
      %v1239 = vpack.c.b16 %v1232, %v1231
      %v1240 = vpack.c.b16 %v1234, %v1233
      %v1241 = vpack.c.b16 %v1236, %v1235
      %v1242 = vpack.c.b16 %v1238, %v1237
      %v1248 = vsel %vm788, %v909, 0
      %v1251 = vsel %vm788, %v910, 0
      %v1254 = vsel %vm788, %v911, 0
      %v1257 = vsel %vm788, %v912, 0
      %v1260 = vsel %vm788, %v913, 0
      %v1263 = vsel %vm788, %v914, 0
      %v1266 = vsel %vm788, %v915, 0
      %v1269 = vsel %vm788, %v916, 0
      %v1272 = vsel %vm788, %v917, 0
      %v1275 = vsel %vm788, %v918, 0
      %v1278 = vsel %vm788, %v919, 0
      %v1281 = vsel %vm788, %v920, 0
      %v1284 = vsel %vm788, %v921, 0
      %v1287 = vsel %vm788, %v922, 0
      %v1290 = vsel %vm788, %v923, 0
      %v1293 = vsel %vm788, %v924, 0
      %1295 = vmatprep.subr.bf16.mxu0 0
      %1296 = vmatpush1.bf16.msra.mxu0 0
      %1297 = vmatprep.subr.bf16.mxu0 0
      %1298 = vmatpush1.bf16.msra.mxu0 0
      %1299 = vmatprep.subr.bf16.mxu0 0
      %1300 = vmatpush1.bf16.msra.mxu0 0
      %1301 = vmatprep.subr.bf16.mxu0 0
      %1302 = vmatpush1.bf16.msra.mxu0 0
      %1303 = vmatprep.subr.bf16.mxu0 0
      %1304 = vmatpush1.bf16.msra.mxu0 %v1242
      %1305 = vmatprep.subr.bf16.mxu0 0
      %1306 = vmatpush1.bf16.msra.mxu0 %v1241
      %1307 = vmatprep.subr.bf16.mxu0 0
      %1308 = vmatpush1.bf16.msra.mxu0 %v1240
      %1309 = vmatprep.subr.bf16.mxu0 0
      %1310 = vmatpush1.bf16.msra.mxu0 %v1239
      %1311 = vmatprep.subr.bf16.mxu0 0
      %1312 = vmatpush2.bf16.msra.mxu0 0
      %1313 = vmatprep.subr.bf16.mxu0 0
      %1314 = vmatpush2.bf16.msra.mxu0 0
      %1315 = vmatprep.subr.bf16.mxu0 0
      %1316 = vmatpush2.bf16.msra.mxu0 0
      %1317 = vmatprep.subr.bf16.mxu0 0
      %1318 = vmatpush2.bf16.msra.mxu0 0
      %1319 = vmatprep.subr.bf16.mxu0 0
      %1320 = vmatpush2.bf16.msra.mxu0 0
      %1321 = vmatprep.subr.bf16.mxu0 0
      %1322 = vmatpush2.bf16.msra.mxu0 0
      %1323 = vmatprep.subr.bf16.mxu0 0
      %1324 = vmatpush2.bf16.msra.mxu0 0
      %1325 = vmatprep.subr.bf16.mxu0 0
      %1326 = vmatpush2.bf16.msra.mxu0 0
      %1327 = vmatprep.mubr.bf16.mxu0 0
      %1328 = vmatmul.mubr.bf16.gmra.mxu0 %v1248
      %v1329 = vpop.f32.mrf.mxu0
      %v1330 = vadd.f32 %v1097, %v1329
      %v1331 = vpop.f32.mrf.mxu0
      %v1332 = vpop.f32.mrf.mxu0
      %v1333 = vadd.f32 %v1100, %v1332
      %v1334 = vpop.f32.mrf.mxu0
      %1335 = vmatprep.mubr.bf16.mxu0 0
      %1336 = vmatmul.mubr.bf16.gmra.mxu0 %v1251
      %v1337 = vpop.f32.mrf.mxu0
      %v1338 = vadd.f32 %v1105, %v1337
      %v1339 = vpop.f32.mrf.mxu0
      %v1340 = vpop.f32.mrf.mxu0
      %v1341 = vadd.f32 %v1108, %v1340
      %v1342 = vpop.f32.mrf.mxu0
      %1343 = vmatprep.mubr.bf16.mxu0 0
      %1344 = vmatmul.mubr.bf16.gmra.mxu0 %v1254
      %v1345 = vpop.f32.mrf.mxu0
      %v1346 = vadd.f32 %v1113, %v1345
      %v1347 = vpop.f32.mrf.mxu0
      %v1348 = vpop.f32.mrf.mxu0
      %v1349 = vadd.f32 %v1116, %v1348
      %v1350 = vpop.f32.mrf.mxu0
      %1351 = vmatprep.mubr.bf16.mxu0 0
      %1352 = vmatmul.mubr.bf16.gmra.mxu0 %v1257
      %v1353 = vpop.f32.mrf.mxu0
      %v1354 = vadd.f32 %v1121, %v1353
      %v1355 = vpop.f32.mrf.mxu0
      %v1356 = vpop.f32.mrf.mxu0
      %v1357 = vadd.f32 %v1124, %v1356
      %v1358 = vpop.f32.mrf.mxu0
      %1359 = vmatprep.mubr.bf16.mxu0 0
      %1360 = vmatmul.mubr.bf16.gmra.mxu0 %v1260
      %v1361 = vpop.f32.mrf.mxu0
      %v1362 = vadd.f32 %v1129, %v1361
      %v1363 = vpop.f32.mrf.mxu0
      %v1364 = vpop.f32.mrf.mxu0
      %v1365 = vadd.f32 %v1132, %v1364
      %v1366 = vpop.f32.mrf.mxu0
      %1367 = vmatprep.mubr.bf16.mxu0 0
      %1368 = vmatmul.mubr.bf16.gmra.mxu0 %v1263
      %v1369 = vpop.f32.mrf.mxu0
      %v1370 = vadd.f32 %v1137, %v1369
      %v1371 = vpop.f32.mrf.mxu0
      %v1372 = vpop.f32.mrf.mxu0
      %v1373 = vadd.f32 %v1140, %v1372
      %v1374 = vpop.f32.mrf.mxu0
      %1375 = vmatprep.mubr.bf16.mxu0 0
      %1376 = vmatmul.mubr.bf16.gmra.mxu0 %v1266
      %v1377 = vpop.f32.mrf.mxu0
      %v1378 = vadd.f32 %v1145, %v1377
      %v1379 = vpop.f32.mrf.mxu0
      %v1380 = vpop.f32.mrf.mxu0
      %v1381 = vadd.f32 %v1148, %v1380
      %v1382 = vpop.f32.mrf.mxu0
      %1383 = vmatprep.mubr.bf16.mxu0 0
      %1384 = vmatmul.mubr.bf16.gmra.mxu0 %v1269
      %v1385 = vpop.f32.mrf.mxu0
      %v1386 = vadd.f32 %v1153, %v1385
      %v1387 = vpop.f32.mrf.mxu0
      %v1388 = vpop.f32.mrf.mxu0
      %v1389 = vadd.f32 %v1156, %v1388
      %v1390 = vpop.f32.mrf.mxu0
      %1391 = vmatprep.mubr.bf16.mxu0 0
      %1392 = vmatmul.mubr.bf16.gmra.mxu0 %v1272
      %v1393 = vpop.f32.mrf.mxu0
      %v1394 = vadd.f32 %v1161, %v1393
      %v1395 = vpop.f32.mrf.mxu0
      %v1396 = vpop.f32.mrf.mxu0
      %v1397 = vadd.f32 %v1164, %v1396
      %v1398 = vpop.f32.mrf.mxu0
      %1399 = vmatprep.mubr.bf16.mxu0 0
      %1400 = vmatmul.mubr.bf16.gmra.mxu0 %v1275
      %v1401 = vpop.f32.mrf.mxu0
      %v1402 = vadd.f32 %v1169, %v1401
      %v1403 = vpop.f32.mrf.mxu0
      %v1404 = vpop.f32.mrf.mxu0
      %v1405 = vadd.f32 %v1172, %v1404
      %v1406 = vpop.f32.mrf.mxu0
      %1407 = vmatprep.mubr.bf16.mxu0 0
      %1408 = vmatmul.mubr.bf16.gmra.mxu0 %v1278
      %v1409 = vpop.f32.mrf.mxu0
      %v1410 = vadd.f32 %v1177, %v1409
      %v1411 = vpop.f32.mrf.mxu0
      %v1412 = vpop.f32.mrf.mxu0
      %v1413 = vadd.f32 %v1180, %v1412
      %v1414 = vpop.f32.mrf.mxu0
      %1415 = vmatprep.mubr.bf16.mxu0 0
      %1416 = vmatmul.mubr.bf16.gmra.mxu0 %v1281
      %v1417 = vpop.f32.mrf.mxu0
      %v1418 = vadd.f32 %v1185, %v1417
      %v1419 = vpop.f32.mrf.mxu0
      %v1420 = vpop.f32.mrf.mxu0
      %v1421 = vadd.f32 %v1188, %v1420
      %v1422 = vpop.f32.mrf.mxu0
      %1423 = vmatprep.mubr.bf16.mxu0 0
      %1424 = vmatmul.mubr.bf16.gmra.mxu0 %v1284
      %v1425 = vpop.f32.mrf.mxu0
      %v1426 = vadd.f32 %v1193, %v1425
      %v1427 = vpop.f32.mrf.mxu0
      %v1428 = vpop.f32.mrf.mxu0
      %v1429 = vadd.f32 %v1196, %v1428
      %v1430 = vpop.f32.mrf.mxu0
      %1431 = vmatprep.mubr.bf16.mxu0 0
      %1432 = vmatmul.mubr.bf16.gmra.mxu0 %v1287
      %v1433 = vpop.f32.mrf.mxu0
      %v1434 = vadd.f32 %v1201, %v1433
      %v1435 = vpop.f32.mrf.mxu0
      %v1436 = vpop.f32.mrf.mxu0
      %v1437 = vadd.f32 %v1204, %v1436
      %v1438 = vpop.f32.mrf.mxu0
      %1439 = vmatprep.mubr.bf16.mxu0 0
      %1440 = vmatmul.mubr.bf16.gmra.mxu0 %v1290
      %v1441 = vpop.f32.mrf.mxu0
      %v1442 = vadd.f32 %v1209, %v1441
      %v1443 = vpop.f32.mrf.mxu0
      %v1444 = vpop.f32.mrf.mxu0
      %v1445 = vadd.f32 %v1212, %v1444
      %v1446 = vpop.f32.mrf.mxu0
      %1447 = vmatprep.mubr.bf16.mxu0 0
      %1448 = vmatmul.mubr.bf16.gmra.mxu0 %v1293
      %v1449 = vpop.f32.mrf.mxu0
      %v1450 = vadd.f32 %v1217, %v1449
      %v1451 = vpop.f32.mrf.mxu0
      %v1452 = vpop.f32.mrf.mxu0
      %v1453 = vadd.f32 %v1220, %v1452
      %v1454 = vpop.f32.mrf.mxu0
      %1455 = vdwg.mxu0
      %v1456 = vld [vmem:[#allocation2 + $0x2] sm:$0xff]
      %v1457 = vld [vmem:[#allocation2 + $0xa] sm:$0xff]
      %v1458 = vld [vmem:[#allocation2 + $0x1a] sm:$0xff]
      %v1459 = vld [vmem:[#allocation2 + $0x22] sm:$0xff]
      %v1460 = vld [vmem:[#allocation2 + $0x32] sm:$0xff]
      %v1461 = vld [vmem:[#allocation2 + $0x3a] sm:$0xff]
      %v1462 = vld [vmem:[#allocation2 + $0x4a] sm:$0xff]
      %v1463 = vld [vmem:[#allocation2 + $0x52] sm:$0xff]
      %v1464 = vld [vmem:[#allocation2 + $0x62] sm:$0xff]
      %v1465 = vld [vmem:[#allocation2 + $0x6a] sm:$0xff]
      %v1466 = vld [vmem:[#allocation2 + $0x7a] sm:$0xff]
      %v1467 = vld [vmem:[#allocation2 + $0x82] sm:$0xff]
      %v1468 = vld [vmem:[#allocation2 + $0x92] sm:$0xff]
      %v1469 = vld [vmem:[#allocation2 + $0x9a] sm:$0xff]
      %v1470 = vld [vmem:[#allocation2 + $0xaa] sm:$0xff]
      %v1471 = vld [vmem:[#allocation2 + $0xb2] sm:$0xff]
      %v1472 = vld [vmem:[#allocation2 + $0xc2] sm:$0xff]
      %v1473 = vld [vmem:[#allocation2 + $0xca] sm:$0xff]
      %v1474 = vld [vmem:[#allocation2 + $0xda] sm:$0xff]
      %v1475 = vld [vmem:[#allocation2 + $0xe2] sm:$0xff]
      %v1476 = vld [vmem:[#allocation2 + $0xf2] sm:$0xff]
      %v1477 = vld [vmem:[#allocation2 + $0xfa] sm:$0xff]
      %v1478 = vld [vmem:[#allocation2 + $0x10a] sm:$0xff]
      %v1479 = vld [vmem:[#allocation2 + $0x112] sm:$0xff]
      %v1480 = vld [vmem:[#allocation2 + $0x122] sm:$0xff]
      %v1481 = vld [vmem:[#allocation2 + $0x12a] sm:$0xff]
      %v1482 = vld [vmem:[#allocation2 + $0x13a] sm:$0xff]
      %v1483 = vld [vmem:[#allocation2 + $0x142] sm:$0xff]
      %v1484 = vld [vmem:[#allocation2 + $0x152] sm:$0xff]
      %v1485 = vld [vmem:[#allocation2 + $0x15a] sm:$0xff]
      %v1486 = vld [vmem:[#allocation2 + $0x16a] sm:$0xff]
      %v1487 = vld [vmem:[#allocation2 + $0x172] sm:$0xff]
      %v1488 = vpack.c.bf16 %v1457, %v1456
      %v1489 = vpack.c.bf16 %v1459, %v1458
      %v1490 = vpack.c.bf16 %v1461, %v1460
      %v1491 = vpack.c.bf16 %v1463, %v1462
      %v1492 = vpack.c.bf16 %v1465, %v1464
      %v1493 = vpack.c.bf16 %v1467, %v1466
      %v1494 = vpack.c.bf16 %v1469, %v1468
      %v1495 = vpack.c.bf16 %v1471, %v1470
      %v1496 = vpack.c.bf16 %v1473, %v1472
      %v1497 = vpack.c.bf16 %v1475, %v1474
      %v1498 = vpack.c.bf16 %v1477, %v1476
      %v1499 = vpack.c.bf16 %v1479, %v1478
      %v1500 = vpack.c.bf16 %v1481, %v1480
      %v1501 = vpack.c.bf16 %v1483, %v1482
      %v1502 = vpack.c.bf16 %v1485, %v1484
      %v1503 = vpack.c.bf16 %v1487, %v1486
      %s1504 = scalar_lea.vmem %s3, 64
      %v1505 = vld [vmem:[%s1504] sm:$0xf]
      %v1506 = vld [vmem:[%s1504 + $0x4] sm:$0xf]
      %v1507 = vld [vmem:[%s1504 + $0x8] sm:$0xf]
      %v1508 = vld [vmem:[%s1504 + $0xc] sm:$0xf]
      %v1509 = vld [vmem:[%s1504 + $0x10] sm:$0xf]
      %v1510 = vld [vmem:[%s1504 + $0x14] sm:$0xf]
      %v1511 = vld [vmem:[%s1504 + $0x18] sm:$0xf]
      %v1512 = vld [vmem:[%s1504 + $0x1c] sm:$0xf]
      %v1521 = vunpack.c.l.b16 %v1505
      %v1522 = vunpack.c.l.b16 %v1506
      %v1523 = vunpack.c.l.b16 %v1507
      %v1524 = vunpack.c.l.b16 %v1508
      %v1525 = vunpack.c.l.b16 %v1509
      %v1526 = vunpack.c.l.b16 %v1510
      %v1527 = vunpack.c.l.b16 %v1511
      %v1528 = vunpack.c.l.b16 %v1512
      %v1529 = vpack.c.b16 %v1522, %v1521
      %v1530 = vpack.c.b16 %v1524, %v1523
      %v1531 = vpack.c.b16 %v1526, %v1525
      %v1532 = vpack.c.b16 %v1528, %v1527
      %v1538 = vsel %vm788, %v1488, 0
      %v1541 = vsel %vm788, %v1489, 0
      %v1544 = vsel %vm788, %v1490, 0
      %v1547 = vsel %vm788, %v1491, 0
      %v1550 = vsel %vm788, %v1492, 0
      %v1553 = vsel %vm788, %v1493, 0
      %v1556 = vsel %vm788, %v1494, 0
      %v1559 = vsel %vm788, %v1495, 0
      %v1562 = vsel %vm788, %v1496, 0
      %v1565 = vsel %vm788, %v1497, 0
      %v1568 = vsel %vm788, %v1498, 0
      %v1571 = vsel %vm788, %v1499, 0
      %v1574 = vsel %vm788, %v1500, 0
      %v1577 = vsel %vm788, %v1501, 0
      %v1580 = vsel %vm788, %v1502, 0
      %v1583 = vsel %vm788, %v1503, 0
      %1585 = vmatprep.subr.bf16.mxu0 0
      %1586 = vmatpush1.bf16.msra.mxu0 0
      %1587 = vmatprep.subr.bf16.mxu0 0
      %1588 = vmatpush1.bf16.msra.mxu0 0
      %1589 = vmatprep.subr.bf16.mxu0 0
      %1590 = vmatpush1.bf16.msra.mxu0 0
      %1591 = vmatprep.subr.bf16.mxu0 0
      %1592 = vmatpush1.bf16.msra.mxu0 0
      %1593 = vmatprep.subr.bf16.mxu0 0
      %1594 = vmatpush1.bf16.msra.mxu0 %v1532
      %1595 = vmatprep.subr.bf16.mxu0 0
      %1596 = vmatpush1.bf16.msra.mxu0 %v1531
      %1597 = vmatprep.subr.bf16.mxu0 0
      %1598 = vmatpush1.bf16.msra.mxu0 %v1530
      %1599 = vmatprep.subr.bf16.mxu0 0
      %1600 = vmatpush1.bf16.msra.mxu0 %v1529
      %1601 = vmatprep.subr.bf16.mxu0 0
      %1602 = vmatpush2.bf16.msra.mxu0 0
      %1603 = vmatprep.subr.bf16.mxu0 0
      %1604 = vmatpush2.bf16.msra.mxu0 0
      %1605 = vmatprep.subr.bf16.mxu0 0
      %1606 = vmatpush2.bf16.msra.mxu0 0
      %1607 = vmatprep.subr.bf16.mxu0 0
      %1608 = vmatpush2.bf16.msra.mxu0 0
      %1609 = vmatprep.subr.bf16.mxu0 0
      %1610 = vmatpush2.bf16.msra.mxu0 0
      %1611 = vmatprep.subr.bf16.mxu0 0
      %1612 = vmatpush2.bf16.msra.mxu0 0
      %1613 = vmatprep.subr.bf16.mxu0 0
      %1614 = vmatpush2.bf16.msra.mxu0 0
      %1615 = vmatprep.subr.bf16.mxu0 0
      %1616 = vmatpush2.bf16.msra.mxu0 0
      %1617 = vmatprep.mubr.bf16.mxu0 0
      %1618 = vmatmul.mubr.bf16.gmra.mxu0 %v1538
      %v1619 = vpop.f32.mrf.mxu0
      %v1620 = vadd.f32 0.0, %v1619
      %v1621 = vpop.f32.mrf.mxu0
      %v1622 = vpop.f32.mrf.mxu0
      %v1623 = vadd.f32 0.0, %v1622
      %v1624 = vpop.f32.mrf.mxu0
      %1625 = vmatprep.mubr.bf16.mxu0 0
      %1626 = vmatmul.mubr.bf16.gmra.mxu0 %v1541
      %v1627 = vpop.f32.mrf.mxu0
      %v1628 = vadd.f32 0.0, %v1627
      %v1629 = vpop.f32.mrf.mxu0
      %v1630 = vpop.f32.mrf.mxu0
      %v1631 = vadd.f32 0.0, %v1630
      %v1632 = vpop.f32.mrf.mxu0
      %1633 = vmatprep.mubr.bf16.mxu0 0
      %1634 = vmatmul.mubr.bf16.gmra.mxu0 %v1544
      %v1635 = vpop.f32.mrf.mxu0
      %v1636 = vadd.f32 0.0, %v1635
      %v1637 = vpop.f32.mrf.mxu0
      %v1638 = vpop.f32.mrf.mxu0
      %v1639 = vadd.f32 0.0, %v1638
      %v1640 = vpop.f32.mrf.mxu0
      %1641 = vmatprep.mubr.bf16.mxu0 0
      %1642 = vmatmul.mubr.bf16.gmra.mxu0 %v1547
      %v1643 = vpop.f32.mrf.mxu0
      %v1644 = vadd.f32 0.0, %v1643
      %v1645 = vpop.f32.mrf.mxu0
      %v1646 = vpop.f32.mrf.mxu0
      %v1647 = vadd.f32 0.0, %v1646
      %v1648 = vpop.f32.mrf.mxu0
      %1649 = vmatprep.mubr.bf16.mxu0 0
      %1650 = vmatmul.mubr.bf16.gmra.mxu0 %v1550
      %v1651 = vpop.f32.mrf.mxu0
      %v1652 = vadd.f32 0.0, %v1651
      %v1653 = vpop.f32.mrf.mxu0
      %v1654 = vpop.f32.mrf.mxu0
      %v1655 = vadd.f32 0.0, %v1654
      %v1656 = vpop.f32.mrf.mxu0
      %1657 = vmatprep.mubr.bf16.mxu0 0
      %1658 = vmatmul.mubr.bf16.gmra.mxu0 %v1553
      %v1659 = vpop.f32.mrf.mxu0
      %v1660 = vadd.f32 0.0, %v1659
      %v1661 = vpop.f32.mrf.mxu0
      %v1662 = vpop.f32.mrf.mxu0
      %v1663 = vadd.f32 0.0, %v1662
      %v1664 = vpop.f32.mrf.mxu0
      %1665 = vmatprep.mubr.bf16.mxu0 0
      %1666 = vmatmul.mubr.bf16.gmra.mxu0 %v1556
      %v1667 = vpop.f32.mrf.mxu0
      %v1668 = vadd.f32 0.0, %v1667
      %v1669 = vpop.f32.mrf.mxu0
      %v1670 = vpop.f32.mrf.mxu0
      %v1671 = vadd.f32 0.0, %v1670
      %v1672 = vpop.f32.mrf.mxu0
      %1673 = vmatprep.mubr.bf16.mxu0 0
      %1674 = vmatmul.mubr.bf16.gmra.mxu0 %v1559
      %v1675 = vpop.f32.mrf.mxu0
      %v1676 = vadd.f32 0.0, %v1675
      %v1677 = vpop.f32.mrf.mxu0
      %v1678 = vpop.f32.mrf.mxu0
      %v1679 = vadd.f32 0.0, %v1678
      %v1680 = vpop.f32.mrf.mxu0
      %1681 = vmatprep.mubr.bf16.mxu0 0
      %1682 = vmatmul.mubr.bf16.gmra.mxu0 %v1562
      %v1683 = vpop.f32.mrf.mxu0
      %v1684 = vadd.f32 0.0, %v1683
      %v1685 = vpop.f32.mrf.mxu0
      %v1686 = vpop.f32.mrf.mxu0
      %v1687 = vadd.f32 0.0, %v1686
      %v1688 = vpop.f32.mrf.mxu0
      %1689 = vmatprep.mubr.bf16.mxu0 0
      %1690 = vmatmul.mubr.bf16.gmra.mxu0 %v1565
      %v1691 = vpop.f32.mrf.mxu0
      %v1692 = vadd.f32 0.0, %v1691
      %v1693 = vpop.f32.mrf.mxu0
      %v1694 = vpop.f32.mrf.mxu0
      %v1695 = vadd.f32 0.0, %v1694
      %v1696 = vpop.f32.mrf.mxu0
      %1697 = vmatprep.mubr.bf16.mxu0 0
      %1698 = vmatmul.mubr.bf16.gmra.mxu0 %v1568
      %v1699 = vpop.f32.mrf.mxu0
      %v1700 = vadd.f32 0.0, %v1699
      %v1701 = vpop.f32.mrf.mxu0
      %v1702 = vpop.f32.mrf.mxu0
      %v1703 = vadd.f32 0.0, %v1702
      %v1704 = vpop.f32.mrf.mxu0
      %1705 = vmatprep.mubr.bf16.mxu0 0
      %1706 = vmatmul.mubr.bf16.gmra.mxu0 %v1571
      %v1707 = vpop.f32.mrf.mxu0
      %v1708 = vadd.f32 0.0, %v1707
      %v1709 = vpop.f32.mrf.mxu0
      %v1710 = vpop.f32.mrf.mxu0
      %v1711 = vadd.f32 0.0, %v1710
      %v1712 = vpop.f32.mrf.mxu0
      %1713 = vmatprep.mubr.bf16.mxu0 0
      %1714 = vmatmul.mubr.bf16.gmra.mxu0 %v1574
      %v1715 = vpop.f32.mrf.mxu0
      %v1716 = vadd.f32 0.0, %v1715
      %v1717 = vpop.f32.mrf.mxu0
      %v1718 = vpop.f32.mrf.mxu0
      %v1719 = vadd.f32 0.0, %v1718
      %v1720 = vpop.f32.mrf.mxu0
      %1721 = vmatprep.mubr.bf16.mxu0 0
      %1722 = vmatmul.mubr.bf16.gmra.mxu0 %v1577
      %v1723 = vpop.f32.mrf.mxu0
      %v1724 = vadd.f32 0.0, %v1723
      %v1725 = vpop.f32.mrf.mxu0
      %v1726 = vpop.f32.mrf.mxu0
      %v1727 = vadd.f32 0.0, %v1726
      %v1728 = vpop.f32.mrf.mxu0
      %1729 = vmatprep.mubr.bf16.mxu0 0
      %1730 = vmatmul.mubr.bf16.gmra.mxu0 %v1580
      %v1731 = vpop.f32.mrf.mxu0
      %v1732 = vadd.f32 0.0, %v1731
      %v1733 = vpop.f32.mrf.mxu0
      %v1734 = vpop.f32.mrf.mxu0
      %v1735 = vadd.f32 0.0, %v1734
      %v1736 = vpop.f32.mrf.mxu0
      %1737 = vmatprep.mubr.bf16.mxu0 0
      %1738 = vmatmul.mubr.bf16.gmra.mxu0 %v1583
      %v1739 = vpop.f32.mrf.mxu0
      %v1740 = vadd.f32 0.0, %v1739
      %v1741 = vpop.f32.mrf.mxu0
      %v1742 = vpop.f32.mrf.mxu0
      %v1743 = vadd.f32 0.0, %v1742
      %v1744 = vpop.f32.mrf.mxu0
      %1745 = vdwg.mxu0
      %v1746 = vadd.f32 %v1330, %v1620
      %v1747 = vadd.f32 %v1333, %v1623
      %v1748 = vadd.f32 %v1338, %v1628
      %v1749 = vadd.f32 %v1341, %v1631
      %v1750 = vadd.f32 %v1346, %v1636
      %v1751 = vadd.f32 %v1349, %v1639
      %v1752 = vadd.f32 %v1354, %v1644
      %v1753 = vadd.f32 %v1357, %v1647
      %v1754 = vadd.f32 %v1362, %v1652
      %v1755 = vadd.f32 %v1365, %v1655
      %v1756 = vadd.f32 %v1370, %v1660
      %v1757 = vadd.f32 %v1373, %v1663
      %v1758 = vadd.f32 %v1378, %v1668
      %v1759 = vadd.f32 %v1381, %v1671
      %v1760 = vadd.f32 %v1386, %v1676
      %v1761 = vadd.f32 %v1389, %v1679
      %v1762 = vadd.f32 %v1394, %v1684
      %v1763 = vadd.f32 %v1397, %v1687
      %v1764 = vadd.f32 %v1402, %v1692
      %v1765 = vadd.f32 %v1405, %v1695
      %v1766 = vadd.f32 %v1410, %v1700
      %v1767 = vadd.f32 %v1413, %v1703
      %v1768 = vadd.f32 %v1418, %v1708
      %v1769 = vadd.f32 %v1421, %v1711
      %v1770 = vadd.f32 %v1426, %v1716
      %v1771 = vadd.f32 %v1429, %v1719
      %v1772 = vadd.f32 %v1434, %v1724
      %v1773 = vadd.f32 %v1437, %v1727
      %v1774 = vadd.f32 %v1442, %v1732
      %v1775 = vadd.f32 %v1445, %v1735
      %v1776 = vadd.f32 %v1450, %v1740
      %v1777 = vadd.f32 %v1453, %v1743
      %v1778 = vld [vmem:[%s844] sm:$0xff]
      %v1779 = vld [vmem:[%s844 + $0x8] sm:$0xff]
      %v1780 = vld [vmem:[%s844 + $0x18] sm:$0xff]
      %v1781 = vld [vmem:[%s844 + $0x20] sm:$0xff]
      %v1782 = vld [vmem:[%s844 + $0x30] sm:$0xff]
      %v1783 = vld [vmem:[%s844 + $0x38] sm:$0xff]
      %v1784 = vld [vmem:[%s844 + $0x48] sm:$0xff]
      %v1785 = vld [vmem:[%s844 + $0x50] sm:$0xff]
      %v1786 = vld [vmem:[%s844 + $0x60] sm:$0xff]
      %v1787 = vld [vmem:[%s844 + $0x68] sm:$0xff]
      %v1788 = vld [vmem:[%s844 + $0x78] sm:$0xff]
      %v1789 = vld [vmem:[%s844 + $0x80] sm:$0xff]
      %v1790 = vld [vmem:[%s844 + $0x90] sm:$0xff]
      %v1791 = vld [vmem:[%s844 + $0x98] sm:$0xff]
      %v1792 = vld [vmem:[%s844 + $0xa8] sm:$0xff]
      %v1793 = vld [vmem:[%s844 + $0xb0] sm:$0xff]
      %v1794 = vld [vmem:[%s844 + $0xc0] sm:$0xff]
      %v1795 = vld [vmem:[%s844 + $0xc8] sm:$0xff]
      %v1796 = vld [vmem:[%s844 + $0xd8] sm:$0xff]
      %v1797 = vld [vmem:[%s844 + $0xe0] sm:$0xff]
      %v1798 = vld [vmem:[%s844 + $0xf0] sm:$0xff]
      %v1799 = vld [vmem:[%s844 + $0xf8] sm:$0xff]
      %v1800 = vld [vmem:[%s844 + $0x108] sm:$0xff]
      %v1801 = vld [vmem:[%s844 + $0x110] sm:$0xff]
      %v1802 = vld [vmem:[%s844 + $0x120] sm:$0xff]
      %v1803 = vld [vmem:[%s844 + $0x128] sm:$0xff]
      %v1804 = vld [vmem:[%s844 + $0x138] sm:$0xff]
      %v1805 = vld [vmem:[%s844 + $0x140] sm:$0xff]
      %v1806 = vld [vmem:[%s844 + $0x150] sm:$0xff]
      %v1807 = vld [vmem:[%s844 + $0x158] sm:$0xff]
      %v1808 = vld [vmem:[%s844 + $0x168] sm:$0xff]
      %v1809 = vld [vmem:[%s844 + $0x170] sm:$0xff]
      %v1810 = vpack.c.bf16 %v1779, %v1778
      %v1811 = vpack.c.bf16 %v1781, %v1780
      %v1812 = vpack.c.bf16 %v1783, %v1782
      %v1813 = vpack.c.bf16 %v1785, %v1784
      %v1814 = vpack.c.bf16 %v1787, %v1786
      %v1815 = vpack.c.bf16 %v1789, %v1788
      %v1816 = vpack.c.bf16 %v1791, %v1790
      %v1817 = vpack.c.bf16 %v1793, %v1792
      %v1818 = vpack.c.bf16 %v1795, %v1794
      %v1819 = vpack.c.bf16 %v1797, %v1796
      %v1820 = vpack.c.bf16 %v1799, %v1798
      %v1821 = vpack.c.bf16 %v1801, %v1800
      %v1822 = vpack.c.bf16 %v1803, %v1802
      %v1823 = vpack.c.bf16 %v1805, %v1804
      %v1824 = vpack.c.bf16 %v1807, %v1806
      %v1825 = vpack.c.bf16 %v1809, %v1808
      %s1826 = scalar_lea.vmem %s3, 96
      %v1827 = vld [vmem:[%s1826] sm:$0xf]
      %v1828 = vld [vmem:[%s1826 + $0x4] sm:$0xf]
      %v1829 = vld [vmem:[%s1826 + $0x8] sm:$0xf]
      %v1830 = vld [vmem:[%s1826 + $0xc] sm:$0xf]
      %v1831 = vld [vmem:[%s1826 + $0x10] sm:$0xf]
      %v1832 = vld [vmem:[%s1826 + $0x14] sm:$0xf]
      %v1833 = vld [vmem:[%s1826 + $0x18] sm:$0xf]
      %v1834 = vld [vmem:[%s1826 + $0x1c] sm:$0xf]
      %v1843 = vunpack.c.l.b16 %v1827
      %v1844 = vunpack.c.l.b16 %v1828
      %v1845 = vunpack.c.l.b16 %v1829
      %v1846 = vunpack.c.l.b16 %v1830
      %v1847 = vunpack.c.l.b16 %v1831
      %v1848 = vunpack.c.l.b16 %v1832
      %v1849 = vunpack.c.l.b16 %v1833
      %v1850 = vunpack.c.l.b16 %v1834
      %v1851 = vpack.c.b16 %v1844, %v1843
      %v1852 = vpack.c.b16 %v1846, %v1845
      %v1853 = vpack.c.b16 %v1848, %v1847
      %v1854 = vpack.c.b16 %v1850, %v1849
      %v1860 = vsel %vm788, %v1810, 0
      %v1863 = vsel %vm788, %v1811, 0
      %v1866 = vsel %vm788, %v1812, 0
      %v1869 = vsel %vm788, %v1813, 0
      %v1872 = vsel %vm788, %v1814, 0
      %v1875 = vsel %vm788, %v1815, 0
      %v1878 = vsel %vm788, %v1816, 0
      %v1881 = vsel %vm788, %v1817, 0
      %v1884 = vsel %vm788, %v1818, 0
      %v1887 = vsel %vm788, %v1819, 0
      %v1890 = vsel %vm788, %v1820, 0
      %v1893 = vsel %vm788, %v1821, 0
      %v1896 = vsel %vm788, %v1822, 0
      %v1899 = vsel %vm788, %v1823, 0
      %v1902 = vsel %vm788, %v1824, 0
      %v1905 = vsel %vm788, %v1825, 0
      %1907 = vmatprep.subr.bf16.mxu0 0
      %1908 = vmatpush1.bf16.msra.mxu0 0
      %1909 = vmatprep.subr.bf16.mxu0 0
      %1910 = vmatpush1.bf16.msra.mxu0 0
      %1911 = vmatprep.subr.bf16.mxu0 0
      %1912 = vmatpush1.bf16.msra.mxu0 0
      %1913 = vmatprep.subr.bf16.mxu0 0
      %1914 = vmatpush1.bf16.msra.mxu0 0
      %1915 = vmatprep.subr.bf16.mxu0 0
      %1916 = vmatpush1.bf16.msra.mxu0 %v1854
      %1917 = vmatprep.subr.bf16.mxu0 0
      %1918 = vmatpush1.bf16.msra.mxu0 %v1853
      %1919 = vmatprep.subr.bf16.mxu0 0
      %1920 = vmatpush1.bf16.msra.mxu0 %v1852
      %1921 = vmatprep.subr.bf16.mxu0 0
      %1922 = vmatpush1.bf16.msra.mxu0 %v1851
      %1923 = vmatprep.subr.bf16.mxu0 0
      %1924 = vmatpush2.bf16.msra.mxu0 0
      %1925 = vmatprep.subr.bf16.mxu0 0
      %1926 = vmatpush2.bf16.msra.mxu0 0
      %1927 = vmatprep.subr.bf16.mxu0 0
      %1928 = vmatpush2.bf16.msra.mxu0 0
      %1929 = vmatprep.subr.bf16.mxu0 0
      %1930 = vmatpush2.bf16.msra.mxu0 0
      %1931 = vmatprep.subr.bf16.mxu0 0
      %1932 = vmatpush2.bf16.msra.mxu0 0
      %1933 = vmatprep.subr.bf16.mxu0 0
      %1934 = vmatpush2.bf16.msra.mxu0 0
      %1935 = vmatprep.subr.bf16.mxu0 0
      %1936 = vmatpush2.bf16.msra.mxu0 0
      %1937 = vmatprep.subr.bf16.mxu0 0
      %1938 = vmatpush2.bf16.msra.mxu0 0
      %1939 = vmatprep.mubr.bf16.mxu0 0
      %1940 = vmatmul.mubr.bf16.gmra.mxu0 %v1860
      %v1941 = vpop.f32.mrf.mxu0
      %v1942 = vadd.f32 0.0, %v1941
      %v1943 = vpop.f32.mrf.mxu0
      %v1944 = vpop.f32.mrf.mxu0
      %v1945 = vadd.f32 0.0, %v1944
      %v1946 = vpop.f32.mrf.mxu0
      %1947 = vmatprep.mubr.bf16.mxu0 0
      %1948 = vmatmul.mubr.bf16.gmra.mxu0 %v1863
      %v1949 = vpop.f32.mrf.mxu0
      %v1950 = vadd.f32 0.0, %v1949
      %v1951 = vpop.f32.mrf.mxu0
      %v1952 = vpop.f32.mrf.mxu0
      %v1953 = vadd.f32 0.0, %v1952
      %v1954 = vpop.f32.mrf.mxu0
      %1955 = vmatprep.mubr.bf16.mxu0 0
      %1956 = vmatmul.mubr.bf16.gmra.mxu0 %v1866
      %v1957 = vpop.f32.mrf.mxu0
      %v1958 = vadd.f32 0.0, %v1957
      %v1959 = vpop.f32.mrf.mxu0
      %v1960 = vpop.f32.mrf.mxu0
      %v1961 = vadd.f32 0.0, %v1960
      %v1962 = vpop.f32.mrf.mxu0
      %1963 = vmatprep.mubr.bf16.mxu0 0
      %1964 = vmatmul.mubr.bf16.gmra.mxu0 %v1869
      %v1965 = vpop.f32.mrf.mxu0
      %v1966 = vadd.f32 0.0, %v1965
      %v1967 = vpop.f32.mrf.mxu0
      %v1968 = vpop.f32.mrf.mxu0
      %v1969 = vadd.f32 0.0, %v1968
      %v1970 = vpop.f32.mrf.mxu0
      %1971 = vmatprep.mubr.bf16.mxu0 0
      %1972 = vmatmul.mubr.bf16.gmra.mxu0 %v1872
      %v1973 = vpop.f32.mrf.mxu0
      %v1974 = vadd.f32 0.0, %v1973
      %v1975 = vpop.f32.mrf.mxu0
      %v1976 = vpop.f32.mrf.mxu0
      %v1977 = vadd.f32 0.0, %v1976
      %v1978 = vpop.f32.mrf.mxu0
      %1979 = vmatprep.mubr.bf16.mxu0 0
      %1980 = vmatmul.mubr.bf16.gmra.mxu0 %v1875
      %v1981 = vpop.f32.mrf.mxu0
      %v1982 = vadd.f32 0.0, %v1981
      %v1983 = vpop.f32.mrf.mxu0
      %v1984 = vpop.f32.mrf.mxu0
      %v1985 = vadd.f32 0.0, %v1984
      %v1986 = vpop.f32.mrf.mxu0
      %1987 = vmatprep.mubr.bf16.mxu0 0
      %1988 = vmatmul.mubr.bf16.gmra.mxu0 %v1878
      %v1989 = vpop.f32.mrf.mxu0
      %v1990 = vadd.f32 0.0, %v1989
      %v1991 = vpop.f32.mrf.mxu0
      %v1992 = vpop.f32.mrf.mxu0
      %v1993 = vadd.f32 0.0, %v1992
      %v1994 = vpop.f32.mrf.mxu0
      %1995 = vmatprep.mubr.bf16.mxu0 0
      %1996 = vmatmul.mubr.bf16.gmra.mxu0 %v1881
      %v1997 = vpop.f32.mrf.mxu0
      %v1998 = vadd.f32 0.0, %v1997
      %v1999 = vpop.f32.mrf.mxu0
      %v2000 = vpop.f32.mrf.mxu0
      %v2001 = vadd.f32 0.0, %v2000
      %v2002 = vpop.f32.mrf.mxu0
      %2003 = vmatprep.mubr.bf16.mxu0 0
      %2004 = vmatmul.mubr.bf16.gmra.mxu0 %v1884
      %v2005 = vpop.f32.mrf.mxu0
      %v2006 = vadd.f32 0.0, %v2005
      %v2007 = vpop.f32.mrf.mxu0
      %v2008 = vpop.f32.mrf.mxu0
      %v2009 = vadd.f32 0.0, %v2008
      %v2010 = vpop.f32.mrf.mxu0
      %2011 = vmatprep.mubr.bf16.mxu0 0
      %2012 = vmatmul.mubr.bf16.gmra.mxu0 %v1887
      %v2013 = vpop.f32.mrf.mxu0
      %v2014 = vadd.f32 0.0, %v2013
      %v2015 = vpop.f32.mrf.mxu0
      %v2016 = vpop.f32.mrf.mxu0
      %v2017 = vadd.f32 0.0, %v2016
      %v2018 = vpop.f32.mrf.mxu0
      %2019 = vmatprep.mubr.bf16.mxu0 0
      %2020 = vmatmul.mubr.bf16.gmra.mxu0 %v1890
      %v2021 = vpop.f32.mrf.mxu0
      %v2022 = vadd.f32 0.0, %v2021
      %v2023 = vpop.f32.mrf.mxu0
      %v2024 = vpop.f32.mrf.mxu0
      %v2025 = vadd.f32 0.0, %v2024
      %v2026 = vpop.f32.mrf.mxu0
      %2027 = vmatprep.mubr.bf16.mxu0 0
      %2028 = vmatmul.mubr.bf16.gmra.mxu0 %v1893
      %v2029 = vpop.f32.mrf.mxu0
      %v2030 = vadd.f32 0.0, %v2029
      %v2031 = vpop.f32.mrf.mxu0
      %v2032 = vpop.f32.mrf.mxu0
      %v2033 = vadd.f32 0.0, %v2032
      %v2034 = vpop.f32.mrf.mxu0
      %2035 = vmatprep.mubr.bf16.mxu0 0
      %2036 = vmatmul.mubr.bf16.gmra.mxu0 %v1896
      %v2037 = vpop.f32.mrf.mxu0
      %v2038 = vadd.f32 0.0, %v2037
      %v2039 = vpop.f32.mrf.mxu0
      %v2040 = vpop.f32.mrf.mxu0
      %v2041 = vadd.f32 0.0, %v2040
      %v2042 = vpop.f32.mrf.mxu0
      %2043 = vmatprep.mubr.bf16.mxu0 0
      %2044 = vmatmul.mubr.bf16.gmra.mxu0 %v1899
      %v2045 = vpop.f32.mrf.mxu0
      %v2046 = vadd.f32 0.0, %v2045
      %v2047 = vpop.f32.mrf.mxu0
      %v2048 = vpop.f32.mrf.mxu0
      %v2049 = vadd.f32 0.0, %v2048
      %v2050 = vpop.f32.mrf.mxu0
      %2051 = vmatprep.mubr.bf16.mxu0 0
      %2052 = vmatmul.mubr.bf16.gmra.mxu0 %v1902
      %v2053 = vpop.f32.mrf.mxu0
      %v2054 = vadd.f32 0.0, %v2053
      %v2055 = vpop.f32.mrf.mxu0
      %v2056 = vpop.f32.mrf.mxu0
      %v2057 = vadd.f32 0.0, %v2056
      %v2058 = vpop.f32.mrf.mxu0
      %2059 = vmatprep.mubr.bf16.mxu0 0
      %2060 = vmatmul.mubr.bf16.gmra.mxu0 %v1905
      %v2061 = vpop.f32.mrf.mxu0
      %v2062 = vadd.f32 0.0, %v2061
      %v2063 = vpop.f32.mrf.mxu0
      %v2064 = vpop.f32.mrf.mxu0
      %v2065 = vadd.f32 0.0, %v2064
      %v2066 = vpop.f32.mrf.mxu0
      %2067 = vdwg.mxu0
      %v2068 = vadd.f32 %v1746, %v1942
      %v2069 = vadd.f32 %v1747, %v1945
      %v2070 = vadd.f32 %v1748, %v1950
      %v2071 = vadd.f32 %v1749, %v1953
      %v2072 = vadd.f32 %v1750, %v1958
      %v2073 = vadd.f32 %v1751, %v1961
      %v2074 = vadd.f32 %v1752, %v1966
      %v2075 = vadd.f32 %v1753, %v1969
      %v2076 = vadd.f32 %v1754, %v1974
      %v2077 = vadd.f32 %v1755, %v1977
      %v2078 = vadd.f32 %v1756, %v1982
      %v2079 = vadd.f32 %v1757, %v1985
      %v2080 = vadd.f32 %v1758, %v1990
      %v2081 = vadd.f32 %v1759, %v1993
      %v2082 = vadd.f32 %v1760, %v1998
      %v2083 = vadd.f32 %v1761, %v2001
      %v2084 = vadd.f32 %v1762, %v2006
      %v2085 = vadd.f32 %v1763, %v2009
      %v2086 = vadd.f32 %v1764, %v2014
      %v2087 = vadd.f32 %v1765, %v2017
      %v2088 = vadd.f32 %v1766, %v2022
      %v2089 = vadd.f32 %v1767, %v2025
      %v2090 = vadd.f32 %v1768, %v2030
      %v2091 = vadd.f32 %v1769, %v2033
      %v2092 = vadd.f32 %v1770, %v2038
      %v2093 = vadd.f32 %v1771, %v2041
      %v2094 = vadd.f32 %v1772, %v2046
      %v2095 = vadd.f32 %v1773, %v2049
      %v2096 = vadd.f32 %v1774, %v2054
      %v2097 = vadd.f32 %v1775, %v2057
      %v2098 = vadd.f32 %v1776, %v2062
      %v2099 = vadd.f32 %v1777, %v2065
      %v2100 = vld [vmem:[%s844 + $0x1] sm:$0xff]
      %v2101 = vld [vmem:[%s844 + $0x9] sm:$0xff]
      %v2102 = vld [vmem:[%s844 + $0x19] sm:$0xff]
      %v2103 = vld [vmem:[%s844 + $0x21] sm:$0xff]
      %v2104 = vld [vmem:[%s844 + $0x31] sm:$0xff]
      %v2105 = vld [vmem:[%s844 + $0x39] sm:$0xff]
      %v2106 = vld [vmem:[%s844 + $0x49] sm:$0xff]
      %v2107 = vld [vmem:[%s844 + $0x51] sm:$0xff]
      %v2108 = vld [vmem:[%s844 + $0x61] sm:$0xff]
      %v2109 = vld [vmem:[%s844 + $0x69] sm:$0xff]
      %v2110 = vld [vmem:[%s844 + $0x79] sm:$0xff]
      %v2111 = vld [vmem:[%s844 + $0x81] sm:$0xff]
      %v2112 = vld [vmem:[%s844 + $0x91] sm:$0xff]
      %v2113 = vld [vmem:[%s844 + $0x99] sm:$0xff]
      %v2114 = vld [vmem:[%s844 + $0xa9] sm:$0xff]
      %v2115 = vld [vmem:[%s844 + $0xb1] sm:$0xff]
      %v2116 = vld [vmem:[%s844 + $0xc1] sm:$0xff]
      %v2117 = vld [vmem:[%s844 + $0xc9] sm:$0xff]
      %v2118 = vld [vmem:[%s844 + $0xd9] sm:$0xff]
      %v2119 = vld [vmem:[%s844 + $0xe1] sm:$0xff]
      %v2120 = vld [vmem:[%s844 + $0xf1] sm:$0xff]
      %v2121 = vld [vmem:[%s844 + $0xf9] sm:$0xff]
      %v2122 = vld [vmem:[%s844 + $0x109] sm:$0xff]
      %v2123 = vld [vmem:[%s844 + $0x111] sm:$0xff]
      %v2124 = vld [vmem:[%s844 + $0x121] sm:$0xff]
      %v2125 = vld [vmem:[%s844 + $0x129] sm:$0xff]
      %v2126 = vld [vmem:[%s844 + $0x139] sm:$0xff]
      %v2127 = vld [vmem:[%s844 + $0x141] sm:$0xff]
      %v2128 = vld [vmem:[%s844 + $0x151] sm:$0xff]
      %v2129 = vld [vmem:[%s844 + $0x159] sm:$0xff]
      %v2130 = vld [vmem:[%s844 + $0x169] sm:$0xff]
      %v2131 = vld [vmem:[%s844 + $0x171] sm:$0xff]
      %v2132 = vpack.c.bf16 %v2101, %v2100
      %v2133 = vpack.c.bf16 %v2103, %v2102
      %v2134 = vpack.c.bf16 %v2105, %v2104
      %v2135 = vpack.c.bf16 %v2107, %v2106
      %v2136 = vpack.c.bf16 %v2109, %v2108
      %v2137 = vpack.c.bf16 %v2111, %v2110
      %v2138 = vpack.c.bf16 %v2113, %v2112
      %v2139 = vpack.c.bf16 %v2115, %v2114
      %v2140 = vpack.c.bf16 %v2117, %v2116
      %v2141 = vpack.c.bf16 %v2119, %v2118
      %v2142 = vpack.c.bf16 %v2121, %v2120
      %v2143 = vpack.c.bf16 %v2123, %v2122
      %v2144 = vpack.c.bf16 %v2125, %v2124
      %v2145 = vpack.c.bf16 %v2127, %v2126
      %v2146 = vpack.c.bf16 %v2129, %v2128
      %v2147 = vpack.c.bf16 %v2131, %v2130
      %s2148 = scalar_lea.vmem %s3, 128
      %v2149 = vld [vmem:[%s2148] sm:$0xf]
      %v2150 = vld [vmem:[%s2148 + $0x4] sm:$0xf]
      %v2151 = vld [vmem:[%s2148 + $0x8] sm:$0xf]
      %v2152 = vld [vmem:[%s2148 + $0xc] sm:$0xf]
      %v2153 = vld [vmem:[%s2148 + $0x10] sm:$0xf]
      %v2154 = vld [vmem:[%s2148 + $0x14] sm:$0xf]
      %v2155 = vld [vmem:[%s2148 + $0x18] sm:$0xf]
      %v2156 = vld [vmem:[%s2148 + $0x1c] sm:$0xf]
      %v2165 = vunpack.c.l.b16 %v2149
      %v2166 = vunpack.c.l.b16 %v2150
      %v2167 = vunpack.c.l.b16 %v2151
      %v2168 = vunpack.c.l.b16 %v2152
      %v2169 = vunpack.c.l.b16 %v2153
      %v2170 = vunpack.c.l.b16 %v2154
      %v2171 = vunpack.c.l.b16 %v2155
      %v2172 = vunpack.c.l.b16 %v2156
      %v2173 = vpack.c.b16 %v2166, %v2165
      %v2174 = vpack.c.b16 %v2168, %v2167
      %v2175 = vpack.c.b16 %v2170, %v2169
      %v2176 = vpack.c.b16 %v2172, %v2171
      %v2182 = vsel %vm788, %v2132, 0
      %v2185 = vsel %vm788, %v2133, 0
      %v2188 = vsel %vm788, %v2134, 0
      %v2191 = vsel %vm788, %v2135, 0
      %v2194 = vsel %vm788, %v2136, 0
      %v2197 = vsel %vm788, %v2137, 0
      %v2200 = vsel %vm788, %v2138, 0
      %v2203 = vsel %vm788, %v2139, 0
      %v2206 = vsel %vm788, %v2140, 0
      %v2209 = vsel %vm788, %v2141, 0
      %v2212 = vsel %vm788, %v2142, 0
      %v2215 = vsel %vm788, %v2143, 0
      %v2218 = vsel %vm788, %v2144, 0
      %v2221 = vsel %vm788, %v2145, 0
      %v2224 = vsel %vm788, %v2146, 0
      %v2227 = vsel %vm788, %v2147, 0
      %2229 = vmatprep.subr.bf16.mxu0 0
      %2230 = vmatpush1.bf16.msra.mxu0 0
      %2231 = vmatprep.subr.bf16.mxu0 0
      %2232 = vmatpush1.bf16.msra.mxu0 0
      %2233 = vmatprep.subr.bf16.mxu0 0
      %2234 = vmatpush1.bf16.msra.mxu0 0
      %2235 = vmatprep.subr.bf16.mxu0 0
      %2236 = vmatpush1.bf16.msra.mxu0 0
      %2237 = vmatprep.subr.bf16.mxu0 0
      %2238 = vmatpush1.bf16.msra.mxu0 %v2176
      %2239 = vmatprep.subr.bf16.mxu0 0
      %2240 = vmatpush1.bf16.msra.mxu0 %v2175
      %2241 = vmatprep.subr.bf16.mxu0 0
      %2242 = vmatpush1.bf16.msra.mxu0 %v2174
      %2243 = vmatprep.subr.bf16.mxu0 0
      %2244 = vmatpush1.bf16.msra.mxu0 %v2173
      %2245 = vmatprep.subr.bf16.mxu0 0
      %2246 = vmatpush2.bf16.msra.mxu0 0
      %2247 = vmatprep.subr.bf16.mxu0 0
      %2248 = vmatpush2.bf16.msra.mxu0 0
      %2249 = vmatprep.subr.bf16.mxu0 0
      %2250 = vmatpush2.bf16.msra.mxu0 0
      %2251 = vmatprep.subr.bf16.mxu0 0
      %2252 = vmatpush2.bf16.msra.mxu0 0
      %2253 = vmatprep.subr.bf16.mxu0 0
      %2254 = vmatpush2.bf16.msra.mxu0 0
      %2255 = vmatprep.subr.bf16.mxu0 0
      %2256 = vmatpush2.bf16.msra.mxu0 0
      %2257 = vmatprep.subr.bf16.mxu0 0
      %2258 = vmatpush2.bf16.msra.mxu0 0
      %2259 = vmatprep.subr.bf16.mxu0 0
      %2260 = vmatpush2.bf16.msra.mxu0 0
      %2261 = vmatprep.mubr.bf16.mxu0 0
      %2262 = vmatmul.mubr.bf16.gmra.mxu0 %v2182
      %v2263 = vpop.f32.mrf.mxu0
      %v2264 = vadd.f32 0.0, %v2263
      %v2265 = vpop.f32.mrf.mxu0
      %v2266 = vpop.f32.mrf.mxu0
      %v2267 = vadd.f32 0.0, %v2266
      %v2268 = vpop.f32.mrf.mxu0
      %2269 = vmatprep.mubr.bf16.mxu0 0
      %2270 = vmatmul.mubr.bf16.gmra.mxu0 %v2185
      %v2271 = vpop.f32.mrf.mxu0
      %v2272 = vadd.f32 0.0, %v2271
      %v2273 = vpop.f32.mrf.mxu0
      %v2274 = vpop.f32.mrf.mxu0
      %v2275 = vadd.f32 0.0, %v2274
      %v2276 = vpop.f32.mrf.mxu0
      %2277 = vmatprep.mubr.bf16.mxu0 0
      %2278 = vmatmul.mubr.bf16.gmra.mxu0 %v2188
      %v2279 = vpop.f32.mrf.mxu0
      %v2280 = vadd.f32 0.0, %v2279
      %v2281 = vpop.f32.mrf.mxu0
      %v2282 = vpop.f32.mrf.mxu0
      %v2283 = vadd.f32 0.0, %v2282
      %v2284 = vpop.f32.mrf.mxu0
      %2285 = vmatprep.mubr.bf16.mxu0 0
      %2286 = vmatmul.mubr.bf16.gmra.mxu0 %v2191
      %v2287 = vpop.f32.mrf.mxu0
      %v2288 = vadd.f32 0.0, %v2287
      %v2289 = vpop.f32.mrf.mxu0
      %v2290 = vpop.f32.mrf.mxu0
      %v2291 = vadd.f32 0.0, %v2290
      %v2292 = vpop.f32.mrf.mxu0
      %2293 = vmatprep.mubr.bf16.mxu0 0
      %2294 = vmatmul.mubr.bf16.gmra.mxu0 %v2194
      %v2295 = vpop.f32.mrf.mxu0
      %v2296 = vadd.f32 0.0, %v2295
      %v2297 = vpop.f32.mrf.mxu0
      %v2298 = vpop.f32.mrf.mxu0
      %v2299 = vadd.f32 0.0, %v2298
      %v2300 = vpop.f32.mrf.mxu0
      %2301 = vmatprep.mubr.bf16.mxu0 0
      %2302 = vmatmul.mubr.bf16.gmra.mxu0 %v2197
      %v2303 = vpop.f32.mrf.mxu0
      %v2304 = vadd.f32 0.0, %v2303
      %v2305 = vpop.f32.mrf.mxu0
      %v2306 = vpop.f32.mrf.mxu0
      %v2307 = vadd.f32 0.0, %v2306
      %v2308 = vpop.f32.mrf.mxu0
      %2309 = vmatprep.mubr.bf16.mxu0 0
      %2310 = vmatmul.mubr.bf16.gmra.mxu0 %v2200
      %v2311 = vpop.f32.mrf.mxu0
      %v2312 = vadd.f32 0.0, %v2311
      %v2313 = vpop.f32.mrf.mxu0
      %v2314 = vpop.f32.mrf.mxu0
      %v2315 = vadd.f32 0.0, %v2314
      %v2316 = vpop.f32.mrf.mxu0
      %2317 = vmatprep.mubr.bf16.mxu0 0
      %2318 = vmatmul.mubr.bf16.gmra.mxu0 %v2203
      %v2319 = vpop.f32.mrf.mxu0
      %v2320 = vadd.f32 0.0, %v2319
      %v2321 = vpop.f32.mrf.mxu0
      %v2322 = vpop.f32.mrf.mxu0
      %v2323 = vadd.f32 0.0, %v2322
      %v2324 = vpop.f32.mrf.mxu0
      %2325 = vmatprep.mubr.bf16.mxu0 0
      %2326 = vmatmul.mubr.bf16.gmra.mxu0 %v2206
      %v2327 = vpop.f32.mrf.mxu0
      %v2328 = vadd.f32 0.0, %v2327
      %v2329 = vpop.f32.mrf.mxu0
      %v2330 = vpop.f32.mrf.mxu0
      %v2331 = vadd.f32 0.0, %v2330
      %v2332 = vpop.f32.mrf.mxu0
      %2333 = vmatprep.mubr.bf16.mxu0 0
      %2334 = vmatmul.mubr.bf16.gmra.mxu0 %v2209
      %v2335 = vpop.f32.mrf.mxu0
      %v2336 = vadd.f32 0.0, %v2335
      %v2337 = vpop.f32.mrf.mxu0
      %v2338 = vpop.f32.mrf.mxu0
      %v2339 = vadd.f32 0.0, %v2338
      %v2340 = vpop.f32.mrf.mxu0
      %2341 = vmatprep.mubr.bf16.mxu0 0
      %2342 = vmatmul.mubr.bf16.gmra.mxu0 %v2212
      %v2343 = vpop.f32.mrf.mxu0
      %v2344 = vadd.f32 0.0, %v2343
      %v2345 = vpop.f32.mrf.mxu0
      %v2346 = vpop.f32.mrf.mxu0
      %v2347 = vadd.f32 0.0, %v2346
      %v2348 = vpop.f32.mrf.mxu0
      %2349 = vmatprep.mubr.bf16.mxu0 0
      %2350 = vmatmul.mubr.bf16.gmra.mxu0 %v2215
      %v2351 = vpop.f32.mrf.mxu0
      %v2352 = vadd.f32 0.0, %v2351
      %v2353 = vpop.f32.mrf.mxu0
      %v2354 = vpop.f32.mrf.mxu0
      %v2355 = vadd.f32 0.0, %v2354
      %v2356 = vpop.f32.mrf.mxu0
      %2357 = vmatprep.mubr.bf16.mxu0 0
      %2358 = vmatmul.mubr.bf16.gmra.mxu0 %v2218
      %v2359 = vpop.f32.mrf.mxu0
      %v2360 = vadd.f32 0.0, %v2359
      %v2361 = vpop.f32.mrf.mxu0
      %v2362 = vpop.f32.mrf.mxu0
      %v2363 = vadd.f32 0.0, %v2362
      %v2364 = vpop.f32.mrf.mxu0
      %2365 = vmatprep.mubr.bf16.mxu0 0
      %2366 = vmatmul.mubr.bf16.gmra.mxu0 %v2221
      %v2367 = vpop.f32.mrf.mxu0
      %v2368 = vadd.f32 0.0, %v2367
      %v2369 = vpop.f32.mrf.mxu0
      %v2370 = vpop.f32.mrf.mxu0
      %v2371 = vadd.f32 0.0, %v2370
      %v2372 = vpop.f32.mrf.mxu0
      %2373 = vmatprep.mubr.bf16.mxu0 0
      %2374 = vmatmul.mubr.bf16.gmra.mxu0 %v2224
      %v2375 = vpop.f32.mrf.mxu0
      %v2376 = vadd.f32 0.0, %v2375
      %v2377 = vpop.f32.mrf.mxu0
      %v2378 = vpop.f32.mrf.mxu0
      %v2379 = vadd.f32 0.0, %v2378
      %v2380 = vpop.f32.mrf.mxu0
      %2381 = vmatprep.mubr.bf16.mxu0 0
      %2382 = vmatmul.mubr.bf16.gmra.mxu0 %v2227
      %v2383 = vpop.f32.mrf.mxu0
      %v2384 = vadd.f32 0.0, %v2383
      %v2385 = vpop.f32.mrf.mxu0
      %v2386 = vpop.f32.mrf.mxu0
      %v2387 = vadd.f32 0.0, %v2386
      %v2388 = vpop.f32.mrf.mxu0
      %2389 = vdwg.mxu0
      %v2390 = vadd.f32 %v2068, %v2264
      %v2391 = vadd.f32 %v2069, %v2267
      %v2392 = vadd.f32 %v2070, %v2272
      %v2393 = vadd.f32 %v2071, %v2275
      %v2394 = vadd.f32 %v2072, %v2280
      %v2395 = vadd.f32 %v2073, %v2283
      %v2396 = vadd.f32 %v2074, %v2288
      %v2397 = vadd.f32 %v2075, %v2291
      %v2398 = vadd.f32 %v2076, %v2296
      %v2399 = vadd.f32 %v2077, %v2299
      %v2400 = vadd.f32 %v2078, %v2304
      %v2401 = vadd.f32 %v2079, %v2307
      %v2402 = vadd.f32 %v2080, %v2312
      %v2403 = vadd.f32 %v2081, %v2315
      %v2404 = vadd.f32 %v2082, %v2320
      %v2405 = vadd.f32 %v2083, %v2323
      %v2406 = vadd.f32 %v2084, %v2328
      %v2407 = vadd.f32 %v2085, %v2331
      %v2408 = vadd.f32 %v2086, %v2336
      %v2409 = vadd.f32 %v2087, %v2339
      %v2410 = vadd.f32 %v2088, %v2344
      %v2411 = vadd.f32 %v2089, %v2347
      %v2412 = vadd.f32 %v2090, %v2352
      %v2413 = vadd.f32 %v2091, %v2355
      %v2414 = vadd.f32 %v2092, %v2360
      %v2415 = vadd.f32 %v2093, %v2363
      %v2416 = vadd.f32 %v2094, %v2368
      %v2417 = vadd.f32 %v2095, %v2371
      %v2418 = vadd.f32 %v2096, %v2376
      %v2419 = vadd.f32 %v2097, %v2379
      %v2420 = vadd.f32 %v2098, %v2384
      %v2421 = vadd.f32 %v2099, %v2387
      %v2422 = vld [vmem:[%s844 + $0x2] sm:$0xff]
      %v2423 = vld [vmem:[%s844 + $0xa] sm:$0xff]
      %v2424 = vld [vmem:[%s844 + $0x1a] sm:$0xff]
      %v2425 = vld [vmem:[%s844 + $0x22] sm:$0xff]
      %v2426 = vld [vmem:[%s844 + $0x32] sm:$0xff]
      %v2427 = vld [vmem:[%s844 + $0x3a] sm:$0xff]
      %v2428 = vld [vmem:[%s844 + $0x4a] sm:$0xff]
      %v2429 = vld [vmem:[%s844 + $0x52] sm:$0xff]
      %v2430 = vld [vmem:[%s844 + $0x62] sm:$0xff]
      %v2431 = vld [vmem:[%s844 + $0x6a] sm:$0xff]
      %v2432 = vld [vmem:[%s844 + $0x7a] sm:$0xff]
      %v2433 = vld [vmem:[%s844 + $0x82] sm:$0xff]
      %v2434 = vld [vmem:[%s844 + $0x92] sm:$0xff]
      %v2435 = vld [vmem:[%s844 + $0x9a] sm:$0xff]
      %v2436 = vld [vmem:[%s844 + $0xaa] sm:$0xff]
      %v2437 = vld [vmem:[%s844 + $0xb2] sm:$0xff]
      %v2438 = vld [vmem:[%s844 + $0xc2] sm:$0xff]
      %v2439 = vld [vmem:[%s844 + $0xca] sm:$0xff]
      %v2440 = vld [vmem:[%s844 + $0xda] sm:$0xff]
      %v2441 = vld [vmem:[%s844 + $0xe2] sm:$0xff]
      %v2442 = vld [vmem:[%s844 + $0xf2] sm:$0xff]
      %v2443 = vld [vmem:[%s844 + $0xfa] sm:$0xff]
      %v2444 = vld [vmem:[%s844 + $0x10a] sm:$0xff]
      %v2445 = vld [vmem:[%s844 + $0x112] sm:$0xff]
      %v2446 = vld [vmem:[%s844 + $0x122] sm:$0xff]
      %v2447 = vld [vmem:[%s844 + $0x12a] sm:$0xff]
      %v2448 = vld [vmem:[%s844 + $0x13a] sm:$0xff]
      %v2449 = vld [vmem:[%s844 + $0x142] sm:$0xff]
      %v2450 = vld [vmem:[%s844 + $0x152] sm:$0xff]
      %v2451 = vld [vmem:[%s844 + $0x15a] sm:$0xff]
      %v2452 = vld [vmem:[%s844 + $0x16a] sm:$0xff]
      %v2453 = vld [vmem:[%s844 + $0x172] sm:$0xff]
      %v2454 = vpack.c.bf16 %v2423, %v2422
      %v2455 = vpack.c.bf16 %v2425, %v2424
      %v2456 = vpack.c.bf16 %v2427, %v2426
      %v2457 = vpack.c.bf16 %v2429, %v2428
      %v2458 = vpack.c.bf16 %v2431, %v2430
      %v2459 = vpack.c.bf16 %v2433, %v2432
      %v2460 = vpack.c.bf16 %v2435, %v2434
      %v2461 = vpack.c.bf16 %v2437, %v2436
      %v2462 = vpack.c.bf16 %v2439, %v2438
      %v2463 = vpack.c.bf16 %v2441, %v2440
      %v2464 = vpack.c.bf16 %v2443, %v2442
      %v2465 = vpack.c.bf16 %v2445, %v2444
      %v2466 = vpack.c.bf16 %v2447, %v2446
      %v2467 = vpack.c.bf16 %v2449, %v2448
      %v2468 = vpack.c.bf16 %v2451, %v2450
      %v2469 = vpack.c.bf16 %v2453, %v2452
      %s2470 = scalar_lea.vmem %s3, 160
      %v2471 = vld [vmem:[%s2470] sm:$0xf]
      %v2472 = vld [vmem:[%s2470 + $0x4] sm:$0xf]
      %v2473 = vld [vmem:[%s2470 + $0x8] sm:$0xf]
      %v2474 = vld [vmem:[%s2470 + $0xc] sm:$0xf]
      %v2475 = vld [vmem:[%s2470 + $0x10] sm:$0xf]
      %v2476 = vld [vmem:[%s2470 + $0x14] sm:$0xf]
      %v2477 = vld [vmem:[%s2470 + $0x18] sm:$0xf]
      %v2478 = vld [vmem:[%s2470 + $0x1c] sm:$0xf]
      %v2487 = vunpack.c.l.b16 %v2471
      %v2488 = vunpack.c.l.b16 %v2472
      %v2489 = vunpack.c.l.b16 %v2473
      %v2490 = vunpack.c.l.b16 %v2474
      %v2491 = vunpack.c.l.b16 %v2475
      %v2492 = vunpack.c.l.b16 %v2476
      %v2493 = vunpack.c.l.b16 %v2477
      %v2494 = vunpack.c.l.b16 %v2478
      %v2495 = vpack.c.b16 %v2488, %v2487
      %v2496 = vpack.c.b16 %v2490, %v2489
      %v2497 = vpack.c.b16 %v2492, %v2491
      %v2498 = vpack.c.b16 %v2494, %v2493
      %v2504 = vsel %vm788, %v2454, 0
      %v2507 = vsel %vm788, %v2455, 0
      %v2510 = vsel %vm788, %v2456, 0
      %v2513 = vsel %vm788, %v2457, 0
      %v2516 = vsel %vm788, %v2458, 0
      %v2519 = vsel %vm788, %v2459, 0
      %v2522 = vsel %vm788, %v2460, 0
      %v2525 = vsel %vm788, %v2461, 0
      %v2528 = vsel %vm788, %v2462, 0
      %v2531 = vsel %vm788, %v2463, 0
      %v2534 = vsel %vm788, %v2464, 0
      %v2537 = vsel %vm788, %v2465, 0
      %v2540 = vsel %vm788, %v2466, 0
      %v2543 = vsel %vm788, %v2467, 0
      %v2546 = vsel %vm788, %v2468, 0
      %v2549 = vsel %vm788, %v2469, 0
      %2551 = vmatprep.subr.bf16.mxu0 0
      %2552 = vmatpush1.bf16.msra.mxu0 0
      %2553 = vmatprep.subr.bf16.mxu0 0
      %2554 = vmatpush1.bf16.msra.mxu0 0
      %2555 = vmatprep.subr.bf16.mxu0 0
      %2556 = vmatpush1.bf16.msra.mxu0 0
      %2557 = vmatprep.subr.bf16.mxu0 0
      %2558 = vmatpush1.bf16.msra.mxu0 0
      %2559 = vmatprep.subr.bf16.mxu0 0
      %2560 = vmatpush1.bf16.msra.mxu0 %v2498
      %2561 = vmatprep.subr.bf16.mxu0 0
      %2562 = vmatpush1.bf16.msra.mxu0 %v2497
      %2563 = vmatprep.subr.bf16.mxu0 0
      %2564 = vmatpush1.bf16.msra.mxu0 %v2496
      %2565 = vmatprep.subr.bf16.mxu0 0
      %2566 = vmatpush1.bf16.msra.mxu0 %v2495
      %2567 = vmatprep.subr.bf16.mxu0 0
      %2568 = vmatpush2.bf16.msra.mxu0 0
      %2569 = vmatprep.subr.bf16.mxu0 0
      %2570 = vmatpush2.bf16.msra.mxu0 0
      %2571 = vmatprep.subr.bf16.mxu0 0
      %2572 = vmatpush2.bf16.msra.mxu0 0
      %2573 = vmatprep.subr.bf16.mxu0 0
      %2574 = vmatpush2.bf16.msra.mxu0 0
      %2575 = vmatprep.subr.bf16.mxu0 0
      %2576 = vmatpush2.bf16.msra.mxu0 0
      %2577 = vmatprep.subr.bf16.mxu0 0
      %2578 = vmatpush2.bf16.msra.mxu0 0
      %2579 = vmatprep.subr.bf16.mxu0 0
      %2580 = vmatpush2.bf16.msra.mxu0 0
      %2581 = vmatprep.subr.bf16.mxu0 0
      %2582 = vmatpush2.bf16.msra.mxu0 0
      %2583 = vmatprep.mubr.bf16.mxu0 0
      %2584 = vmatmul.mubr.bf16.gmra.mxu0 %v2504
      %v2585 = vpop.f32.mrf.mxu0
      %v2586 = vadd.f32 0.0, %v2585
      %v2587 = vpop.f32.mrf.mxu0
      %v2588 = vpop.f32.mrf.mxu0
      %v2589 = vadd.f32 0.0, %v2588
      %v2590 = vpop.f32.mrf.mxu0
      %2591 = vmatprep.mubr.bf16.mxu0 0
      %2592 = vmatmul.mubr.bf16.gmra.mxu0 %v2507
      %v2593 = vpop.f32.mrf.mxu0
      %v2594 = vadd.f32 0.0, %v2593
      %v2595 = vpop.f32.mrf.mxu0
      %v2596 = vpop.f32.mrf.mxu0
      %v2597 = vadd.f32 0.0, %v2596
      %v2598 = vpop.f32.mrf.mxu0
      %2599 = vmatprep.mubr.bf16.mxu0 0
      %2600 = vmatmul.mubr.bf16.gmra.mxu0 %v2510
      %v2601 = vpop.f32.mrf.mxu0
      %v2602 = vadd.f32 0.0, %v2601
      %v2603 = vpop.f32.mrf.mxu0
      %v2604 = vpop.f32.mrf.mxu0
      %v2605 = vadd.f32 0.0, %v2604
      %v2606 = vpop.f32.mrf.mxu0
      %2607 = vmatprep.mubr.bf16.mxu0 0
      %2608 = vmatmul.mubr.bf16.gmra.mxu0 %v2513
      %v2609 = vpop.f32.mrf.mxu0
      %v2610 = vadd.f32 0.0, %v2609
      %v2611 = vpop.f32.mrf.mxu0
      %v2612 = vpop.f32.mrf.mxu0
      %v2613 = vadd.f32 0.0, %v2612
      %v2614 = vpop.f32.mrf.mxu0
      %2615 = vmatprep.mubr.bf16.mxu0 0
      %2616 = vmatmul.mubr.bf16.gmra.mxu0 %v2516
      %v2617 = vpop.f32.mrf.mxu0
      %v2618 = vadd.f32 0.0, %v2617
      %v2619 = vpop.f32.mrf.mxu0
      %v2620 = vpop.f32.mrf.mxu0
      %v2621 = vadd.f32 0.0, %v2620
      %v2622 = vpop.f32.mrf.mxu0
      %2623 = vmatprep.mubr.bf16.mxu0 0
      %2624 = vmatmul.mubr.bf16.gmra.mxu0 %v2519
      %v2625 = vpop.f32.mrf.mxu0
      %v2626 = vadd.f32 0.0, %v2625
      %v2627 = vpop.f32.mrf.mxu0
      %v2628 = vpop.f32.mrf.mxu0
      %v2629 = vadd.f32 0.0, %v2628
      %v2630 = vpop.f32.mrf.mxu0
      %2631 = vmatprep.mubr.bf16.mxu0 0
      %2632 = vmatmul.mubr.bf16.gmra.mxu0 %v2522
      %v2633 = vpop.f32.mrf.mxu0
      %v2634 = vadd.f32 0.0, %v2633
      %v2635 = vpop.f32.mrf.mxu0
      %v2636 = vpop.f32.mrf.mxu0
      %v2637 = vadd.f32 0.0, %v2636
      %v2638 = vpop.f32.mrf.mxu0
      %2639 = vmatprep.mubr.bf16.mxu0 0
      %2640 = vmatmul.mubr.bf16.gmra.mxu0 %v2525
      %v2641 = vpop.f32.mrf.mxu0
      %v2642 = vadd.f32 0.0, %v2641
      %v2643 = vpop.f32.mrf.mxu0
      %v2644 = vpop.f32.mrf.mxu0
      %v2645 = vadd.f32 0.0, %v2644
      %v2646 = vpop.f32.mrf.mxu0
      %2647 = vmatprep.mubr.bf16.mxu0 0
      %2648 = vmatmul.mubr.bf16.gmra.mxu0 %v2528
      %v2649 = vpop.f32.mrf.mxu0
      %v2650 = vadd.f32 0.0, %v2649
      %v2651 = vpop.f32.mrf.mxu0
      %v2652 = vpop.f32.mrf.mxu0
      %v2653 = vadd.f32 0.0, %v2652
      %v2654 = vpop.f32.mrf.mxu0
      %2655 = vmatprep.mubr.bf16.mxu0 0
      %2656 = vmatmul.mubr.bf16.gmra.mxu0 %v2531
      %v2657 = vpop.f32.mrf.mxu0
      %v2658 = vadd.f32 0.0, %v2657
      %v2659 = vpop.f32.mrf.mxu0
      %v2660 = vpop.f32.mrf.mxu0
      %v2661 = vadd.f32 0.0, %v2660
      %v2662 = vpop.f32.mrf.mxu0
      %2663 = vmatprep.mubr.bf16.mxu0 0
      %2664 = vmatmul.mubr.bf16.gmra.mxu0 %v2534
      %v2665 = vpop.f32.mrf.mxu0
      %v2666 = vadd.f32 0.0, %v2665
      %v2667 = vpop.f32.mrf.mxu0
      %v2668 = vpop.f32.mrf.mxu0
      %v2669 = vadd.f32 0.0, %v2668
      %v2670 = vpop.f32.mrf.mxu0
      %2671 = vmatprep.mubr.bf16.mxu0 0
      %2672 = vmatmul.mubr.bf16.gmra.mxu0 %v2537
      %v2673 = vpop.f32.mrf.mxu0
      %v2674 = vadd.f32 0.0, %v2673
      %v2675 = vpop.f32.mrf.mxu0
      %v2676 = vpop.f32.mrf.mxu0
      %v2677 = vadd.f32 0.0, %v2676
      %v2678 = vpop.f32.mrf.mxu0
      %2679 = vmatprep.mubr.bf16.mxu0 0
      %2680 = vmatmul.mubr.bf16.gmra.mxu0 %v2540
      %v2681 = vpop.f32.mrf.mxu0
      %v2682 = vadd.f32 0.0, %v2681
      %v2683 = vpop.f32.mrf.mxu0
      %v2684 = vpop.f32.mrf.mxu0
      %v2685 = vadd.f32 0.0, %v2684
      %v2686 = vpop.f32.mrf.mxu0
      %2687 = vmatprep.mubr.bf16.mxu0 0
      %2688 = vmatmul.mubr.bf16.gmra.mxu0 %v2543
      %v2689 = vpop.f32.mrf.mxu0
      %v2690 = vadd.f32 0.0, %v2689
      %v2691 = vpop.f32.mrf.mxu0
      %v2692 = vpop.f32.mrf.mxu0
      %v2693 = vadd.f32 0.0, %v2692
      %v2694 = vpop.f32.mrf.mxu0
      %2695 = vmatprep.mubr.bf16.mxu0 0
      %2696 = vmatmul.mubr.bf16.gmra.mxu0 %v2546
      %v2697 = vpop.f32.mrf.mxu0
      %v2698 = vadd.f32 0.0, %v2697
      %v2699 = vpop.f32.mrf.mxu0
      %v2700 = vpop.f32.mrf.mxu0
      %v2701 = vadd.f32 0.0, %v2700
      %v2702 = vpop.f32.mrf.mxu0
      %2703 = vmatprep.mubr.bf16.mxu0 0
      %2704 = vmatmul.mubr.bf16.gmra.mxu0 %v2549
      %v2705 = vpop.f32.mrf.mxu0
      %v2706 = vadd.f32 0.0, %v2705
      %v2707 = vpop.f32.mrf.mxu0
      %v2708 = vpop.f32.mrf.mxu0
      %v2709 = vadd.f32 0.0, %v2708
      %v2710 = vpop.f32.mrf.mxu0
      %2711 = vdwg.mxu0
      %v2712 = vadd.f32 %v2390, %v2586
      %v2713 = vadd.f32 %v2391, %v2589
      %v2714 = vadd.f32 %v2392, %v2594
      %v2715 = vadd.f32 %v2393, %v2597
      %v2716 = vadd.f32 %v2394, %v2602
      %v2717 = vadd.f32 %v2395, %v2605
      %v2718 = vadd.f32 %v2396, %v2610
      %v2719 = vadd.f32 %v2397, %v2613
      %v2720 = vadd.f32 %v2398, %v2618
      %v2721 = vadd.f32 %v2399, %v2621
      %v2722 = vadd.f32 %v2400, %v2626
      %v2723 = vadd.f32 %v2401, %v2629
      %v2724 = vadd.f32 %v2402, %v2634
      %v2725 = vadd.f32 %v2403, %v2637
      %v2726 = vadd.f32 %v2404, %v2642
      %v2727 = vadd.f32 %v2405, %v2645
      %v2728 = vadd.f32 %v2406, %v2650
      %v2729 = vadd.f32 %v2407, %v2653
      %v2730 = vadd.f32 %v2408, %v2658
      %v2731 = vadd.f32 %v2409, %v2661
      %v2732 = vadd.f32 %v2410, %v2666
      %v2733 = vadd.f32 %v2411, %v2669
      %v2734 = vadd.f32 %v2412, %v2674
      %v2735 = vadd.f32 %v2413, %v2677
      %v2736 = vadd.f32 %v2414, %v2682
      %v2737 = vadd.f32 %v2415, %v2685
      %v2738 = vadd.f32 %v2416, %v2690
      %v2739 = vadd.f32 %v2417, %v2693
      %v2740 = vadd.f32 %v2418, %v2698
      %v2741 = vadd.f32 %v2419, %v2701
      %v2742 = vadd.f32 %v2420, %v2706
      %v2743 = vadd.f32 %v2421, %v2709
      %s2744 = scalar_lea.vmem [#allocation2], 48
      %v2745 = vld [vmem:[%s2744] sm:$0xff]
      %v2746 = vld [vmem:[%s2744 + $0x8] sm:$0xff]
      %v2747 = vld [vmem:[%s2744 + $0x18] sm:$0xff]
      %v2748 = vld [vmem:[%s2744 + $0x20] sm:$0xff]
      %v2749 = vld [vmem:[%s2744 + $0x30] sm:$0xff]
      %v2750 = vld [vmem:[%s2744 + $0x38] sm:$0xff]
      %v2751 = vld [vmem:[%s2744 + $0x48] sm:$0xff]
      %v2752 = vld [vmem:[%s2744 + $0x50] sm:$0xff]
      %v2753 = vld [vmem:[%s2744 + $0x60] sm:$0xff]
      %v2754 = vld [vmem:[%s2744 + $0x68] sm:$0xff]
      %v2755 = vld [vmem:[%s2744 + $0x78] sm:$0xff]
      %v2756 = vld [vmem:[%s2744 + $0x80] sm:$0xff]
      %v2757 = vld [vmem:[%s2744 + $0x90] sm:$0xff]
      %v2758 = vld [vmem:[%s2744 + $0x98] sm:$0xff]
      %v2759 = vld [vmem:[%s2744 + $0xa8] sm:$0xff]
      %v2760 = vld [vmem:[%s2744 + $0xb0] sm:$0xff]
      %v2761 = vld [vmem:[%s2744 + $0xc0] sm:$0xff]
      %v2762 = vld [vmem:[%s2744 + $0xc8] sm:$0xff]
      %v2763 = vld [vmem:[%s2744 + $0xd8] sm:$0xff]
      %v2764 = vld [vmem:[%s2744 + $0xe0] sm:$0xff]
      %v2765 = vld [vmem:[%s2744 + $0xf0] sm:$0xff]
      %v2766 = vld [vmem:[%s2744 + $0xf8] sm:$0xff]
      %v2767 = vld [vmem:[%s2744 + $0x108] sm:$0xff]
      %v2768 = vld [vmem:[%s2744 + $0x110] sm:$0xff]
      %v2769 = vld [vmem:[%s2744 + $0x120] sm:$0xff]
      %v2770 = vld [vmem:[%s2744 + $0x128] sm:$0xff]
      %v2771 = vld [vmem:[%s2744 + $0x138] sm:$0xff]
      %v2772 = vld [vmem:[%s2744 + $0x140] sm:$0xff]
      %v2773 = vld [vmem:[%s2744 + $0x150] sm:$0xff]
      %v2774 = vld [vmem:[%s2744 + $0x158] sm:$0xff]
      %v2775 = vld [vmem:[%s2744 + $0x168] sm:$0xff]
      %v2776 = vld [vmem:[%s2744 + $0x170] sm:$0xff]
      %v2777 = vpack.c.bf16 %v2746, %v2745
      %v2778 = vpack.c.bf16 %v2748, %v2747
      %v2779 = vpack.c.bf16 %v2750, %v2749
      %v2780 = vpack.c.bf16 %v2752, %v2751
      %v2781 = vpack.c.bf16 %v2754, %v2753
      %v2782 = vpack.c.bf16 %v2756, %v2755
      %v2783 = vpack.c.bf16 %v2758, %v2757
      %v2784 = vpack.c.bf16 %v2760, %v2759
      %v2785 = vpack.c.bf16 %v2762, %v2761
      %v2786 = vpack.c.bf16 %v2764, %v2763
      %v2787 = vpack.c.bf16 %v2766, %v2765
      %v2788 = vpack.c.bf16 %v2768, %v2767
      %v2789 = vpack.c.bf16 %v2770, %v2769
      %v2790 = vpack.c.bf16 %v2772, %v2771
      %v2791 = vpack.c.bf16 %v2774, %v2773
      %v2792 = vpack.c.bf16 %v2776, %v2775
      %s2793 = scalar_lea.vmem %s3, 192
      %v2794 = vld [vmem:[%s2793] sm:$0xf]
      %v2795 = vld [vmem:[%s2793 + $0x4] sm:$0xf]
      %v2796 = vld [vmem:[%s2793 + $0x8] sm:$0xf]
      %v2797 = vld [vmem:[%s2793 + $0xc] sm:$0xf]
      %v2798 = vld [vmem:[%s2793 + $0x10] sm:$0xf]
      %v2799 = vld [vmem:[%s2793 + $0x14] sm:$0xf]
      %v2800 = vld [vmem:[%s2793 + $0x18] sm:$0xf]
      %v2801 = vld [vmem:[%s2793 + $0x1c] sm:$0xf]
      %v2810 = vunpack.c.l.b16 %v2794
      %v2811 = vunpack.c.l.b16 %v2795
      %v2812 = vunpack.c.l.b16 %v2796
      %v2813 = vunpack.c.l.b16 %v2797
      %v2814 = vunpack.c.l.b16 %v2798
      %v2815 = vunpack.c.l.b16 %v2799
      %v2816 = vunpack.c.l.b16 %v2800
      %v2817 = vunpack.c.l.b16 %v2801
      %v2818 = vpack.c.b16 %v2811, %v2810
      %v2819 = vpack.c.b16 %v2813, %v2812
      %v2820 = vpack.c.b16 %v2815, %v2814
      %v2821 = vpack.c.b16 %v2817, %v2816
      %v2827 = vsel %vm788, %v2777, 0
      %v2830 = vsel %vm788, %v2778, 0
      %v2833 = vsel %vm788, %v2779, 0
      %v2836 = vsel %vm788, %v2780, 0
      %v2839 = vsel %vm788, %v2781, 0
      %v2842 = vsel %vm788, %v2782, 0
      %v2845 = vsel %vm788, %v2783, 0
      %v2848 = vsel %vm788, %v2784, 0
      %v2851 = vsel %vm788, %v2785, 0
      %v2854 = vsel %vm788, %v2786, 0
      %v2857 = vsel %vm788, %v2787, 0
      %v2860 = vsel %vm788, %v2788, 0
      %v2863 = vsel %vm788, %v2789, 0
      %v2866 = vsel %vm788, %v2790, 0
      %v2869 = vsel %vm788, %v2791, 0
      %v2872 = vsel %vm788, %v2792, 0
      %2874 = vmatprep.subr.bf16.mxu0 0
      %2875 = vmatpush1.bf16.msra.mxu0 0
      %2876 = vmatprep.subr.bf16.mxu0 0
      %2877 = vmatpush1.bf16.msra.mxu0 0
      %2878 = vmatprep.subr.bf16.mxu0 0
      %2879 = vmatpush1.bf16.msra.mxu0 0
      %2880 = vmatprep.subr.bf16.mxu0 0
      %2881 = vmatpush1.bf16.msra.mxu0 0
      %2882 = vmatprep.subr.bf16.mxu0 0
      %2883 = vmatpush1.bf16.msra.mxu0 %v2821
      %2884 = vmatprep.subr.bf16.mxu0 0
      %2885 = vmatpush1.bf16.msra.mxu0 %v2820
      %2886 = vmatprep.subr.bf16.mxu0 0
      %2887 = vmatpush1.bf16.msra.mxu0 %v2819
      %2888 = vmatprep.subr.bf16.mxu0 0
      %2889 = vmatpush1.bf16.msra.mxu0 %v2818
      %2890 = vmatprep.subr.bf16.mxu0 0
      %2891 = vmatpush2.bf16.msra.mxu0 0
      %2892 = vmatprep.subr.bf16.mxu0 0
      %2893 = vmatpush2.bf16.msra.mxu0 0
      %2894 = vmatprep.subr.bf16.mxu0 0
      %2895 = vmatpush2.bf16.msra.mxu0 0
      %2896 = vmatprep.subr.bf16.mxu0 0
      %2897 = vmatpush2.bf16.msra.mxu0 0
      %2898 = vmatprep.subr.bf16.mxu0 0
      %2899 = vmatpush2.bf16.msra.mxu0 0
      %2900 = vmatprep.subr.bf16.mxu0 0
      %2901 = vmatpush2.bf16.msra.mxu0 0
      %2902 = vmatprep.subr.bf16.mxu0 0
      %2903 = vmatpush2.bf16.msra.mxu0 0
      %2904 = vmatprep.subr.bf16.mxu0 0
      %2905 = vmatpush2.bf16.msra.mxu0 0
      %2906 = vmatprep.mubr.bf16.mxu0 0
      %2907 = vmatmul.mubr.bf16.gmra.mxu0 %v2827
      %v2908 = vpop.f32.mrf.mxu0
      %v2909 = vadd.f32 0.0, %v2908
      %v2910 = vpop.f32.mrf.mxu0
      %v2911 = vpop.f32.mrf.mxu0
      %v2912 = vadd.f32 0.0, %v2911
      %v2913 = vpop.f32.mrf.mxu0
      %2914 = vmatprep.mubr.bf16.mxu0 0
      %2915 = vmatmul.mubr.bf16.gmra.mxu0 %v2830
      %v2916 = vpop.f32.mrf.mxu0
      %v2917 = vadd.f32 0.0, %v2916
      %v2918 = vpop.f32.mrf.mxu0
      %v2919 = vpop.f32.mrf.mxu0
      %v2920 = vadd.f32 0.0, %v2919
      %v2921 = vpop.f32.mrf.mxu0
      %2922 = vmatprep.mubr.bf16.mxu0 0
      %2923 = vmatmul.mubr.bf16.gmra.mxu0 %v2833
      %v2924 = vpop.f32.mrf.mxu0
      %v2925 = vadd.f32 0.0, %v2924
      %v2926 = vpop.f32.mrf.mxu0
      %v2927 = vpop.f32.mrf.mxu0
      %v2928 = vadd.f32 0.0, %v2927
      %v2929 = vpop.f32.mrf.mxu0
      %2930 = vmatprep.mubr.bf16.mxu0 0
      %2931 = vmatmul.mubr.bf16.gmra.mxu0 %v2836
      %v2932 = vpop.f32.mrf.mxu0
      %v2933 = vadd.f32 0.0, %v2932
      %v2934 = vpop.f32.mrf.mxu0
      %v2935 = vpop.f32.mrf.mxu0
      %v2936 = vadd.f32 0.0, %v2935
      %v2937 = vpop.f32.mrf.mxu0
      %2938 = vmatprep.mubr.bf16.mxu0 0
      %2939 = vmatmul.mubr.bf16.gmra.mxu0 %v2839
      %v2940 = vpop.f32.mrf.mxu0
      %v2941 = vadd.f32 0.0, %v2940
      %v2942 = vpop.f32.mrf.mxu0
      %v2943 = vpop.f32.mrf.mxu0
      %v2944 = vadd.f32 0.0, %v2943
      %v2945 = vpop.f32.mrf.mxu0
      %2946 = vmatprep.mubr.bf16.mxu0 0
      %2947 = vmatmul.mubr.bf16.gmra.mxu0 %v2842
      %v2948 = vpop.f32.mrf.mxu0
      %v2949 = vadd.f32 0.0, %v2948
      %v2950 = vpop.f32.mrf.mxu0
      %v2951 = vpop.f32.mrf.mxu0
      %v2952 = vadd.f32 0.0, %v2951
      %v2953 = vpop.f32.mrf.mxu0
      %2954 = vmatprep.mubr.bf16.mxu0 0
      %2955 = vmatmul.mubr.bf16.gmra.mxu0 %v2845
      %v2956 = vpop.f32.mrf.mxu0
      %v2957 = vadd.f32 0.0, %v2956
      %v2958 = vpop.f32.mrf.mxu0
      %v2959 = vpop.f32.mrf.mxu0
      %v2960 = vadd.f32 0.0, %v2959
      %v2961 = vpop.f32.mrf.mxu0
      %2962 = vmatprep.mubr.bf16.mxu0 0
      %2963 = vmatmul.mubr.bf16.gmra.mxu0 %v2848
      %v2964 = vpop.f32.mrf.mxu0
      %v2965 = vadd.f32 0.0, %v2964
      %v2966 = vpop.f32.mrf.mxu0
      %v2967 = vpop.f32.mrf.mxu0
      %v2968 = vadd.f32 0.0, %v2967
      %v2969 = vpop.f32.mrf.mxu0
      %2970 = vmatprep.mubr.bf16.mxu0 0
      %2971 = vmatmul.mubr.bf16.gmra.mxu0 %v2851
      %v2972 = vpop.f32.mrf.mxu0
      %v2973 = vadd.f32 0.0, %v2972
      %v2974 = vpop.f32.mrf.mxu0
      %v2975 = vpop.f32.mrf.mxu0
      %v2976 = vadd.f32 0.0, %v2975
      %v2977 = vpop.f32.mrf.mxu0
      %2978 = vmatprep.mubr.bf16.mxu0 0
      %2979 = vmatmul.mubr.bf16.gmra.mxu0 %v2854
      %v2980 = vpop.f32.mrf.mxu0
      %v2981 = vadd.f32 0.0, %v2980
      %v2982 = vpop.f32.mrf.mxu0
      %v2983 = vpop.f32.mrf.mxu0
      %v2984 = vadd.f32 0.0, %v2983
      %v2985 = vpop.f32.mrf.mxu0
      %2986 = vmatprep.mubr.bf16.mxu0 0
      %2987 = vmatmul.mubr.bf16.gmra.mxu0 %v2857
      %v2988 = vpop.f32.mrf.mxu0
      %v2989 = vadd.f32 0.0, %v2988
      %v2990 = vpop.f32.mrf.mxu0
      %v2991 = vpop.f32.mrf.mxu0
      %v2992 = vadd.f32 0.0, %v2991
      %v2993 = vpop.f32.mrf.mxu0
      %2994 = vmatprep.mubr.bf16.mxu0 0
      %2995 = vmatmul.mubr.bf16.gmra.mxu0 %v2860
      %v2996 = vpop.f32.mrf.mxu0
      %v2997 = vadd.f32 0.0, %v2996
      %v2998 = vpop.f32.mrf.mxu0
      %v2999 = vpop.f32.mrf.mxu0
      %v3000 = vadd.f32 0.0, %v2999
      %v3001 = vpop.f32.mrf.mxu0
      %3002 = vmatprep.mubr.bf16.mxu0 0
      %3003 = vmatmul.mubr.bf16.gmra.mxu0 %v2863
      %v3004 = vpop.f32.mrf.mxu0
      %v3005 = vadd.f32 0.0, %v3004
      %v3006 = vpop.f32.mrf.mxu0
      %v3007 = vpop.f32.mrf.mxu0
      %v3008 = vadd.f32 0.0, %v3007
      %v3009 = vpop.f32.mrf.mxu0
      %3010 = vmatprep.mubr.bf16.mxu0 0
      %3011 = vmatmul.mubr.bf16.gmra.mxu0 %v2866
      %v3012 = vpop.f32.mrf.mxu0
      %v3013 = vadd.f32 0.0, %v3012
      %v3014 = vpop.f32.mrf.mxu0
      %v3015 = vpop.f32.mrf.mxu0
      %v3016 = vadd.f32 0.0, %v3015
      %v3017 = vpop.f32.mrf.mxu0
      %3018 = vmatprep.mubr.bf16.mxu0 0
      %3019 = vmatmul.mubr.bf16.gmra.mxu0 %v2869
      %v3020 = vpop.f32.mrf.mxu0
      %v3021 = vadd.f32 0.0, %v3020
      %v3022 = vpop.f32.mrf.mxu0
      %v3023 = vpop.f32.mrf.mxu0
      %v3024 = vadd.f32 0.0, %v3023
      %v3025 = vpop.f32.mrf.mxu0
      %3026 = vmatprep.mubr.bf16.mxu0 0
      %3027 = vmatmul.mubr.bf16.gmra.mxu0 %v2872
      %v3028 = vpop.f32.mrf.mxu0
      %v3029 = vadd.f32 0.0, %v3028
      %v3030 = vpop.f32.mrf.mxu0
      %v3031 = vpop.f32.mrf.mxu0
      %v3032 = vadd.f32 0.0, %v3031
      %v3033 = vpop.f32.mrf.mxu0
      %3034 = vdwg.mxu0
      %v3035 = vadd.f32 %v2712, %v2909
      %v3036 = vadd.f32 %v2713, %v2912
      %v3037 = vadd.f32 %v2714, %v2917
      %v3038 = vadd.f32 %v2715, %v2920
      %v3039 = vadd.f32 %v2716, %v2925
      %v3040 = vadd.f32 %v2717, %v2928
      %v3041 = vadd.f32 %v2718, %v2933
      %v3042 = vadd.f32 %v2719, %v2936
      %v3043 = vadd.f32 %v2720, %v2941
      %v3044 = vadd.f32 %v2721, %v2944
      %v3045 = vadd.f32 %v2722, %v2949
      %v3046 = vadd.f32 %v2723, %v2952
      %v3047 = vadd.f32 %v2724, %v2957
      %v3048 = vadd.f32 %v2725, %v2960
      %v3049 = vadd.f32 %v2726, %v2965
      %v3050 = vadd.f32 %v2727, %v2968
      %v3051 = vadd.f32 %v2728, %v2973
      %v3052 = vadd.f32 %v2729, %v2976
      %v3053 = vadd.f32 %v2730, %v2981
      %v3054 = vadd.f32 %v2731, %v2984
      %v3055 = vadd.f32 %v2732, %v2989
      %v3056 = vadd.f32 %v2733, %v2992
      %v3057 = vadd.f32 %v2734, %v2997
      %v3058 = vadd.f32 %v2735, %v3000
      %v3059 = vadd.f32 %v2736, %v3005
      %v3060 = vadd.f32 %v2737, %v3008
      %v3061 = vadd.f32 %v2738, %v3013
      %v3062 = vadd.f32 %v2739, %v3016
      %v3063 = vadd.f32 %v2740, %v3021
      %v3064 = vadd.f32 %v2741, %v3024
      %v3065 = vadd.f32 %v2742, %v3029
      %v3066 = vadd.f32 %v2743, %v3032
      %v3067 = vld [vmem:[%s2744 + $0x1] sm:$0xff]
      %v3068 = vld [vmem:[%s2744 + $0x9] sm:$0xff]
      %v3069 = vld [vmem:[%s2744 + $0x19] sm:$0xff]
      %v3070 = vld [vmem:[%s2744 + $0x21] sm:$0xff]
      %v3071 = vld [vmem:[%s2744 + $0x31] sm:$0xff]
      %v3072 = vld [vmem:[%s2744 + $0x39] sm:$0xff]
      %v3073 = vld [vmem:[%s2744 + $0x49] sm:$0xff]
      %v3074 = vld [vmem:[%s2744 + $0x51] sm:$0xff]
      %v3075 = vld [vmem:[%s2744 + $0x61] sm:$0xff]
      %v3076 = vld [vmem:[%s2744 + $0x69] sm:$0xff]
      %v3077 = vld [vmem:[%s2744 + $0x79] sm:$0xff]
      %v3078 = vld [vmem:[%s2744 + $0x81] sm:$0xff]
      %v3079 = vld [vmem:[%s2744 + $0x91] sm:$0xff]
      %v3080 = vld [vmem:[%s2744 + $0x99] sm:$0xff]
      %v3081 = vld [vmem:[%s2744 + $0xa9] sm:$0xff]
      %v3082 = vld [vmem:[%s2744 + $0xb1] sm:$0xff]
      %v3083 = vld [vmem:[%s2744 + $0xc1] sm:$0xff]
      %v3084 = vld [vmem:[%s2744 + $0xc9] sm:$0xff]
      %v3085 = vld [vmem:[%s2744 + $0xd9] sm:$0xff]
      %v3086 = vld [vmem:[%s2744 + $0xe1] sm:$0xff]
      %v3087 = vld [vmem:[%s2744 + $0xf1] sm:$0xff]
      %v3088 = vld [vmem:[%s2744 + $0xf9] sm:$0xff]
      %v3089 = vld [vmem:[%s2744 + $0x109] sm:$0xff]
      %v3090 = vld [vmem:[%s2744 + $0x111] sm:$0xff]
      %v3091 = vld [vmem:[%s2744 + $0x121] sm:$0xff]
      %v3092 = vld [vmem:[%s2744 + $0x129] sm:$0xff]
      %v3093 = vld [vmem:[%s2744 + $0x139] sm:$0xff]
      %v3094 = vld [vmem:[%s2744 + $0x141] sm:$0xff]
      %v3095 = vld [vmem:[%s2744 + $0x151] sm:$0xff]
      %v3096 = vld [vmem:[%s2744 + $0x159] sm:$0xff]
      %v3097 = vld [vmem:[%s2744 + $0x169] sm:$0xff]
      %v3098 = vld [vmem:[%s2744 + $0x171] sm:$0xff]
      %v3099 = vpack.c.bf16 %v3068, %v3067
      %v3100 = vpack.c.bf16 %v3070, %v3069
      %v3101 = vpack.c.bf16 %v3072, %v3071
      %v3102 = vpack.c.bf16 %v3074, %v3073
      %v3103 = vpack.c.bf16 %v3076, %v3075
      %v3104 = vpack.c.bf16 %v3078, %v3077
      %v3105 = vpack.c.bf16 %v3080, %v3079
      %v3106 = vpack.c.bf16 %v3082, %v3081
      %v3107 = vpack.c.bf16 %v3084, %v3083
      %v3108 = vpack.c.bf16 %v3086, %v3085
      %v3109 = vpack.c.bf16 %v3088, %v3087
      %v3110 = vpack.c.bf16 %v3090, %v3089
      %v3111 = vpack.c.bf16 %v3092, %v3091
      %v3112 = vpack.c.bf16 %v3094, %v3093
      %v3113 = vpack.c.bf16 %v3096, %v3095
      %v3114 = vpack.c.bf16 %v3098, %v3097
      %s3115 = scalar_lea.vmem %s3, 224
      %v3116 = vld [vmem:[%s3115] sm:$0xf]
      %v3117 = vld [vmem:[%s3115 + $0x4] sm:$0xf]
      %v3118 = vld [vmem:[%s3115 + $0x8] sm:$0xf]
      %v3119 = vld [vmem:[%s3115 + $0xc] sm:$0xf]
      %v3120 = vld [vmem:[%s3115 + $0x10] sm:$0xf]
      %v3121 = vld [vmem:[%s3115 + $0x14] sm:$0xf]
      %v3122 = vld [vmem:[%s3115 + $0x18] sm:$0xf]
      %v3123 = vld [vmem:[%s3115 + $0x1c] sm:$0xf]
      %v3132 = vunpack.c.l.b16 %v3116
      %v3133 = vunpack.c.l.b16 %v3117
      %v3134 = vunpack.c.l.b16 %v3118
      %v3135 = vunpack.c.l.b16 %v3119
      %v3136 = vunpack.c.l.b16 %v3120
      %v3137 = vunpack.c.l.b16 %v3121
      %v3138 = vunpack.c.l.b16 %v3122
      %v3139 = vunpack.c.l.b16 %v3123
      %v3140 = vpack.c.b16 %v3133, %v3132
      %v3141 = vpack.c.b16 %v3135, %v3134
      %v3142 = vpack.c.b16 %v3137, %v3136
      %v3143 = vpack.c.b16 %v3139, %v3138
      %v3149 = vsel %vm788, %v3099, 0
      %v3152 = vsel %vm788, %v3100, 0
      %v3155 = vsel %vm788, %v3101, 0
      %v3158 = vsel %vm788, %v3102, 0
      %v3161 = vsel %vm788, %v3103, 0
      %v3164 = vsel %vm788, %v3104, 0
      %v3167 = vsel %vm788, %v3105, 0
      %v3170 = vsel %vm788, %v3106, 0
      %v3173 = vsel %vm788, %v3107, 0
      %v3176 = vsel %vm788, %v3108, 0
      %v3179 = vsel %vm788, %v3109, 0
      %v3182 = vsel %vm788, %v3110, 0
      %v3185 = vsel %vm788, %v3111, 0
      %v3188 = vsel %vm788, %v3112, 0
      %v3191 = vsel %vm788, %v3113, 0
      %v3194 = vsel %vm788, %v3114, 0
      %3196 = vmatprep.subr.bf16.mxu0 0
      %3197 = vmatpush1.bf16.msra.mxu0 0
      %3198 = vmatprep.subr.bf16.mxu0 0
      %3199 = vmatpush1.bf16.msra.mxu0 0
      %3200 = vmatprep.subr.bf16.mxu0 0
      %3201 = vmatpush1.bf16.msra.mxu0 0
      %3202 = vmatprep.subr.bf16.mxu0 0
      %3203 = vmatpush1.bf16.msra.mxu0 0
      %3204 = vmatprep.subr.bf16.mxu0 0
      %3205 = vmatpush1.bf16.msra.mxu0 %v3143
      %3206 = vmatprep.subr.bf16.mxu0 0
      %3207 = vmatpush1.bf16.msra.mxu0 %v3142
      %3208 = vmatprep.subr.bf16.mxu0 0
      %3209 = vmatpush1.bf16.msra.mxu0 %v3141
      %3210 = vmatprep.subr.bf16.mxu0 0
      %3211 = vmatpush1.bf16.msra.mxu0 %v3140
      %3212 = vmatprep.subr.bf16.mxu0 0
      %3213 = vmatpush2.bf16.msra.mxu0 0
      %3214 = vmatprep.subr.bf16.mxu0 0
      %3215 = vmatpush2.bf16.msra.mxu0 0
      %3216 = vmatprep.subr.bf16.mxu0 0
      %3217 = vmatpush2.bf16.msra.mxu0 0
      %3218 = vmatprep.subr.bf16.mxu0 0
      %3219 = vmatpush2.bf16.msra.mxu0 0
      %3220 = vmatprep.subr.bf16.mxu0 0
      %3221 = vmatpush2.bf16.msra.mxu0 0
      %3222 = vmatprep.subr.bf16.mxu0 0
      %3223 = vmatpush2.bf16.msra.mxu0 0
      %3224 = vmatprep.subr.bf16.mxu0 0
      %3225 = vmatpush2.bf16.msra.mxu0 0
      %3226 = vmatprep.subr.bf16.mxu0 0
      %3227 = vmatpush2.bf16.msra.mxu0 0
      %3228 = vmatprep.mubr.bf16.mxu0 0
      %3229 = vmatmul.mubr.bf16.gmra.mxu0 %v3149
      %v3230 = vpop.f32.mrf.mxu0
      %v3231 = vadd.f32 0.0, %v3230
      %v3232 = vpop.f32.mrf.mxu0
      %v3233 = vpop.f32.mrf.mxu0
      %v3234 = vadd.f32 0.0, %v3233
      %v3235 = vpop.f32.mrf.mxu0
      %3236 = vmatprep.mubr.bf16.mxu0 0
      %3237 = vmatmul.mubr.bf16.gmra.mxu0 %v3152
      %v3238 = vpop.f32.mrf.mxu0
      %v3239 = vadd.f32 0.0, %v3238
      %v3240 = vpop.f32.mrf.mxu0
      %v3241 = vpop.f32.mrf.mxu0
      %v3242 = vadd.f32 0.0, %v3241
      %v3243 = vpop.f32.mrf.mxu0
      %3244 = vmatprep.mubr.bf16.mxu0 0
      %3245 = vmatmul.mubr.bf16.gmra.mxu0 %v3155
      %v3246 = vpop.f32.mrf.mxu0
      %v3247 = vadd.f32 0.0, %v3246
      %v3248 = vpop.f32.mrf.mxu0
      %v3249 = vpop.f32.mrf.mxu0
      %v3250 = vadd.f32 0.0, %v3249
      %v3251 = vpop.f32.mrf.mxu0
      %3252 = vmatprep.mubr.bf16.mxu0 0
      %3253 = vmatmul.mubr.bf16.gmra.mxu0 %v3158
      %v3254 = vpop.f32.mrf.mxu0
      %v3255 = vadd.f32 0.0, %v3254
      %v3256 = vpop.f32.mrf.mxu0
      %v3257 = vpop.f32.mrf.mxu0
      %v3258 = vadd.f32 0.0, %v3257
      %v3259 = vpop.f32.mrf.mxu0
      %3260 = vmatprep.mubr.bf16.mxu0 0
      %3261 = vmatmul.mubr.bf16.gmra.mxu0 %v3161
      %v3262 = vpop.f32.mrf.mxu0
      %v3263 = vadd.f32 0.0, %v3262
      %v3264 = vpop.f32.mrf.mxu0
      %v3265 = vpop.f32.mrf.mxu0
      %v3266 = vadd.f32 0.0, %v3265
      %v3267 = vpop.f32.mrf.mxu0
      %3268 = vmatprep.mubr.bf16.mxu0 0
      %3269 = vmatmul.mubr.bf16.gmra.mxu0 %v3164
      %v3270 = vpop.f32.mrf.mxu0
      %v3271 = vadd.f32 0.0, %v3270
      %v3272 = vpop.f32.mrf.mxu0
      %v3273 = vpop.f32.mrf.mxu0
      %v3274 = vadd.f32 0.0, %v3273
      %v3275 = vpop.f32.mrf.mxu0
      %3276 = vmatprep.mubr.bf16.mxu0 0
      %3277 = vmatmul.mubr.bf16.gmra.mxu0 %v3167
      %v3278 = vpop.f32.mrf.mxu0
      %v3279 = vadd.f32 0.0, %v3278
      %v3280 = vpop.f32.mrf.mxu0
      %v3281 = vpop.f32.mrf.mxu0
      %v3282 = vadd.f32 0.0, %v3281
      %v3283 = vpop.f32.mrf.mxu0
      %3284 = vmatprep.mubr.bf16.mxu0 0
      %3285 = vmatmul.mubr.bf16.gmra.mxu0 %v3170
      %v3286 = vpop.f32.mrf.mxu0
      %v3287 = vadd.f32 0.0, %v3286
      %v3288 = vpop.f32.mrf.mxu0
      %v3289 = vpop.f32.mrf.mxu0
      %v3290 = vadd.f32 0.0, %v3289
      %v3291 = vpop.f32.mrf.mxu0
      %3292 = vmatprep.mubr.bf16.mxu0 0
      %3293 = vmatmul.mubr.bf16.gmra.mxu0 %v3173
      %v3294 = vpop.f32.mrf.mxu0
      %v3295 = vadd.f32 0.0, %v3294
      %v3296 = vpop.f32.mrf.mxu0
      %v3297 = vpop.f32.mrf.mxu0
      %v3298 = vadd.f32 0.0, %v3297
      %v3299 = vpop.f32.mrf.mxu0
      %3300 = vmatprep.mubr.bf16.mxu0 0
      %3301 = vmatmul.mubr.bf16.gmra.mxu0 %v3176
      %v3302 = vpop.f32.mrf.mxu0
      %v3303 = vadd.f32 0.0, %v3302
      %v3304 = vpop.f32.mrf.mxu0
      %v3305 = vpop.f32.mrf.mxu0
      %v3306 = vadd.f32 0.0, %v3305
      %v3307 = vpop.f32.mrf.mxu0
      %3308 = vmatprep.mubr.bf16.mxu0 0
      %3309 = vmatmul.mubr.bf16.gmra.mxu0 %v3179
      %v3310 = vpop.f32.mrf.mxu0
      %v3311 = vadd.f32 0.0, %v3310
      %v3312 = vpop.f32.mrf.mxu0
      %v3313 = vpop.f32.mrf.mxu0
      %v3314 = vadd.f32 0.0, %v3313
      %v3315 = vpop.f32.mrf.mxu0
      %3316 = vmatprep.mubr.bf16.mxu0 0
      %3317 = vmatmul.mubr.bf16.gmra.mxu0 %v3182
      %v3318 = vpop.f32.mrf.mxu0
      %v3319 = vadd.f32 0.0, %v3318
      %v3320 = vpop.f32.mrf.mxu0
      %v3321 = vpop.f32.mrf.mxu0
      %v3322 = vadd.f32 0.0, %v3321
      %v3323 = vpop.f32.mrf.mxu0
      %3324 = vmatprep.mubr.bf16.mxu0 0
      %3325 = vmatmul.mubr.bf16.gmra.mxu0 %v3185
      %v3326 = vpop.f32.mrf.mxu0
      %v3327 = vadd.f32 0.0, %v3326
      %v3328 = vpop.f32.mrf.mxu0
      %v3329 = vpop.f32.mrf.mxu0
      %v3330 = vadd.f32 0.0, %v3329
      %v3331 = vpop.f32.mrf.mxu0
      %3332 = vmatprep.mubr.bf16.mxu0 0
      %3333 = vmatmul.mubr.bf16.gmra.mxu0 %v3188
      %v3334 = vpop.f32.mrf.mxu0
      %v3335 = vadd.f32 0.0, %v3334
      %v3336 = vpop.f32.mrf.mxu0
      %v3337 = vpop.f32.mrf.mxu0
      %v3338 = vadd.f32 0.0, %v3337
      %v3339 = vpop.f32.mrf.mxu0
      %3340 = vmatprep.mubr.bf16.mxu0 0
      %3341 = vmatmul.mubr.bf16.gmra.mxu0 %v3191
      %v3342 = vpop.f32.mrf.mxu0
      %v3343 = vadd.f32 0.0, %v3342
      %v3344 = vpop.f32.mrf.mxu0
      %v3345 = vpop.f32.mrf.mxu0
      %v3346 = vadd.f32 0.0, %v3345
      %v3347 = vpop.f32.mrf.mxu0
      %3348 = vmatprep.mubr.bf16.mxu0 0
      %3349 = vmatmul.mubr.bf16.gmra.mxu0 %v3194
      %v3350 = vpop.f32.mrf.mxu0
      %v3351 = vadd.f32 0.0, %v3350
      %v3352 = vpop.f32.mrf.mxu0
      %v3353 = vpop.f32.mrf.mxu0
      %v3354 = vadd.f32 0.0, %v3353
      %v3355 = vpop.f32.mrf.mxu0
      %3356 = vdwg.mxu0
      %v3357 = vadd.f32 %v3035, %v3231
      %v3358 = vadd.f32 %v3036, %v3234
      %v3359 = vadd.f32 %v3037, %v3239
      %v3360 = vadd.f32 %v3038, %v3242
      %v3361 = vadd.f32 %v3039, %v3247
      %v3362 = vadd.f32 %v3040, %v3250
      %v3363 = vadd.f32 %v3041, %v3255
      %v3364 = vadd.f32 %v3042, %v3258
      %v3365 = vadd.f32 %v3043, %v3263
      %v3366 = vadd.f32 %v3044, %v3266
      %v3367 = vadd.f32 %v3045, %v3271
      %v3368 = vadd.f32 %v3046, %v3274
      %v3369 = vadd.f32 %v3047, %v3279
      %v3370 = vadd.f32 %v3048, %v3282
      %v3371 = vadd.f32 %v3049, %v3287
      %v3372 = vadd.f32 %v3050, %v3290
      %v3373 = vadd.f32 %v3051, %v3295
      %v3374 = vadd.f32 %v3052, %v3298
      %v3375 = vadd.f32 %v3053, %v3303
      %v3376 = vadd.f32 %v3054, %v3306
      %v3377 = vadd.f32 %v3055, %v3311
      %v3378 = vadd.f32 %v3056, %v3314
      %v3379 = vadd.f32 %v3057, %v3319
      %v3380 = vadd.f32 %v3058, %v3322
      %v3381 = vadd.f32 %v3059, %v3327
      %v3382 = vadd.f32 %v3060, %v3330
      %v3383 = vadd.f32 %v3061, %v3335
      %v3384 = vadd.f32 %v3062, %v3338
      %v3385 = vadd.f32 %v3063, %v3343
      %v3386 = vadd.f32 %v3064, %v3346
      %v3387 = vadd.f32 %v3065, %v3351
      %v3388 = vadd.f32 %v3066, %v3354
      %v3389 = vld [vmem:[%s2744 + $0x2] sm:$0xff]
      %v3390 = vld [vmem:[%s2744 + $0xa] sm:$0xff]
      %v3391 = vld [vmem:[%s2744 + $0x1a] sm:$0xff]
      %v3392 = vld [vmem:[%s2744 + $0x22] sm:$0xff]
      %v3393 = vld [vmem:[%s2744 + $0x32] sm:$0xff]
      %v3394 = vld [vmem:[%s2744 + $0x3a] sm:$0xff]
      %v3395 = vld [vmem:[%s2744 + $0x4a] sm:$0xff]
      %v3396 = vld [vmem:[%s2744 + $0x52] sm:$0xff]
      %v3397 = vld [vmem:[%s2744 + $0x62] sm:$0xff]
      %v3398 = vld [vmem:[%s2744 + $0x6a] sm:$0xff]
      %v3399 = vld [vmem:[%s2744 + $0x7a] sm:$0xff]
      %v3400 = vld [vmem:[%s2744 + $0x82] sm:$0xff]
      %v3401 = vld [vmem:[%s2744 + $0x92] sm:$0xff]
      %v3402 = vld [vmem:[%s2744 + $0x9a] sm:$0xff]
      %v3403 = vld [vmem:[%s2744 + $0xaa] sm:$0xff]
      %v3404 = vld [vmem:[%s2744 + $0xb2] sm:$0xff]
      %v3405 = vld [vmem:[%s2744 + $0xc2] sm:$0xff]
      %v3406 = vld [vmem:[%s2744 + $0xca] sm:$0xff]
      %v3407 = vld [vmem:[%s2744 + $0xda] sm:$0xff]
      %v3408 = vld [vmem:[%s2744 + $0xe2] sm:$0xff]
      %v3409 = vld [vmem:[%s2744 + $0xf2] sm:$0xff]
      %v3410 = vld [vmem:[%s2744 + $0xfa] sm:$0xff]
      %v3411 = vld [vmem:[%s2744 + $0x10a] sm:$0xff]
      %v3412 = vld [vmem:[%s2744 + $0x112] sm:$0xff]
      %v3413 = vld [vmem:[%s2744 + $0x122] sm:$0xff]
      %v3414 = vld [vmem:[%s2744 + $0x12a] sm:$0xff]
      %v3415 = vld [vmem:[%s2744 + $0x13a] sm:$0xff]
      %v3416 = vld [vmem:[%s2744 + $0x142] sm:$0xff]
      %v3417 = vld [vmem:[%s2744 + $0x152] sm:$0xff]
      %v3418 = vld [vmem:[%s2744 + $0x15a] sm:$0xff]
      %v3419 = vld [vmem:[%s2744 + $0x16a] sm:$0xff]
      %v3420 = vld [vmem:[%s2744 + $0x172] sm:$0xff]
      %v3421 = vpack.c.bf16 %v3390, %v3389
      %v3422 = vpack.c.bf16 %v3392, %v3391
      %v3423 = vpack.c.bf16 %v3394, %v3393
      %v3424 = vpack.c.bf16 %v3396, %v3395
      %v3425 = vpack.c.bf16 %v3398, %v3397
      %v3426 = vpack.c.bf16 %v3400, %v3399
      %v3427 = vpack.c.bf16 %v3402, %v3401
      %v3428 = vpack.c.bf16 %v3404, %v3403
      %v3429 = vpack.c.bf16 %v3406, %v3405
      %v3430 = vpack.c.bf16 %v3408, %v3407
      %v3431 = vpack.c.bf16 %v3410, %v3409
      %v3432 = vpack.c.bf16 %v3412, %v3411
      %v3433 = vpack.c.bf16 %v3414, %v3413
      %v3434 = vpack.c.bf16 %v3416, %v3415
      %v3435 = vpack.c.bf16 %v3418, %v3417
      %v3436 = vpack.c.bf16 %v3420, %v3419
      %s3437 = scalar_lea.vmem %s3, 256
      %v3438 = vld [vmem:[%s3437] sm:$0xf]
      %v3439 = vld [vmem:[%s3437 + $0x4] sm:$0xf]
      %v3440 = vld [vmem:[%s3437 + $0x8] sm:$0xf]
      %v3441 = vld [vmem:[%s3437 + $0xc] sm:$0xf]
      %v3442 = vld [vmem:[%s3437 + $0x10] sm:$0xf]
      %v3443 = vld [vmem:[%s3437 + $0x14] sm:$0xf]
      %v3444 = vld [vmem:[%s3437 + $0x18] sm:$0xf]
      %v3445 = vld [vmem:[%s3437 + $0x1c] sm:$0xf]
      %v3454 = vunpack.c.l.b16 %v3438
      %v3455 = vunpack.c.l.b16 %v3439
      %v3456 = vunpack.c.l.b16 %v3440
      %v3457 = vunpack.c.l.b16 %v3441
      %v3458 = vunpack.c.l.b16 %v3442
      %v3459 = vunpack.c.l.b16 %v3443
      %v3460 = vunpack.c.l.b16 %v3444
      %v3461 = vunpack.c.l.b16 %v3445
      %v3462 = vpack.c.b16 %v3455, %v3454
      %v3463 = vpack.c.b16 %v3457, %v3456
      %v3464 = vpack.c.b16 %v3459, %v3458
      %v3465 = vpack.c.b16 %v3461, %v3460
      %v3471 = vsel %vm788, %v3421, 0
      %v3474 = vsel %vm788, %v3422, 0
      %v3477 = vsel %vm788, %v3423, 0
      %v3480 = vsel %vm788, %v3424, 0
      %v3483 = vsel %vm788, %v3425, 0
      %v3486 = vsel %vm788, %v3426, 0
      %v3489 = vsel %vm788, %v3427, 0
      %v3492 = vsel %vm788, %v3428, 0
      %v3495 = vsel %vm788, %v3429, 0
      %v3498 = vsel %vm788, %v3430, 0
      %v3501 = vsel %vm788, %v3431, 0
      %v3504 = vsel %vm788, %v3432, 0
      %v3507 = vsel %vm788, %v3433, 0
      %v3510 = vsel %vm788, %v3434, 0
      %v3513 = vsel %vm788, %v3435, 0
      %v3516 = vsel %vm788, %v3436, 0
      %3518 = vmatprep.subr.bf16.mxu0 0
      %3519 = vmatpush1.bf16.msra.mxu0 0
      %3520 = vmatprep.subr.bf16.mxu0 0
      %3521 = vmatpush1.bf16.msra.mxu0 0
      %3522 = vmatprep.subr.bf16.mxu0 0
      %3523 = vmatpush1.bf16.msra.mxu0 0
      %3524 = vmatprep.subr.bf16.mxu0 0
      %3525 = vmatpush1.bf16.msra.mxu0 0
      %3526 = vmatprep.subr.bf16.mxu0 0
      %3527 = vmatpush1.bf16.msra.mxu0 %v3465
      %3528 = vmatprep.subr.bf16.mxu0 0
      %3529 = vmatpush1.bf16.msra.mxu0 %v3464
      %3530 = vmatprep.subr.bf16.mxu0 0
      %3531 = vmatpush1.bf16.msra.mxu0 %v3463
      %3532 = vmatprep.subr.bf16.mxu0 0
      %3533 = vmatpush1.bf16.msra.mxu0 %v3462
      %3534 = vmatprep.subr.bf16.mxu0 0
      %3535 = vmatpush2.bf16.msra.mxu0 0
      %3536 = vmatprep.subr.bf16.mxu0 0
      %3537 = vmatpush2.bf16.msra.mxu0 0
      %3538 = vmatprep.subr.bf16.mxu0 0
      %3539 = vmatpush2.bf16.msra.mxu0 0
      %3540 = vmatprep.subr.bf16.mxu0 0
      %3541 = vmatpush2.bf16.msra.mxu0 0
      %3542 = vmatprep.subr.bf16.mxu0 0
      %3543 = vmatpush2.bf16.msra.mxu0 0
      %3544 = vmatprep.subr.bf16.mxu0 0
      %3545 = vmatpush2.bf16.msra.mxu0 0
      %3546 = vmatprep.subr.bf16.mxu0 0
      %3547 = vmatpush2.bf16.msra.mxu0 0
      %3548 = vmatprep.subr.bf16.mxu0 0
      %3549 = vmatpush2.bf16.msra.mxu0 0
      %3550 = vmatprep.mubr.bf16.mxu0 0
      %3551 = vmatmul.mubr.bf16.gmra.mxu0 %v3471
      %v3552 = vpop.f32.mrf.mxu0
      %v3553 = vadd.f32 0.0, %v3552
      %v3554 = vpop.f32.mrf.mxu0
      %v3555 = vpop.f32.mrf.mxu0
      %v3556 = vadd.f32 0.0, %v3555
      %v3557 = vpop.f32.mrf.mxu0
      %3558 = vmatprep.mubr.bf16.mxu0 0
      %3559 = vmatmul.mubr.bf16.gmra.mxu0 %v3474
      %v3560 = vpop.f32.mrf.mxu0
      %v3561 = vadd.f32 0.0, %v3560
      %v3562 = vpop.f32.mrf.mxu0
      %v3563 = vpop.f32.mrf.mxu0
      %v3564 = vadd.f32 0.0, %v3563
      %v3565 = vpop.f32.mrf.mxu0
      %3566 = vmatprep.mubr.bf16.mxu0 0
      %3567 = vmatmul.mubr.bf16.gmra.mxu0 %v3477
      %v3568 = vpop.f32.mrf.mxu0
      %v3569 = vadd.f32 0.0, %v3568
      %v3570 = vpop.f32.mrf.mxu0
      %v3571 = vpop.f32.mrf.mxu0
      %v3572 = vadd.f32 0.0, %v3571
      %v3573 = vpop.f32.mrf.mxu0
      %3574 = vmatprep.mubr.bf16.mxu0 0
      %3575 = vmatmul.mubr.bf16.gmra.mxu0 %v3480
      %v3576 = vpop.f32.mrf.mxu0
      %v3577 = vadd.f32 0.0, %v3576
      %v3578 = vpop.f32.mrf.mxu0
      %v3579 = vpop.f32.mrf.mxu0
      %v3580 = vadd.f32 0.0, %v3579
      %v3581 = vpop.f32.mrf.mxu0
      %3582 = vmatprep.mubr.bf16.mxu0 0
      %3583 = vmatmul.mubr.bf16.gmra.mxu0 %v3483
      %v3584 = vpop.f32.mrf.mxu0
      %v3585 = vadd.f32 0.0, %v3584
      %v3586 = vpop.f32.mrf.mxu0
      %v3587 = vpop.f32.mrf.mxu0
      %v3588 = vadd.f32 0.0, %v3587
      %v3589 = vpop.f32.mrf.mxu0
      %3590 = vmatprep.mubr.bf16.mxu0 0
      %3591 = vmatmul.mubr.bf16.gmra.mxu0 %v3486
      %v3592 = vpop.f32.mrf.mxu0
      %v3593 = vadd.f32 0.0, %v3592
      %v3594 = vpop.f32.mrf.mxu0
      %v3595 = vpop.f32.mrf.mxu0
      %v3596 = vadd.f32 0.0, %v3595
      %v3597 = vpop.f32.mrf.mxu0
      %3598 = vmatprep.mubr.bf16.mxu0 0
      %3599 = vmatmul.mubr.bf16.gmra.mxu0 %v3489
      %v3600 = vpop.f32.mrf.mxu0
      %v3601 = vadd.f32 0.0, %v3600
      %v3602 = vpop.f32.mrf.mxu0
      %v3603 = vpop.f32.mrf.mxu0
      %v3604 = vadd.f32 0.0, %v3603
      %v3605 = vpop.f32.mrf.mxu0
      %3606 = vmatprep.mubr.bf16.mxu0 0
      %3607 = vmatmul.mubr.bf16.gmra.mxu0 %v3492
      %v3608 = vpop.f32.mrf.mxu0
      %v3609 = vadd.f32 0.0, %v3608
      %v3610 = vpop.f32.mrf.mxu0
      %v3611 = vpop.f32.mrf.mxu0
      %v3612 = vadd.f32 0.0, %v3611
      %v3613 = vpop.f32.mrf.mxu0
      %3614 = vmatprep.mubr.bf16.mxu0 0
      %3615 = vmatmul.mubr.bf16.gmra.mxu0 %v3495
      %v3616 = vpop.f32.mrf.mxu0
      %v3617 = vadd.f32 0.0, %v3616
      %v3618 = vpop.f32.mrf.mxu0
      %v3619 = vpop.f32.mrf.mxu0
      %v3620 = vadd.f32 0.0, %v3619
      %v3621 = vpop.f32.mrf.mxu0
      %3622 = vmatprep.mubr.bf16.mxu0 0
      %3623 = vmatmul.mubr.bf16.gmra.mxu0 %v3498
      %v3624 = vpop.f32.mrf.mxu0
      %v3625 = vadd.f32 0.0, %v3624
      %v3626 = vpop.f32.mrf.mxu0
      %v3627 = vpop.f32.mrf.mxu0
      %v3628 = vadd.f32 0.0, %v3627
      %v3629 = vpop.f32.mrf.mxu0
      %3630 = vmatprep.mubr.bf16.mxu0 0
      %3631 = vmatmul.mubr.bf16.gmra.mxu0 %v3501
      %v3632 = vpop.f32.mrf.mxu0
      %v3633 = vadd.f32 0.0, %v3632
      %v3634 = vpop.f32.mrf.mxu0
      %v3635 = vpop.f32.mrf.mxu0
      %v3636 = vadd.f32 0.0, %v3635
      %v3637 = vpop.f32.mrf.mxu0
      %3638 = vmatprep.mubr.bf16.mxu0 0
      %3639 = vmatmul.mubr.bf16.gmra.mxu0 %v3504
      %v3640 = vpop.f32.mrf.mxu0
      %v3641 = vadd.f32 0.0, %v3640
      %v3642 = vpop.f32.mrf.mxu0
      %v3643 = vpop.f32.mrf.mxu0
      %v3644 = vadd.f32 0.0, %v3643
      %v3645 = vpop.f32.mrf.mxu0
      %3646 = vmatprep.mubr.bf16.mxu0 0
      %3647 = vmatmul.mubr.bf16.gmra.mxu0 %v3507
      %v3648 = vpop.f32.mrf.mxu0
      %v3649 = vadd.f32 0.0, %v3648
      %v3650 = vpop.f32.mrf.mxu0
      %v3651 = vpop.f32.mrf.mxu0
      %v3652 = vadd.f32 0.0, %v3651
      %v3653 = vpop.f32.mrf.mxu0
      %3654 = vmatprep.mubr.bf16.mxu0 0
      %3655 = vmatmul.mubr.bf16.gmra.mxu0 %v3510
      %v3656 = vpop.f32.mrf.mxu0
      %v3657 = vadd.f32 0.0, %v3656
      %v3658 = vpop.f32.mrf.mxu0
      %v3659 = vpop.f32.mrf.mxu0
      %v3660 = vadd.f32 0.0, %v3659
      %v3661 = vpop.f32.mrf.mxu0
      %3662 = vmatprep.mubr.bf16.mxu0 0
      %3663 = vmatmul.mubr.bf16.gmra.mxu0 %v3513
      %v3664 = vpop.f32.mrf.mxu0
      %v3665 = vadd.f32 0.0, %v3664
      %v3666 = vpop.f32.mrf.mxu0
      %v3667 = vpop.f32.mrf.mxu0
      %v3668 = vadd.f32 0.0, %v3667
      %v3669 = vpop.f32.mrf.mxu0
      %3670 = vmatprep.mubr.bf16.mxu0 0
      %3671 = vmatmul.mubr.bf16.gmra.mxu0 %v3516
      %v3672 = vpop.f32.mrf.mxu0
      %v3673 = vadd.f32 0.0, %v3672
      %v3674 = vpop.f32.mrf.mxu0
      %v3675 = vpop.f32.mrf.mxu0
      %v3676 = vadd.f32 0.0, %v3675
      %v3677 = vpop.f32.mrf.mxu0
      %3678 = vdwg.mxu0
      %v3679 = vadd.f32 %v3357, %v3553
      %v3680 = vadd.f32 %v3358, %v3556
      %v3681 = vadd.f32 %v3359, %v3561
      %v3682 = vadd.f32 %v3360, %v3564
      %v3683 = vadd.f32 %v3361, %v3569
      %v3684 = vadd.f32 %v3362, %v3572
      %v3685 = vadd.f32 %v3363, %v3577
      %v3686 = vadd.f32 %v3364, %v3580
      %v3687 = vadd.f32 %v3365, %v3585
      %v3688 = vadd.f32 %v3366, %v3588
      %v3689 = vadd.f32 %v3367, %v3593
      %v3690 = vadd.f32 %v3368, %v3596
      %v3691 = vadd.f32 %v3369, %v3601
      %v3692 = vadd.f32 %v3370, %v3604
      %v3693 = vadd.f32 %v3371, %v3609
      %v3694 = vadd.f32 %v3372, %v3612
      %v3695 = vadd.f32 %v3373, %v3617
      %v3696 = vadd.f32 %v3374, %v3620
      %v3697 = vadd.f32 %v3375, %v3625
      %v3698 = vadd.f32 %v3376, %v3628
      %v3699 = vadd.f32 %v3377, %v3633
      %v3700 = vadd.f32 %v3378, %v3636
      %v3701 = vadd.f32 %v3379, %v3641
      %v3702 = vadd.f32 %v3380, %v3644
      %v3703 = vadd.f32 %v3381, %v3649
      %v3704 = vadd.f32 %v3382, %v3652
      %v3705 = vadd.f32 %v3383, %v3657
      %v3706 = vadd.f32 %v3384, %v3660
      %v3707 = vadd.f32 %v3385, %v3665
      %v3708 = vadd.f32 %v3386, %v3668
      %v3709 = vadd.f32 %v3387, %v3673
      %v3710 = vadd.f32 %v3388, %v3676
      %v3711 = vld [vmem:[%s4] sm:$0x1]
      %v3713 = vlaneseq
      %v3714 = vshrl.u32 %v3713, 7
      %v3715 = vsub.s32 0, %v3714
      %v3716 = vrot.slane %v3711, %v3715
      %v3718 = vadd.f32 %v3679, %v3716
      %v3719 = vadd.f32 %v3680, %v3716
      %v3720 = vadd.f32 %v3681, %v3716
      %v3721 = vadd.f32 %v3682, %v3716
      %v3722 = vadd.f32 %v3683, %v3716
      %v3723 = vadd.f32 %v3684, %v3716
      %v3724 = vadd.f32 %v3685, %v3716
      %v3725 = vadd.f32 %v3686, %v3716
      %v3726 = vadd.f32 %v3687, %v3716
      %v3727 = vadd.f32 %v3688, %v3716
      %v3728 = vadd.f32 %v3689, %v3716
      %v3729 = vadd.f32 %v3690, %v3716
      %v3730 = vadd.f32 %v3691, %v3716
      %v3731 = vadd.f32 %v3692, %v3716
      %v3732 = vadd.f32 %v3693, %v3716
      %v3733 = vadd.f32 %v3694, %v3716
      %v3734 = vadd.f32 %v3695, %v3716
      %v3735 = vadd.f32 %v3696, %v3716
      %v3736 = vadd.f32 %v3697, %v3716
      %v3737 = vadd.f32 %v3698, %v3716
      %v3738 = vadd.f32 %v3699, %v3716
      %v3739 = vadd.f32 %v3700, %v3716
      %v3740 = vadd.f32 %v3701, %v3716
      %v3741 = vadd.f32 %v3702, %v3716
      %v3742 = vadd.f32 %v3703, %v3716
      %v3743 = vadd.f32 %v3704, %v3716
      %v3744 = vadd.f32 %v3705, %v3716
      %v3745 = vadd.f32 %v3706, %v3716
      %v3746 = vadd.f32 %v3707, %v3716
      %v3747 = vadd.f32 %v3708, %v3716
      %v3748 = vadd.f32 %v3709, %v3716
      %v3749 = vadd.f32 %v3710, %v3716
      %v3750 = vmax.f32 %v3718, 0.0
      %v3751 = vmax.f32 %v3719, 0.0
      %v3752 = vmax.f32 %v3720, 0.0
      %v3753 = vmax.f32 %v3721, 0.0
      %v3754 = vmax.f32 %v3722, 0.0
      %v3755 = vmax.f32 %v3723, 0.0
      %v3756 = vmax.f32 %v3724, 0.0
      %v3757 = vmax.f32 %v3725, 0.0
      %v3758 = vmax.f32 %v3726, 0.0
      %v3759 = vmax.f32 %v3727, 0.0
      %v3760 = vmax.f32 %v3728, 0.0
      %v3761 = vmax.f32 %v3729, 0.0
      %v3762 = vmax.f32 %v3730, 0.0
      %v3763 = vmax.f32 %v3731, 0.0
      %v3764 = vmax.f32 %v3732, 0.0
      %v3765 = vmax.f32 %v3733, 0.0
      %v3766 = vmax.f32 %v3734, 0.0
      %v3767 = vmax.f32 %v3735, 0.0
      %v3768 = vmax.f32 %v3736, 0.0
      %v3769 = vmax.f32 %v3737, 0.0
      %v3770 = vmax.f32 %v3738, 0.0
      %v3771 = vmax.f32 %v3739, 0.0
      %v3772 = vmax.f32 %v3740, 0.0
      %v3773 = vmax.f32 %v3741, 0.0
      %v3774 = vmax.f32 %v3742, 0.0
      %v3775 = vmax.f32 %v3743, 0.0
      %v3776 = vmax.f32 %v3744, 0.0
      %v3777 = vmax.f32 %v3745, 0.0
      %v3778 = vmax.f32 %v3746, 0.0
      %v3779 = vmax.f32 %v3747, 0.0
      %v3780 = vmax.f32 %v3748, 0.0
      %v3781 = vmax.f32 %v3749, 0.0
      %3782 = vst.msk [vmem:[%s844 + $0x1] sm:$0xff] %vm788, %v3750
      %3783 = vst.msk [vmem:[%s844 + $0x9] sm:$0xff] %vm788, %v3751
      %3784 = vst.msk [vmem:[%s844 + $0x19] sm:$0xff] %vm788, %v3752
      %3785 = vst.msk [vmem:[%s844 + $0x21] sm:$0xff] %vm788, %v3753
      %3786 = vst.msk [vmem:[%s844 + $0x31] sm:$0xff] %vm788, %v3754
      %3787 = vst.msk [vmem:[%s844 + $0x39] sm:$0xff] %vm788, %v3755
      %3788 = vst.msk [vmem:[%s844 + $0x49] sm:$0xff] %vm788, %v3756
      %3789 = vst.msk [vmem:[%s844 + $0x51] sm:$0xff] %vm788, %v3757
      %3790 = vst.msk [vmem:[%s844 + $0x61] sm:$0xff] %vm788, %v3758
      %3791 = vst.msk [vmem:[%s844 + $0x69] sm:$0xff] %vm788, %v3759
      %3792 = vst.msk [vmem:[%s844 + $0x79] sm:$0xff] %vm788, %v3760
      %3793 = vst.msk [vmem:[%s844 + $0x81] sm:$0xff] %vm788, %v3761
      %3794 = vst.msk [vmem:[%s844 + $0x91] sm:$0xff] %vm788, %v3762
      %3795 = vst.msk [vmem:[%s844 + $0x99] sm:$0xff] %vm788, %v3763
      %3796 = vst.msk [vmem:[%s844 + $0xa9] sm:$0xff] %vm788, %v3764
      %3797 = vst.msk [vmem:[%s844 + $0xb1] sm:$0xff] %vm788, %v3765
      %3798 = vst.msk [vmem:[%s844 + $0xc1] sm:$0xff] %vm788, %v3766
      %3799 = vst.msk [vmem:[%s844 + $0xc9] sm:$0xff] %vm788, %v3767
      %3800 = vst.msk [vmem:[%s844 + $0xd9] sm:$0xff] %vm788, %v3768
      %3801 = vst.msk [vmem:[%s844 + $0xe1] sm:$0xff] %vm788, %v3769
      %3802 = vst.msk [vmem:[%s844 + $0xf1] sm:$0xff] %vm788, %v3770
      %3803 = vst.msk [vmem:[%s844 + $0xf9] sm:$0xff] %vm788, %v3771
      %3804 = vst.msk [vmem:[%s844 + $0x109] sm:$0xff] %vm788, %v3772
      %3805 = vst.msk [vmem:[%s844 + $0x111] sm:$0xff] %vm788, %v3773
      %3806 = vst.msk [vmem:[%s844 + $0x121] sm:$0xff] %vm788, %v3774
      %3807 = vst.msk [vmem:[%s844 + $0x129] sm:$0xff] %vm788, %v3775
      %3808 = vst.msk [vmem:[%s844 + $0x139] sm:$0xff] %vm788, %v3776
      %3809 = vst.msk [vmem:[%s844 + $0x141] sm:$0xff] %vm788, %v3777
      %3810 = vst.msk [vmem:[%s844 + $0x151] sm:$0xff] %vm788, %v3778
      %3811 = vst.msk [vmem:[%s844 + $0x159] sm:$0xff] %vm788, %v3779
      %3812 = vst.msk [vmem:[%s844 + $0x169] sm:$0xff] %vm788, %v3780
      %3813 = vst.msk [vmem:[%s844 + $0x171] sm:$0xff] %vm788, %v3781
      %v3814 = vld [vmem:[#allocation2] sm:$0xff]
      %v3815 = vld [vmem:[#allocation2 + $0x8] sm:$0xff]
      %v3816 = vld [vmem:[#allocation2 + $0x18] sm:$0xff]
      %v3817 = vld [vmem:[#allocation2 + $0x20] sm:$0xff]
      %v3818 = vld [vmem:[#allocation2 + $0x30] sm:$0xff]
      %v3819 = vld [vmem:[#allocation2 + $0x38] sm:$0xff]
      %v3820 = vld [vmem:[#allocation2 + $0x48] sm:$0xff]
      %v3821 = vld [vmem:[#allocation2 + $0x50] sm:$0xff]
      %v3822 = vld [vmem:[#allocation2 + $0x60] sm:$0xff]
      %v3823 = vld [vmem:[#allocation2 + $0x68] sm:$0xff]
      %v3824 = vld [vmem:[#allocation2 + $0x78] sm:$0xff]
      %v3825 = vld [vmem:[#allocation2 + $0x80] sm:$0xff]
      %v3826 = vld [vmem:[#allocation2 + $0x90] sm:$0xff]
      %v3827 = vld [vmem:[#allocation2 + $0x98] sm:$0xff]
      %v3828 = vld [vmem:[#allocation2 + $0xa8] sm:$0xff]
      %v3829 = vld [vmem:[#allocation2 + $0xb0] sm:$0xff]
      %v3830 = vld [vmem:[#allocation2 + $0xc0] sm:$0xff]
      %v3831 = vld [vmem:[#allocation2 + $0xc8] sm:$0xff]
      %v3832 = vld [vmem:[#allocation2 + $0xd8] sm:$0xff]
      %v3833 = vld [vmem:[#allocation2 + $0xe0] sm:$0xff]
      %v3834 = vld [vmem:[#allocation2 + $0xf0] sm:$0xff]
      %v3835 = vld [vmem:[#allocation2 + $0xf8] sm:$0xff]
      %v3836 = vld [vmem:[#allocation2 + $0x108] sm:$0xff]
      %v3837 = vld [vmem:[#allocation2 + $0x110] sm:$0xff]
      %v3838 = vld [vmem:[#allocation2 + $0x120] sm:$0xff]
      %v3839 = vld [vmem:[#allocation2 + $0x128] sm:$0xff]
      %v3840 = vld [vmem:[#allocation2 + $0x138] sm:$0xff]
      %v3841 = vld [vmem:[#allocation2 + $0x140] sm:$0xff]
      %v3842 = vld [vmem:[#allocation2 + $0x150] sm:$0xff]
      %v3843 = vld [vmem:[#allocation2 + $0x158] sm:$0xff]
      %v3844 = vld [vmem:[#allocation2 + $0x168] sm:$0xff]
      %v3845 = vld [vmem:[#allocation2 + $0x170] sm:$0xff]
      %v3846 = vpack.c.bf16 %v3815, %v3814
      %v3847 = vpack.c.bf16 %v3817, %v3816
      %v3848 = vpack.c.bf16 %v3819, %v3818
      %v3849 = vpack.c.bf16 %v3821, %v3820
      %v3850 = vpack.c.bf16 %v3823, %v3822
      %v3851 = vpack.c.bf16 %v3825, %v3824
      %v3852 = vpack.c.bf16 %v3827, %v3826
      %v3853 = vpack.c.bf16 %v3829, %v3828
      %v3854 = vpack.c.bf16 %v3831, %v3830
      %v3855 = vpack.c.bf16 %v3833, %v3832
      %v3856 = vpack.c.bf16 %v3835, %v3834
      %v3857 = vpack.c.bf16 %v3837, %v3836
      %v3858 = vpack.c.bf16 %v3839, %v3838
      %v3859 = vpack.c.bf16 %v3841, %v3840
      %v3860 = vpack.c.bf16 %v3843, %v3842
      %v3861 = vpack.c.bf16 %v3845, %v3844
      %v3862 = vld [vmem:[%s5] sm:$0xf]
      %v3863 = vld [vmem:[%s5 + $0x4] sm:$0xf]
      %v3864 = vld [vmem:[%s5 + $0x8] sm:$0xf]
      %v3865 = vld [vmem:[%s5 + $0xc] sm:$0xf]
      %v3866 = vld [vmem:[%s5 + $0x10] sm:$0xf]
      %v3867 = vld [vmem:[%s5 + $0x14] sm:$0xf]
      %v3868 = vld [vmem:[%s5 + $0x18] sm:$0xf]
      %v3869 = vld [vmem:[%s5 + $0x1c] sm:$0xf]
      %v3870 = vld [vmem:[#allocation2 + $0x1] sm:$0xff]
      %v3871 = vld [vmem:[#allocation2 + $0x9] sm:$0xff]
      %v3872 = vld [vmem:[#allocation2 + $0x19] sm:$0xff]
      %v3873 = vld [vmem:[#allocation2 + $0x21] sm:$0xff]
      %v3874 = vld [vmem:[#allocation2 + $0x31] sm:$0xff]
      %v3875 = vld [vmem:[#allocation2 + $0x39] sm:$0xff]
      %v3876 = vld [vmem:[#allocation2 + $0x49] sm:$0xff]
      %v3877 = vld [vmem:[#allocation2 + $0x51] sm:$0xff]
      %v3878 = vld [vmem:[#allocation2 + $0x61] sm:$0xff]
      %v3879 = vld [vmem:[#allocation2 + $0x69] sm:$0xff]
      %v3880 = vld [vmem:[#allocation2 + $0x79] sm:$0xff]
      %v3881 = vld [vmem:[#allocation2 + $0x81] sm:$0xff]
      %v3882 = vld [vmem:[#allocation2 + $0x91] sm:$0xff]
      %v3883 = vld [vmem:[#allocation2 + $0x99] sm:$0xff]
      %v3884 = vld [vmem:[#allocation2 + $0xa9] sm:$0xff]
      %v3885 = vld [vmem:[#allocation2 + $0xb1] sm:$0xff]
      %v3886 = vld [vmem:[#allocation2 + $0xc1] sm:$0xff]
      %v3887 = vld [vmem:[#allocation2 + $0xc9] sm:$0xff]
      %v3888 = vld [vmem:[#allocation2 + $0xd9] sm:$0xff]
      %v3889 = vld [vmem:[#allocation2 + $0xe1] sm:$0xff]
      %v3890 = vld [vmem:[#allocation2 + $0xf1] sm:$0xff]
      %v3891 = vld [vmem:[#allocation2 + $0xf9] sm:$0xff]
      %v3892 = vld [vmem:[#allocation2 + $0x109] sm:$0xff]
      %v3893 = vld [vmem:[#allocation2 + $0x111] sm:$0xff]
      %v3894 = vld [vmem:[#allocation2 + $0x121] sm:$0xff]
      %v3895 = vld [vmem:[#allocation2 + $0x129] sm:$0xff]
      %v3896 = vld [vmem:[#allocation2 + $0x139] sm:$0xff]
      %v3897 = vld [vmem:[#allocation2 + $0x141] sm:$0xff]
      %v3898 = vld [vmem:[#allocation2 + $0x151] sm:$0xff]
      %v3899 = vld [vmem:[#allocation2 + $0x159] sm:$0xff]
      %v3900 = vld [vmem:[#allocation2 + $0x169] sm:$0xff]
      %v3901 = vld [vmem:[#allocation2 + $0x171] sm:$0xff]
      %v3902 = vpack.c.bf16 %v3871, %v3870
      %v3903 = vpack.c.bf16 %v3873, %v3872
      %v3904 = vpack.c.bf16 %v3875, %v3874
      %v3905 = vpack.c.bf16 %v3877, %v3876
      %v3906 = vpack.c.bf16 %v3879, %v3878
      %v3907 = vpack.c.bf16 %v3881, %v3880
      %v3908 = vpack.c.bf16 %v3883, %v3882
      %v3909 = vpack.c.bf16 %v3885, %v3884
      %v3910 = vpack.c.bf16 %v3887, %v3886
      %v3911 = vpack.c.bf16 %v3889, %v3888
      %v3912 = vpack.c.bf16 %v3891, %v3890
      %v3913 = vpack.c.bf16 %v3893, %v3892
      %v3914 = vpack.c.bf16 %v3895, %v3894
      %v3915 = vpack.c.bf16 %v3897, %v3896
      %v3916 = vpack.c.bf16 %v3899, %v3898
      %v3917 = vpack.c.bf16 %v3901, %v3900
      %s3918 = scalar_lea.vmem %s5, 32
      %v3919 = vld [vmem:[%s3918] sm:$0xf]
      %v3920 = vld [vmem:[%s3918 + $0x4] sm:$0xf]
      %v3921 = vld [vmem:[%s3918 + $0x8] sm:$0xf]
      %v3922 = vld [vmem:[%s3918 + $0xc] sm:$0xf]
      %v3923 = vld [vmem:[%s3918 + $0x10] sm:$0xf]
      %v3924 = vld [vmem:[%s3918 + $0x14] sm:$0xf]
      %v3925 = vld [vmem:[%s3918 + $0x18] sm:$0xf]
      %v3926 = vld [vmem:[%s3918 + $0x1c] sm:$0xf]
      %v3935 = vunpack.c.l.b16 %v3919
      %v3936 = vunpack.c.l.b16 %v3920
      %v3937 = vunpack.c.l.b16 %v3921
      %v3938 = vunpack.c.l.b16 %v3922
      %v3939 = vunpack.c.l.b16 %v3923
      %v3940 = vunpack.c.l.b16 %v3924
      %v3941 = vunpack.c.l.b16 %v3925
      %v3942 = vunpack.c.l.b16 %v3926
      %v3943 = vpack.c.b16 %v3936, %v3935
      %v3944 = vpack.c.b16 %v3938, %v3937
      %v3945 = vpack.c.b16 %v3940, %v3939
      %v3946 = vpack.c.b16 %v3942, %v3941
      %v3952 = vsel %vm788, %v3902, 0
      %v3955 = vsel %vm788, %v3903, 0
      %v3958 = vsel %vm788, %v3904, 0
      %v3961 = vsel %vm788, %v3905, 0
      %v3964 = vsel %vm788, %v3906, 0
      %v3967 = vsel %vm788, %v3907, 0
      %v3970 = vsel %vm788, %v3908, 0
      %v3973 = vsel %vm788, %v3909, 0
      %v3976 = vsel %vm788, %v3910, 0
      %v3979 = vsel %vm788, %v3911, 0
      %v3982 = vsel %vm788, %v3912, 0
      %v3985 = vsel %vm788, %v3913, 0
      %v3988 = vsel %vm788, %v3914, 0
      %v3991 = vsel %vm788, %v3915, 0
      %v3994 = vsel %vm788, %v3916, 0
      %v3997 = vsel %vm788, %v3917, 0
      %3999 = vmatprep.subr.bf16.mxu0 0
      %4000 = vmatpush1.bf16.msra.mxu0 0
      %4001 = vmatprep.subr.bf16.mxu0 0
      %4002 = vmatpush1.bf16.msra.mxu0 0
      %4003 = vmatprep.subr.bf16.mxu0 0
      %4004 = vmatpush1.bf16.msra.mxu0 0
      %4005 = vmatprep.subr.bf16.mxu0 0
      %4006 = vmatpush1.bf16.msra.mxu0 0
      %4007 = vmatprep.subr.bf16.mxu0 0
      %4008 = vmatpush1.bf16.msra.mxu0 %v3946
      %4009 = vmatprep.subr.bf16.mxu0 0
      %4010 = vmatpush1.bf16.msra.mxu0 %v3945
      %4011 = vmatprep.subr.bf16.mxu0 0
      %4012 = vmatpush1.bf16.msra.mxu0 %v3944
      %4013 = vmatprep.subr.bf16.mxu0 0
      %4014 = vmatpush1.bf16.msra.mxu0 %v3943
      %4015 = vmatprep.subr.bf16.mxu0 0
      %4016 = vmatpush2.bf16.msra.mxu0 0
      %4017 = vmatprep.subr.bf16.mxu0 0
      %4018 = vmatpush2.bf16.msra.mxu0 0
      %4019 = vmatprep.subr.bf16.mxu0 0
      %4020 = vmatpush2.bf16.msra.mxu0 0
      %4021 = vmatprep.subr.bf16.mxu0 0
      %4022 = vmatpush2.bf16.msra.mxu0 0
      %4023 = vmatprep.subr.bf16.mxu0 0
      %4024 = vmatpush2.bf16.msra.mxu0 0
      %4025 = vmatprep.subr.bf16.mxu0 0
      %4026 = vmatpush2.bf16.msra.mxu0 0
      %4027 = vmatprep.subr.bf16.mxu0 0
      %4028 = vmatpush2.bf16.msra.mxu0 0
      %4029 = vmatprep.subr.bf16.mxu0 0
      %4030 = vmatpush2.bf16.msra.mxu0 0
      %4031 = vmatprep.mubr.bf16.mxu0 0
      %4032 = vmatmul.mubr.bf16.gmra.mxu0 %v3952
      %v4033 = vpop.f32.mrf.mxu0
      %v4034 = vadd.f32 0.0, %v4033
      %v4035 = vpop.f32.mrf.mxu0
      %v4036 = vpop.f32.mrf.mxu0
      %v4037 = vadd.f32 0.0, %v4036
      %v4038 = vpop.f32.mrf.mxu0
      %4039 = vmatprep.mubr.bf16.mxu0 0
      %4040 = vmatmul.mubr.bf16.gmra.mxu0 %v3955
      %v4041 = vpop.f32.mrf.mxu0
      %v4042 = vadd.f32 0.0, %v4041
      %v4043 = vpop.f32.mrf.mxu0
      %v4044 = vpop.f32.mrf.mxu0
      %v4045 = vadd.f32 0.0, %v4044
      %v4046 = vpop.f32.mrf.mxu0
      %4047 = vmatprep.mubr.bf16.mxu0 0
      %4048 = vmatmul.mubr.bf16.gmra.mxu0 %v3958
      %v4049 = vpop.f32.mrf.mxu0
      %v4050 = vadd.f32 0.0, %v4049
      %v4051 = vpop.f32.mrf.mxu0
      %v4052 = vpop.f32.mrf.mxu0
      %v4053 = vadd.f32 0.0, %v4052
      %v4054 = vpop.f32.mrf.mxu0
      %4055 = vmatprep.mubr.bf16.mxu0 0
      %4056 = vmatmul.mubr.bf16.gmra.mxu0 %v3961
      %v4057 = vpop.f32.mrf.mxu0
      %v4058 = vadd.f32 0.0, %v4057
      %v4059 = vpop.f32.mrf.mxu0
      %v4060 = vpop.f32.mrf.mxu0
      %v4061 = vadd.f32 0.0, %v4060
      %v4062 = vpop.f32.mrf.mxu0
      %4063 = vmatprep.mubr.bf16.mxu0 0
      %4064 = vmatmul.mubr.bf16.gmra.mxu0 %v3964
      %v4065 = vpop.f32.mrf.mxu0
      %v4066 = vadd.f32 0.0, %v4065
      %v4067 = vpop.f32.mrf.mxu0
      %v4068 = vpop.f32.mrf.mxu0
      %v4069 = vadd.f32 0.0, %v4068
      %v4070 = vpop.f32.mrf.mxu0
      %4071 = vmatprep.mubr.bf16.mxu0 0
      %4072 = vmatmul.mubr.bf16.gmra.mxu0 %v3967
      %v4073 = vpop.f32.mrf.mxu0
      %v4074 = vadd.f32 0.0, %v4073
      %v4075 = vpop.f32.mrf.mxu0
      %v4076 = vpop.f32.mrf.mxu0
      %v4077 = vadd.f32 0.0, %v4076
      %v4078 = vpop.f32.mrf.mxu0
      %4079 = vmatprep.mubr.bf16.mxu0 0
      %4080 = vmatmul.mubr.bf16.gmra.mxu0 %v3970
      %v4081 = vpop.f32.mrf.mxu0
      %v4082 = vadd.f32 0.0, %v4081
      %v4083 = vpop.f32.mrf.mxu0
      %v4084 = vpop.f32.mrf.mxu0
      %v4085 = vadd.f32 0.0, %v4084
      %v4086 = vpop.f32.mrf.mxu0
      %4087 = vmatprep.mubr.bf16.mxu0 0
      %4088 = vmatmul.mubr.bf16.gmra.mxu0 %v3973
      %v4089 = vpop.f32.mrf.mxu0
      %v4090 = vadd.f32 0.0, %v4089
      %v4091 = vpop.f32.mrf.mxu0
      %v4092 = vpop.f32.mrf.mxu0
      %v4093 = vadd.f32 0.0, %v4092
      %v4094 = vpop.f32.mrf.mxu0
      %4095 = vmatprep.mubr.bf16.mxu0 0
      %4096 = vmatmul.mubr.bf16.gmra.mxu0 %v3976
      %v4097 = vpop.f32.mrf.mxu0
      %v4098 = vadd.f32 0.0, %v4097
      %v4099 = vpop.f32.mrf.mxu0
      %v4100 = vpop.f32.mrf.mxu0
      %v4101 = vadd.f32 0.0, %v4100
      %v4102 = vpop.f32.mrf.mxu0
      %4103 = vmatprep.mubr.bf16.mxu0 0
      %4104 = vmatmul.mubr.bf16.gmra.mxu0 %v3979
      %v4105 = vpop.f32.mrf.mxu0
      %v4106 = vadd.f32 0.0, %v4105
      %v4107 = vpop.f32.mrf.mxu0
      %v4108 = vpop.f32.mrf.mxu0
      %v4109 = vadd.f32 0.0, %v4108
      %v4110 = vpop.f32.mrf.mxu0
      %4111 = vmatprep.mubr.bf16.mxu0 0
      %4112 = vmatmul.mubr.bf16.gmra.mxu0 %v3982
      %v4113 = vpop.f32.mrf.mxu0
      %v4114 = vadd.f32 0.0, %v4113
      %v4115 = vpop.f32.mrf.mxu0
      %v4116 = vpop.f32.mrf.mxu0
      %v4117 = vadd.f32 0.0, %v4116
      %v4118 = vpop.f32.mrf.mxu0
      %4119 = vmatprep.mubr.bf16.mxu0 0
      %4120 = vmatmul.mubr.bf16.gmra.mxu0 %v3985
      %v4121 = vpop.f32.mrf.mxu0
      %v4122 = vadd.f32 0.0, %v4121
      %v4123 = vpop.f32.mrf.mxu0
      %v4124 = vpop.f32.mrf.mxu0
      %v4125 = vadd.f32 0.0, %v4124
      %v4126 = vpop.f32.mrf.mxu0
      %4127 = vmatprep.mubr.bf16.mxu0 0
      %4128 = vmatmul.mubr.bf16.gmra.mxu0 %v3988
      %v4129 = vpop.f32.mrf.mxu0
      %v4130 = vadd.f32 0.0, %v4129
      %v4131 = vpop.f32.mrf.mxu0
      %v4132 = vpop.f32.mrf.mxu0
      %v4133 = vadd.f32 0.0, %v4132
      %v4134 = vpop.f32.mrf.mxu0
      %4135 = vmatprep.mubr.bf16.mxu0 0
      %4136 = vmatmul.mubr.bf16.gmra.mxu0 %v3991
      %v4137 = vpop.f32.mrf.mxu0
      %v4138 = vadd.f32 0.0, %v4137
      %v4139 = vpop.f32.mrf.mxu0
      %v4140 = vpop.f32.mrf.mxu0
      %v4141 = vadd.f32 0.0, %v4140
      %v4142 = vpop.f32.mrf.mxu0
      %4143 = vmatprep.mubr.bf16.mxu0 0
      %4144 = vmatmul.mubr.bf16.gmra.mxu0 %v3994
      %v4145 = vpop.f32.mrf.mxu0
      %v4146 = vadd.f32 0.0, %v4145
      %v4147 = vpop.f32.mrf.mxu0
      %v4148 = vpop.f32.mrf.mxu0
      %v4149 = vadd.f32 0.0, %v4148
      %v4150 = vpop.f32.mrf.mxu0
      %4151 = vmatprep.mubr.bf16.mxu0 0
      %4152 = vmatmul.mubr.bf16.gmra.mxu0 %v3997
      %v4153 = vpop.f32.mrf.mxu0
      %v4154 = vadd.f32 0.0, %v4153
      %v4155 = vpop.f32.mrf.mxu0
      %v4156 = vpop.f32.mrf.mxu0
      %v4157 = vadd.f32 0.0, %v4156
      %v4158 = vpop.f32.mrf.mxu0
      %4159 = vdwg.mxu0
      %v4168 = vunpack.c.l.b16 %v3862
      %v4169 = vunpack.c.l.b16 %v3863
      %v4170 = vunpack.c.l.b16 %v3864
      %v4171 = vunpack.c.l.b16 %v3865
      %v4172 = vunpack.c.l.b16 %v3866
      %v4173 = vunpack.c.l.b16 %v3867
      %v4174 = vunpack.c.l.b16 %v3868
      %v4175 = vunpack.c.l.b16 %v3869
      %v4176 = vpack.c.b16 %v4169, %v4168
      %v4177 = vpack.c.b16 %v4171, %v4170
      %v4178 = vpack.c.b16 %v4173, %v4172
      %v4179 = vpack.c.b16 %v4175, %v4174
      %v4185 = vsel %vm788, %v3846, 0
      %v4188 = vsel %vm788, %v3847, 0
      %v4191 = vsel %vm788, %v3848, 0
      %v4194 = vsel %vm788, %v3849, 0
      %v4197 = vsel %vm788, %v3850, 0
      %v4200 = vsel %vm788, %v3851, 0
      %v4203 = vsel %vm788, %v3852, 0
      %v4206 = vsel %vm788, %v3853, 0
      %v4209 = vsel %vm788, %v3854, 0
      %v4212 = vsel %vm788, %v3855, 0
      %v4215 = vsel %vm788, %v3856, 0
      %v4218 = vsel %vm788, %v3857, 0
      %v4221 = vsel %vm788, %v3858, 0
      %v4224 = vsel %vm788, %v3859, 0
      %v4227 = vsel %vm788, %v3860, 0
      %v4230 = vsel %vm788, %v3861, 0
      %4232 = vmatprep.subr.bf16.mxu0 0
      %4233 = vmatpush1.bf16.msra.mxu0 0
      %4234 = vmatprep.subr.bf16.mxu0 0
      %4235 = vmatpush1.bf16.msra.mxu0 0
      %4236 = vmatprep.subr.bf16.mxu0 0
      %4237 = vmatpush1.bf16.msra.mxu0 0
      %4238 = vmatprep.subr.bf16.mxu0 0
      %4239 = vmatpush1.bf16.msra.mxu0 0
      %4240 = vmatprep.subr.bf16.mxu0 0
      %4241 = vmatpush1.bf16.msra.mxu0 %v4179
      %4242 = vmatprep.subr.bf16.mxu0 0
      %4243 = vmatpush1.bf16.msra.mxu0 %v4178
      %4244 = vmatprep.subr.bf16.mxu0 0
      %4245 = vmatpush1.bf16.msra.mxu0 %v4177
      %4246 = vmatprep.subr.bf16.mxu0 0
      %4247 = vmatpush1.bf16.msra.mxu0 %v4176
      %4248 = vmatprep.subr.bf16.mxu0 0
      %4249 = vmatpush2.bf16.msra.mxu0 0
      %4250 = vmatprep.subr.bf16.mxu0 0
      %4251 = vmatpush2.bf16.msra.mxu0 0
      %4252 = vmatprep.subr.bf16.mxu0 0
      %4253 = vmatpush2.bf16.msra.mxu0 0
      %4254 = vmatprep.subr.bf16.mxu0 0
      %4255 = vmatpush2.bf16.msra.mxu0 0
      %4256 = vmatprep.subr.bf16.mxu0 0
      %4257 = vmatpush2.bf16.msra.mxu0 0
      %4258 = vmatprep.subr.bf16.mxu0 0
      %4259 = vmatpush2.bf16.msra.mxu0 0
      %4260 = vmatprep.subr.bf16.mxu0 0
      %4261 = vmatpush2.bf16.msra.mxu0 0
      %4262 = vmatprep.subr.bf16.mxu0 0
      %4263 = vmatpush2.bf16.msra.mxu0 0
      %4264 = vmatprep.mubr.bf16.mxu0 0
      %4265 = vmatmul.mubr.bf16.gmra.mxu0 %v4185
      %v4266 = vpop.f32.mrf.mxu0
      %v4267 = vadd.f32 %v4034, %v4266
      %v4268 = vpop.f32.mrf.mxu0
      %v4269 = vpop.f32.mrf.mxu0
      %v4270 = vadd.f32 %v4037, %v4269
      %v4271 = vpop.f32.mrf.mxu0
      %4272 = vmatprep.mubr.bf16.mxu0 0
      %4273 = vmatmul.mubr.bf16.gmra.mxu0 %v4188
      %v4274 = vpop.f32.mrf.mxu0
      %v4275 = vadd.f32 %v4042, %v4274
      %v4276 = vpop.f32.mrf.mxu0
      %v4277 = vpop.f32.mrf.mxu0
      %v4278 = vadd.f32 %v4045, %v4277
      %v4279 = vpop.f32.mrf.mxu0
      %4280 = vmatprep.mubr.bf16.mxu0 0
      %4281 = vmatmul.mubr.bf16.gmra.mxu0 %v4191
      %v4282 = vpop.f32.mrf.mxu0
      %v4283 = vadd.f32 %v4050, %v4282
      %v4284 = vpop.f32.mrf.mxu0
      %v4285 = vpop.f32.mrf.mxu0
      %v4286 = vadd.f32 %v4053, %v4285
      %v4287 = vpop.f32.mrf.mxu0
      %4288 = vmatprep.mubr.bf16.mxu0 0
      %4289 = vmatmul.mubr.bf16.gmra.mxu0 %v4194
      %v4290 = vpop.f32.mrf.mxu0
      %v4291 = vadd.f32 %v4058, %v4290
      %v4292 = vpop.f32.mrf.mxu0
      %v4293 = vpop.f32.mrf.mxu0
      %v4294 = vadd.f32 %v4061, %v4293
      %v4295 = vpop.f32.mrf.mxu0
      %4296 = vmatprep.mubr.bf16.mxu0 0
      %4297 = vmatmul.mubr.bf16.gmra.mxu0 %v4197
      %v4298 = vpop.f32.mrf.mxu0
      %v4299 = vadd.f32 %v4066, %v4298
      %v4300 = vpop.f32.mrf.mxu0
      %v4301 = vpop.f32.mrf.mxu0
      %v4302 = vadd.f32 %v4069, %v4301
      %v4303 = vpop.f32.mrf.mxu0
      %4304 = vmatprep.mubr.bf16.mxu0 0
      %4305 = vmatmul.mubr.bf16.gmra.mxu0 %v4200
      %v4306 = vpop.f32.mrf.mxu0
      %v4307 = vadd.f32 %v4074, %v4306
      %v4308 = vpop.f32.mrf.mxu0
      %v4309 = vpop.f32.mrf.mxu0
      %v4310 = vadd.f32 %v4077, %v4309
      %v4311 = vpop.f32.mrf.mxu0
      %4312 = vmatprep.mubr.bf16.mxu0 0
      %4313 = vmatmul.mubr.bf16.gmra.mxu0 %v4203
      %v4314 = vpop.f32.mrf.mxu0
      %v4315 = vadd.f32 %v4082, %v4314
      %v4316 = vpop.f32.mrf.mxu0
      %v4317 = vpop.f32.mrf.mxu0
      %v4318 = vadd.f32 %v4085, %v4317
      %v4319 = vpop.f32.mrf.mxu0
      %4320 = vmatprep.mubr.bf16.mxu0 0
      %4321 = vmatmul.mubr.bf16.gmra.mxu0 %v4206
      %v4322 = vpop.f32.mrf.mxu0
      %v4323 = vadd.f32 %v4090, %v4322
      %v4324 = vpop.f32.mrf.mxu0
      %v4325 = vpop.f32.mrf.mxu0
      %v4326 = vadd.f32 %v4093, %v4325
      %v4327 = vpop.f32.mrf.mxu0
      %4328 = vmatprep.mubr.bf16.mxu0 0
      %4329 = vmatmul.mubr.bf16.gmra.mxu0 %v4209
      %v4330 = vpop.f32.mrf.mxu0
      %v4331 = vadd.f32 %v4098, %v4330
      %v4332 = vpop.f32.mrf.mxu0
      %v4333 = vpop.f32.mrf.mxu0
      %v4334 = vadd.f32 %v4101, %v4333
      %v4335 = vpop.f32.mrf.mxu0
      %4336 = vmatprep.mubr.bf16.mxu0 0
      %4337 = vmatmul.mubr.bf16.gmra.mxu0 %v4212
      %v4338 = vpop.f32.mrf.mxu0
      %v4339 = vadd.f32 %v4106, %v4338
      %v4340 = vpop.f32.mrf.mxu0
      %v4341 = vpop.f32.mrf.mxu0
      %v4342 = vadd.f32 %v4109, %v4341
      %v4343 = vpop.f32.mrf.mxu0
      %4344 = vmatprep.mubr.bf16.mxu0 0
      %4345 = vmatmul.mubr.bf16.gmra.mxu0 %v4215
      %v4346 = vpop.f32.mrf.mxu0
      %v4347 = vadd.f32 %v4114, %v4346
      %v4348 = vpop.f32.mrf.mxu0
      %v4349 = vpop.f32.mrf.mxu0
      %v4350 = vadd.f32 %v4117, %v4349
      %v4351 = vpop.f32.mrf.mxu0
      %4352 = vmatprep.mubr.bf16.mxu0 0
      %4353 = vmatmul.mubr.bf16.gmra.mxu0 %v4218
      %v4354 = vpop.f32.mrf.mxu0
      %v4355 = vadd.f32 %v4122, %v4354
      %v4356 = vpop.f32.mrf.mxu0
      %v4357 = vpop.f32.mrf.mxu0
      %v4358 = vadd.f32 %v4125, %v4357
      %v4359 = vpop.f32.mrf.mxu0
      %4360 = vmatprep.mubr.bf16.mxu0 0
      %4361 = vmatmul.mubr.bf16.gmra.mxu0 %v4221
      %v4362 = vpop.f32.mrf.mxu0
      %v4363 = vadd.f32 %v4130, %v4362
      %v4364 = vpop.f32.mrf.mxu0
      %v4365 = vpop.f32.mrf.mxu0
      %v4366 = vadd.f32 %v4133, %v4365
      %v4367 = vpop.f32.mrf.mxu0
      %4368 = vmatprep.mubr.bf16.mxu0 0
      %4369 = vmatmul.mubr.bf16.gmra.mxu0 %v4224
      %v4370 = vpop.f32.mrf.mxu0
      %v4371 = vadd.f32 %v4138, %v4370
      %v4372 = vpop.f32.mrf.mxu0
      %v4373 = vpop.f32.mrf.mxu0
      %v4374 = vadd.f32 %v4141, %v4373
      %v4375 = vpop.f32.mrf.mxu0
      %4376 = vmatprep.mubr.bf16.mxu0 0
      %4377 = vmatmul.mubr.bf16.gmra.mxu0 %v4227
      %v4378 = vpop.f32.mrf.mxu0
      %v4379 = vadd.f32 %v4146, %v4378
      %v4380 = vpop.f32.mrf.mxu0
      %v4381 = vpop.f32.mrf.mxu0
      %v4382 = vadd.f32 %v4149, %v4381
      %v4383 = vpop.f32.mrf.mxu0
      %4384 = vmatprep.mubr.bf16.mxu0 0
      %4385 = vmatmul.mubr.bf16.gmra.mxu0 %v4230
      %v4386 = vpop.f32.mrf.mxu0
      %v4387 = vadd.f32 %v4154, %v4386
      %v4388 = vpop.f32.mrf.mxu0
      %v4389 = vpop.f32.mrf.mxu0
      %v4390 = vadd.f32 %v4157, %v4389
      %v4391 = vpop.f32.mrf.mxu0
      %4392 = vdwg.mxu0
      %v4393 = vld [vmem:[#allocation2 + $0x2] sm:$0xff]
      %v4394 = vld [vmem:[#allocation2 + $0xa] sm:$0xff]
      %v4395 = vld [vmem:[#allocation2 + $0x1a] sm:$0xff]
      %v4396 = vld [vmem:[#allocation2 + $0x22] sm:$0xff]
      %v4397 = vld [vmem:[#allocation2 + $0x32] sm:$0xff]
      %v4398 = vld [vmem:[#allocation2 + $0x3a] sm:$0xff]
      %v4399 = vld [vmem:[#allocation2 + $0x4a] sm:$0xff]
      %v4400 = vld [vmem:[#allocation2 + $0x52] sm:$0xff]
      %v4401 = vld [vmem:[#allocation2 + $0x62] sm:$0xff]
      %v4402 = vld [vmem:[#allocation2 + $0x6a] sm:$0xff]
      %v4403 = vld [vmem:[#allocation2 + $0x7a] sm:$0xff]
      %v4404 = vld [vmem:[#allocation2 + $0x82] sm:$0xff]
      %v4405 = vld [vmem:[#allocation2 + $0x92] sm:$0xff]
      %v4406 = vld [vmem:[#allocation2 + $0x9a] sm:$0xff]
      %v4407 = vld [vmem:[#allocation2 + $0xaa] sm:$0xff]
      %v4408 = vld [vmem:[#allocation2 + $0xb2] sm:$0xff]
      %v4409 = vld [vmem:[#allocation2 + $0xc2] sm:$0xff]
      %v4410 = vld [vmem:[#allocation2 + $0xca] sm:$0xff]
      %v4411 = vld [vmem:[#allocation2 + $0xda] sm:$0xff]
      %v4412 = vld [vmem:[#allocation2 + $0xe2] sm:$0xff]
      %v4413 = vld [vmem:[#allocation2 + $0xf2] sm:$0xff]
      %v4414 = vld [vmem:[#allocation2 + $0xfa] sm:$0xff]
      %v4415 = vld [vmem:[#allocation2 + $0x10a] sm:$0xff]
      %v4416 = vld [vmem:[#allocation2 + $0x112] sm:$0xff]
      %v4417 = vld [vmem:[#allocation2 + $0x122] sm:$0xff]
      %v4418 = vld [vmem:[#allocation2 + $0x12a] sm:$0xff]
      %v4419 = vld [vmem:[#allocation2 + $0x13a] sm:$0xff]
      %v4420 = vld [vmem:[#allocation2 + $0x142] sm:$0xff]
      %v4421 = vld [vmem:[#allocation2 + $0x152] sm:$0xff]
      %v4422 = vld [vmem:[#allocation2 + $0x15a] sm:$0xff]
      %v4423 = vld [vmem:[#allocation2 + $0x16a] sm:$0xff]
      %v4424 = vld [vmem:[#allocation2 + $0x172] sm:$0xff]
      %v4425 = vpack.c.bf16 %v4394, %v4393
      %v4426 = vpack.c.bf16 %v4396, %v4395
      %v4427 = vpack.c.bf16 %v4398, %v4397
      %v4428 = vpack.c.bf16 %v4400, %v4399
      %v4429 = vpack.c.bf16 %v4402, %v4401
      %v4430 = vpack.c.bf16 %v4404, %v4403
      %v4431 = vpack.c.bf16 %v4406, %v4405
      %v4432 = vpack.c.bf16 %v4408, %v4407
      %v4433 = vpack.c.bf16 %v4410, %v4409
      %v4434 = vpack.c.bf16 %v4412, %v4411
      %v4435 = vpack.c.bf16 %v4414, %v4413
      %v4436 = vpack.c.bf16 %v4416, %v4415
      %v4437 = vpack.c.bf16 %v4418, %v4417
      %v4438 = vpack.c.bf16 %v4420, %v4419
      %v4439 = vpack.c.bf16 %v4422, %v4421
      %v4440 = vpack.c.bf16 %v4424, %v4423
      %s4441 = scalar_lea.vmem %s5, 64
      %v4442 = vld [vmem:[%s4441] sm:$0xf]
      %v4443 = vld [vmem:[%s4441 + $0x4] sm:$0xf]
      %v4444 = vld [vmem:[%s4441 + $0x8] sm:$0xf]
      %v4445 = vld [vmem:[%s4441 + $0xc] sm:$0xf]
      %v4446 = vld [vmem:[%s4441 + $0x10] sm:$0xf]
      %v4447 = vld [vmem:[%s4441 + $0x14] sm:$0xf]
      %v4448 = vld [vmem:[%s4441 + $0x18] sm:$0xf]
      %v4449 = vld [vmem:[%s4441 + $0x1c] sm:$0xf]
      %v4458 = vunpack.c.l.b16 %v4442
      %v4459 = vunpack.c.l.b16 %v4443
      %v4460 = vunpack.c.l.b16 %v4444
      %v4461 = vunpack.c.l.b16 %v4445
      %v4462 = vunpack.c.l.b16 %v4446
      %v4463 = vunpack.c.l.b16 %v4447
      %v4464 = vunpack.c.l.b16 %v4448
      %v4465 = vunpack.c.l.b16 %v4449
      %v4466 = vpack.c.b16 %v4459, %v4458
      %v4467 = vpack.c.b16 %v4461, %v4460
      %v4468 = vpack.c.b16 %v4463, %v4462
      %v4469 = vpack.c.b16 %v4465, %v4464
      %v4475 = vsel %vm788, %v4425, 0
      %v4478 = vsel %vm788, %v4426, 0
      %v4481 = vsel %vm788, %v4427, 0
      %v4484 = vsel %vm788, %v4428, 0
      %v4487 = vsel %vm788, %v4429, 0
      %v4490 = vsel %vm788, %v4430, 0
      %v4493 = vsel %vm788, %v4431, 0
      %v4496 = vsel %vm788, %v4432, 0
      %v4499 = vsel %vm788, %v4433, 0
      %v4502 = vsel %vm788, %v4434, 0
      %v4505 = vsel %vm788, %v4435, 0
      %v4508 = vsel %vm788, %v4436, 0
      %v4511 = vsel %vm788, %v4437, 0
      %v4514 = vsel %vm788, %v4438, 0
      %v4517 = vsel %vm788, %v4439, 0
      %v4520 = vsel %vm788, %v4440, 0
      %4522 = vmatprep.subr.bf16.mxu0 0
      %4523 = vmatpush1.bf16.msra.mxu0 0
      %4524 = vmatprep.subr.bf16.mxu0 0
      %4525 = vmatpush1.bf16.msra.mxu0 0
      %4526 = vmatprep.subr.bf16.mxu0 0
      %4527 = vmatpush1.bf16.msra.mxu0 0
      %4528 = vmatprep.subr.bf16.mxu0 0
      %4529 = vmatpush1.bf16.msra.mxu0 0
      %4530 = vmatprep.subr.bf16.mxu0 0
      %4531 = vmatpush1.bf16.msra.mxu0 %v4469
      %4532 = vmatprep.subr.bf16.mxu0 0
      %4533 = vmatpush1.bf16.msra.mxu0 %v4468
      %4534 = vmatprep.subr.bf16.mxu0 0
      %4535 = vmatpush1.bf16.msra.mxu0 %v4467
      %4536 = vmatprep.subr.bf16.mxu0 0
      %4537 = vmatpush1.bf16.msra.mxu0 %v4466
      %4538 = vmatprep.subr.bf16.mxu0 0
      %4539 = vmatpush2.bf16.msra.mxu0 0
      %4540 = vmatprep.subr.bf16.mxu0 0
      %4541 = vmatpush2.bf16.msra.mxu0 0
      %4542 = vmatprep.subr.bf16.mxu0 0
      %4543 = vmatpush2.bf16.msra.mxu0 0
      %4544 = vmatprep.subr.bf16.mxu0 0
      %4545 = vmatpush2.bf16.msra.mxu0 0
      %4546 = vmatprep.subr.bf16.mxu0 0
      %4547 = vmatpush2.bf16.msra.mxu0 0
      %4548 = vmatprep.subr.bf16.mxu0 0
      %4549 = vmatpush2.bf16.msra.mxu0 0
      %4550 = vmatprep.subr.bf16.mxu0 0
      %4551 = vmatpush2.bf16.msra.mxu0 0
      %4552 = vmatprep.subr.bf16.mxu0 0
      %4553 = vmatpush2.bf16.msra.mxu0 0
      %4554 = vmatprep.mubr.bf16.mxu0 0
      %4555 = vmatmul.mubr.bf16.gmra.mxu0 %v4475
      %v4556 = vpop.f32.mrf.mxu0
      %v4557 = vadd.f32 0.0, %v4556
      %v4558 = vpop.f32.mrf.mxu0
      %v4559 = vpop.f32.mrf.mxu0
      %v4560 = vadd.f32 0.0, %v4559
      %v4561 = vpop.f32.mrf.mxu0
      %4562 = vmatprep.mubr.bf16.mxu0 0
      %4563 = vmatmul.mubr.bf16.gmra.mxu0 %v4478
      %v4564 = vpop.f32.mrf.mxu0
      %v4565 = vadd.f32 0.0, %v4564
      %v4566 = vpop.f32.mrf.mxu0
      %v4567 = vpop.f32.mrf.mxu0
      %v4568 = vadd.f32 0.0, %v4567
      %v4569 = vpop.f32.mrf.mxu0
      %4570 = vmatprep.mubr.bf16.mxu0 0
      %4571 = vmatmul.mubr.bf16.gmra.mxu0 %v4481
      %v4572 = vpop.f32.mrf.mxu0
      %v4573 = vadd.f32 0.0, %v4572
      %v4574 = vpop.f32.mrf.mxu0
      %v4575 = vpop.f32.mrf.mxu0
      %v4576 = vadd.f32 0.0, %v4575
      %v4577 = vpop.f32.mrf.mxu0
      %4578 = vmatprep.mubr.bf16.mxu0 0
      %4579 = vmatmul.mubr.bf16.gmra.mxu0 %v4484
      %v4580 = vpop.f32.mrf.mxu0
      %v4581 = vadd.f32 0.0, %v4580
      %v4582 = vpop.f32.mrf.mxu0
      %v4583 = vpop.f32.mrf.mxu0
      %v4584 = vadd.f32 0.0, %v4583
      %v4585 = vpop.f32.mrf.mxu0
      %4586 = vmatprep.mubr.bf16.mxu0 0
      %4587 = vmatmul.mubr.bf16.gmra.mxu0 %v4487
      %v4588 = vpop.f32.mrf.mxu0
      %v4589 = vadd.f32 0.0, %v4588
      %v4590 = vpop.f32.mrf.mxu0
      %v4591 = vpop.f32.mrf.mxu0
      %v4592 = vadd.f32 0.0, %v4591
      %v4593 = vpop.f32.mrf.mxu0
      %4594 = vmatprep.mubr.bf16.mxu0 0
      %4595 = vmatmul.mubr.bf16.gmra.mxu0 %v4490
      %v4596 = vpop.f32.mrf.mxu0
      %v4597 = vadd.f32 0.0, %v4596
      %v4598 = vpop.f32.mrf.mxu0
      %v4599 = vpop.f32.mrf.mxu0
      %v4600 = vadd.f32 0.0, %v4599
      %v4601 = vpop.f32.mrf.mxu0
      %4602 = vmatprep.mubr.bf16.mxu0 0
      %4603 = vmatmul.mubr.bf16.gmra.mxu0 %v4493
      %v4604 = vpop.f32.mrf.mxu0
      %v4605 = vadd.f32 0.0, %v4604
      %v4606 = vpop.f32.mrf.mxu0
      %v4607 = vpop.f32.mrf.mxu0
      %v4608 = vadd.f32 0.0, %v4607
      %v4609 = vpop.f32.mrf.mxu0
      %4610 = vmatprep.mubr.bf16.mxu0 0
      %4611 = vmatmul.mubr.bf16.gmra.mxu0 %v4496
      %v4612 = vpop.f32.mrf.mxu0
      %v4613 = vadd.f32 0.0, %v4612
      %v4614 = vpop.f32.mrf.mxu0
      %v4615 = vpop.f32.mrf.mxu0
      %v4616 = vadd.f32 0.0, %v4615
      %v4617 = vpop.f32.mrf.mxu0
      %4618 = vmatprep.mubr.bf16.mxu0 0
      %4619 = vmatmul.mubr.bf16.gmra.mxu0 %v4499
      %v4620 = vpop.f32.mrf.mxu0
      %v4621 = vadd.f32 0.0, %v4620
      %v4622 = vpop.f32.mrf.mxu0
      %v4623 = vpop.f32.mrf.mxu0
      %v4624 = vadd.f32 0.0, %v4623
      %v4625 = vpop.f32.mrf.mxu0
      %4626 = vmatprep.mubr.bf16.mxu0 0
      %4627 = vmatmul.mubr.bf16.gmra.mxu0 %v4502
      %v4628 = vpop.f32.mrf.mxu0
      %v4629 = vadd.f32 0.0, %v4628
      %v4630 = vpop.f32.mrf.mxu0
      %v4631 = vpop.f32.mrf.mxu0
      %v4632 = vadd.f32 0.0, %v4631
      %v4633 = vpop.f32.mrf.mxu0
      %4634 = vmatprep.mubr.bf16.mxu0 0
      %4635 = vmatmul.mubr.bf16.gmra.mxu0 %v4505
      %v4636 = vpop.f32.mrf.mxu0
      %v4637 = vadd.f32 0.0, %v4636
      %v4638 = vpop.f32.mrf.mxu0
      %v4639 = vpop.f32.mrf.mxu0
      %v4640 = vadd.f32 0.0, %v4639
      %v4641 = vpop.f32.mrf.mxu0
      %4642 = vmatprep.mubr.bf16.mxu0 0
      %4643 = vmatmul.mubr.bf16.gmra.mxu0 %v4508
      %v4644 = vpop.f32.mrf.mxu0
      %v4645 = vadd.f32 0.0, %v4644
      %v4646 = vpop.f32.mrf.mxu0
      %v4647 = vpop.f32.mrf.mxu0
      %v4648 = vadd.f32 0.0, %v4647
      %v4649 = vpop.f32.mrf.mxu0
      %4650 = vmatprep.mubr.bf16.mxu0 0
      %4651 = vmatmul.mubr.bf16.gmra.mxu0 %v4511
      %v4652 = vpop.f32.mrf.mxu0
      %v4653 = vadd.f32 0.0, %v4652
      %v4654 = vpop.f32.mrf.mxu0
      %v4655 = vpop.f32.mrf.mxu0
      %v4656 = vadd.f32 0.0, %v4655
      %v4657 = vpop.f32.mrf.mxu0
      %4658 = vmatprep.mubr.bf16.mxu0 0
      %4659 = vmatmul.mubr.bf16.gmra.mxu0 %v4514
      %v4660 = vpop.f32.mrf.mxu0
      %v4661 = vadd.f32 0.0, %v4660
      %v4662 = vpop.f32.mrf.mxu0
      %v4663 = vpop.f32.mrf.mxu0
      %v4664 = vadd.f32 0.0, %v4663
      %v4665 = vpop.f32.mrf.mxu0
      %4666 = vmatprep.mubr.bf16.mxu0 0
      %4667 = vmatmul.mubr.bf16.gmra.mxu0 %v4517
      %v4668 = vpop.f32.mrf.mxu0
      %v4669 = vadd.f32 0.0, %v4668
      %v4670 = vpop.f32.mrf.mxu0
      %v4671 = vpop.f32.mrf.mxu0
      %v4672 = vadd.f32 0.0, %v4671
      %v4673 = vpop.f32.mrf.mxu0
      %4674 = vmatprep.mubr.bf16.mxu0 0
      %4675 = vmatmul.mubr.bf16.gmra.mxu0 %v4520
      %v4676 = vpop.f32.mrf.mxu0
      %v4677 = vadd.f32 0.0, %v4676
      %v4678 = vpop.f32.mrf.mxu0
      %v4679 = vpop.f32.mrf.mxu0
      %v4680 = vadd.f32 0.0, %v4679
      %v4681 = vpop.f32.mrf.mxu0
      %4682 = vdwg.mxu0
      %v4683 = vadd.f32 %v4267, %v4557
      %v4684 = vadd.f32 %v4270, %v4560
      %v4685 = vadd.f32 %v4275, %v4565
      %v4686 = vadd.f32 %v4278, %v4568
      %v4687 = vadd.f32 %v4283, %v4573
      %v4688 = vadd.f32 %v4286, %v4576
      %v4689 = vadd.f32 %v4291, %v4581
      %v4690 = vadd.f32 %v4294, %v4584
      %v4691 = vadd.f32 %v4299, %v4589
      %v4692 = vadd.f32 %v4302, %v4592
      %v4693 = vadd.f32 %v4307, %v4597
      %v4694 = vadd.f32 %v4310, %v4600
      %v4695 = vadd.f32 %v4315, %v4605
      %v4696 = vadd.f32 %v4318, %v4608
      %v4697 = vadd.f32 %v4323, %v4613
      %v4698 = vadd.f32 %v4326, %v4616
      %v4699 = vadd.f32 %v4331, %v4621
      %v4700 = vadd.f32 %v4334, %v4624
      %v4701 = vadd.f32 %v4339, %v4629
      %v4702 = vadd.f32 %v4342, %v4632
      %v4703 = vadd.f32 %v4347, %v4637
      %v4704 = vadd.f32 %v4350, %v4640
      %v4705 = vadd.f32 %v4355, %v4645
      %v4706 = vadd.f32 %v4358, %v4648
      %v4707 = vadd.f32 %v4363, %v4653
      %v4708 = vadd.f32 %v4366, %v4656
      %v4709 = vadd.f32 %v4371, %v4661
      %v4710 = vadd.f32 %v4374, %v4664
      %v4711 = vadd.f32 %v4379, %v4669
      %v4712 = vadd.f32 %v4382, %v4672
      %v4713 = vadd.f32 %v4387, %v4677
      %v4714 = vadd.f32 %v4390, %v4680
      %v4715 = vld [vmem:[%s844] sm:$0xff]
      %v4716 = vld [vmem:[%s844 + $0x8] sm:$0xff]
      %v4717 = vld [vmem:[%s844 + $0x18] sm:$0xff]
      %v4718 = vld [vmem:[%s844 + $0x20] sm:$0xff]
      %v4719 = vld [vmem:[%s844 + $0x30] sm:$0xff]
      %v4720 = vld [vmem:[%s844 + $0x38] sm:$0xff]
      %v4721 = vld [vmem:[%s844 + $0x48] sm:$0xff]
      %v4722 = vld [vmem:[%s844 + $0x50] sm:$0xff]
      %v4723 = vld [vmem:[%s844 + $0x60] sm:$0xff]
      %v4724 = vld [vmem:[%s844 + $0x68] sm:$0xff]
      %v4725 = vld [vmem:[%s844 + $0x78] sm:$0xff]
      %v4726 = vld [vmem:[%s844 + $0x80] sm:$0xff]
      %v4727 = vld [vmem:[%s844 + $0x90] sm:$0xff]
      %v4728 = vld [vmem:[%s844 + $0x98] sm:$0xff]
      %v4729 = vld [vmem:[%s844 + $0xa8] sm:$0xff]
      %v4730 = vld [vmem:[%s844 + $0xb0] sm:$0xff]
      %v4731 = vld [vmem:[%s844 + $0xc0] sm:$0xff]
      %v4732 = vld [vmem:[%s844 + $0xc8] sm:$0xff]
      %v4733 = vld [vmem:[%s844 + $0xd8] sm:$0xff]
      %v4734 = vld [vmem:[%s844 + $0xe0] sm:$0xff]
      %v4735 = vld [vmem:[%s844 + $0xf0] sm:$0xff]
      %v4736 = vld [vmem:[%s844 + $0xf8] sm:$0xff]
      %v4737 = vld [vmem:[%s844 + $0x108] sm:$0xff]
      %v4738 = vld [vmem:[%s844 + $0x110] sm:$0xff]
      %v4739 = vld [vmem:[%s844 + $0x120] sm:$0xff]
      %v4740 = vld [vmem:[%s844 + $0x128] sm:$0xff]
      %v4741 = vld [vmem:[%s844 + $0x138] sm:$0xff]
      %v4742 = vld [vmem:[%s844 + $0x140] sm:$0xff]
      %v4743 = vld [vmem:[%s844 + $0x150] sm:$0xff]
      %v4744 = vld [vmem:[%s844 + $0x158] sm:$0xff]
      %v4745 = vld [vmem:[%s844 + $0x168] sm:$0xff]
      %v4746 = vld [vmem:[%s844 + $0x170] sm:$0xff]
      %v4747 = vpack.c.bf16 %v4716, %v4715
      %v4748 = vpack.c.bf16 %v4718, %v4717
      %v4749 = vpack.c.bf16 %v4720, %v4719
      %v4750 = vpack.c.bf16 %v4722, %v4721
      %v4751 = vpack.c.bf16 %v4724, %v4723
      %v4752 = vpack.c.bf16 %v4726, %v4725
      %v4753 = vpack.c.bf16 %v4728, %v4727
      %v4754 = vpack.c.bf16 %v4730, %v4729
      %v4755 = vpack.c.bf16 %v4732, %v4731
      %v4756 = vpack.c.bf16 %v4734, %v4733
      %v4757 = vpack.c.bf16 %v4736, %v4735
      %v4758 = vpack.c.bf16 %v4738, %v4737
      %v4759 = vpack.c.bf16 %v4740, %v4739
      %v4760 = vpack.c.bf16 %v4742, %v4741
      %v4761 = vpack.c.bf16 %v4744, %v4743
      %v4762 = vpack.c.bf16 %v4746, %v4745
      %s4763 = scalar_lea.vmem %s5, 96
      %v4764 = vld [vmem:[%s4763] sm:$0xf]
      %v4765 = vld [vmem:[%s4763 + $0x4] sm:$0xf]
      %v4766 = vld [vmem:[%s4763 + $0x8] sm:$0xf]
      %v4767 = vld [vmem:[%s4763 + $0xc] sm:$0xf]
      %v4768 = vld [vmem:[%s4763 + $0x10] sm:$0xf]
      %v4769 = vld [vmem:[%s4763 + $0x14] sm:$0xf]
      %v4770 = vld [vmem:[%s4763 + $0x18] sm:$0xf]
      %v4771 = vld [vmem:[%s4763 + $0x1c] sm:$0xf]
      %v4780 = vunpack.c.l.b16 %v4764
      %v4781 = vunpack.c.l.b16 %v4765
      %v4782 = vunpack.c.l.b16 %v4766
      %v4783 = vunpack.c.l.b16 %v4767
      %v4784 = vunpack.c.l.b16 %v4768
      %v4785 = vunpack.c.l.b16 %v4769
      %v4786 = vunpack.c.l.b16 %v4770
      %v4787 = vunpack.c.l.b16 %v4771
      %v4788 = vpack.c.b16 %v4781, %v4780
      %v4789 = vpack.c.b16 %v4783, %v4782
      %v4790 = vpack.c.b16 %v4785, %v4784
      %v4791 = vpack.c.b16 %v4787, %v4786
      %v4797 = vsel %vm788, %v4747, 0
      %v4800 = vsel %vm788, %v4748, 0
      %v4803 = vsel %vm788, %v4749, 0
      %v4806 = vsel %vm788, %v4750, 0
      %v4809 = vsel %vm788, %v4751, 0
      %v4812 = vsel %vm788, %v4752, 0
      %v4815 = vsel %vm788, %v4753, 0
      %v4818 = vsel %vm788, %v4754, 0
      %v4821 = vsel %vm788, %v4755, 0
      %v4824 = vsel %vm788, %v4756, 0
      %v4827 = vsel %vm788, %v4757, 0
      %v4830 = vsel %vm788, %v4758, 0
      %v4833 = vsel %vm788, %v4759, 0
      %v4836 = vsel %vm788, %v4760, 0
      %v4839 = vsel %vm788, %v4761, 0
      %v4842 = vsel %vm788, %v4762, 0
      %4844 = vmatprep.subr.bf16.mxu0 0
      %4845 = vmatpush1.bf16.msra.mxu0 0
      %4846 = vmatprep.subr.bf16.mxu0 0
      %4847 = vmatpush1.bf16.msra.mxu0 0
      %4848 = vmatprep.subr.bf16.mxu0 0
      %4849 = vmatpush1.bf16.msra.mxu0 0
      %4850 = vmatprep.subr.bf16.mxu0 0
      %4851 = vmatpush1.bf16.msra.mxu0 0
      %4852 = vmatprep.subr.bf16.mxu0 0
      %4853 = vmatpush1.bf16.msra.mxu0 %v4791
      %4854 = vmatprep.subr.bf16.mxu0 0
      %4855 = vmatpush1.bf16.msra.mxu0 %v4790
      %4856 = vmatprep.subr.bf16.mxu0 0
      %4857 = vmatpush1.bf16.msra.mxu0 %v4789
      %4858 = vmatprep.subr.bf16.mxu0 0
      %4859 = vmatpush1.bf16.msra.mxu0 %v4788
      %4860 = vmatprep.subr.bf16.mxu0 0
      %4861 = vmatpush2.bf16.msra.mxu0 0
      %4862 = vmatprep.subr.bf16.mxu0 0
      %4863 = vmatpush2.bf16.msra.mxu0 0
      %4864 = vmatprep.subr.bf16.mxu0 0
      %4865 = vmatpush2.bf16.msra.mxu0 0
      %4866 = vmatprep.subr.bf16.mxu0 0
      %4867 = vmatpush2.bf16.msra.mxu0 0
      %4868 = vmatprep.subr.bf16.mxu0 0
      %4869 = vmatpush2.bf16.msra.mxu0 0
      %4870 = vmatprep.subr.bf16.mxu0 0
      %4871 = vmatpush2.bf16.msra.mxu0 0
      %4872 = vmatprep.subr.bf16.mxu0 0
      %4873 = vmatpush2.bf16.msra.mxu0 0
      %4874 = vmatprep.subr.bf16.mxu0 0
      %4875 = vmatpush2.bf16.msra.mxu0 0
      %4876 = vmatprep.mubr.bf16.mxu0 0
      %4877 = vmatmul.mubr.bf16.gmra.mxu0 %v4797
      %v4878 = vpop.f32.mrf.mxu0
      %v4879 = vadd.f32 0.0, %v4878
      %v4880 = vpop.f32.mrf.mxu0
      %v4881 = vpop.f32.mrf.mxu0
      %v4882 = vadd.f32 0.0, %v4881
      %v4883 = vpop.f32.mrf.mxu0
      %4884 = vmatprep.mubr.bf16.mxu0 0
      %4885 = vmatmul.mubr.bf16.gmra.mxu0 %v4800
      %v4886 = vpop.f32.mrf.mxu0
      %v4887 = vadd.f32 0.0, %v4886
      %v4888 = vpop.f32.mrf.mxu0
      %v4889 = vpop.f32.mrf.mxu0
      %v4890 = vadd.f32 0.0, %v4889
      %v4891 = vpop.f32.mrf.mxu0
      %4892 = vmatprep.mubr.bf16.mxu0 0
      %4893 = vmatmul.mubr.bf16.gmra.mxu0 %v4803
      %v4894 = vpop.f32.mrf.mxu0
      %v4895 = vadd.f32 0.0, %v4894
      %v4896 = vpop.f32.mrf.mxu0
      %v4897 = vpop.f32.mrf.mxu0
      %v4898 = vadd.f32 0.0, %v4897
      %v4899 = vpop.f32.mrf.mxu0
      %4900 = vmatprep.mubr.bf16.mxu0 0
      %4901 = vmatmul.mubr.bf16.gmra.mxu0 %v4806
      %v4902 = vpop.f32.mrf.mxu0
      %v4903 = vadd.f32 0.0, %v4902
      %v4904 = vpop.f32.mrf.mxu0
      %v4905 = vpop.f32.mrf.mxu0
      %v4906 = vadd.f32 0.0, %v4905
      %v4907 = vpop.f32.mrf.mxu0
      %4908 = vmatprep.mubr.bf16.mxu0 0
      %4909 = vmatmul.mubr.bf16.gmra.mxu0 %v4809
      %v4910 = vpop.f32.mrf.mxu0
      %v4911 = vadd.f32 0.0, %v4910
      %v4912 = vpop.f32.mrf.mxu0
      %v4913 = vpop.f32.mrf.mxu0
      %v4914 = vadd.f32 0.0, %v4913
      %v4915 = vpop.f32.mrf.mxu0
      %4916 = vmatprep.mubr.bf16.mxu0 0
      %4917 = vmatmul.mubr.bf16.gmra.mxu0 %v4812
      %v4918 = vpop.f32.mrf.mxu0
      %v4919 = vadd.f32 0.0, %v4918
      %v4920 = vpop.f32.mrf.mxu0
      %v4921 = vpop.f32.mrf.mxu0
      %v4922 = vadd.f32 0.0, %v4921
      %v4923 = vpop.f32.mrf.mxu0
      %4924 = vmatprep.mubr.bf16.mxu0 0
      %4925 = vmatmul.mubr.bf16.gmra.mxu0 %v4815
      %v4926 = vpop.f32.mrf.mxu0
      %v4927 = vadd.f32 0.0, %v4926
      %v4928 = vpop.f32.mrf.mxu0
      %v4929 = vpop.f32.mrf.mxu0
      %v4930 = vadd.f32 0.0, %v4929
      %v4931 = vpop.f32.mrf.mxu0
      %4932 = vmatprep.mubr.bf16.mxu0 0
      %4933 = vmatmul.mubr.bf16.gmra.mxu0 %v4818
      %v4934 = vpop.f32.mrf.mxu0
      %v4935 = vadd.f32 0.0, %v4934
      %v4936 = vpop.f32.mrf.mxu0
      %v4937 = vpop.f32.mrf.mxu0
      %v4938 = vadd.f32 0.0, %v4937
      %v4939 = vpop.f32.mrf.mxu0
      %4940 = vmatprep.mubr.bf16.mxu0 0
      %4941 = vmatmul.mubr.bf16.gmra.mxu0 %v4821
      %v4942 = vpop.f32.mrf.mxu0
      %v4943 = vadd.f32 0.0, %v4942
      %v4944 = vpop.f32.mrf.mxu0
      %v4945 = vpop.f32.mrf.mxu0
      %v4946 = vadd.f32 0.0, %v4945
      %v4947 = vpop.f32.mrf.mxu0
      %4948 = vmatprep.mubr.bf16.mxu0 0
      %4949 = vmatmul.mubr.bf16.gmra.mxu0 %v4824
      %v4950 = vpop.f32.mrf.mxu0
      %v4951 = vadd.f32 0.0, %v4950
      %v4952 = vpop.f32.mrf.mxu0
      %v4953 = vpop.f32.mrf.mxu0
      %v4954 = vadd.f32 0.0, %v4953
      %v4955 = vpop.f32.mrf.mxu0
      %4956 = vmatprep.mubr.bf16.mxu0 0
      %4957 = vmatmul.mubr.bf16.gmra.mxu0 %v4827
      %v4958 = vpop.f32.mrf.mxu0
      %v4959 = vadd.f32 0.0, %v4958
      %v4960 = vpop.f32.mrf.mxu0
      %v4961 = vpop.f32.mrf.mxu0
      %v4962 = vadd.f32 0.0, %v4961
      %v4963 = vpop.f32.mrf.mxu0
      %4964 = vmatprep.mubr.bf16.mxu0 0
      %4965 = vmatmul.mubr.bf16.gmra.mxu0 %v4830
      %v4966 = vpop.f32.mrf.mxu0
      %v4967 = vadd.f32 0.0, %v4966
      %v4968 = vpop.f32.mrf.mxu0
      %v4969 = vpop.f32.mrf.mxu0
      %v4970 = vadd.f32 0.0, %v4969
      %v4971 = vpop.f32.mrf.mxu0
      %4972 = vmatprep.mubr.bf16.mxu0 0
      %4973 = vmatmul.mubr.bf16.gmra.mxu0 %v4833
      %v4974 = vpop.f32.mrf.mxu0
      %v4975 = vadd.f32 0.0, %v4974
      %v4976 = vpop.f32.mrf.mxu0
      %v4977 = vpop.f32.mrf.mxu0
      %v4978 = vadd.f32 0.0, %v4977
      %v4979 = vpop.f32.mrf.mxu0
      %4980 = vmatprep.mubr.bf16.mxu0 0
      %4981 = vmatmul.mubr.bf16.gmra.mxu0 %v4836
      %v4982 = vpop.f32.mrf.mxu0
      %v4983 = vadd.f32 0.0, %v4982
      %v4984 = vpop.f32.mrf.mxu0
      %v4985 = vpop.f32.mrf.mxu0
      %v4986 = vadd.f32 0.0, %v4985
      %v4987 = vpop.f32.mrf.mxu0
      %4988 = vmatprep.mubr.bf16.mxu0 0
      %4989 = vmatmul.mubr.bf16.gmra.mxu0 %v4839
      %v4990 = vpop.f32.mrf.mxu0
      %v4991 = vadd.f32 0.0, %v4990
      %v4992 = vpop.f32.mrf.mxu0
      %v4993 = vpop.f32.mrf.mxu0
      %v4994 = vadd.f32 0.0, %v4993
      %v4995 = vpop.f32.mrf.mxu0
      %4996 = vmatprep.mubr.bf16.mxu0 0
      %4997 = vmatmul.mubr.bf16.gmra.mxu0 %v4842
      %v4998 = vpop.f32.mrf.mxu0
      %v4999 = vadd.f32 0.0, %v4998
      %v5000 = vpop.f32.mrf.mxu0
      %v5001 = vpop.f32.mrf.mxu0
      %v5002 = vadd.f32 0.0, %v5001
      %v5003 = vpop.f32.mrf.mxu0
      %5004 = vdwg.mxu0
      %v5005 = vadd.f32 %v4683, %v4879
      %v5006 = vadd.f32 %v4684, %v4882
      %v5007 = vadd.f32 %v4685, %v4887
      %v5008 = vadd.f32 %v4686, %v4890
      %v5009 = vadd.f32 %v4687, %v4895
      %v5010 = vadd.f32 %v4688, %v4898
      %v5011 = vadd.f32 %v4689, %v4903
      %v5012 = vadd.f32 %v4690, %v4906
      %v5013 = vadd.f32 %v4691, %v4911
      %v5014 = vadd.f32 %v4692, %v4914
      %v5015 = vadd.f32 %v4693, %v4919
      %v5016 = vadd.f32 %v4694, %v4922
      %v5017 = vadd.f32 %v4695, %v4927
      %v5018 = vadd.f32 %v4696, %v4930
      %v5019 = vadd.f32 %v4697, %v4935
      %v5020 = vadd.f32 %v4698, %v4938
      %v5021 = vadd.f32 %v4699, %v4943
      %v5022 = vadd.f32 %v4700, %v4946
      %v5023 = vadd.f32 %v4701, %v4951
      %v5024 = vadd.f32 %v4702, %v4954
      %v5025 = vadd.f32 %v4703, %v4959
      %v5026 = vadd.f32 %v4704, %v4962
      %v5027 = vadd.f32 %v4705, %v4967
      %v5028 = vadd.f32 %v4706, %v4970
      %v5029 = vadd.f32 %v4707, %v4975
      %v5030 = vadd.f32 %v4708, %v4978
      %v5031 = vadd.f32 %v4709, %v4983
      %v5032 = vadd.f32 %v4710, %v4986
      %v5033 = vadd.f32 %v4711, %v4991
      %v5034 = vadd.f32 %v4712, %v4994
      %v5035 = vadd.f32 %v4713, %v4999
      %v5036 = vadd.f32 %v4714, %v5002
      %v5037 = vld [vmem:[%s844 + $0x1] sm:$0xff]
      %v5038 = vld [vmem:[%s844 + $0x9] sm:$0xff]
      %v5039 = vld [vmem:[%s844 + $0x19] sm:$0xff]
      %v5040 = vld [vmem:[%s844 + $0x21] sm:$0xff]
      %v5041 = vld [vmem:[%s844 + $0x31] sm:$0xff]
      %v5042 = vld [vmem:[%s844 + $0x39] sm:$0xff]
      %v5043 = vld [vmem:[%s844 + $0x49] sm:$0xff]
      %v5044 = vld [vmem:[%s844 + $0x51] sm:$0xff]
      %v5045 = vld [vmem:[%s844 + $0x61] sm:$0xff]
      %v5046 = vld [vmem:[%s844 + $0x69] sm:$0xff]
      %v5047 = vld [vmem:[%s844 + $0x79] sm:$0xff]
      %v5048 = vld [vmem:[%s844 + $0x81] sm:$0xff]
      %v5049 = vld [vmem:[%s844 + $0x91] sm:$0xff]
      %v5050 = vld [vmem:[%s844 + $0x99] sm:$0xff]
      %v5051 = vld [vmem:[%s844 + $0xa9] sm:$0xff]
      %v5052 = vld [vmem:[%s844 + $0xb1] sm:$0xff]
      %v5053 = vld [vmem:[%s844 + $0xc1] sm:$0xff]
      %v5054 = vld [vmem:[%s844 + $0xc9] sm:$0xff]
      %v5055 = vld [vmem:[%s844 + $0xd9] sm:$0xff]
      %v5056 = vld [vmem:[%s844 + $0xe1] sm:$0xff]
      %v5057 = vld [vmem:[%s844 + $0xf1] sm:$0xff]
      %v5058 = vld [vmem:[%s844 + $0xf9] sm:$0xff]
      %v5059 = vld [vmem:[%s844 + $0x109] sm:$0xff]
      %v5060 = vld [vmem:[%s844 + $0x111] sm:$0xff]
      %v5061 = vld [vmem:[%s844 + $0x121] sm:$0xff]
      %v5062 = vld [vmem:[%s844 + $0x129] sm:$0xff]
      %v5063 = vld [vmem:[%s844 + $0x139] sm:$0xff]
      %v5064 = vld [vmem:[%s844 + $0x141] sm:$0xff]
      %v5065 = vld [vmem:[%s844 + $0x151] sm:$0xff]
      %v5066 = vld [vmem:[%s844 + $0x159] sm:$0xff]
      %v5067 = vld [vmem:[%s844 + $0x169] sm:$0xff]
      %v5068 = vld [vmem:[%s844 + $0x171] sm:$0xff]
      %v5069 = vpack.c.bf16 %v5038, %v5037
      %v5070 = vpack.c.bf16 %v5040, %v5039
      %v5071 = vpack.c.bf16 %v5042, %v5041
      %v5072 = vpack.c.bf16 %v5044, %v5043
      %v5073 = vpack.c.bf16 %v5046, %v5045
      %v5074 = vpack.c.bf16 %v5048, %v5047
      %v5075 = vpack.c.bf16 %v5050, %v5049
      %v5076 = vpack.c.bf16 %v5052, %v5051
      %v5077 = vpack.c.bf16 %v5054, %v5053
      %v5078 = vpack.c.bf16 %v5056, %v5055
      %v5079 = vpack.c.bf16 %v5058, %v5057
      %v5080 = vpack.c.bf16 %v5060, %v5059
      %v5081 = vpack.c.bf16 %v5062, %v5061
      %v5082 = vpack.c.bf16 %v5064, %v5063
      %v5083 = vpack.c.bf16 %v5066, %v5065
      %v5084 = vpack.c.bf16 %v5068, %v5067
      %s5085 = scalar_lea.vmem %s5, 128
      %v5086 = vld [vmem:[%s5085] sm:$0xf]
      %v5087 = vld [vmem:[%s5085 + $0x4] sm:$0xf]
      %v5088 = vld [vmem:[%s5085 + $0x8] sm:$0xf]
      %v5089 = vld [vmem:[%s5085 + $0xc] sm:$0xf]
      %v5090 = vld [vmem:[%s5085 + $0x10] sm:$0xf]
      %v5091 = vld [vmem:[%s5085 + $0x14] sm:$0xf]
      %v5092 = vld [vmem:[%s5085 + $0x18] sm:$0xf]
      %v5093 = vld [vmem:[%s5085 + $0x1c] sm:$0xf]
      %v5102 = vunpack.c.l.b16 %v5086
      %v5103 = vunpack.c.l.b16 %v5087
      %v5104 = vunpack.c.l.b16 %v5088
      %v5105 = vunpack.c.l.b16 %v5089
      %v5106 = vunpack.c.l.b16 %v5090
      %v5107 = vunpack.c.l.b16 %v5091
      %v5108 = vunpack.c.l.b16 %v5092
      %v5109 = vunpack.c.l.b16 %v5093
      %v5110 = vpack.c.b16 %v5103, %v5102
      %v5111 = vpack.c.b16 %v5105, %v5104
      %v5112 = vpack.c.b16 %v5107, %v5106
      %v5113 = vpack.c.b16 %v5109, %v5108
      %v5119 = vsel %vm788, %v5069, 0
      %v5122 = vsel %vm788, %v5070, 0
      %v5125 = vsel %vm788, %v5071, 0
      %v5128 = vsel %vm788, %v5072, 0
      %v5131 = vsel %vm788, %v5073, 0
      %v5134 = vsel %vm788, %v5074, 0
      %v5137 = vsel %vm788, %v5075, 0
      %v5140 = vsel %vm788, %v5076, 0
      %v5143 = vsel %vm788, %v5077, 0
      %v5146 = vsel %vm788, %v5078, 0
      %v5149 = vsel %vm788, %v5079, 0
      %v5152 = vsel %vm788, %v5080, 0
      %v5155 = vsel %vm788, %v5081, 0
      %v5158 = vsel %vm788, %v5082, 0
      %v5161 = vsel %vm788, %v5083, 0
      %v5164 = vsel %vm788, %v5084, 0
      %5166 = vmatprep.subr.bf16.mxu0 0
      %5167 = vmatpush1.bf16.msra.mxu0 0
      %5168 = vmatprep.subr.bf16.mxu0 0
      %5169 = vmatpush1.bf16.msra.mxu0 0
      %5170 = vmatprep.subr.bf16.mxu0 0
      %5171 = vmatpush1.bf16.msra.mxu0 0
      %5172 = vmatprep.subr.bf16.mxu0 0
      %5173 = vmatpush1.bf16.msra.mxu0 0
      %5174 = vmatprep.subr.bf16.mxu0 0
      %5175 = vmatpush1.bf16.msra.mxu0 %v5113
      %5176 = vmatprep.subr.bf16.mxu0 0
      %5177 = vmatpush1.bf16.msra.mxu0 %v5112
      %5178 = vmatprep.subr.bf16.mxu0 0
      %5179 = vmatpush1.bf16.msra.mxu0 %v5111
      %5180 = vmatprep.subr.bf16.mxu0 0
      %5181 = vmatpush1.bf16.msra.mxu0 %v5110
      %5182 = vmatprep.subr.bf16.mxu0 0
      %5183 = vmatpush2.bf16.msra.mxu0 0
      %5184 = vmatprep.subr.bf16.mxu0 0
      %5185 = vmatpush2.bf16.msra.mxu0 0
      %5186 = vmatprep.subr.bf16.mxu0 0
      %5187 = vmatpush2.bf16.msra.mxu0 0
      %5188 = vmatprep.subr.bf16.mxu0 0
      %5189 = vmatpush2.bf16.msra.mxu0 0
      %5190 = vmatprep.subr.bf16.mxu0 0
      %5191 = vmatpush2.bf16.msra.mxu0 0
      %5192 = vmatprep.subr.bf16.mxu0 0
      %5193 = vmatpush2.bf16.msra.mxu0 0
      %5194 = vmatprep.subr.bf16.mxu0 0
      %5195 = vmatpush2.bf16.msra.mxu0 0
      %5196 = vmatprep.subr.bf16.mxu0 0
      %5197 = vmatpush2.bf16.msra.mxu0 0
      %5198 = vmatprep.mubr.bf16.mxu0 0
      %5199 = vmatmul.mubr.bf16.gmra.mxu0 %v5119
      %v5200 = vpop.f32.mrf.mxu0
      %v5201 = vadd.f32 0.0, %v5200
      %v5202 = vpop.f32.mrf.mxu0
      %v5203 = vpop.f32.mrf.mxu0
      %v5204 = vadd.f32 0.0, %v5203
      %v5205 = vpop.f32.mrf.mxu0
      %5206 = vmatprep.mubr.bf16.mxu0 0
      %5207 = vmatmul.mubr.bf16.gmra.mxu0 %v5122
      %v5208 = vpop.f32.mrf.mxu0
      %v5209 = vadd.f32 0.0, %v5208
      %v5210 = vpop.f32.mrf.mxu0
      %v5211 = vpop.f32.mrf.mxu0
      %v5212 = vadd.f32 0.0, %v5211
      %v5213 = vpop.f32.mrf.mxu0
      %5214 = vmatprep.mubr.bf16.mxu0 0
      %5215 = vmatmul.mubr.bf16.gmra.mxu0 %v5125
      %v5216 = vpop.f32.mrf.mxu0
      %v5217 = vadd.f32 0.0, %v5216
      %v5218 = vpop.f32.mrf.mxu0
      %v5219 = vpop.f32.mrf.mxu0
      %v5220 = vadd.f32 0.0, %v5219
      %v5221 = vpop.f32.mrf.mxu0
      %5222 = vmatprep.mubr.bf16.mxu0 0
      %5223 = vmatmul.mubr.bf16.gmra.mxu0 %v5128
      %v5224 = vpop.f32.mrf.mxu0
      %v5225 = vadd.f32 0.0, %v5224
      %v5226 = vpop.f32.mrf.mxu0
      %v5227 = vpop.f32.mrf.mxu0
      %v5228 = vadd.f32 0.0, %v5227
      %v5229 = vpop.f32.mrf.mxu0
      %5230 = vmatprep.mubr.bf16.mxu0 0
      %5231 = vmatmul.mubr.bf16.gmra.mxu0 %v5131
      %v5232 = vpop.f32.mrf.mxu0
      %v5233 = vadd.f32 0.0, %v5232
      %v5234 = vpop.f32.mrf.mxu0
      %v5235 = vpop.f32.mrf.mxu0
      %v5236 = vadd.f32 0.0, %v5235
      %v5237 = vpop.f32.mrf.mxu0
      %5238 = vmatprep.mubr.bf16.mxu0 0
      %5239 = vmatmul.mubr.bf16.gmra.mxu0 %v5134
      %v5240 = vpop.f32.mrf.mxu0
      %v5241 = vadd.f32 0.0, %v5240
      %v5242 = vpop.f32.mrf.mxu0
      %v5243 = vpop.f32.mrf.mxu0
      %v5244 = vadd.f32 0.0, %v5243
      %v5245 = vpop.f32.mrf.mxu0
      %5246 = vmatprep.mubr.bf16.mxu0 0
      %5247 = vmatmul.mubr.bf16.gmra.mxu0 %v5137
      %v5248 = vpop.f32.mrf.mxu0
      %v5249 = vadd.f32 0.0, %v5248
      %v5250 = vpop.f32.mrf.mxu0
      %v5251 = vpop.f32.mrf.mxu0
      %v5252 = vadd.f32 0.0, %v5251
      %v5253 = vpop.f32.mrf.mxu0
      %5254 = vmatprep.mubr.bf16.mxu0 0
      %5255 = vmatmul.mubr.bf16.gmra.mxu0 %v5140
      %v5256 = vpop.f32.mrf.mxu0
      %v5257 = vadd.f32 0.0, %v5256
      %v5258 = vpop.f32.mrf.mxu0
      %v5259 = vpop.f32.mrf.mxu0
      %v5260 = vadd.f32 0.0, %v5259
      %v5261 = vpop.f32.mrf.mxu0
      %5262 = vmatprep.mubr.bf16.mxu0 0
      %5263 = vmatmul.mubr.bf16.gmra.mxu0 %v5143
      %v5264 = vpop.f32.mrf.mxu0
      %v5265 = vadd.f32 0.0, %v5264
      %v5266 = vpop.f32.mrf.mxu0
      %v5267 = vpop.f32.mrf.mxu0
      %v5268 = vadd.f32 0.0, %v5267
      %v5269 = vpop.f32.mrf.mxu0
      %5270 = vmatprep.mubr.bf16.mxu0 0
      %5271 = vmatmul.mubr.bf16.gmra.mxu0 %v5146
      %v5272 = vpop.f32.mrf.mxu0
      %v5273 = vadd.f32 0.0, %v5272
      %v5274 = vpop.f32.mrf.mxu0
      %v5275 = vpop.f32.mrf.mxu0
      %v5276 = vadd.f32 0.0, %v5275
      %v5277 = vpop.f32.mrf.mxu0
      %5278 = vmatprep.mubr.bf16.mxu0 0
      %5279 = vmatmul.mubr.bf16.gmra.mxu0 %v5149
      %v5280 = vpop.f32.mrf.mxu0
      %v5281 = vadd.f32 0.0, %v5280
      %v5282 = vpop.f32.mrf.mxu0
      %v5283 = vpop.f32.mrf.mxu0
      %v5284 = vadd.f32 0.0, %v5283
      %v5285 = vpop.f32.mrf.mxu0
      %5286 = vmatprep.mubr.bf16.mxu0 0
      %5287 = vmatmul.mubr.bf16.gmra.mxu0 %v5152
      %v5288 = vpop.f32.mrf.mxu0
      %v5289 = vadd.f32 0.0, %v5288
      %v5290 = vpop.f32.mrf.mxu0
      %v5291 = vpop.f32.mrf.mxu0
      %v5292 = vadd.f32 0.0, %v5291
      %v5293 = vpop.f32.mrf.mxu0
      %5294 = vmatprep.mubr.bf16.mxu0 0
      %5295 = vmatmul.mubr.bf16.gmra.mxu0 %v5155
      %v5296 = vpop.f32.mrf.mxu0
      %v5297 = vadd.f32 0.0, %v5296
      %v5298 = vpop.f32.mrf.mxu0
      %v5299 = vpop.f32.mrf.mxu0
      %v5300 = vadd.f32 0.0, %v5299
      %v5301 = vpop.f32.mrf.mxu0
      %5302 = vmatprep.mubr.bf16.mxu0 0
      %5303 = vmatmul.mubr.bf16.gmra.mxu0 %v5158
      %v5304 = vpop.f32.mrf.mxu0
      %v5305 = vadd.f32 0.0, %v5304
      %v5306 = vpop.f32.mrf.mxu0
      %v5307 = vpop.f32.mrf.mxu0
      %v5308 = vadd.f32 0.0, %v5307
      %v5309 = vpop.f32.mrf.mxu0
      %5310 = vmatprep.mubr.bf16.mxu0 0
      %5311 = vmatmul.mubr.bf16.gmra.mxu0 %v5161
      %v5312 = vpop.f32.mrf.mxu0
      %v5313 = vadd.f32 0.0, %v5312
      %v5314 = vpop.f32.mrf.mxu0
      %v5315 = vpop.f32.mrf.mxu0
      %v5316 = vadd.f32 0.0, %v5315
      %v5317 = vpop.f32.mrf.mxu0
      %5318 = vmatprep.mubr.bf16.mxu0 0
      %5319 = vmatmul.mubr.bf16.gmra.mxu0 %v5164
      %v5320 = vpop.f32.mrf.mxu0
      %v5321 = vadd.f32 0.0, %v5320
      %v5322 = vpop.f32.mrf.mxu0
      %v5323 = vpop.f32.mrf.mxu0
      %v5324 = vadd.f32 0.0, %v5323
      %v5325 = vpop.f32.mrf.mxu0
      %5326 = vdwg.mxu0
      %v5327 = vadd.f32 %v5005, %v5201
      %v5328 = vadd.f32 %v5006, %v5204
      %v5329 = vadd.f32 %v5007, %v5209
      %v5330 = vadd.f32 %v5008, %v5212
      %v5331 = vadd.f32 %v5009, %v5217
      %v5332 = vadd.f32 %v5010, %v5220
      %v5333 = vadd.f32 %v5011, %v5225
      %v5334 = vadd.f32 %v5012, %v5228
      %v5335 = vadd.f32 %v5013, %v5233
      %v5336 = vadd.f32 %v5014, %v5236
      %v5337 = vadd.f32 %v5015, %v5241
      %v5338 = vadd.f32 %v5016, %v5244
      %v5339 = vadd.f32 %v5017, %v5249
      %v5340 = vadd.f32 %v5018, %v5252
      %v5341 = vadd.f32 %v5019, %v5257
      %v5342 = vadd.f32 %v5020, %v5260
      %v5343 = vadd.f32 %v5021, %v5265
      %v5344 = vadd.f32 %v5022, %v5268
      %v5345 = vadd.f32 %v5023, %v5273
      %v5346 = vadd.f32 %v5024, %v5276
      %v5347 = vadd.f32 %v5025, %v5281
      %v5348 = vadd.f32 %v5026, %v5284
      %v5349 = vadd.f32 %v5027, %v5289
      %v5350 = vadd.f32 %v5028, %v5292
      %v5351 = vadd.f32 %v5029, %v5297
      %v5352 = vadd.f32 %v5030, %v5300
      %v5353 = vadd.f32 %v5031, %v5305
      %v5354 = vadd.f32 %v5032, %v5308
      %v5355 = vadd.f32 %v5033, %v5313
      %v5356 = vadd.f32 %v5034, %v5316
      %v5357 = vadd.f32 %v5035, %v5321
      %v5358 = vadd.f32 %v5036, %v5324
      %v5359 = vld [vmem:[%s844 + $0x2] sm:$0xff]
      %v5360 = vld [vmem:[%s844 + $0xa] sm:$0xff]
      %v5361 = vld [vmem:[%s844 + $0x1a] sm:$0xff]
      %v5362 = vld [vmem:[%s844 + $0x22] sm:$0xff]
      %v5363 = vld [vmem:[%s844 + $0x32] sm:$0xff]
      %v5364 = vld [vmem:[%s844 + $0x3a] sm:$0xff]
      %v5365 = vld [vmem:[%s844 + $0x4a] sm:$0xff]
      %v5366 = vld [vmem:[%s844 + $0x52] sm:$0xff]
      %v5367 = vld [vmem:[%s844 + $0x62] sm:$0xff]
      %v5368 = vld [vmem:[%s844 + $0x6a] sm:$0xff]
      %v5369 = vld [vmem:[%s844 + $0x7a] sm:$0xff]
      %v5370 = vld [vmem:[%s844 + $0x82] sm:$0xff]
      %v5371 = vld [vmem:[%s844 + $0x92] sm:$0xff]
      %v5372 = vld [vmem:[%s844 + $0x9a] sm:$0xff]
      %v5373 = vld [vmem:[%s844 + $0xaa] sm:$0xff]
      %v5374 = vld [vmem:[%s844 + $0xb2] sm:$0xff]
      %v5375 = vld [vmem:[%s844 + $0xc2] sm:$0xff]
      %v5376 = vld [vmem:[%s844 + $0xca] sm:$0xff]
      %v5377 = vld [vmem:[%s844 + $0xda] sm:$0xff]
      %v5378 = vld [vmem:[%s844 + $0xe2] sm:$0xff]
      %v5379 = vld [vmem:[%s844 + $0xf2] sm:$0xff]
      %v5380 = vld [vmem:[%s844 + $0xfa] sm:$0xff]
      %v5381 = vld [vmem:[%s844 + $0x10a] sm:$0xff]
      %v5382 = vld [vmem:[%s844 + $0x112] sm:$0xff]
      %v5383 = vld [vmem:[%s844 + $0x122] sm:$0xff]
      %v5384 = vld [vmem:[%s844 + $0x12a] sm:$0xff]
      %v5385 = vld [vmem:[%s844 + $0x13a] sm:$0xff]
      %v5386 = vld [vmem:[%s844 + $0x142] sm:$0xff]
      %v5387 = vld [vmem:[%s844 + $0x152] sm:$0xff]
      %v5388 = vld [vmem:[%s844 + $0x15a] sm:$0xff]
      %v5389 = vld [vmem:[%s844 + $0x16a] sm:$0xff]
      %v5390 = vld [vmem:[%s844 + $0x172] sm:$0xff]
      %v5391 = vpack.c.bf16 %v5360, %v5359
      %v5392 = vpack.c.bf16 %v5362, %v5361
      %v5393 = vpack.c.bf16 %v5364, %v5363
      %v5394 = vpack.c.bf16 %v5366, %v5365
      %v5395 = vpack.c.bf16 %v5368, %v5367
      %v5396 = vpack.c.bf16 %v5370, %v5369
      %v5397 = vpack.c.bf16 %v5372, %v5371
      %v5398 = vpack.c.bf16 %v5374, %v5373
      %v5399 = vpack.c.bf16 %v5376, %v5375
      %v5400 = vpack.c.bf16 %v5378, %v5377
      %v5401 = vpack.c.bf16 %v5380, %v5379
      %v5402 = vpack.c.bf16 %v5382, %v5381
      %v5403 = vpack.c.bf16 %v5384, %v5383
      %v5404 = vpack.c.bf16 %v5386, %v5385
      %v5405 = vpack.c.bf16 %v5388, %v5387
      %v5406 = vpack.c.bf16 %v5390, %v5389
      %s5407 = scalar_lea.vmem %s5, 160
      %v5408 = vld [vmem:[%s5407] sm:$0xf]
      %v5409 = vld [vmem:[%s5407 + $0x4] sm:$0xf]
      %v5410 = vld [vmem:[%s5407 + $0x8] sm:$0xf]
      %v5411 = vld [vmem:[%s5407 + $0xc] sm:$0xf]
      %v5412 = vld [vmem:[%s5407 + $0x10] sm:$0xf]
      %v5413 = vld [vmem:[%s5407 + $0x14] sm:$0xf]
      %v5414 = vld [vmem:[%s5407 + $0x18] sm:$0xf]
      %v5415 = vld [vmem:[%s5407 + $0x1c] sm:$0xf]
      %v5424 = vunpack.c.l.b16 %v5408
      %v5425 = vunpack.c.l.b16 %v5409
      %v5426 = vunpack.c.l.b16 %v5410
      %v5427 = vunpack.c.l.b16 %v5411
      %v5428 = vunpack.c.l.b16 %v5412
      %v5429 = vunpack.c.l.b16 %v5413
      %v5430 = vunpack.c.l.b16 %v5414
      %v5431 = vunpack.c.l.b16 %v5415
      %v5432 = vpack.c.b16 %v5425, %v5424
      %v5433 = vpack.c.b16 %v5427, %v5426
      %v5434 = vpack.c.b16 %v5429, %v5428
      %v5435 = vpack.c.b16 %v5431, %v5430
      %v5441 = vsel %vm788, %v5391, 0
      %v5444 = vsel %vm788, %v5392, 0
      %v5447 = vsel %vm788, %v5393, 0
      %v5450 = vsel %vm788, %v5394, 0
      %v5453 = vsel %vm788, %v5395, 0
      %v5456 = vsel %vm788, %v5396, 0
      %v5459 = vsel %vm788, %v5397, 0
      %v5462 = vsel %vm788, %v5398, 0
      %v5465 = vsel %vm788, %v5399, 0
      %v5468 = vsel %vm788, %v5400, 0
      %v5471 = vsel %vm788, %v5401, 0
      %v5474 = vsel %vm788, %v5402, 0
      %v5477 = vsel %vm788, %v5403, 0
      %v5480 = vsel %vm788, %v5404, 0
      %v5483 = vsel %vm788, %v5405, 0
      %v5486 = vsel %vm788, %v5406, 0
      %5488 = vmatprep.subr.bf16.mxu0 0
      %5489 = vmatpush1.bf16.msra.mxu0 0
      %5490 = vmatprep.subr.bf16.mxu0 0
      %5491 = vmatpush1.bf16.msra.mxu0 0
      %5492 = vmatprep.subr.bf16.mxu0 0
      %5493 = vmatpush1.bf16.msra.mxu0 0
      %5494 = vmatprep.subr.bf16.mxu0 0
      %5495 = vmatpush1.bf16.msra.mxu0 0
      %5496 = vmatprep.subr.bf16.mxu0 0
      %5497 = vmatpush1.bf16.msra.mxu0 %v5435
      %5498 = vmatprep.subr.bf16.mxu0 0
      %5499 = vmatpush1.bf16.msra.mxu0 %v5434
      %5500 = vmatprep.subr.bf16.mxu0 0
      %5501 = vmatpush1.bf16.msra.mxu0 %v5433
      %5502 = vmatprep.subr.bf16.mxu0 0
      %5503 = vmatpush1.bf16.msra.mxu0 %v5432
      %5504 = vmatprep.subr.bf16.mxu0 0
      %5505 = vmatpush2.bf16.msra.mxu0 0
      %5506 = vmatprep.subr.bf16.mxu0 0
      %5507 = vmatpush2.bf16.msra.mxu0 0
      %5508 = vmatprep.subr.bf16.mxu0 0
      %5509 = vmatpush2.bf16.msra.mxu0 0
      %5510 = vmatprep.subr.bf16.mxu0 0
      %5511 = vmatpush2.bf16.msra.mxu0 0
      %5512 = vmatprep.subr.bf16.mxu0 0
      %5513 = vmatpush2.bf16.msra.mxu0 0
      %5514 = vmatprep.subr.bf16.mxu0 0
      %5515 = vmatpush2.bf16.msra.mxu0 0
      %5516 = vmatprep.subr.bf16.mxu0 0
      %5517 = vmatpush2.bf16.msra.mxu0 0
      %5518 = vmatprep.subr.bf16.mxu0 0
      %5519 = vmatpush2.bf16.msra.mxu0 0
      %5520 = vmatprep.mubr.bf16.mxu0 0
      %5521 = vmatmul.mubr.bf16.gmra.mxu0 %v5441
      %v5522 = vpop.f32.mrf.mxu0
      %v5523 = vadd.f32 0.0, %v5522
      %v5524 = vpop.f32.mrf.mxu0
      %v5525 = vpop.f32.mrf.mxu0
      %v5526 = vadd.f32 0.0, %v5525
      %v5527 = vpop.f32.mrf.mxu0
      %5528 = vmatprep.mubr.bf16.mxu0 0
      %5529 = vmatmul.mubr.bf16.gmra.mxu0 %v5444
      %v5530 = vpop.f32.mrf.mxu0
      %v5531 = vadd.f32 0.0, %v5530
      %v5532 = vpop.f32.mrf.mxu0
      %v5533 = vpop.f32.mrf.mxu0
      %v5534 = vadd.f32 0.0, %v5533
      %v5535 = vpop.f32.mrf.mxu0
      %5536 = vmatprep.mubr.bf16.mxu0 0
      %5537 = vmatmul.mubr.bf16.gmra.mxu0 %v5447
      %v5538 = vpop.f32.mrf.mxu0
      %v5539 = vadd.f32 0.0, %v5538
      %v5540 = vpop.f32.mrf.mxu0
      %v5541 = vpop.f32.mrf.mxu0
      %v5542 = vadd.f32 0.0, %v5541
      %v5543 = vpop.f32.mrf.mxu0
      %5544 = vmatprep.mubr.bf16.mxu0 0
      %5545 = vmatmul.mubr.bf16.gmra.mxu0 %v5450
      %v5546 = vpop.f32.mrf.mxu0
      %v5547 = vadd.f32 0.0, %v5546
      %v5548 = vpop.f32.mrf.mxu0
      %v5549 = vpop.f32.mrf.mxu0
      %v5550 = vadd.f32 0.0, %v5549
      %v5551 = vpop.f32.mrf.mxu0
      %5552 = vmatprep.mubr.bf16.mxu0 0
      %5553 = vmatmul.mubr.bf16.gmra.mxu0 %v5453
      %v5554 = vpop.f32.mrf.mxu0
      %v5555 = vadd.f32 0.0, %v5554
      %v5556 = vpop.f32.mrf.mxu0
      %v5557 = vpop.f32.mrf.mxu0
      %v5558 = vadd.f32 0.0, %v5557
      %v5559 = vpop.f32.mrf.mxu0
      %5560 = vmatprep.mubr.bf16.mxu0 0
      %5561 = vmatmul.mubr.bf16.gmra.mxu0 %v5456
      %v5562 = vpop.f32.mrf.mxu0
      %v5563 = vadd.f32 0.0, %v5562
      %v5564 = vpop.f32.mrf.mxu0
      %v5565 = vpop.f32.mrf.mxu0
      %v5566 = vadd.f32 0.0, %v5565
      %v5567 = vpop.f32.mrf.mxu0
      %5568 = vmatprep.mubr.bf16.mxu0 0
      %5569 = vmatmul.mubr.bf16.gmra.mxu0 %v5459
      %v5570 = vpop.f32.mrf.mxu0
      %v5571 = vadd.f32 0.0, %v5570
      %v5572 = vpop.f32.mrf.mxu0
      %v5573 = vpop.f32.mrf.mxu0
      %v5574 = vadd.f32 0.0, %v5573
      %v5575 = vpop.f32.mrf.mxu0
      %5576 = vmatprep.mubr.bf16.mxu0 0
      %5577 = vmatmul.mubr.bf16.gmra.mxu0 %v5462
      %v5578 = vpop.f32.mrf.mxu0
      %v5579 = vadd.f32 0.0, %v5578
      %v5580 = vpop.f32.mrf.mxu0
      %v5581 = vpop.f32.mrf.mxu0
      %v5582 = vadd.f32 0.0, %v5581
      %v5583 = vpop.f32.mrf.mxu0
      %5584 = vmatprep.mubr.bf16.mxu0 0
      %5585 = vmatmul.mubr.bf16.gmra.mxu0 %v5465
      %v5586 = vpop.f32.mrf.mxu0
      %v5587 = vadd.f32 0.0, %v5586
      %v5588 = vpop.f32.mrf.mxu0
      %v5589 = vpop.f32.mrf.mxu0
      %v5590 = vadd.f32 0.0, %v5589
      %v5591 = vpop.f32.mrf.mxu0
      %5592 = vmatprep.mubr.bf16.mxu0 0
      %5593 = vmatmul.mubr.bf16.gmra.mxu0 %v5468
      %v5594 = vpop.f32.mrf.mxu0
      %v5595 = vadd.f32 0.0, %v5594
      %v5596 = vpop.f32.mrf.mxu0
      %v5597 = vpop.f32.mrf.mxu0
      %v5598 = vadd.f32 0.0, %v5597
      %v5599 = vpop.f32.mrf.mxu0
      %5600 = vmatprep.mubr.bf16.mxu0 0
      %5601 = vmatmul.mubr.bf16.gmra.mxu0 %v5471
      %v5602 = vpop.f32.mrf.mxu0
      %v5603 = vadd.f32 0.0, %v5602
      %v5604 = vpop.f32.mrf.mxu0
      %v5605 = vpop.f32.mrf.mxu0
      %v5606 = vadd.f32 0.0, %v5605
      %v5607 = vpop.f32.mrf.mxu0
      %5608 = vmatprep.mubr.bf16.mxu0 0
      %5609 = vmatmul.mubr.bf16.gmra.mxu0 %v5474
      %v5610 = vpop.f32.mrf.mxu0
      %v5611 = vadd.f32 0.0, %v5610
      %v5612 = vpop.f32.mrf.mxu0
      %v5613 = vpop.f32.mrf.mxu0
      %v5614 = vadd.f32 0.0, %v5613
      %v5615 = vpop.f32.mrf.mxu0
      %5616 = vmatprep.mubr.bf16.mxu0 0
      %5617 = vmatmul.mubr.bf16.gmra.mxu0 %v5477
      %v5618 = vpop.f32.mrf.mxu0
      %v5619 = vadd.f32 0.0, %v5618
      %v5620 = vpop.f32.mrf.mxu0
      %v5621 = vpop.f32.mrf.mxu0
      %v5622 = vadd.f32 0.0, %v5621
      %v5623 = vpop.f32.mrf.mxu0
      %5624 = vmatprep.mubr.bf16.mxu0 0
      %5625 = vmatmul.mubr.bf16.gmra.mxu0 %v5480
      %v5626 = vpop.f32.mrf.mxu0
      %v5627 = vadd.f32 0.0, %v5626
      %v5628 = vpop.f32.mrf.mxu0
      %v5629 = vpop.f32.mrf.mxu0
      %v5630 = vadd.f32 0.0, %v5629
      %v5631 = vpop.f32.mrf.mxu0
      %5632 = vmatprep.mubr.bf16.mxu0 0
      %5633 = vmatmul.mubr.bf16.gmra.mxu0 %v5483
      %v5634 = vpop.f32.mrf.mxu0
      %v5635 = vadd.f32 0.0, %v5634
      %v5636 = vpop.f32.mrf.mxu0
      %v5637 = vpop.f32.mrf.mxu0
      %v5638 = vadd.f32 0.0, %v5637
      %v5639 = vpop.f32.mrf.mxu0
      %5640 = vmatprep.mubr.bf16.mxu0 0
      %5641 = vmatmul.mubr.bf16.gmra.mxu0 %v5486
      %v5642 = vpop.f32.mrf.mxu0
      %v5643 = vadd.f32 0.0, %v5642
      %v5644 = vpop.f32.mrf.mxu0
      %v5645 = vpop.f32.mrf.mxu0
      %v5646 = vadd.f32 0.0, %v5645
      %v5647 = vpop.f32.mrf.mxu0
      %5648 = vdwg.mxu0
      %v5649 = vadd.f32 %v5327, %v5523
      %v5650 = vadd.f32 %v5328, %v5526
      %v5651 = vadd.f32 %v5329, %v5531
      %v5652 = vadd.f32 %v5330, %v5534
      %v5653 = vadd.f32 %v5331, %v5539
      %v5654 = vadd.f32 %v5332, %v5542
      %v5655 = vadd.f32 %v5333, %v5547
      %v5656 = vadd.f32 %v5334, %v5550
      %v5657 = vadd.f32 %v5335, %v5555
      %v5658 = vadd.f32 %v5336, %v5558
      %v5659 = vadd.f32 %v5337, %v5563
      %v5660 = vadd.f32 %v5338, %v5566
      %v5661 = vadd.f32 %v5339, %v5571
      %v5662 = vadd.f32 %v5340, %v5574
      %v5663 = vadd.f32 %v5341, %v5579
      %v5664 = vadd.f32 %v5342, %v5582
      %v5665 = vadd.f32 %v5343, %v5587
      %v5666 = vadd.f32 %v5344, %v5590
      %v5667 = vadd.f32 %v5345, %v5595
      %v5668 = vadd.f32 %v5346, %v5598
      %v5669 = vadd.f32 %v5347, %v5603
      %v5670 = vadd.f32 %v5348, %v5606
      %v5671 = vadd.f32 %v5349, %v5611
      %v5672 = vadd.f32 %v5350, %v5614
      %v5673 = vadd.f32 %v5351, %v5619
      %v5674 = vadd.f32 %v5352, %v5622
      %v5675 = vadd.f32 %v5353, %v5627
      %v5676 = vadd.f32 %v5354, %v5630
      %v5677 = vadd.f32 %v5355, %v5635
      %v5678 = vadd.f32 %v5356, %v5638
      %v5679 = vadd.f32 %v5357, %v5643
      %v5680 = vadd.f32 %v5358, %v5646
      %v5681 = vld [vmem:[%s2744] sm:$0xff]
      %v5682 = vld [vmem:[%s2744 + $0x8] sm:$0xff]
      %v5683 = vld [vmem:[%s2744 + $0x18] sm:$0xff]
      %v5684 = vld [vmem:[%s2744 + $0x20] sm:$0xff]
      %v5685 = vld [vmem:[%s2744 + $0x30] sm:$0xff]
      %v5686 = vld [vmem:[%s2744 + $0x38] sm:$0xff]
      %v5687 = vld [vmem:[%s2744 + $0x48] sm:$0xff]
      %v5688 = vld [vmem:[%s2744 + $0x50] sm:$0xff]
      %v5689 = vld [vmem:[%s2744 + $0x60] sm:$0xff]
      %v5690 = vld [vmem:[%s2744 + $0x68] sm:$0xff]
      %v5691 = vld [vmem:[%s2744 + $0x78] sm:$0xff]
      %v5692 = vld [vmem:[%s2744 + $0x80] sm:$0xff]
      %v5693 = vld [vmem:[%s2744 + $0x90] sm:$0xff]
      %v5694 = vld [vmem:[%s2744 + $0x98] sm:$0xff]
      %v5695 = vld [vmem:[%s2744 + $0xa8] sm:$0xff]
      %v5696 = vld [vmem:[%s2744 + $0xb0] sm:$0xff]
      %v5697 = vld [vmem:[%s2744 + $0xc0] sm:$0xff]
      %v5698 = vld [vmem:[%s2744 + $0xc8] sm:$0xff]
      %v5699 = vld [vmem:[%s2744 + $0xd8] sm:$0xff]
      %v5700 = vld [vmem:[%s2744 + $0xe0] sm:$0xff]
      %v5701 = vld [vmem:[%s2744 + $0xf0] sm:$0xff]
      %v5702 = vld [vmem:[%s2744 + $0xf8] sm:$0xff]
      %v5703 = vld [vmem:[%s2744 + $0x108] sm:$0xff]
      %v5704 = vld [vmem:[%s2744 + $0x110] sm:$0xff]
      %v5705 = vld [vmem:[%s2744 + $0x120] sm:$0xff]
      %v5706 = vld [vmem:[%s2744 + $0x128] sm:$0xff]
      %v5707 = vld [vmem:[%s2744 + $0x138] sm:$0xff]
      %v5708 = vld [vmem:[%s2744 + $0x140] sm:$0xff]
      %v5709 = vld [vmem:[%s2744 + $0x150] sm:$0xff]
      %v5710 = vld [vmem:[%s2744 + $0x158] sm:$0xff]
      %v5711 = vld [vmem:[%s2744 + $0x168] sm:$0xff]
      %v5712 = vld [vmem:[%s2744 + $0x170] sm:$0xff]
      %v5713 = vpack.c.bf16 %v5682, %v5681
      %v5714 = vpack.c.bf16 %v5684, %v5683
      %v5715 = vpack.c.bf16 %v5686, %v5685
      %v5716 = vpack.c.bf16 %v5688, %v5687
      %v5717 = vpack.c.bf16 %v5690, %v5689
      %v5718 = vpack.c.bf16 %v5692, %v5691
      %v5719 = vpack.c.bf16 %v5694, %v5693
      %v5720 = vpack.c.bf16 %v5696, %v5695
      %v5721 = vpack.c.bf16 %v5698, %v5697
      %v5722 = vpack.c.bf16 %v5700, %v5699
      %v5723 = vpack.c.bf16 %v5702, %v5701
      %v5724 = vpack.c.bf16 %v5704, %v5703
      %v5725 = vpack.c.bf16 %v5706, %v5705
      %v5726 = vpack.c.bf16 %v5708, %v5707
      %v5727 = vpack.c.bf16 %v5710, %v5709
      %v5728 = vpack.c.bf16 %v5712, %v5711
      %s5729 = scalar_lea.vmem %s5, 192
      %v5730 = vld [vmem:[%s5729] sm:$0xf]
      %v5731 = vld [vmem:[%s5729 + $0x4] sm:$0xf]
      %v5732 = vld [vmem:[%s5729 + $0x8] sm:$0xf]
      %v5733 = vld [vmem:[%s5729 + $0xc] sm:$0xf]
      %v5734 = vld [vmem:[%s5729 + $0x10] sm:$0xf]
      %v5735 = vld [vmem:[%s5729 + $0x14] sm:$0xf]
      %v5736 = vld [vmem:[%s5729 + $0x18] sm:$0xf]
      %v5737 = vld [vmem:[%s5729 + $0x1c] sm:$0xf]
      %v5746 = vunpack.c.l.b16 %v5730
      %v5747 = vunpack.c.l.b16 %v5731
      %v5748 = vunpack.c.l.b16 %v5732
      %v5749 = vunpack.c.l.b16 %v5733
      %v5750 = vunpack.c.l.b16 %v5734
      %v5751 = vunpack.c.l.b16 %v5735
      %v5752 = vunpack.c.l.b16 %v5736
      %v5753 = vunpack.c.l.b16 %v5737
      %v5754 = vpack.c.b16 %v5747, %v5746
      %v5755 = vpack.c.b16 %v5749, %v5748
      %v5756 = vpack.c.b16 %v5751, %v5750
      %v5757 = vpack.c.b16 %v5753, %v5752
      %v5763 = vsel %vm788, %v5713, 0
      %v5766 = vsel %vm788, %v5714, 0
      %v5769 = vsel %vm788, %v5715, 0
      %v5772 = vsel %vm788, %v5716, 0
      %v5775 = vsel %vm788, %v5717, 0
      %v5778 = vsel %vm788, %v5718, 0
      %v5781 = vsel %vm788, %v5719, 0
      %v5784 = vsel %vm788, %v5720, 0
      %v5787 = vsel %vm788, %v5721, 0
      %v5790 = vsel %vm788, %v5722, 0
      %v5793 = vsel %vm788, %v5723, 0
      %v5796 = vsel %vm788, %v5724, 0
      %v5799 = vsel %vm788, %v5725, 0
      %v5802 = vsel %vm788, %v5726, 0
      %v5805 = vsel %vm788, %v5727, 0
      %v5808 = vsel %vm788, %v5728, 0
      %5810 = vmatprep.subr.bf16.mxu0 0
      %5811 = vmatpush1.bf16.msra.mxu0 0
      %5812 = vmatprep.subr.bf16.mxu0 0
      %5813 = vmatpush1.bf16.msra.mxu0 0
      %5814 = vmatprep.subr.bf16.mxu0 0
      %5815 = vmatpush1.bf16.msra.mxu0 0
      %5816 = vmatprep.subr.bf16.mxu0 0
      %5817 = vmatpush1.bf16.msra.mxu0 0
      %5818 = vmatprep.subr.bf16.mxu0 0
      %5819 = vmatpush1.bf16.msra.mxu0 %v5757
      %5820 = vmatprep.subr.bf16.mxu0 0
      %5821 = vmatpush1.bf16.msra.mxu0 %v5756
      %5822 = vmatprep.subr.bf16.mxu0 0
      %5823 = vmatpush1.bf16.msra.mxu0 %v5755
      %5824 = vmatprep.subr.bf16.mxu0 0
      %5825 = vmatpush1.bf16.msra.mxu0 %v5754
      %5826 = vmatprep.subr.bf16.mxu0 0
      %5827 = vmatpush2.bf16.msra.mxu0 0
      %5828 = vmatprep.subr.bf16.mxu0 0
      %5829 = vmatpush2.bf16.msra.mxu0 0
      %5830 = vmatprep.subr.bf16.mxu0 0
      %5831 = vmatpush2.bf16.msra.mxu0 0
      %5832 = vmatprep.subr.bf16.mxu0 0
      %5833 = vmatpush2.bf16.msra.mxu0 0
      %5834 = vmatprep.subr.bf16.mxu0 0
      %5835 = vmatpush2.bf16.msra.mxu0 0
      %5836 = vmatprep.subr.bf16.mxu0 0
      %5837 = vmatpush2.bf16.msra.mxu0 0
      %5838 = vmatprep.subr.bf16.mxu0 0
      %5839 = vmatpush2.bf16.msra.mxu0 0
      %5840 = vmatprep.subr.bf16.mxu0 0
      %5841 = vmatpush2.bf16.msra.mxu0 0
      %5842 = vmatprep.mubr.bf16.mxu0 0
      %5843 = vmatmul.mubr.bf16.gmra.mxu0 %v5763
      %v5844 = vpop.f32.mrf.mxu0
      %v5845 = vadd.f32 0.0, %v5844
      %v5846 = vpop.f32.mrf.mxu0
      %v5847 = vpop.f32.mrf.mxu0
      %v5848 = vadd.f32 0.0, %v5847
      %v5849 = vpop.f32.mrf.mxu0
      %5850 = vmatprep.mubr.bf16.mxu0 0
      %5851 = vmatmul.mubr.bf16.gmra.mxu0 %v5766
      %v5852 = vpop.f32.mrf.mxu0
      %v5853 = vadd.f32 0.0, %v5852
      %v5854 = vpop.f32.mrf.mxu0
      %v5855 = vpop.f32.mrf.mxu0
      %v5856 = vadd.f32 0.0, %v5855
      %v5857 = vpop.f32.mrf.mxu0
      %5858 = vmatprep.mubr.bf16.mxu0 0
      %5859 = vmatmul.mubr.bf16.gmra.mxu0 %v5769
      %v5860 = vpop.f32.mrf.mxu0
      %v5861 = vadd.f32 0.0, %v5860
      %v5862 = vpop.f32.mrf.mxu0
      %v5863 = vpop.f32.mrf.mxu0
      %v5864 = vadd.f32 0.0, %v5863
      %v5865 = vpop.f32.mrf.mxu0
      %5866 = vmatprep.mubr.bf16.mxu0 0
      %5867 = vmatmul.mubr.bf16.gmra.mxu0 %v5772
      %v5868 = vpop.f32.mrf.mxu0
      %v5869 = vadd.f32 0.0, %v5868
      %v5870 = vpop.f32.mrf.mxu0
      %v5871 = vpop.f32.mrf.mxu0
      %v5872 = vadd.f32 0.0, %v5871
      %v5873 = vpop.f32.mrf.mxu0
      %5874 = vmatprep.mubr.bf16.mxu0 0
      %5875 = vmatmul.mubr.bf16.gmra.mxu0 %v5775
      %v5876 = vpop.f32.mrf.mxu0
      %v5877 = vadd.f32 0.0, %v5876
      %v5878 = vpop.f32.mrf.mxu0
      %v5879 = vpop.f32.mrf.mxu0
      %v5880 = vadd.f32 0.0, %v5879
      %v5881 = vpop.f32.mrf.mxu0
      %5882 = vmatprep.mubr.bf16.mxu0 0
      %5883 = vmatmul.mubr.bf16.gmra.mxu0 %v5778
      %v5884 = vpop.f32.mrf.mxu0
      %v5885 = vadd.f32 0.0, %v5884
      %v5886 = vpop.f32.mrf.mxu0
      %v5887 = vpop.f32.mrf.mxu0
      %v5888 = vadd.f32 0.0, %v5887
      %v5889 = vpop.f32.mrf.mxu0
      %5890 = vmatprep.mubr.bf16.mxu0 0
      %5891 = vmatmul.mubr.bf16.gmra.mxu0 %v5781
      %v5892 = vpop.f32.mrf.mxu0
      %v5893 = vadd.f32 0.0, %v5892
      %v5894 = vpop.f32.mrf.mxu0
      %v5895 = vpop.f32.mrf.mxu0
      %v5896 = vadd.f32 0.0, %v5895
      %v5897 = vpop.f32.mrf.mxu0
      %5898 = vmatprep.mubr.bf16.mxu0 0
      %5899 = vmatmul.mubr.bf16.gmra.mxu0 %v5784
      %v5900 = vpop.f32.mrf.mxu0
      %v5901 = vadd.f32 0.0, %v5900
      %v5902 = vpop.f32.mrf.mxu0
      %v5903 = vpop.f32.mrf.mxu0
      %v5904 = vadd.f32 0.0, %v5903
      %v5905 = vpop.f32.mrf.mxu0
      %5906 = vmatprep.mubr.bf16.mxu0 0
      %5907 = vmatmul.mubr.bf16.gmra.mxu0 %v5787
      %v5908 = vpop.f32.mrf.mxu0
      %v5909 = vadd.f32 0.0, %v5908
      %v5910 = vpop.f32.mrf.mxu0
      %v5911 = vpop.f32.mrf.mxu0
      %v5912 = vadd.f32 0.0, %v5911
      %v5913 = vpop.f32.mrf.mxu0
      %5914 = vmatprep.mubr.bf16.mxu0 0
      %5915 = vmatmul.mubr.bf16.gmra.mxu0 %v5790
      %v5916 = vpop.f32.mrf.mxu0
      %v5917 = vadd.f32 0.0, %v5916
      %v5918 = vpop.f32.mrf.mxu0
      %v5919 = vpop.f32.mrf.mxu0
      %v5920 = vadd.f32 0.0, %v5919
      %v5921 = vpop.f32.mrf.mxu0
      %5922 = vmatprep.mubr.bf16.mxu0 0
      %5923 = vmatmul.mubr.bf16.gmra.mxu0 %v5793
      %v5924 = vpop.f32.mrf.mxu0
      %v5925 = vadd.f32 0.0, %v5924
      %v5926 = vpop.f32.mrf.mxu0
      %v5927 = vpop.f32.mrf.mxu0
      %v5928 = vadd.f32 0.0, %v5927
      %v5929 = vpop.f32.mrf.mxu0
      %5930 = vmatprep.mubr.bf16.mxu0 0
      %5931 = vmatmul.mubr.bf16.gmra.mxu0 %v5796
      %v5932 = vpop.f32.mrf.mxu0
      %v5933 = vadd.f32 0.0, %v5932
      %v5934 = vpop.f32.mrf.mxu0
      %v5935 = vpop.f32.mrf.mxu0
      %v5936 = vadd.f32 0.0, %v5935
      %v5937 = vpop.f32.mrf.mxu0
      %5938 = vmatprep.mubr.bf16.mxu0 0
      %5939 = vmatmul.mubr.bf16.gmra.mxu0 %v5799
      %v5940 = vpop.f32.mrf.mxu0
      %v5941 = vadd.f32 0.0, %v5940
      %v5942 = vpop.f32.mrf.mxu0
      %v5943 = vpop.f32.mrf.mxu0
      %v5944 = vadd.f32 0.0, %v5943
      %v5945 = vpop.f32.mrf.mxu0
      %5946 = vmatprep.mubr.bf16.mxu0 0
      %5947 = vmatmul.mubr.bf16.gmra.mxu0 %v5802
      %v5948 = vpop.f32.mrf.mxu0
      %v5949 = vadd.f32 0.0, %v5948
      %v5950 = vpop.f32.mrf.mxu0
      %v5951 = vpop.f32.mrf.mxu0
      %v5952 = vadd.f32 0.0, %v5951
      %v5953 = vpop.f32.mrf.mxu0
      %5954 = vmatprep.mubr.bf16.mxu0 0
      %5955 = vmatmul.mubr.bf16.gmra.mxu0 %v5805
      %v5956 = vpop.f32.mrf.mxu0
      %v5957 = vadd.f32 0.0, %v5956
      %v5958 = vpop.f32.mrf.mxu0
      %v5959 = vpop.f32.mrf.mxu0
      %v5960 = vadd.f32 0.0, %v5959
      %v5961 = vpop.f32.mrf.mxu0
      %5962 = vmatprep.mubr.bf16.mxu0 0
      %5963 = vmatmul.mubr.bf16.gmra.mxu0 %v5808
      %v5964 = vpop.f32.mrf.mxu0
      %v5965 = vadd.f32 0.0, %v5964
      %v5966 = vpop.f32.mrf.mxu0
      %v5967 = vpop.f32.mrf.mxu0
      %v5968 = vadd.f32 0.0, %v5967
      %v5969 = vpop.f32.mrf.mxu0
      %5970 = vdwg.mxu0
      %v5971 = vadd.f32 %v5649, %v5845
      %v5972 = vadd.f32 %v5650, %v5848
      %v5973 = vadd.f32 %v5651, %v5853
      %v5974 = vadd.f32 %v5652, %v5856
      %v5975 = vadd.f32 %v5653, %v5861
      %v5976 = vadd.f32 %v5654, %v5864
      %v5977 = vadd.f32 %v5655, %v5869
      %v5978 = vadd.f32 %v5656, %v5872
      %v5979 = vadd.f32 %v5657, %v5877
      %v5980 = vadd.f32 %v5658, %v5880
      %v5981 = vadd.f32 %v5659, %v5885
      %v5982 = vadd.f32 %v5660, %v5888
      %v5983 = vadd.f32 %v5661, %v5893
      %v5984 = vadd.f32 %v5662, %v5896
      %v5985 = vadd.f32 %v5663, %v5901
      %v5986 = vadd.f32 %v5664, %v5904
      %v5987 = vadd.f32 %v5665, %v5909
      %v5988 = vadd.f32 %v5666, %v5912
      %v5989 = vadd.f32 %v5667, %v5917
      %v5990 = vadd.f32 %v5668, %v5920
      %v5991 = vadd.f32 %v5669, %v5925
      %v5992 = vadd.f32 %v5670, %v5928
      %v5993 = vadd.f32 %v5671, %v5933
      %v5994 = vadd.f32 %v5672, %v5936
      %v5995 = vadd.f32 %v5673, %v5941
      %v5996 = vadd.f32 %v5674, %v5944
      %v5997 = vadd.f32 %v5675, %v5949
      %v5998 = vadd.f32 %v5676, %v5952
      %v5999 = vadd.f32 %v5677, %v5957
      %v6000 = vadd.f32 %v5678, %v5960
      %v6001 = vadd.f32 %v5679, %v5965
      %v6002 = vadd.f32 %v5680, %v5968
      %v6003 = vld [vmem:[%s2744 + $0x1] sm:$0xff]
      %v6004 = vld [vmem:[%s2744 + $0x9] sm:$0xff]
      %v6005 = vld [vmem:[%s2744 + $0x19] sm:$0xff]
      %v6006 = vld [vmem:[%s2744 + $0x21] sm:$0xff]
      %v6007 = vld [vmem:[%s2744 + $0x31] sm:$0xff]
      %v6008 = vld [vmem:[%s2744 + $0x39] sm:$0xff]
      %v6009 = vld [vmem:[%s2744 + $0x49] sm:$0xff]
      %v6010 = vld [vmem:[%s2744 + $0x51] sm:$0xff]
      %v6011 = vld [vmem:[%s2744 + $0x61] sm:$0xff]
      %v6012 = vld [vmem:[%s2744 + $0x69] sm:$0xff]
      %v6013 = vld [vmem:[%s2744 + $0x79] sm:$0xff]
      %v6014 = vld [vmem:[%s2744 + $0x81] sm:$0xff]
      %v6015 = vld [vmem:[%s2744 + $0x91] sm:$0xff]
      %v6016 = vld [vmem:[%s2744 + $0x99] sm:$0xff]
      %v6017 = vld [vmem:[%s2744 + $0xa9] sm:$0xff]
      %v6018 = vld [vmem:[%s2744 + $0xb1] sm:$0xff]
      %v6019 = vld [vmem:[%s2744 + $0xc1] sm:$0xff]
      %v6020 = vld [vmem:[%s2744 + $0xc9] sm:$0xff]
      %v6021 = vld [vmem:[%s2744 + $0xd9] sm:$0xff]
      %v6022 = vld [vmem:[%s2744 + $0xe1] sm:$0xff]
      %v6023 = vld [vmem:[%s2744 + $0xf1] sm:$0xff]
      %v6024 = vld [vmem:[%s2744 + $0xf9] sm:$0xff]
      %v6025 = vld [vmem:[%s2744 + $0x109] sm:$0xff]
      %v6026 = vld [vmem:[%s2744 + $0x111] sm:$0xff]
      %v6027 = vld [vmem:[%s2744 + $0x121] sm:$0xff]
      %v6028 = vld [vmem:[%s2744 + $0x129] sm:$0xff]
      %v6029 = vld [vmem:[%s2744 + $0x139] sm:$0xff]
      %v6030 = vld [vmem:[%s2744 + $0x141] sm:$0xff]
      %v6031 = vld [vmem:[%s2744 + $0x151] sm:$0xff]
      %v6032 = vld [vmem:[%s2744 + $0x159] sm:$0xff]
      %v6033 = vld [vmem:[%s2744 + $0x169] sm:$0xff]
      %v6034 = vld [vmem:[%s2744 + $0x171] sm:$0xff]
      %v6035 = vpack.c.bf16 %v6004, %v6003
      %v6036 = vpack.c.bf16 %v6006, %v6005
      %v6037 = vpack.c.bf16 %v6008, %v6007
      %v6038 = vpack.c.bf16 %v6010, %v6009
      %v6039 = vpack.c.bf16 %v6012, %v6011
      %v6040 = vpack.c.bf16 %v6014, %v6013
      %v6041 = vpack.c.bf16 %v6016, %v6015
      %v6042 = vpack.c.bf16 %v6018, %v6017
      %v6043 = vpack.c.bf16 %v6020, %v6019
      %v6044 = vpack.c.bf16 %v6022, %v6021
      %v6045 = vpack.c.bf16 %v6024, %v6023
      %v6046 = vpack.c.bf16 %v6026, %v6025
      %v6047 = vpack.c.bf16 %v6028, %v6027
      %v6048 = vpack.c.bf16 %v6030, %v6029
      %v6049 = vpack.c.bf16 %v6032, %v6031
      %v6050 = vpack.c.bf16 %v6034, %v6033
      %s6051 = scalar_lea.vmem %s5, 224
      %v6052 = vld [vmem:[%s6051] sm:$0xf]
      %v6053 = vld [vmem:[%s6051 + $0x4] sm:$0xf]
      %v6054 = vld [vmem:[%s6051 + $0x8] sm:$0xf]
      %v6055 = vld [vmem:[%s6051 + $0xc] sm:$0xf]
      %v6056 = vld [vmem:[%s6051 + $0x10] sm:$0xf]
      %v6057 = vld [vmem:[%s6051 + $0x14] sm:$0xf]
      %v6058 = vld [vmem:[%s6051 + $0x18] sm:$0xf]
      %v6059 = vld [vmem:[%s6051 + $0x1c] sm:$0xf]
      %v6068 = vunpack.c.l.b16 %v6052
      %v6069 = vunpack.c.l.b16 %v6053
      %v6070 = vunpack.c.l.b16 %v6054
      %v6071 = vunpack.c.l.b16 %v6055
      %v6072 = vunpack.c.l.b16 %v6056
      %v6073 = vunpack.c.l.b16 %v6057
      %v6074 = vunpack.c.l.b16 %v6058
      %v6075 = vunpack.c.l.b16 %v6059
      %v6076 = vpack.c.b16 %v6069, %v6068
      %v6077 = vpack.c.b16 %v6071, %v6070
      %v6078 = vpack.c.b16 %v6073, %v6072
      %v6079 = vpack.c.b16 %v6075, %v6074
      %v6085 = vsel %vm788, %v6035, 0
      %v6088 = vsel %vm788, %v6036, 0
      %v6091 = vsel %vm788, %v6037, 0
      %v6094 = vsel %vm788, %v6038, 0
      %v6097 = vsel %vm788, %v6039, 0
      %v6100 = vsel %vm788, %v6040, 0
      %v6103 = vsel %vm788, %v6041, 0
      %v6106 = vsel %vm788, %v6042, 0
      %v6109 = vsel %vm788, %v6043, 0
      %v6112 = vsel %vm788, %v6044, 0
      %v6115 = vsel %vm788, %v6045, 0
      %v6118 = vsel %vm788, %v6046, 0
      %v6121 = vsel %vm788, %v6047, 0
      %v6124 = vsel %vm788, %v6048, 0
      %v6127 = vsel %vm788, %v6049, 0
      %v6130 = vsel %vm788, %v6050, 0
      %6132 = vmatprep.subr.bf16.mxu0 0
      %6133 = vmatpush1.bf16.msra.mxu0 0
      %6134 = vmatprep.subr.bf16.mxu0 0
      %6135 = vmatpush1.bf16.msra.mxu0 0
      %6136 = vmatprep.subr.bf16.mxu0 0
      %6137 = vmatpush1.bf16.msra.mxu0 0
      %6138 = vmatprep.subr.bf16.mxu0 0
      %6139 = vmatpush1.bf16.msra.mxu0 0
      %6140 = vmatprep.subr.bf16.mxu0 0
      %6141 = vmatpush1.bf16.msra.mxu0 %v6079
      %6142 = vmatprep.subr.bf16.mxu0 0
      %6143 = vmatpush1.bf16.msra.mxu0 %v6078
      %6144 = vmatprep.subr.bf16.mxu0 0
      %6145 = vmatpush1.bf16.msra.mxu0 %v6077
      %6146 = vmatprep.subr.bf16.mxu0 0
      %6147 = vmatpush1.bf16.msra.mxu0 %v6076
      %6148 = vmatprep.subr.bf16.mxu0 0
      %6149 = vmatpush2.bf16.msra.mxu0 0
      %6150 = vmatprep.subr.bf16.mxu0 0
      %6151 = vmatpush2.bf16.msra.mxu0 0
      %6152 = vmatprep.subr.bf16.mxu0 0
      %6153 = vmatpush2.bf16.msra.mxu0 0
      %6154 = vmatprep.subr.bf16.mxu0 0
      %6155 = vmatpush2.bf16.msra.mxu0 0
      %6156 = vmatprep.subr.bf16.mxu0 0
      %6157 = vmatpush2.bf16.msra.mxu0 0
      %6158 = vmatprep.subr.bf16.mxu0 0
      %6159 = vmatpush2.bf16.msra.mxu0 0
      %6160 = vmatprep.subr.bf16.mxu0 0
      %6161 = vmatpush2.bf16.msra.mxu0 0
      %6162 = vmatprep.subr.bf16.mxu0 0
      %6163 = vmatpush2.bf16.msra.mxu0 0
      %6164 = vmatprep.mubr.bf16.mxu0 0
      %6165 = vmatmul.mubr.bf16.gmra.mxu0 %v6085
      %v6166 = vpop.f32.mrf.mxu0
      %v6167 = vadd.f32 0.0, %v6166
      %v6168 = vpop.f32.mrf.mxu0
      %v6169 = vpop.f32.mrf.mxu0
      %v6170 = vadd.f32 0.0, %v6169
      %v6171 = vpop.f32.mrf.mxu0
      %6172 = vmatprep.mubr.bf16.mxu0 0
      %6173 = vmatmul.mubr.bf16.gmra.mxu0 %v6088
      %v6174 = vpop.f32.mrf.mxu0
      %v6175 = vadd.f32 0.0, %v6174
      %v6176 = vpop.f32.mrf.mxu0
      %v6177 = vpop.f32.mrf.mxu0
      %v6178 = vadd.f32 0.0, %v6177
      %v6179 = vpop.f32.mrf.mxu0
      %6180 = vmatprep.mubr.bf16.mxu0 0
      %6181 = vmatmul.mubr.bf16.gmra.mxu0 %v6091
      %v6182 = vpop.f32.mrf.mxu0
      %v6183 = vadd.f32 0.0, %v6182
      %v6184 = vpop.f32.mrf.mxu0
      %v6185 = vpop.f32.mrf.mxu0
      %v6186 = vadd.f32 0.0, %v6185
      %v6187 = vpop.f32.mrf.mxu0
      %6188 = vmatprep.mubr.bf16.mxu0 0
      %6189 = vmatmul.mubr.bf16.gmra.mxu0 %v6094
      %v6190 = vpop.f32.mrf.mxu0
      %v6191 = vadd.f32 0.0, %v6190
      %v6192 = vpop.f32.mrf.mxu0
      %v6193 = vpop.f32.mrf.mxu0
      %v6194 = vadd.f32 0.0, %v6193
      %v6195 = vpop.f32.mrf.mxu0
      %6196 = vmatprep.mubr.bf16.mxu0 0
      %6197 = vmatmul.mubr.bf16.gmra.mxu0 %v6097
      %v6198 = vpop.f32.mrf.mxu0
      %v6199 = vadd.f32 0.0, %v6198
      %v6200 = vpop.f32.mrf.mxu0
      %v6201 = vpop.f32.mrf.mxu0
      %v6202 = vadd.f32 0.0, %v6201
      %v6203 = vpop.f32.mrf.mxu0
      %6204 = vmatprep.mubr.bf16.mxu0 0
      %6205 = vmatmul.mubr.bf16.gmra.mxu0 %v6100
      %v6206 = vpop.f32.mrf.mxu0
      %v6207 = vadd.f32 0.0, %v6206
      %v6208 = vpop.f32.mrf.mxu0
      %v6209 = vpop.f32.mrf.mxu0
      %v6210 = vadd.f32 0.0, %v6209
      %v6211 = vpop.f32.mrf.mxu0
      %6212 = vmatprep.mubr.bf16.mxu0 0
      %6213 = vmatmul.mubr.bf16.gmra.mxu0 %v6103
      %v6214 = vpop.f32.mrf.mxu0
      %v6215 = vadd.f32 0.0, %v6214
      %v6216 = vpop.f32.mrf.mxu0
      %v6217 = vpop.f32.mrf.mxu0
      %v6218 = vadd.f32 0.0, %v6217
      %v6219 = vpop.f32.mrf.mxu0
      %6220 = vmatprep.mubr.bf16.mxu0 0
      %6221 = vmatmul.mubr.bf16.gmra.mxu0 %v6106
      %v6222 = vpop.f32.mrf.mxu0
      %v6223 = vadd.f32 0.0, %v6222
      %v6224 = vpop.f32.mrf.mxu0
      %v6225 = vpop.f32.mrf.mxu0
      %v6226 = vadd.f32 0.0, %v6225
      %v6227 = vpop.f32.mrf.mxu0
      %6228 = vmatprep.mubr.bf16.mxu0 0
      %6229 = vmatmul.mubr.bf16.gmra.mxu0 %v6109
      %v6230 = vpop.f32.mrf.mxu0
      %v6231 = vadd.f32 0.0, %v6230
      %v6232 = vpop.f32.mrf.mxu0
      %v6233 = vpop.f32.mrf.mxu0
      %v6234 = vadd.f32 0.0, %v6233
      %v6235 = vpop.f32.mrf.mxu0
      %6236 = vmatprep.mubr.bf16.mxu0 0
      %6237 = vmatmul.mubr.bf16.gmra.mxu0 %v6112
      %v6238 = vpop.f32.mrf.mxu0
      %v6239 = vadd.f32 0.0, %v6238
      %v6240 = vpop.f32.mrf.mxu0
      %v6241 = vpop.f32.mrf.mxu0
      %v6242 = vadd.f32 0.0, %v6241
      %v6243 = vpop.f32.mrf.mxu0
      %6244 = vmatprep.mubr.bf16.mxu0 0
      %6245 = vmatmul.mubr.bf16.gmra.mxu0 %v6115
      %v6246 = vpop.f32.mrf.mxu0
      %v6247 = vadd.f32 0.0, %v6246
      %v6248 = vpop.f32.mrf.mxu0
      %v6249 = vpop.f32.mrf.mxu0
      %v6250 = vadd.f32 0.0, %v6249
      %v6251 = vpop.f32.mrf.mxu0
      %6252 = vmatprep.mubr.bf16.mxu0 0
      %6253 = vmatmul.mubr.bf16.gmra.mxu0 %v6118
      %v6254 = vpop.f32.mrf.mxu0
      %v6255 = vadd.f32 0.0, %v6254
      %v6256 = vpop.f32.mrf.mxu0
      %v6257 = vpop.f32.mrf.mxu0
      %v6258 = vadd.f32 0.0, %v6257
      %v6259 = vpop.f32.mrf.mxu0
      %6260 = vmatprep.mubr.bf16.mxu0 0
      %6261 = vmatmul.mubr.bf16.gmra.mxu0 %v6121
      %v6262 = vpop.f32.mrf.mxu0
      %v6263 = vadd.f32 0.0, %v6262
      %v6264 = vpop.f32.mrf.mxu0
      %v6265 = vpop.f32.mrf.mxu0
      %v6266 = vadd.f32 0.0, %v6265
      %v6267 = vpop.f32.mrf.mxu0
      %6268 = vmatprep.mubr.bf16.mxu0 0
      %6269 = vmatmul.mubr.bf16.gmra.mxu0 %v6124
      %v6270 = vpop.f32.mrf.mxu0
      %v6271 = vadd.f32 0.0, %v6270
      %v6272 = vpop.f32.mrf.mxu0
      %v6273 = vpop.f32.mrf.mxu0
      %v6274 = vadd.f32 0.0, %v6273
      %v6275 = vpop.f32.mrf.mxu0
      %6276 = vmatprep.mubr.bf16.mxu0 0
      %6277 = vmatmul.mubr.bf16.gmra.mxu0 %v6127
      %v6278 = vpop.f32.mrf.mxu0
      %v6279 = vadd.f32 0.0, %v6278
      %v6280 = vpop.f32.mrf.mxu0
      %v6281 = vpop.f32.mrf.mxu0
      %v6282 = vadd.f32 0.0, %v6281
      %v6283 = vpop.f32.mrf.mxu0
      %6284 = vmatprep.mubr.bf16.mxu0 0
      %6285 = vmatmul.mubr.bf16.gmra.mxu0 %v6130
      %v6286 = vpop.f32.mrf.mxu0
      %v6287 = vadd.f32 0.0, %v6286
      %v6288 = vpop.f32.mrf.mxu0
      %v6289 = vpop.f32.mrf.mxu0
      %v6290 = vadd.f32 0.0, %v6289
      %v6291 = vpop.f32.mrf.mxu0
      %6292 = vdwg.mxu0
      %v6293 = vadd.f32 %v5971, %v6167
      %v6294 = vadd.f32 %v5972, %v6170
      %v6295 = vadd.f32 %v5973, %v6175
      %v6296 = vadd.f32 %v5974, %v6178
      %v6297 = vadd.f32 %v5975, %v6183
      %v6298 = vadd.f32 %v5976, %v6186
      %v6299 = vadd.f32 %v5977, %v6191
      %v6300 = vadd.f32 %v5978, %v6194
      %v6301 = vadd.f32 %v5979, %v6199
      %v6302 = vadd.f32 %v5980, %v6202
      %v6303 = vadd.f32 %v5981, %v6207
      %v6304 = vadd.f32 %v5982, %v6210
      %v6305 = vadd.f32 %v5983, %v6215
      %v6306 = vadd.f32 %v5984, %v6218
      %v6307 = vadd.f32 %v5985, %v6223
      %v6308 = vadd.f32 %v5986, %v6226
      %v6309 = vadd.f32 %v5987, %v6231
      %v6310 = vadd.f32 %v5988, %v6234
      %v6311 = vadd.f32 %v5989, %v6239
      %v6312 = vadd.f32 %v5990, %v6242
      %v6313 = vadd.f32 %v5991, %v6247
      %v6314 = vadd.f32 %v5992, %v6250
      %v6315 = vadd.f32 %v5993, %v6255
      %v6316 = vadd.f32 %v5994, %v6258
      %v6317 = vadd.f32 %v5995, %v6263
      %v6318 = vadd.f32 %v5996, %v6266
      %v6319 = vadd.f32 %v5997, %v6271
      %v6320 = vadd.f32 %v5998, %v6274
      %v6321 = vadd.f32 %v5999, %v6279
      %v6322 = vadd.f32 %v6000, %v6282
      %v6323 = vadd.f32 %v6001, %v6287
      %v6324 = vadd.f32 %v6002, %v6290
      %v6325 = vld [vmem:[%s2744 + $0x2] sm:$0xff]
      %v6326 = vld [vmem:[%s2744 + $0xa] sm:$0xff]
      %v6327 = vld [vmem:[%s2744 + $0x1a] sm:$0xff]
      %v6328 = vld [vmem:[%s2744 + $0x22] sm:$0xff]
      %v6329 = vld [vmem:[%s2744 + $0x32] sm:$0xff]
      %v6330 = vld [vmem:[%s2744 + $0x3a] sm:$0xff]
      %v6331 = vld [vmem:[%s2744 + $0x4a] sm:$0xff]
      %v6332 = vld [vmem:[%s2744 + $0x52] sm:$0xff]
      %v6333 = vld [vmem:[%s2744 + $0x62] sm:$0xff]
      %v6334 = vld [vmem:[%s2744 + $0x6a] sm:$0xff]
      %v6335 = vld [vmem:[%s2744 + $0x7a] sm:$0xff]
      %v6336 = vld [vmem:[%s2744 + $0x82] sm:$0xff]
      %v6337 = vld [vmem:[%s2744 + $0x92] sm:$0xff]
      %v6338 = vld [vmem:[%s2744 + $0x9a] sm:$0xff]
      %v6339 = vld [vmem:[%s2744 + $0xaa] sm:$0xff]
      %v6340 = vld [vmem:[%s2744 + $0xb2] sm:$0xff]
      %v6341 = vld [vmem:[%s2744 + $0xc2] sm:$0xff]
      %v6342 = vld [vmem:[%s2744 + $0xca] sm:$0xff]
      %v6343 = vld [vmem:[%s2744 + $0xda] sm:$0xff]
      %v6344 = vld [vmem:[%s2744 + $0xe2] sm:$0xff]
      %v6345 = vld [vmem:[%s2744 + $0xf2] sm:$0xff]
      %v6346 = vld [vmem:[%s2744 + $0xfa] sm:$0xff]
      %v6347 = vld [vmem:[%s2744 + $0x10a] sm:$0xff]
      %v6348 = vld [vmem:[%s2744 + $0x112] sm:$0xff]
      %v6349 = vld [vmem:[%s2744 + $0x122] sm:$0xff]
      %v6350 = vld [vmem:[%s2744 + $0x12a] sm:$0xff]
      %v6351 = vld [vmem:[%s2744 + $0x13a] sm:$0xff]
      %v6352 = vld [vmem:[%s2744 + $0x142] sm:$0xff]
      %v6353 = vld [vmem:[%s2744 + $0x152] sm:$0xff]
      %v6354 = vld [vmem:[%s2744 + $0x15a] sm:$0xff]
      %v6355 = vld [vmem:[%s2744 + $0x16a] sm:$0xff]
      %v6356 = vld [vmem:[%s2744 + $0x172] sm:$0xff]
      %v6357 = vpack.c.bf16 %v6326, %v6325
      %v6358 = vpack.c.bf16 %v6328, %v6327
      %v6359 = vpack.c.bf16 %v6330, %v6329
      %v6360 = vpack.c.bf16 %v6332, %v6331
      %v6361 = vpack.c.bf16 %v6334, %v6333
      %v6362 = vpack.c.bf16 %v6336, %v6335
      %v6363 = vpack.c.bf16 %v6338, %v6337
      %v6364 = vpack.c.bf16 %v6340, %v6339
      %v6365 = vpack.c.bf16 %v6342, %v6341
      %v6366 = vpack.c.bf16 %v6344, %v6343
      %v6367 = vpack.c.bf16 %v6346, %v6345
      %v6368 = vpack.c.bf16 %v6348, %v6347
      %v6369 = vpack.c.bf16 %v6350, %v6349
      %v6370 = vpack.c.bf16 %v6352, %v6351
      %v6371 = vpack.c.bf16 %v6354, %v6353
      %v6372 = vpack.c.bf16 %v6356, %v6355
      %s6373 = scalar_lea.vmem %s5, 256
      %v6374 = vld [vmem:[%s6373] sm:$0xf]
      %v6375 = vld [vmem:[%s6373 + $0x4] sm:$0xf]
      %v6376 = vld [vmem:[%s6373 + $0x8] sm:$0xf]
      %v6377 = vld [vmem:[%s6373 + $0xc] sm:$0xf]
      %v6378 = vld [vmem:[%s6373 + $0x10] sm:$0xf]
      %v6379 = vld [vmem:[%s6373 + $0x14] sm:$0xf]
      %v6380 = vld [vmem:[%s6373 + $0x18] sm:$0xf]
      %v6381 = vld [vmem:[%s6373 + $0x1c] sm:$0xf]
      %v6390 = vunpack.c.l.b16 %v6374
      %v6391 = vunpack.c.l.b16 %v6375
      %v6392 = vunpack.c.l.b16 %v6376
      %v6393 = vunpack.c.l.b16 %v6377
      %v6394 = vunpack.c.l.b16 %v6378
      %v6395 = vunpack.c.l.b16 %v6379
      %v6396 = vunpack.c.l.b16 %v6380
      %v6397 = vunpack.c.l.b16 %v6381
      %v6398 = vpack.c.b16 %v6391, %v6390
      %v6399 = vpack.c.b16 %v6393, %v6392
      %v6400 = vpack.c.b16 %v6395, %v6394
      %v6401 = vpack.c.b16 %v6397, %v6396
      %v6407 = vsel %vm788, %v6357, 0
      %v6410 = vsel %vm788, %v6358, 0
      %v6413 = vsel %vm788, %v6359, 0
      %v6416 = vsel %vm788, %v6360, 0
      %v6419 = vsel %vm788, %v6361, 0
      %v6422 = vsel %vm788, %v6362, 0
      %v6425 = vsel %vm788, %v6363, 0
      %v6428 = vsel %vm788, %v6364, 0
      %v6431 = vsel %vm788, %v6365, 0
      %v6434 = vsel %vm788, %v6366, 0
      %v6437 = vsel %vm788, %v6367, 0
      %v6440 = vsel %vm788, %v6368, 0
      %v6443 = vsel %vm788, %v6369, 0
      %v6446 = vsel %vm788, %v6370, 0
      %v6449 = vsel %vm788, %v6371, 0
      %v6452 = vsel %vm788, %v6372, 0
      %6454 = vmatprep.subr.bf16.mxu0 0
      %6455 = vmatpush1.bf16.msra.mxu0 0
      %6456 = vmatprep.subr.bf16.mxu0 0
      %6457 = vmatpush1.bf16.msra.mxu0 0
      %6458 = vmatprep.subr.bf16.mxu0 0
      %6459 = vmatpush1.bf16.msra.mxu0 0
      %6460 = vmatprep.subr.bf16.mxu0 0
      %6461 = vmatpush1.bf16.msra.mxu0 0
      %6462 = vmatprep.subr.bf16.mxu0 0
      %6463 = vmatpush1.bf16.msra.mxu0 %v6401
      %6464 = vmatprep.subr.bf16.mxu0 0
      %6465 = vmatpush1.bf16.msra.mxu0 %v6400
      %6466 = vmatprep.subr.bf16.mxu0 0
      %6467 = vmatpush1.bf16.msra.mxu0 %v6399
      %6468 = vmatprep.subr.bf16.mxu0 0
      %6469 = vmatpush1.bf16.msra.mxu0 %v6398
      %6470 = vmatprep.subr.bf16.mxu0 0
      %6471 = vmatpush2.bf16.msra.mxu0 0
      %6472 = vmatprep.subr.bf16.mxu0 0
      %6473 = vmatpush2.bf16.msra.mxu0 0
      %6474 = vmatprep.subr.bf16.mxu0 0
      %6475 = vmatpush2.bf16.msra.mxu0 0
      %6476 = vmatprep.subr.bf16.mxu0 0
      %6477 = vmatpush2.bf16.msra.mxu0 0
      %6478 = vmatprep.subr.bf16.mxu0 0
      %6479 = vmatpush2.bf16.msra.mxu0 0
      %6480 = vmatprep.subr.bf16.mxu0 0
      %6481 = vmatpush2.bf16.msra.mxu0 0
      %6482 = vmatprep.subr.bf16.mxu0 0
      %6483 = vmatpush2.bf16.msra.mxu0 0
      %6484 = vmatprep.subr.bf16.mxu0 0
      %6485 = vmatpush2.bf16.msra.mxu0 0
      %6486 = vmatprep.mubr.bf16.mxu0 0
      %6487 = vmatmul.mubr.bf16.gmra.mxu0 %v6407
      %v6488 = vpop.f32.mrf.mxu0
      %v6489 = vadd.f32 0.0, %v6488
      %v6490 = vpop.f32.mrf.mxu0
      %v6491 = vpop.f32.mrf.mxu0
      %v6492 = vadd.f32 0.0, %v6491
      %v6493 = vpop.f32.mrf.mxu0
      %6494 = vmatprep.mubr.bf16.mxu0 0
      %6495 = vmatmul.mubr.bf16.gmra.mxu0 %v6410
      %v6496 = vpop.f32.mrf.mxu0
      %v6497 = vadd.f32 0.0, %v6496
      %v6498 = vpop.f32.mrf.mxu0
      %v6499 = vpop.f32.mrf.mxu0
      %v6500 = vadd.f32 0.0, %v6499
      %v6501 = vpop.f32.mrf.mxu0
      %6502 = vmatprep.mubr.bf16.mxu0 0
      %6503 = vmatmul.mubr.bf16.gmra.mxu0 %v6413
      %v6504 = vpop.f32.mrf.mxu0
      %v6505 = vadd.f32 0.0, %v6504
      %v6506 = vpop.f32.mrf.mxu0
      %v6507 = vpop.f32.mrf.mxu0
      %v6508 = vadd.f32 0.0, %v6507
      %v6509 = vpop.f32.mrf.mxu0
      %6510 = vmatprep.mubr.bf16.mxu0 0
      %6511 = vmatmul.mubr.bf16.gmra.mxu0 %v6416
      %v6512 = vpop.f32.mrf.mxu0
      %v6513 = vadd.f32 0.0, %v6512
      %v6514 = vpop.f32.mrf.mxu0
      %v6515 = vpop.f32.mrf.mxu0
      %v6516 = vadd.f32 0.0, %v6515
      %v6517 = vpop.f32.mrf.mxu0
      %6518 = vmatprep.mubr.bf16.mxu0 0
      %6519 = vmatmul.mubr.bf16.gmra.mxu0 %v6419
      %v6520 = vpop.f32.mrf.mxu0
      %v6521 = vadd.f32 0.0, %v6520
      %v6522 = vpop.f32.mrf.mxu0
      %v6523 = vpop.f32.mrf.mxu0
      %v6524 = vadd.f32 0.0, %v6523
      %v6525 = vpop.f32.mrf.mxu0
      %6526 = vmatprep.mubr.bf16.mxu0 0
      %6527 = vmatmul.mubr.bf16.gmra.mxu0 %v6422
      %v6528 = vpop.f32.mrf.mxu0
      %v6529 = vadd.f32 0.0, %v6528
      %v6530 = vpop.f32.mrf.mxu0
      %v6531 = vpop.f32.mrf.mxu0
      %v6532 = vadd.f32 0.0, %v6531
      %v6533 = vpop.f32.mrf.mxu0
      %6534 = vmatprep.mubr.bf16.mxu0 0
      %6535 = vmatmul.mubr.bf16.gmra.mxu0 %v6425
      %v6536 = vpop.f32.mrf.mxu0
      %v6537 = vadd.f32 0.0, %v6536
      %v6538 = vpop.f32.mrf.mxu0
      %v6539 = vpop.f32.mrf.mxu0
      %v6540 = vadd.f32 0.0, %v6539
      %v6541 = vpop.f32.mrf.mxu0
      %6542 = vmatprep.mubr.bf16.mxu0 0
      %6543 = vmatmul.mubr.bf16.gmra.mxu0 %v6428
      %v6544 = vpop.f32.mrf.mxu0
      %v6545 = vadd.f32 0.0, %v6544
      %v6546 = vpop.f32.mrf.mxu0
      %v6547 = vpop.f32.mrf.mxu0
      %v6548 = vadd.f32 0.0, %v6547
      %v6549 = vpop.f32.mrf.mxu0
      %6550 = vmatprep.mubr.bf16.mxu0 0
      %6551 = vmatmul.mubr.bf16.gmra.mxu0 %v6431
      %v6552 = vpop.f32.mrf.mxu0
      %v6553 = vadd.f32 0.0, %v6552
      %v6554 = vpop.f32.mrf.mxu0
      %v6555 = vpop.f32.mrf.mxu0
      %v6556 = vadd.f32 0.0, %v6555
      %v6557 = vpop.f32.mrf.mxu0
      %6558 = vmatprep.mubr.bf16.mxu0 0
      %6559 = vmatmul.mubr.bf16.gmra.mxu0 %v6434
      %v6560 = vpop.f32.mrf.mxu0
      %v6561 = vadd.f32 0.0, %v6560
      %v6562 = vpop.f32.mrf.mxu0
      %v6563 = vpop.f32.mrf.mxu0
      %v6564 = vadd.f32 0.0, %v6563
      %v6565 = vpop.f32.mrf.mxu0
      %6566 = vmatprep.mubr.bf16.mxu0 0
      %6567 = vmatmul.mubr.bf16.gmra.mxu0 %v6437
      %v6568 = vpop.f32.mrf.mxu0
      %v6569 = vadd.f32 0.0, %v6568
      %v6570 = vpop.f32.mrf.mxu0
      %v6571 = vpop.f32.mrf.mxu0
      %v6572 = vadd.f32 0.0, %v6571
      %v6573 = vpop.f32.mrf.mxu0
      %6574 = vmatprep.mubr.bf16.mxu0 0
      %6575 = vmatmul.mubr.bf16.gmra.mxu0 %v6440
      %v6576 = vpop.f32.mrf.mxu0
      %v6577 = vadd.f32 0.0, %v6576
      %v6578 = vpop.f32.mrf.mxu0
      %v6579 = vpop.f32.mrf.mxu0
      %v6580 = vadd.f32 0.0, %v6579
      %v6581 = vpop.f32.mrf.mxu0
      %6582 = vmatprep.mubr.bf16.mxu0 0
      %6583 = vmatmul.mubr.bf16.gmra.mxu0 %v6443
      %v6584 = vpop.f32.mrf.mxu0
      %v6585 = vadd.f32 0.0, %v6584
      %v6586 = vpop.f32.mrf.mxu0
      %v6587 = vpop.f32.mrf.mxu0
      %v6588 = vadd.f32 0.0, %v6587
      %v6589 = vpop.f32.mrf.mxu0
      %6590 = vmatprep.mubr.bf16.mxu0 0
      %6591 = vmatmul.mubr.bf16.gmra.mxu0 %v6446
      %v6592 = vpop.f32.mrf.mxu0
      %v6593 = vadd.f32 0.0, %v6592
      %v6594 = vpop.f32.mrf.mxu0
      %v6595 = vpop.f32.mrf.mxu0
      %v6596 = vadd.f32 0.0, %v6595
      %v6597 = vpop.f32.mrf.mxu0
      %6598 = vmatprep.mubr.bf16.mxu0 0
      %6599 = vmatmul.mubr.bf16.gmra.mxu0 %v6449
      %v6600 = vpop.f32.mrf.mxu0
      %v6601 = vadd.f32 0.0, %v6600
      %v6602 = vpop.f32.mrf.mxu0
      %v6603 = vpop.f32.mrf.mxu0
      %v6604 = vadd.f32 0.0, %v6603
      %v6605 = vpop.f32.mrf.mxu0
      %6606 = vmatprep.mubr.bf16.mxu0 0
      %6607 = vmatmul.mubr.bf16.gmra.mxu0 %v6452
      %v6608 = vpop.f32.mrf.mxu0
      %v6609 = vadd.f32 0.0, %v6608
      %v6610 = vpop.f32.mrf.mxu0
      %v6611 = vpop.f32.mrf.mxu0
      %v6612 = vadd.f32 0.0, %v6611
      %v6613 = vpop.f32.mrf.mxu0
      %6614 = vdwg.mxu0
      %v6615 = vadd.f32 %v6293, %v6489
      %v6616 = vadd.f32 %v6294, %v6492
      %v6617 = vadd.f32 %v6295, %v6497
      %v6618 = vadd.f32 %v6296, %v6500
      %v6619 = vadd.f32 %v6297, %v6505
      %v6620 = vadd.f32 %v6298, %v6508
      %v6621 = vadd.f32 %v6299, %v6513
      %v6622 = vadd.f32 %v6300, %v6516
      %v6623 = vadd.f32 %v6301, %v6521
      %v6624 = vadd.f32 %v6302, %v6524
      %v6625 = vadd.f32 %v6303, %v6529
      %v6626 = vadd.f32 %v6304, %v6532
      %v6627 = vadd.f32 %v6305, %v6537
      %v6628 = vadd.f32 %v6306, %v6540
      %v6629 = vadd.f32 %v6307, %v6545
      %v6630 = vadd.f32 %v6308, %v6548
      %v6631 = vadd.f32 %v6309, %v6553
      %v6632 = vadd.f32 %v6310, %v6556
      %v6633 = vadd.f32 %v6311, %v6561
      %v6634 = vadd.f32 %v6312, %v6564
      %v6635 = vadd.f32 %v6313, %v6569
      %v6636 = vadd.f32 %v6314, %v6572
      %v6637 = vadd.f32 %v6315, %v6577
      %v6638 = vadd.f32 %v6316, %v6580
      %v6639 = vadd.f32 %v6317, %v6585
      %v6640 = vadd.f32 %v6318, %v6588
      %v6641 = vadd.f32 %v6319, %v6593
      %v6642 = vadd.f32 %v6320, %v6596
      %v6643 = vadd.f32 %v6321, %v6601
      %v6644 = vadd.f32 %v6322, %v6604
      %v6645 = vadd.f32 %v6323, %v6609
      %v6646 = vadd.f32 %v6324, %v6612
      %v6647 = vld [vmem:[%s6] sm:$0x1]
      %v6649 = vlaneseq
      %v6650 = vshrl.u32 %v6649, 7
      %v6651 = vsub.s32 0, %v6650
      %v6652 = vrot.slane %v6647, %v6651
      %v6654 = vadd.f32 %v6615, %v6652
      %v6655 = vadd.f32 %v6616, %v6652
      %v6656 = vadd.f32 %v6617, %v6652
      %v6657 = vadd.f32 %v6618, %v6652
      %v6658 = vadd.f32 %v6619, %v6652
      %v6659 = vadd.f32 %v6620, %v6652
      %v6660 = vadd.f32 %v6621, %v6652
      %v6661 = vadd.f32 %v6622, %v6652
      %v6662 = vadd.f32 %v6623, %v6652
      %v6663 = vadd.f32 %v6624, %v6652
      %v6664 = vadd.f32 %v6625, %v6652
      %v6665 = vadd.f32 %v6626, %v6652
      %v6666 = vadd.f32 %v6627, %v6652
      %v6667 = vadd.f32 %v6628, %v6652
      %v6668 = vadd.f32 %v6629, %v6652
      %v6669 = vadd.f32 %v6630, %v6652
      %v6670 = vadd.f32 %v6631, %v6652
      %v6671 = vadd.f32 %v6632, %v6652
      %v6672 = vadd.f32 %v6633, %v6652
      %v6673 = vadd.f32 %v6634, %v6652
      %v6674 = vadd.f32 %v6635, %v6652
      %v6675 = vadd.f32 %v6636, %v6652
      %v6676 = vadd.f32 %v6637, %v6652
      %v6677 = vadd.f32 %v6638, %v6652
      %v6678 = vadd.f32 %v6639, %v6652
      %v6679 = vadd.f32 %v6640, %v6652
      %v6680 = vadd.f32 %v6641, %v6652
      %v6681 = vadd.f32 %v6642, %v6652
      %v6682 = vadd.f32 %v6643, %v6652
      %v6683 = vadd.f32 %v6644, %v6652
      %v6684 = vadd.f32 %v6645, %v6652
      %v6685 = vadd.f32 %v6646, %v6652
      %v6686 = vmax.f32 %v6654, 0.0
      %v6687 = vmax.f32 %v6655, 0.0
      %v6688 = vmax.f32 %v6656, 0.0
      %v6689 = vmax.f32 %v6657, 0.0
      %v6690 = vmax.f32 %v6658, 0.0
      %v6691 = vmax.f32 %v6659, 0.0
      %v6692 = vmax.f32 %v6660, 0.0
      %v6693 = vmax.f32 %v6661, 0.0
      %v6694 = vmax.f32 %v6662, 0.0
      %v6695 = vmax.f32 %v6663, 0.0
      %v6696 = vmax.f32 %v6664, 0.0
      %v6697 = vmax.f32 %v6665, 0.0
      %v6698 = vmax.f32 %v6666, 0.0
      %v6699 = vmax.f32 %v6667, 0.0
      %v6700 = vmax.f32 %v6668, 0.0
      %v6701 = vmax.f32 %v6669, 0.0
      %v6702 = vmax.f32 %v6670, 0.0
      %v6703 = vmax.f32 %v6671, 0.0
      %v6704 = vmax.f32 %v6672, 0.0
      %v6705 = vmax.f32 %v6673, 0.0
      %v6706 = vmax.f32 %v6674, 0.0
      %v6707 = vmax.f32 %v6675, 0.0
      %v6708 = vmax.f32 %v6676, 0.0
      %v6709 = vmax.f32 %v6677, 0.0
      %v6710 = vmax.f32 %v6678, 0.0
      %v6711 = vmax.f32 %v6679, 0.0
      %v6712 = vmax.f32 %v6680, 0.0
      %v6713 = vmax.f32 %v6681, 0.0
      %v6714 = vmax.f32 %v6682, 0.0
      %v6715 = vmax.f32 %v6683, 0.0
      %v6716 = vmax.f32 %v6684, 0.0
      %v6717 = vmax.f32 %v6685, 0.0
      %v6718 = vpack.c.bf16 %v6687, %v6686
      %v6719 = vpack.c.bf16 %v6689, %v6688
      %v6720 = vpack.c.bf16 %v6691, %v6690
      %v6721 = vpack.c.bf16 %v6693, %v6692
      %v6722 = vpack.c.bf16 %v6695, %v6694
      %v6723 = vpack.c.bf16 %v6697, %v6696
      %v6724 = vpack.c.bf16 %v6699, %v6698
      %v6725 = vpack.c.bf16 %v6701, %v6700
      %v6726 = vpack.c.bf16 %v6703, %v6702
      %v6727 = vpack.c.bf16 %v6705, %v6704
      %v6728 = vpack.c.bf16 %v6707, %v6706
      %v6729 = vpack.c.bf16 %v6709, %v6708
      %v6730 = vpack.c.bf16 %v6711, %v6710
      %v6731 = vpack.c.bf16 %v6713, %v6712
      %v6732 = vpack.c.bf16 %v6715, %v6714
      %v6733 = vpack.c.bf16 %v6717, %v6716
      %v6750 = vunpack.c.l.b16 %v6718
      %v6751 = vunpack.c.h.b16 %v6718
      %v6752 = vunpack.c.l.b16 %v6719
      %v6753 = vunpack.c.h.b16 %v6719
      %v6754 = vunpack.c.l.b16 %v6720
      %v6755 = vunpack.c.h.b16 %v6720
      %v6756 = vunpack.c.l.b16 %v6721
      %v6757 = vunpack.c.h.b16 %v6721
      %v6758 = vunpack.c.l.b16 %v6722
      %v6759 = vunpack.c.h.b16 %v6722
      %v6760 = vunpack.c.l.b16 %v6723
      %v6761 = vunpack.c.h.b16 %v6723
      %v6762 = vunpack.c.l.b16 %v6724
      %v6763 = vunpack.c.h.b16 %v6724
      %v6764 = vunpack.c.l.b16 %v6725
      %v6765 = vunpack.c.h.b16 %v6725
      %v6766 = vunpack.c.l.b16 %v6726
      %v6767 = vunpack.c.h.b16 %v6726
      %v6768 = vunpack.c.l.b16 %v6727
      %v6769 = vunpack.c.h.b16 %v6727
      %v6770 = vunpack.c.l.b16 %v6728
      %v6771 = vunpack.c.h.b16 %v6728
      %v6772 = vunpack.c.l.b16 %v6729
      %v6773 = vunpack.c.h.b16 %v6729
      %v6774 = vunpack.c.l.b16 %v6730
      %v6775 = vunpack.c.h.b16 %v6730
      %v6776 = vunpack.c.l.b16 %v6731
      %v6777 = vunpack.c.h.b16 %v6731
      %v6778 = vunpack.c.l.b16 %v6732
      %v6779 = vunpack.c.h.b16 %v6732
      %v6780 = vunpack.c.l.b16 %v6733
      %v6781 = vunpack.c.h.b16 %v6733
      %v6782 = vpack.c.b16 %v6750, %v6750
      %v6783 = vpack.c.b16 %v6751, %v6751
      %v6784 = vpack.c.b16 %v6752, %v6752
      %v6785 = vpack.c.b16 %v6753, %v6753
      %v6786 = vpack.c.b16 %v6754, %v6754
      %v6787 = vpack.c.b16 %v6755, %v6755
      %v6788 = vpack.c.b16 %v6756, %v6756
      %v6789 = vpack.c.b16 %v6757, %v6757
      %v6790 = vpack.c.b16 %v6758, %v6758
      %v6791 = vpack.c.b16 %v6759, %v6759
      %v6792 = vpack.c.b16 %v6760, %v6760
      %v6793 = vpack.c.b16 %v6761, %v6761
      %v6794 = vpack.c.b16 %v6762, %v6762
      %v6795 = vpack.c.b16 %v6763, %v6763
      %v6796 = vpack.c.b16 %v6764, %v6764
      %v6797 = vpack.c.b16 %v6765, %v6765
      %v6798 = vpack.c.b16 %v6766, %v6766
      %v6799 = vpack.c.b16 %v6767, %v6767
      %v6800 = vpack.c.b16 %v6768, %v6768
      %v6801 = vpack.c.b16 %v6769, %v6769
      %v6802 = vpack.c.b16 %v6770, %v6770
      %v6803 = vpack.c.b16 %v6771, %v6771
      %v6804 = vpack.c.b16 %v6772, %v6772
      %v6805 = vpack.c.b16 %v6773, %v6773
      %v6806 = vpack.c.b16 %v6774, %v6774
      %v6807 = vpack.c.b16 %v6775, %v6775
      %v6808 = vpack.c.b16 %v6776, %v6776
      %v6809 = vpack.c.b16 %v6777, %v6777
      %v6810 = vpack.c.b16 %v6778, %v6778
      %v6811 = vpack.c.b16 %v6779, %v6779
      %v6812 = vpack.c.b16 %v6780, %v6780
      %v6813 = vpack.c.b16 %v6781, %v6781
      %vm6846 = vcmask 519168
      %6847 = vst.msk [vmem:[%s278] sm:$0xf] %vm6846, %v6782
      %6848 = vst.msk [vmem:[%s278 + $0x4] sm:$0xf] %vm6846, %v6783
      %6849 = vst.msk [vmem:[%s278 + $0x8] sm:$0xf] %vm6846, %v6784
      %6850 = vst.msk [vmem:[%s278 + $0xc] sm:$0xf] %vm6846, %v6785
      %6851 = vst.msk [vmem:[%s278 + $0x10] sm:$0xf] %vm6846, %v6786
      %6852 = vst.msk [vmem:[%s278 + $0x14] sm:$0xf] %vm6846, %v6787
      %6853 = vst.msk [vmem:[%s278 + $0x18] sm:$0xf] %vm6846, %v6788
      %6854 = vst.msk [vmem:[%s278 + $0x1c] sm:$0xf] %vm6846, %v6789
      %6855 = vst.msk [vmem:[%s278 + $0x20] sm:$0xf] %vm6846, %v6790
      %6856 = vst.msk [vmem:[%s278 + $0x24] sm:$0xf] %vm6846, %v6791
      %6857 = vst.msk [vmem:[%s278 + $0x28] sm:$0xf] %vm6846, %v6792
      %6858 = vst.msk [vmem:[%s278 + $0x2c] sm:$0xf] %vm6846, %v6793
      %6859 = vst.msk [vmem:[%s278 + $0x30] sm:$0xf] %vm6846, %v6794
      %6860 = vst.msk [vmem:[%s278 + $0x34] sm:$0xf] %vm6846, %v6795
      %6861 = vst.msk [vmem:[%s278 + $0x38] sm:$0xf] %vm6846, %v6796
      %6862 = vst.msk [vmem:[%s278 + $0x3c] sm:$0xf] %vm6846, %v6797
      %6863 = vst.msk [vmem:[%s278 + $0x40] sm:$0xf] %vm6846, %v6798
      %6864 = vst.msk [vmem:[%s278 + $0x44] sm:$0xf] %vm6846, %v6799
      %6865 = vst.msk [vmem:[%s278 + $0x48] sm:$0xf] %vm6846, %v6800
      %6866 = vst.msk [vmem:[%s278 + $0x4c] sm:$0xf] %vm6846, %v6801
      %6867 = vst.msk [vmem:[%s278 + $0x50] sm:$0xf] %vm6846, %v6802
      %6868 = vst.msk [vmem:[%s278 + $0x54] sm:$0xf] %vm6846, %v6803
      %6869 = vst.msk [vmem:[%s278 + $0x58] sm:$0xf] %vm6846, %v6804
      %6870 = vst.msk [vmem:[%s278 + $0x5c] sm:$0xf] %vm6846, %v6805
      %6871 = vst.msk [vmem:[%s278 + $0x60] sm:$0xf] %vm6846, %v6806
      %6872 = vst.msk [vmem:[%s278 + $0x64] sm:$0xf] %vm6846, %v6807
      %6873 = vst.msk [vmem:[%s278 + $0x68] sm:$0xf] %vm6846, %v6808
      %6874 = vst.msk [vmem:[%s278 + $0x6c] sm:$0xf] %vm6846, %v6809
      %6875 = vst.msk [vmem:[%s278 + $0x70] sm:$0xf] %vm6846, %v6810
      %6876 = vst.msk [vmem:[%s278 + $0x74] sm:$0xf] %vm6846, %v6811
      %6877 = vst.msk [vmem:[%s278 + $0x78] sm:$0xf] %vm6846, %v6812
      %6878 = vst.msk [vmem:[%s278 + $0x7c] sm:$0xf] %vm6846, %v6813
      %p6879 = scmp.lt.s32.totalorder %s18, 1
      %s6880 = scalar_select %p6879, %s18, 1
      %s6881 = smul.addr %s6880, 32
      %s6882 = smul.addr %s6881, 4
      %s6883 = scalar_lea.vmem %s7, %s6882
      // Predicated region
      $region49: #{patch_embed4_2_forward.2} parent=47 // pred_check
        %p6884 = pneg %p188
      $region50: #{patch_embed4_2_forward.2} parent=47 // pred_check_branch
        %6886 = sbr.rel (%p6884) target = $region52
      $region51: #{patch_embed4_2_forward.2} parent=47 // pred_region
        _
      $region52: #{patch_embed4_2_forward.2} parent=47 // pred_fallthru
        _
    $region48: #{patch_embed4_2_forward.2} parent=5 // pred_fallthru
      _
    %p6887 = scmp.le.s32.totalorder 2, %s13
    // Predicated region
    $region53: #{patch_embed4_2_forward.2} parent=5 // pred_check
      %p6888 = pneg %p6887
    $region54: #{patch_embed4_2_forward.2} parent=5 // pred_check_branch
      %6890 = sbr.rel (%p6888) target = $region56
    $region55: #{patch_embed4_2_forward.2} parent=5 // pred_region
      %s6891 = ssub.s32 %s13, 2
      // Predicated region
      $region57: #{patch_embed4_2_forward.2} parent=55 // pred_check
        %p6892 = pneg %p194
      $region58: #{patch_embed4_2_forward.2} parent=55 // pred_check_branch
        %6894 = sbr.rel (%p6892) target = $region60
      $region59: #{patch_embed4_2_forward.2} parent=55 // pred_region
        %p6895 = scmp.lt.s32.totalorder %s19, 1
        %s6896 = scalar_select %p6895, %s19, 1
        %s6897 = smul.addr %s6896, 32
        %s6898 = smul.addr %s6897, 4
        %s6899 = scalar_lea.vmem %s7, %s6898
      $region60: #{patch_embed4_2_forward.2} parent=55 // pred_fallthru
        _
    $region56: #{patch_embed4_2_forward.2} parent=5 // pred_fallthru
      _
  $region6: #{patch_embed4_2_forward.2} parent=0 // loop_footer
    %s17 = sadd.s32 1, %s13
  $region7: #{patch_embed4_2_forward.2} parent=0 // loop_footer_branch
    %12 = sbr.rel target = $region3
  $region8: #{patch_embed4_2_forward.2} parent=0 // loop_exit
    _

</llo_original>
